<compile_context>
chip_gen: v7x
topology: tpu7x:2x2x1
jax: 0.10.0
libtpu: 0.0.40
codegen_flags: <defaults>
</compile_context>

<pallas_src>
import functools

import jax
import jax.numpy as jnp
from jax.experimental import pallas as pl
from jax.experimental.pallas import tpu as pltpu


def scorenet_kernel(
    # streamed per-batch inputs
    x_ref,                       # (1, n, 8)  padded xyz, f32
    c_ref,                       # (1, 1, Z)  latent code, f32
    # grid-invariant head weights
    basis_ref,                   # (8, P)     sinusoid basis, f32
    pews_ref, pewc_ref,          # (P, Z)     PointEmbed linear (sin / cos rows), f32
    pewx_ref,                    # (8, Z)     PointEmbed linear (xyz rows, padded), f32
    peb_ref,                     # (1, Z)     f32
    wppe_ref,                    # (Z, H)     conv_p, pe half, bf16
    wpc_ref,                     # (Z, H)     conv_p, latent half, f32 (M=1 dot)
    bp_ref,                      # (1, H)     f32
    # per-block weights (streamed along the block grid axis)
    bn1s_ref, bn1t_ref,          # (1, 1, H)  folded BN, f32
    w1_ref, b1_ref,              # (1, H, H) bf16, (1, 1, H) f32
    bn2s_ref, bn2t_ref,
    w2_ref, b2_ref,
    wse1_ref, bse1_ref,          # (1, H, Hi) f32, (1, 1, Hi) f32   (M=1 dots)
    wse2_ref, bse2_ref,          # (1, Hi, H) f32, (1, 1, H) f32
    wrpe_ref,                    # (1, Z, H)  residual_conv, pe half, bf16
    wrc_ref,                     # (1, Z, H)  residual_conv, latent half, f32
    bres_ref,                    # (1, 1, H)  f32
    # grid-invariant tail weights
    bnos_ref, bnot_ref,          # (1, H)     folded bn_out, f32
    wout_ref,                    # (H, Do+1)  conv_out in cols [:Do], col Do = 0, bf16
    bnfs_ref, bnft_ref,          # (1, H)     folded fusion BN, f32
    wf_ref,                      # (H, Do+1)  fusion conv in col Do, rest 0, bf16
    btail_ref,                   # (1, Do+1)  [b_out, b_fusion], f32
    # output
    out_ref,                     # (1, n, Do+1) packed, f32
    # scratch (persist across the block grid axis)
    pe_sc,                       # VMEM (n, Z) f32
    net_sc,                      # VMEM (n, H) f32
    *, inv_n,
):
    i = pl.program_id(1)
    bf16 = jnp.bfloat16
    f32 = jnp.float32

    cvec = c_ref[0]                                              # (1, Z)

    @pl.when(i == 0)
    def _init():
        # PointEmbed, fully in-kernel (sin/cos on the EUP, tiny MXU dots).
        x = x_ref[0]                                             # (n, 8)
        proj = jnp.dot(x, basis_ref[...], preferred_element_type=f32)
        pe = (jnp.dot(jnp.sin(proj), pews_ref[...], preferred_element_type=f32)
              + jnp.dot(jnp.cos(proj), pewc_ref[...], preferred_element_type=f32)
              + jnp.dot(x, pewx_ref[...], preferred_element_type=f32)
              + peb_ref[...])                                    # (n, Z)
        pe_sc[...] = pe
        # conv_p([pe ; broadcast(c)]): the latent half collapses to a (1,H) row.
        net_sc[...] = (jnp.dot(pe.astype(bf16), wppe_ref[...],
                               preferred_element_type=f32)
                       + jnp.dot(cvec, wpc_ref[...], preferred_element_type=f32)
                       + bp_ref[...])

    net = net_sc[...]                                            # (n, H)
    pe = pe_sc[...]                                              # (n, Z)

    # ---------------- ResnetBlockC for block i ----------------
    # Block 1: proj(relu(bn(x)))
    h = jax.nn.relu(net * bn1s_ref[0] + bn1t_ref[0])
    h = jnp.dot(h.astype(bf16), w1_ref[0], preferred_element_type=f32) + b1_ref[0]
    # Block 2
    h = jax.nn.relu(h * bn2s_ref[0] + bn2t_ref[0])
    h = jnp.dot(h.astype(bf16), w2_ref[0], preferred_element_type=f32) + b2_ref[0]

    # SqueezeExcite (no mask): mean over the full point set -> MLP -> gate.
    avg = jnp.sum(h, axis=0, keepdims=True) * inv_n              # (1, H)
    g = jnp.dot(avg, wse1_ref[0], preferred_element_type=f32) + bse1_ref[0]
    g = g * jax.nn.sigmoid(g)                                    # SiLU
    g = jnp.dot(g, wse2_ref[0], preferred_element_type=f32) + bse2_ref[0]
    h = h * jax.nn.sigmoid(g)

    # residual_conv(c_xyz) = pe part (per point) + latent part ((1, H) row).
    res = (jnp.dot(pe.astype(bf16), wrpe_ref[0], preferred_element_type=f32)
           + jnp.dot(cvec, wrc_ref[0], preferred_element_type=f32)
           + bres_ref[0])

    net = net + h + res                                          # identity shortcut
    net_sc[...] = net

    @pl.when(i == pl.num_programs(1) - 1)
    def _tail():
        # Fused conv_out + fusion_weight tail: single packed (n, Do+1) store
        # stream instead of separate 3-lane and 1-lane masked stores.
        a = jax.nn.relu(net * bnos_ref[...] + bnot_ref[...])
        f = jax.nn.relu(net * bnfs_ref[...] + bnft_ref[...])
        packed = (jnp.dot(a.astype(bf16), wout_ref[...], preferred_element_type=f32)
                  + jnp.dot(f.astype(bf16), wf_ref[...], preferred_element_type=f32)
                  + btail_ref[...])                              # (n, Do+1)
        lane = jax.lax.broadcasted_iota(jnp.int32, packed.shape, 1)
        out_ref[0] = jnp.where(lane == packed.shape[-1] - 1,
                               jax.nn.sigmoid(packed), packed)


def init_params(key, *, z_dim, dim, out_dim, hidden, num_blocks):
    assert dim == 3, "PointEmbed basis assumes 3-D points"
    assert num_blocks >= 1
    eps = 1e-5
    hi = max(hidden // 4, 16)                 # SqueezeExcite inner dim
    pe_hidden = 48                            # PointEmbed default
    kf = pe_hidden // 6                       # 8 frequencies per axis
    half = pe_hidden // 2                     # 24
    d_pad = 8                                 # xyz zero-padded to 8 channels
    bf16 = jnp.bfloat16

    freqs = (2.0 ** jnp.arange(kf, dtype=jnp.float32)) * jnp.pi
    basis = jnp.zeros((d_pad, half), jnp.float32)
    for ax in range(3):
        basis = basis.at[ax, ax * kf:(ax + 1) * kf].set(freqs)   # (8, 24)

    ks = iter(jax.random.split(key, 64))

    def w(shape, scale=0.1):
        return scale * jax.random.normal(next(ks), shape, jnp.float32)

    # PointEmbed linear: Linear(48 + 3, z_dim) split into sin / cos / xyz rows.
    pe_w = w((pe_hidden + 3, z_dim))
    pew_x = jnp.zeros((d_pad, z_dim), jnp.float32).at[:3].set(pe_w[pe_hidden:])

    # BatchNorm folded (eval mode, fresh-init stats: mean=0, var=1, g=1, b=0).
    s1 = jnp.full((1, hidden), 1.0 / jnp.sqrt(1.0 + eps), jnp.float32)
    t1 = jnp.zeros((1, hidden), jnp.float32)
    s_nb = jnp.tile(s1[None], (num_blocks, 1, 1))
    t_nb = jnp.tile(t1[None], (num_blocks, 1, 1))

    # conv_p / residual_conv split into [pe rows ; latent rows].
    wp = w((2 * z_dim, hidden))
    wres = w((num_blocks, 2 * z_dim, hidden))

    # Packed output tail: (H, out_dim+1); conv_out in cols [:out_dim],
    # fusion conv in the last column.
    wout = w((hidden, out_dim))
    wfuse = w((hidden, 1))
    wout_pad = jnp.concatenate([wout, jnp.zeros((hidden, 1), jnp.float32)], axis=1)
    wf_pad = jnp.concatenate([jnp.zeros((hidden, out_dim), jnp.float32), wfuse], axis=1)
    btail = jnp.concatenate([w((1, out_dim), 0.01), w((1, 1), 0.01)], axis=1)

    return dict(
        basis=basis,
        pew_sin=pe_w[:half],
        pew_cos=pe_w[half:pe_hidden],
        pew_x=pew_x,
        peb=w((1, z_dim), 0.01),
        wp_pe=wp[:z_dim].astype(bf16),
        wp_c=wp[z_dim:],
        bp=w((1, hidden), 0.01),
        bn1_s=s_nb, bn1_t=t_nb,
        w1=w((num_blocks, hidden, hidden)).astype(bf16),
        b1=w((num_blocks, 1, hidden), 0.01),
        bn2_s=s_nb, bn2_t=t_nb,
        w2=w((num_blocks, hidden, hidden)).astype(bf16),
        b2=w((num_blocks, 1, hidden), 0.01),
        wse1=w((num_blocks, hidden, hi)),
        bse1=w((num_blocks, 1, hi), 0.01),
        wse2=w((num_blocks, hi, hidden)),
        bse2=w((num_blocks, 1, hidden), 0.01),
        wres_pe=wres[:, :z_dim].astype(bf16),
        wres_c=wres[:, z_dim:],
        bres=w((num_blocks, 1, hidden), 0.01),
        bno_s=s1, bno_t=t1,
        bnf_s=s1, bnf_t=t1,
        wout=wout_pad.astype(bf16),
        wf=wf_pad.astype(bf16),
        btail=btail,
    )


def scorenet_forward(x, c, params, *, num_blocks):
    """x: (B, n, 3) coordinates, c: (B, z_dim) latent.  Returns (out, fusion_w)."""
    B, n, d = x.shape
    z = c.shape[-1]
    hidden = params["bp"].shape[-1]
    dp1 = params["btail"].shape[-1]           # out_dim + 1
    out_dim = dp1 - 1
    d_pad = params["basis"].shape[0]

    # Stream only raw coordinates (padded 3 -> 8 channels) and the latent.
    x_pad = jnp.zeros((B, n, d_pad), jnp.float32).at[..., :d].set(
        x.astype(jnp.float32))
    c3 = c.reshape(B, 1, z).astype(jnp.float32)

    head_names = ["basis", "pew_sin", "pew_cos", "pew_x", "peb",
                  "wp_pe", "wp_c", "bp"]
    block_names = ["bn1_s", "bn1_t", "w1", "b1",
                   "bn2_s", "bn2_t", "w2", "b2",
                   "wse1", "bse1", "wse2", "bse2",
                   "wres_pe", "wres_c", "bres"]
    tail_names = ["bno_s", "bno_t", "wout", "bnf_s", "bnf_t", "wf", "btail"]

    head_w = [params[k] for k in head_names]
    block_w = [params[k] for k in block_names]
    tail_w = [params[k] for k in tail_names]

    def invariant(a):
        # Grid-invariant weight: fetched once, stays resident.
        return pl.BlockSpec(a.shape, lambda b, i, _nd=a.ndim: (0,) * _nd)

    def per_block(a):
        # Streamed along the block grid axis (one block's weights resident).
        return pl.BlockSpec((1,) + a.shape[1:], lambda b, i: (i, 0, 0))

    in_specs = (
        [pl.BlockSpec((1, n, d_pad), lambda b, i: (b, 0, 0)),    # x
         pl.BlockSpec((1, 1, z), lambda b, i: (b, 0, 0))]        # c
        + [invariant(a) for a in head_w]
        + [per_block(a) for a in block_w]
        + [invariant(a) for a in tail_w]
    )
    out_specs = pl.BlockSpec((1, n, dp1), lambda b, i: (b, 0, 0))
    out_shape = jax.ShapeDtypeStruct((B, n, dp1), jnp.float32)

    kernel = functools.partial(scorenet_kernel, inv_n=1.0 / n)
    packed = pl.pallas_call(
        kernel,
        out_shape=out_shape,
        grid_spec=pltpu.PrefetchScalarGridSpec(
            num_scalar_prefetch=0,
            grid=(B, num_blocks),
            in_specs=in_specs,
            out_specs=out_specs,
            scratch_shapes=[pltpu.VMEM((n, z), jnp.float32),       # pe
                            pltpu.VMEM((n, hidden), jnp.float32)],  # net
        ),
        compiler_params=pltpu.CompilerParams(
            dimension_semantics=("parallel", "arbitrary"),
            vmem_limit_bytes=48 * 1024 * 1024,
        ),
    )(x_pad, c3, *head_w, *block_w, *tail_w)

    return packed[..., :out_dim], packed[..., out_dim:]


if __name__ == "__main__":
    # Small, shape-consistent config:
    z_dim, dim, out_dim, hidden_size, num_blocks = 32, 3, 3, 64, 2
    B, n = 2, 128

    key = jax.random.PRNGKey(0)
    kx, kc, kp = jax.random.split(key, 3)
    x = jax.random.normal(kx, (B, n, dim), jnp.float32)   # (B, n, d) coordinates
    c = jax.random.normal(kc, (B, z_dim), jnp.float32)    # (B, C) latent code
    params = init_params(kp, z_dim=z_dim, dim=dim, out_dim=out_dim,
                         hidden=hidden_size, num_blocks=num_blocks)

    out, fw = scorenet_forward(x, c, params, num_blocks=num_blocks)
    jax.block_until_ready((out, fw))
    assert out.shape == (B, n, out_dim)
    assert fw.shape == (B, n, 1)
    assert bool(jnp.all(jnp.isfinite(out))) and bool(jnp.all(jnp.isfinite(fw)))
    print("KERNEL_OK")
</pallas_src>

<mosaic_0001>
module attributes {stable_mosaic.version = 11 : i64} {
  func.func @scorenet_kernel(%arg0: i32, %arg1: i32, %arg2: memref<1x128x8xf32, #tpu.memory_space<vmem>>, %arg3: memref<1x1x32xf32, #tpu.memory_space<vmem>>, %arg4: memref<8x24xf32, #tpu.memory_space<vmem>>, %arg5: memref<24x32xf32, #tpu.memory_space<vmem>>, %arg6: memref<24x32xf32, #tpu.memory_space<vmem>>, %arg7: memref<8x32xf32, #tpu.memory_space<vmem>>, %arg8: memref<1x32xf32, #tpu.memory_space<vmem>>, %arg9: memref<32x64xbf16, #tpu.memory_space<vmem>>, %arg10: memref<32x64xf32, #tpu.memory_space<vmem>>, %arg11: memref<1x64xf32, #tpu.memory_space<vmem>>, %arg12: memref<1x1x64xf32, #tpu.memory_space<vmem>>, %arg13: memref<1x1x64xf32, #tpu.memory_space<vmem>>, %arg14: memref<1x64x64xbf16, #tpu.memory_space<vmem>>, %arg15: memref<1x1x64xf32, #tpu.memory_space<vmem>>, %arg16: memref<1x1x64xf32, #tpu.memory_space<vmem>>, %arg17: memref<1x1x64xf32, #tpu.memory_space<vmem>>, %arg18: memref<1x64x64xbf16, #tpu.memory_space<vmem>>, %arg19: memref<1x1x64xf32, #tpu.memory_space<vmem>>, %arg20: memref<1x64x16xf32, #tpu.memory_space<vmem>>, %arg21: memref<1x1x16xf32, #tpu.memory_space<vmem>>, %arg22: memref<1x16x64xf32, #tpu.memory_space<vmem>>, %arg23: memref<1x1x64xf32, #tpu.memory_space<vmem>>, %arg24: memref<1x32x64xbf16, #tpu.memory_space<vmem>>, %arg25: memref<1x32x64xf32, #tpu.memory_space<vmem>>, %arg26: memref<1x1x64xf32, #tpu.memory_space<vmem>>, %arg27: memref<1x64xf32, #tpu.memory_space<vmem>>, %arg28: memref<1x64xf32, #tpu.memory_space<vmem>>, %arg29: memref<64x4xbf16, #tpu.memory_space<vmem>>, %arg30: memref<1x64xf32, #tpu.memory_space<vmem>>, %arg31: memref<1x64xf32, #tpu.memory_space<vmem>>, %arg32: memref<64x4xbf16, #tpu.memory_space<vmem>>, %arg33: memref<1x4xf32, #tpu.memory_space<vmem>>, %arg34: memref<1x128x4xf32, #tpu.memory_space<vmem>>, %arg35: memref<128x32xf32, #tpu.memory_space<vmem>>, %arg36: memref<128x64xf32, #tpu.memory_space<vmem>>) attributes {dimension_semantics = [#tpu.dimension_semantics<parallel>, #tpu.dimension_semantics<arbitrary>], iteration_bounds = array<i64: 2, 2>, scalar_prefetch = 0 : i64, scratch_operands = 2 : i64, tpu.core_type = #tpu.core_type<tc>, window_params = [{transform_indices = @transform_0, window_bounds = array<i64: 1, 128, 8>}, {transform_indices = @transform_1, window_bounds = array<i64: 1, 1, 32>}, {pipeline_mode = #tpu.pipeline_mode<synchronous>, transform_indices = @transform_2, window_bounds = array<i64: 8, 24>}, {pipeline_mode = #tpu.pipeline_mode<synchronous>, transform_indices = @transform_3, window_bounds = array<i64: 24, 32>}, {pipeline_mode = #tpu.pipeline_mode<synchronous>, transform_indices = @transform_4, window_bounds = array<i64: 24, 32>}, {pipeline_mode = #tpu.pipeline_mode<synchronous>, transform_indices = @transform_5, window_bounds = array<i64: 8, 32>}, {pipeline_mode = #tpu.pipeline_mode<synchronous>, transform_indices = @transform_6, window_bounds = array<i64: 1, 32>}, {pipeline_mode = #tpu.pipeline_mode<synchronous>, transform_indices = @transform_7, window_bounds = array<i64: 32, 64>}, {pipeline_mode = #tpu.pipeline_mode<synchronous>, transform_indices = @transform_8, window_bounds = array<i64: 32, 64>}, {pipeline_mode = #tpu.pipeline_mode<synchronous>, transform_indices = @transform_9, window_bounds = array<i64: 1, 64>}, {transform_indices = @transform_10, window_bounds = array<i64: 1, 1, 64>}, {transform_indices = @transform_11, window_bounds = array<i64: 1, 1, 64>}, {transform_indices = @transform_12, window_bounds = array<i64: 1, 64, 64>}, {transform_indices = @transform_13, window_bounds = array<i64: 1, 1, 64>}, {transform_indices = @transform_14, window_bounds = array<i64: 1, 1, 64>}, {transform_indices = @transform_15, window_bounds = array<i64: 1, 1, 64>}, {transform_indices = @transform_16, window_bounds = array<i64: 1, 64, 64>}, {transform_indices = @transform_17, window_bounds = array<i64: 1, 1, 64>}, {transform_indices = @transform_18, window_bounds = array<i64: 1, 64, 16>}, {transform_indices = @transform_19, window_bounds = array<i64: 1, 1, 16>}, {transform_indices = @transform_20, window_bounds = array<i64: 1, 16, 64>}, {transform_indices = @transform_21, window_bounds = array<i64: 1, 1, 64>}, {transform_indices = @transform_22, window_bounds = array<i64: 1, 32, 64>}, {transform_indices = @transform_23, window_bounds = array<i64: 1, 32, 64>}, {transform_indices = @transform_24, window_bounds = array<i64: 1, 1, 64>}, {pipeline_mode = #tpu.pipeline_mode<synchronous>, transform_indices = @transform_25, window_bounds = array<i64: 1, 64>}, {pipeline_mode = #tpu.pipeline_mode<synchronous>, transform_indices = @transform_26, window_bounds = array<i64: 1, 64>}, {pipeline_mode = #tpu.pipeline_mode<synchronous>, transform_indices = @transform_27, window_bounds = array<i64: 64, 4>}, {pipeline_mode = #tpu.pipeline_mode<synchronous>, transform_indices = @transform_28, window_bounds = array<i64: 1, 64>}, {pipeline_mode = #tpu.pipeline_mode<synchronous>, transform_indices = @transform_29, window_bounds = array<i64: 1, 64>}, {pipeline_mode = #tpu.pipeline_mode<synchronous>, transform_indices = @transform_30, window_bounds = array<i64: 64, 4>}, {pipeline_mode = #tpu.pipeline_mode<synchronous>, transform_indices = @transform_31, window_bounds = array<i64: 1, 4>}, {transform_indices = @transform_32, window_bounds = array<i64: 1, 128, 4>}]} {
    %c0 = arith.constant 0 : index
    %c0_0 = arith.constant 0 : index
    %c0_1 = arith.constant 0 : index
    %0 = vector.load %arg3[%c0, %c0_0, %c0_1] : memref<1x1x32xf32, #tpu.memory_space<vmem>>, vector<1x1x32xf32>
    %1 = vector.shape_cast %0 : vector<1x1x32xf32> to vector<1x32xf32>
    %c0_i32 = arith.constant 0 : i32
    %2 = arith.cmpi eq, %arg1, %c0_i32 : i32
    %3 = arith.extui %2 : i1 to i32
    %c0_i32_2 = arith.constant 0 : i32
    %4 = arith.cmpi ne, %3, %c0_i32_2 : i32
    scf.if %4 {
      %c0_66 = arith.constant 0 : index
      %c0_67 = arith.constant 0 : index
      %c0_68 = arith.constant 0 : index
      %91 = vector.load %arg2[%c0_66, %c0_67, %c0_68] : memref<1x128x8xf32, #tpu.memory_space<vmem>>, vector<1x128x8xf32>
      %92 = vector.shape_cast %91 : vector<1x128x8xf32> to vector<128x8xf32>
      %c0_69 = arith.constant 0 : index
      %c0_70 = arith.constant 0 : index
      %93 = vector.load %arg4[%c0_69, %c0_70] : memref<8x24xf32, #tpu.memory_space<vmem>>, vector<8x24xf32>
      %cst_71 = arith.constant dense<0.000000e+00> : vector<128x24xf32>
      %94 = tpu.matmul %92, %93, %cst_71 {dimension_numbers = #tpu.dot_dimension_numbers<[1], [0], [0], [1], [0, 0, 1, 1], [], []>} : vector<128x8xf32>, vector<8x24xf32>, vector<128x24xf32> -> vector<128x24xf32>
      %95 = math.sin %94 : vector<128x24xf32>
      %c0_72 = arith.constant 0 : index
      %c0_73 = arith.constant 0 : index
      %96 = vector.load %arg5[%c0_72, %c0_73] : memref<24x32xf32, #tpu.memory_space<vmem>>, vector<24x32xf32>
      %cst_74 = arith.constant dense<0.000000e+00> : vector<128x32xf32>
      %97 = tpu.matmul %95, %96, %cst_74 {dimension_numbers = #tpu.dot_dimension_numbers<[1], [0], [0], [1], [0, 0, 1, 1], [], []>} : vector<128x24xf32>, vector<24x32xf32>, vector<128x32xf32> -> vector<128x32xf32>
      %98 = math.cos %94 : vector<128x24xf32>
      %c0_75 = arith.constant 0 : index
      %c0_76 = arith.constant 0 : index
      %99 = vector.load %arg6[%c0_75, %c0_76] : memref<24x32xf32, #tpu.memory_space<vmem>>, vector<24x32xf32>
      %cst_77 = arith.constant dense<0.000000e+00> : vector<128x32xf32>
      %100 = tpu.matmul %98, %99, %cst_77 {dimension_numbers = #tpu.dot_dimension_numbers<[1], [0], [0], [1], [0, 0, 1, 1], [], []>} : vector<128x24xf32>, vector<24x32xf32>, vector<128x32xf32> -> vector<128x32xf32>
      %101 = arith.addf %97, %100 : vector<128x32xf32>
      %c0_78 = arith.constant 0 : index
      %c0_79 = arith.constant 0 : index
      %102 = vector.load %arg7[%c0_78, %c0_79] : memref<8x32xf32, #tpu.memory_space<vmem>>, vector<8x32xf32>
      %cst_80 = arith.constant dense<0.000000e+00> : vector<128x32xf32>
      %103 = tpu.matmul %92, %102, %cst_80 {dimension_numbers = #tpu.dot_dimension_numbers<[1], [0], [0], [1], [0, 0, 1, 1], [], []>} : vector<128x8xf32>, vector<8x32xf32>, vector<128x32xf32> -> vector<128x32xf32>
      %104 = arith.addf %101, %103 : vector<128x32xf32>
      %c0_81 = arith.constant 0 : index
      %c0_82 = arith.constant 0 : index
      %105 = vector.load %arg8[%c0_81, %c0_82] : memref<1x32xf32, #tpu.memory_space<vmem>>, vector<1x32xf32>
      %106 = vector.broadcast %105 : vector<1x32xf32> to vector<128x32xf32>
      %107 = arith.addf %104, %106 : vector<128x32xf32>
      %c0_83 = arith.constant 0 : index
      %c0_84 = arith.constant 0 : index
      %108 = vector.load %arg35[%c0_83, %c0_84] : memref<128x32xf32, #tpu.memory_space<vmem>>, vector<128x32xf32>
      tpu.vector_store %arg35[%c0_83, %c0_84], %107 {strides = array<i32>} : memref<128x32xf32, #tpu.memory_space<vmem>>, vector<128x32xf32>,
      %109 = arith.truncf %107 : vector<128x32xf32> to vector<128x32xbf16>
      %c0_85 = arith.constant 0 : index
      %c0_86 = arith.constant 0 : index
      %110 = vector.load %arg9[%c0_85, %c0_86] : memref<32x64xbf16, #tpu.memory_space<vmem>>, vector<32x64xbf16>
      %cst_87 = arith.constant dense<0.000000e+00> : vector<128x64xf32>
      %111 = tpu.matmul %109, %110, %cst_87 {dimension_numbers = #tpu.dot_dimension_numbers<[1], [0], [0], [1], [0, 0, 1, 1], [], []>} : vector<128x32xbf16>, vector<32x64xbf16>, vector<128x64xf32> -> vector<128x64xf32>
      %c0_88 = arith.constant 0 : index
      %c0_89 = arith.constant 0 : index
      %112 = vector.load %arg10[%c0_88, %c0_89] : memref<32x64xf32, #tpu.memory_space<vmem>>, vector<32x64xf32>
      %cst_90 = arith.constant dense<0.000000e+00> : vector<1x64xf32>
      %113 = tpu.matmul %1, %112, %cst_90 {dimension_numbers = #tpu.dot_dimension_numbers<[1], [0], [0], [1], [0, 0, 1, 1], [], []>} : vector<1x32xf32>, vector<32x64xf32>, vector<1x64xf32> -> vector<1x64xf32>
      %114 = vector.broadcast %113 : vector<1x64xf32> to vector<128x64xf32>
      %115 = arith.addf %111, %114 : vector<128x64xf32>
      %c0_91 = arith.constant 0 : index
      %c0_92 = arith.constant 0 : index
      %116 = vector.load %arg11[%c0_91, %c0_92] : memref<1x64xf32, #tpu.memory_space<vmem>>, vector<1x64xf32>
      %117 = vector.broadcast %116 : vector<1x64xf32> to vector<128x64xf32>
      %118 = arith.addf %115, %117 : vector<128x64xf32>
      %c0_93 = arith.constant 0 : index
      %c0_94 = arith.constant 0 : index
      %119 = vector.load %arg36[%c0_93, %c0_94] : memref<128x64xf32, #tpu.memory_space<vmem>>, vector<128x64xf32>
      tpu.vector_store %arg36[%c0_93, %c0_94], %118 {strides = array<i32>} : memref<128x64xf32, #tpu.memory_space<vmem>>, vector<128x64xf32>,
    } else {
    }
    %c0_3 = arith.constant 0 : index
    %c0_4 = arith.constant 0 : index
    %5 = vector.load %arg36[%c0_3, %c0_4] : memref<128x64xf32, #tpu.memory_space<vmem>>, vector<128x64xf32>
    %c0_5 = arith.constant 0 : index
    %c0_6 = arith.constant 0 : index
    %6 = vector.load %arg35[%c0_5, %c0_6] : memref<128x32xf32, #tpu.memory_space<vmem>>, vector<128x32xf32>
    %c0_7 = arith.constant 0 : index
    %c0_8 = arith.constant 0 : index
    %c0_9 = arith.constant 0 : index
    %7 = vector.load %arg12[%c0_7, %c0_8, %c0_9] : memref<1x1x64xf32, #tpu.memory_space<vmem>>, vector<1x1x64xf32>
    %8 = vector.shape_cast %7 : vector<1x1x64xf32> to vector<1x64xf32>
    %9 = vector.broadcast %8 : vector<1x64xf32> to vector<128x64xf32>
    %10 = arith.mulf %5, %9 : vector<128x64xf32>
    %c0_10 = arith.constant 0 : index
    %c0_11 = arith.constant 0 : index
    %c0_12 = arith.constant 0 : index
    %11 = vector.load %arg13[%c0_10, %c0_11, %c0_12] : memref<1x1x64xf32, #tpu.memory_space<vmem>>, vector<1x1x64xf32>
    %12 = vector.shape_cast %11 : vector<1x1x64xf32> to vector<1x64xf32>
    %13 = vector.broadcast %12 : vector<1x64xf32> to vector<128x64xf32>
    %14 = arith.addf %10, %13 : vector<128x64xf32>
    %cst = arith.constant 0.000000e+00 : f32
    %15 = vector.broadcast %cst : f32 to vector<128x64xf32>
    %16 = arith.maximumf %14, %15 : vector<128x64xf32>
    %17 = arith.truncf %16 : vector<128x64xf32> to vector<128x64xbf16>
    %c0_13 = arith.constant 0 : index
    %c0_14 = arith.constant 0 : index
    %c0_15 = arith.constant 0 : index
    %18 = vector.load %arg14[%c0_13, %c0_14, %c0_15] : memref<1x64x64xbf16, #tpu.memory_space<vmem>>, vector<1x64x64xbf16>
    %19 = vector.shape_cast %18 : vector<1x64x64xbf16> to vector<64x64xbf16>
    %cst_16 = arith.constant dense<0.000000e+00> : vector<128x64xf32>
    %20 = tpu.matmul %17, %19, %cst_16 {dimension_numbers = #tpu.dot_dimension_numbers<[1], [0], [0], [1], [0, 0, 1, 1], [], []>} : vector<128x64xbf16>, vector<64x64xbf16>, vector<128x64xf32> -> vector<128x64xf32>
    %c0_17 = arith.constant 0 : index
    %c0_18 = arith.constant 0 : index
    %c0_19 = arith.constant 0 : index
    %21 = vector.load %arg15[%c0_17, %c0_18, %c0_19] : memref<1x1x64xf32, #tpu.memory_space<vmem>>, vector<1x1x64xf32>
    %22 = vector.shape_cast %21 : vector<1x1x64xf32> to vector<1x64xf32>
    %23 = vector.broadcast %22 : vector<1x64xf32> to vector<128x64xf32>
    %24 = arith.addf %20, %23 : vector<128x64xf32>
    %c0_20 = arith.constant 0 : index
    %c0_21 = arith.constant 0 : index
    %c0_22 = arith.constant 0 : index
    %25 = vector.load %arg16[%c0_20, %c0_21, %c0_22] : memref<1x1x64xf32, #tpu.memory_space<vmem>>, vector<1x1x64xf32>
    %26 = vector.shape_cast %25 : vector<1x1x64xf32> to vector<1x64xf32>
    %27 = vector.broadcast %26 : vector<1x64xf32> to vector<128x64xf32>
    %28 = arith.mulf %24, %27 : vector<128x64xf32>
    %c0_23 = arith.constant 0 : index
    %c0_24 = arith.constant 0 : index
    %c0_25 = arith.constant 0 : index
    %29 = vector.load %arg17[%c0_23, %c0_24, %c0_25] : memref<1x1x64xf32, #tpu.memory_space<vmem>>, vector<1x1x64xf32>
    %30 = vector.shape_cast %29 : vector<1x1x64xf32> to vector<1x64xf32>
    %31 = vector.broadcast %30 : vector<1x64xf32> to vector<128x64xf32>
    %32 = arith.addf %28, %31 : vector<128x64xf32>
    %cst_26 = arith.constant 0.000000e+00 : f32
    %33 = vector.broadcast %cst_26 : f32 to vector<128x64xf32>
    %34 = arith.maximumf %32, %33 : vector<128x64xf32>
    %35 = arith.truncf %34 : vector<128x64xf32> to vector<128x64xbf16>
    %c0_27 = arith.constant 0 : index
    %c0_28 = arith.constant 0 : index
    %c0_29 = arith.constant 0 : index
    %36 = vector.load %arg18[%c0_27, %c0_28, %c0_29] : memref<1x64x64xbf16, #tpu.memory_space<vmem>>, vector<1x64x64xbf16>
    %37 = vector.shape_cast %36 : vector<1x64x64xbf16> to vector<64x64xbf16>
    %cst_30 = arith.constant dense<0.000000e+00> : vector<128x64xf32>
    %38 = tpu.matmul %35, %37, %cst_30 {dimension_numbers = #tpu.dot_dimension_numbers<[1], [0], [0], [1], [0, 0, 1, 1], [], []>} : vector<128x64xbf16>, vector<64x64xbf16>, vector<128x64xf32> -> vector<128x64xf32>
    %c0_31 = arith.constant 0 : index
    %c0_32 = arith.constant 0 : index
    %c0_33 = arith.constant 0 : index
    %39 = vector.load %arg19[%c0_31, %c0_32, %c0_33] : memref<1x1x64xf32, #tpu.memory_space<vmem>>, vector<1x1x64xf32>
    %40 = vector.shape_cast %39 : vector<1x1x64xf32> to vector<1x64xf32>
    %41 = vector.broadcast %40 : vector<1x64xf32> to vector<128x64xf32>
    %42 = arith.addf %38, %41 : vector<128x64xf32>
    %cst_34 = arith.constant dense<0.000000e+00> : vector<64xf32>
    %43 = vector.multi_reduction <add>, %42, %cst_34 [0] : vector<128x64xf32> to vector<64xf32>
    %44 = vector.shape_cast %43 : vector<64xf32> to vector<1x64xf32>
    %cst_35 = arith.constant 7.812500e-03 : f32
    %45 = vector.broadcast %cst_35 : f32 to vector<1x64xf32>
    %46 = arith.mulf %44, %45 : vector<1x64xf32>
    %c0_36 = arith.constant 0 : index
    %c0_37 = arith.constant 0 : index
    %c0_38 = arith.constant 0 : index
    %47 = vector.load %arg20[%c0_36, %c0_37, %c0_38] : memref<1x64x16xf32, #tpu.memory_space<vmem>>, vector<1x64x16xf32>
    %48 = vector.shape_cast %47 : vector<1x64x16xf32> to vector<64x16xf32>
    %cst_39 = arith.constant dense<0.000000e+00> : vector<1x16xf32>
    %49 = tpu.matmul %46, %48, %cst_39 {dimension_numbers = #tpu.dot_dimension_numbers<[1], [0], [0], [1], [0, 0, 1, 1], [], []>} : vector<1x64xf32>, vector<64x16xf32>, vector<1x16xf32> -> vector<1x16xf32>
    %c0_40 = arith.constant 0 : index
    %c0_41 = arith.constant 0 : index
    %c0_42 = arith.constant 0 : index
    %50 = vector.load %arg21[%c0_40, %c0_41, %c0_42] : memref<1x1x16xf32, #tpu.memory_space<vmem>>, vector<1x1x16xf32>
    %51 = vector.shape_cast %50 : vector<1x1x16xf32> to vector<1x16xf32>
    %52 = arith.addf %49, %51 : vector<1x16xf32>
    %53 = arith.negf %52 : vector<1x16xf32>
    %54 = math.exp %53 : vector<1x16xf32>
    %cst_43 = arith.constant 1.000000e+00 : f32
    %55 = vector.broadcast %cst_43 : f32 to vector<1x16xf32>
    %56 = arith.addf %55, %54 : vector<1x16xf32>
    %57 = arith.divf %55, %56 : vector<1x16xf32>
    %58 = arith.mulf %52, %57 : vector<1x16xf32>
    %c0_44 = arith.constant 0 : index
    %c0_45 = arith.constant 0 : index
    %c0_46 = arith.constant 0 : index
    %59 = vector.load %arg22[%c0_44, %c0_45, %c0_46] : memref<1x16x64xf32, #tpu.memory_space<vmem>>, vector<1x16x64xf32>
    %60 = vector.shape_cast %59 : vector<1x16x64xf32> to vector<16x64xf32>
    %cst_47 = arith.constant dense<0.000000e+00> : vector<1x64xf32>
    %61 = tpu.matmul %58, %60, %cst_47 {dimension_numbers = #tpu.dot_dimension_numbers<[1], [0], [0], [1], [0, 0, 1, 1], [], []>} : vector<1x16xf32>, vector<16x64xf32>, vector<1x64xf32> -> vector<1x64xf32>
    %c0_48 = arith.constant 0 : index
    %c0_49 = arith.constant 0 : index
    %c0_50 = arith.constant 0 : index
    %62 = vector.load %arg23[%c0_48, %c0_49, %c0_50] : memref<1x1x64xf32, #tpu.memory_space<vmem>>, vector<1x1x64xf32>
    %63 = vector.shape_cast %62 : vector<1x1x64xf32> to vector<1x64xf32>
    %64 = arith.addf %61, %63 : vector<1x64xf32>
    %65 = arith.negf %64 : vector<1x64xf32>
    %66 = math.exp %65 : vector<1x64xf32>
    %cst_51 = arith.constant 1.000000e+00 : f32
    %67 = vector.broadcast %cst_51 : f32 to vector<1x64xf32>
    %68 = arith.addf %67, %66 : vector<1x64xf32>
    %69 = arith.divf %67, %68 : vector<1x64xf32>
    %70 = vector.broadcast %69 : vector<1x64xf32> to vector<128x64xf32>
    %71 = arith.mulf %42, %70 : vector<128x64xf32>
    %72 = arith.truncf %6 : vector<128x32xf32> to vector<128x32xbf16>
    %c0_52 = arith.constant 0 : index
    %c0_53 = arith.constant 0 : index
    %c0_54 = arith.constant 0 : index
    %73 = vector.load %arg24[%c0_52, %c0_53, %c0_54] : memref<1x32x64xbf16, #tpu.memory_space<vmem>>, vector<1x32x64xbf16>
    %74 = vector.shape_cast %73 : vector<1x32x64xbf16> to vector<32x64xbf16>
    %cst_55 = arith.constant dense<0.000000e+00> : vector<128x64xf32>
    %75 = tpu.matmul %72, %74, %cst_55 {dimension_numbers = #tpu.dot_dimension_numbers<[1], [0], [0], [1], [0, 0, 1, 1], [], []>} : vector<128x32xbf16>, vector<32x64xbf16>, vector<128x64xf32> -> vector<128x64xf32>
    %c0_56 = arith.constant 0 : index
    %c0_57 = arith.constant 0 : index
    %c0_58 = arith.constant 0 : index
    %76 = vector.load %arg25[%c0_56, %c0_57, %c0_58] : memref<1x32x64xf32, #tpu.memory_space<vmem>>, vector<1x32x64xf32>
    %77 = vector.shape_cast %76 : vector<1x32x64xf32> to vector<32x64xf32>
    %cst_59 = arith.constant dense<0.000000e+00> : vector<1x64xf32>
    %78 = tpu.matmul %1, %77, %cst_59 {dimension_numbers = #tpu.dot_dimension_numbers<[1], [0], [0], [1], [0, 0, 1, 1], [], []>} : vector<1x32xf32>, vector<32x64xf32>, vector<1x64xf32> -> vector<1x64xf32>
    %79 = vector.broadcast %78 : vector<1x64xf32> to vector<128x64xf32>
    %80 = arith.addf %75, %79 : vector<128x64xf32>
    %c0_60 = arith.constant 0 : index
    %c0_61 = arith.constant 0 : index
    %c0_62 = arith.constant 0 : index
    %81 = vector.load %arg26[%c0_60, %c0_61, %c0_62] : memref<1x1x64xf32, #tpu.memory_space<vmem>>, vector<1x1x64xf32>
    %82 = vector.shape_cast %81 : vector<1x1x64xf32> to vector<1x64xf32>
    %83 = vector.broadcast %82 : vector<1x64xf32> to vector<128x64xf32>
    %84 = arith.addf %80, %83 : vector<128x64xf32>
    %85 = arith.addf %5, %71 : vector<128x64xf32>
    %86 = arith.addf %85, %84 : vector<128x64xf32>
    %c0_63 = arith.constant 0 : index
    %c0_64 = arith.constant 0 : index
    %87 = vector.load %arg36[%c0_63, %c0_64] : memref<128x64xf32, #tpu.memory_space<vmem>>, vector<128x64xf32>
    tpu.vector_store %arg36[%c0_63, %c0_64], %86 {strides = array<i32>} : memref<128x64xf32, #tpu.memory_space<vmem>>, vector<128x64xf32>,
    %c1_i32 = arith.constant 1 : i32
    %88 = arith.cmpi eq, %arg1, %c1_i32 : i32
    %89 = arith.extui %88 : i1 to i32
    %c0_i32_65 = arith.constant 0 : i32
    %90 = arith.cmpi ne, %89, %c0_i32_65 : i32
    scf.if %90 {
      %c0_66 = arith.constant 0 : index
      %c0_67 = arith.constant 0 : index
      %91 = vector.load %arg27[%c0_66, %c0_67] : memref<1x64xf32, #tpu.memory_space<vmem>>, vector<1x64xf32>
      %92 = vector.broadcast %91 : vector<1x64xf32> to vector<128x64xf32>
      %93 = arith.mulf %86, %92 : vector<128x64xf32>
      %c0_68 = arith.constant 0 : index
      %c0_69 = arith.constant 0 : index
      %94 = vector.load %arg28[%c0_68, %c0_69] : memref<1x64xf32, #tpu.memory_space<vmem>>, vector<1x64xf32>
      %95 = vector.broadcast %94 : vector<1x64xf32> to vector<128x64xf32>
      %96 = arith.addf %93, %95 : vector<128x64xf32>
      %cst_70 = arith.constant 0.000000e+00 : f32
      %97 = vector.broadcast %cst_70 : f32 to vector<128x64xf32>
      %98 = arith.maximumf %96, %97 : vector<128x64xf32>
      %c0_71 = arith.constant 0 : index
      %c0_72 = arith.constant 0 : index
      %99 = vector.load %arg30[%c0_71, %c0_72] : memref<1x64xf32, #tpu.memory_space<vmem>>, vector<1x64xf32>
      %100 = vector.broadcast %99 : vector<1x64xf32> to vector<128x64xf32>
      %101 = arith.mulf %86, %100 : vector<128x64xf32>
      %c0_73 = arith.constant 0 : index
      %c0_74 = arith.constant 0 : index
      %102 = vector.load %arg31[%c0_73, %c0_74] : memref<1x64xf32, #tpu.memory_space<vmem>>, vector<1x64xf32>
      %103 = vector.broadcast %102 : vector<1x64xf32> to vector<128x64xf32>
      %104 = arith.addf %101, %103 : vector<128x64xf32>
      %cst_75 = arith.constant 0.000000e+00 : f32
      %105 = vector.broadcast %cst_75 : f32 to vector<128x64xf32>
      %106 = arith.maximumf %104, %105 : vector<128x64xf32>
      %107 = arith.truncf %98 : vector<128x64xf32> to vector<128x64xbf16>
      %c0_76 = arith.constant 0 : index
      %c0_77 = arith.constant 0 : index
      %108 = vector.load %arg29[%c0_76, %c0_77] : memref<64x4xbf16, #tpu.memory_space<vmem>>, vector<64x4xbf16>
      %cst_78 = arith.constant dense<0.000000e+00> : vector<128x4xf32>
      %109 = tpu.matmul %107, %108, %cst_78 {dimension_numbers = #tpu.dot_dimension_numbers<[1], [0], [0], [1], [0, 0, 1, 1], [], []>} : vector<128x64xbf16>, vector<64x4xbf16>, vector<128x4xf32> -> vector<128x4xf32>
      %110 = arith.truncf %106 : vector<128x64xf32> to vector<128x64xbf16>
      %c0_79 = arith.constant 0 : index
      %c0_80 = arith.constant 0 : index
      %111 = vector.load %arg32[%c0_79, %c0_80] : memref<64x4xbf16, #tpu.memory_space<vmem>>, vector<64x4xbf16>
      %cst_81 = arith.constant dense<0.000000e+00> : vector<128x4xf32>
      %112 = tpu.matmul %110, %111, %cst_81 {dimension_numbers = #tpu.dot_dimension_numbers<[1], [0], [0], [1], [0, 0, 1, 1], [], []>} : vector<128x64xbf16>, vector<64x4xbf16>, vector<128x4xf32> -> vector<128x4xf32>
      %113 = arith.addf %109, %112 : vector<128x4xf32>
      %c0_82 = arith.constant 0 : index
      %c0_83 = arith.constant 0 : index
      %114 = vector.load %arg33[%c0_82, %c0_83] : memref<1x4xf32, #tpu.memory_space<vmem>>, vector<1x4xf32>
      %115 = vector.broadcast %114 : vector<1x4xf32> to vector<128x4xf32>
      %116 = arith.addf %113, %115 : vector<128x4xf32>
      %117 = tpu.iota {dimensions = array<i32: 1>} : vector<128x4xi32>
      %c3_i32 = arith.constant 3 : i32
      %118 = vector.broadcast %c3_i32 : i32 to vector<128x4xi32>
      %119 = arith.cmpi eq, %117, %118 : vector<128x4xi32>
      %120 = arith.negf %116 : vector<128x4xf32>
      %121 = math.exp %120 : vector<128x4xf32>
      %cst_84 = arith.constant 1.000000e+00 : f32
      %122 = vector.broadcast %cst_84 : f32 to vector<128x4xf32>
      %123 = arith.addf %122, %121 : vector<128x4xf32>
      %124 = arith.divf %122, %123 : vector<128x4xf32>
      %125 = arith.select %119, %124, %116 : vector<128x4xi1>, vector<128x4xf32>
      %c0_85 = arith.constant 0 : index
      %c0_86 = arith.constant 0 : index
      %c0_87 = arith.constant 0 : index
      %126 = vector.load %arg34[%c0_85, %c0_86, %c0_87] : memref<1x128x4xf32, #tpu.memory_space<vmem>>, vector<1x128x4xf32>
      %127 = vector.shape_cast %126 : vector<1x128x4xf32> to vector<128x4xf32>
      %128 = vector.shape_cast %125 : vector<128x4xf32> to vector<1x128x4xf32>
      tpu.vector_store %arg34[%c0_85, %c0_86, %c0_87], %128 {strides = array<i32>} : memref<1x128x4xf32, #tpu.memory_space<vmem>>, vector<1x128x4xf32>,
    } else {
    }
    return
  }
  func.func @transform_0(%arg0: i32, %arg1: i32) -> (i32, i32, i32) {
    %c0_i32 = arith.constant 0 : i32
    %c0_i32_0 = arith.constant 0 : i32
    %c0_i32_1 = arith.constant 0 : i32
    return %arg0, %c0_i32, %c0_i32_0 : i32, i32, i32
  }
  func.func @transform_1(%arg0: i32, %arg1: i32) -> (i32, i32, i32) {
    %c0_i32 = arith.constant 0 : i32
    %c0_i32_0 = arith.constant 0 : i32
    %c0_i32_1 = arith.constant 0 : i32
    return %arg0, %c0_i32, %c0_i32_0 : i32, i32, i32
  }
  func.func @transform_2(%arg0: i32, %arg1: i32) -> (i32, i32) {
    %c0_i32 = arith.constant 0 : i32
    %c0_i32_0 = arith.constant 0 : i32
    %c0_i32_1 = arith.constant 0 : i32
    return %c0_i32, %c0_i32_0 : i32, i32
  }
  func.func @transform_3(%arg0: i32, %arg1: i32) -> (i32, i32) {
    %c0_i32 = arith.constant 0 : i32
    %c0_i32_0 = arith.constant 0 : i32
    %c0_i32_1 = arith.constant 0 : i32
    return %c0_i32, %c0_i32_0 : i32, i32
  }
  func.func @transform_4(%arg0: i32, %arg1: i32) -> (i32, i32) {
    %c0_i32 = arith.constant 0 : i32
    %c0_i32_0 = arith.constant 0 : i32
    %c0_i32_1 = arith.constant 0 : i32
    return %c0_i32, %c0_i32_0 : i32, i32
  }
  func.func @transform_5(%arg0: i32, %arg1: i32) -> (i32, i32) {
    %c0_i32 = arith.constant 0 : i32
    %c0_i32_0 = arith.constant 0 : i32
    %c0_i32_1 = arith.constant 0 : i32
    return %c0_i32, %c0_i32_0 : i32, i32
  }
  func.func @transform_6(%arg0: i32, %arg1: i32) -> (i32, i32) {
    %c0_i32 = arith.constant 0 : i32
    %c0_i32_0 = arith.constant 0 : i32
    %c0_i32_1 = arith.constant 0 : i32
    return %c0_i32, %c0_i32_0 : i32, i32
  }
  func.func @transform_7(%arg0: i32, %arg1: i32) -> (i32, i32) {
    %c0_i32 = arith.constant 0 : i32
    %c0_i32_0 = arith.constant 0 : i32
    %c0_i32_1 = arith.constant 0 : i32
    return %c0_i32, %c0_i32_0 : i32, i32
  }
  func.func @transform_8(%arg0: i32, %arg1: i32) -> (i32, i32) {
    %c0_i32 = arith.constant 0 : i32
    %c0_i32_0 = arith.constant 0 : i32
    %c0_i32_1 = arith.constant 0 : i32
    return %c0_i32, %c0_i32_0 : i32, i32
  }
  func.func @transform_9(%arg0: i32, %arg1: i32) -> (i32, i32) {
    %c0_i32 = arith.constant 0 : i32
    %c0_i32_0 = arith.constant 0 : i32
    %c0_i32_1 = arith.constant 0 : i32
    return %c0_i32, %c0_i32_0 : i32, i32
  }
  func.func @transform_10(%arg0: i32, %arg1: i32) -> (i32, i32, i32) {
    %c0_i32 = arith.constant 0 : i32
    %c0_i32_0 = arith.constant 0 : i32
    %c0_i32_1 = arith.constant 0 : i32
    return %arg1, %c0_i32, %c0_i32_0 : i32, i32, i32
  }
  func.func @transform_11(%arg0: i32, %arg1: i32) -> (i32, i32, i32) {
    %c0_i32 = arith.constant 0 : i32
    %c0_i32_0 = arith.constant 0 : i32
    %c0_i32_1 = arith.constant 0 : i32
    return %arg1, %c0_i32, %c0_i32_0 : i32, i32, i32
  }
  func.func @transform_12(%arg0: i32, %arg1: i32) -> (i32, i32, i32) {
    %c0_i32 = arith.constant 0 : i32
    %c0_i32_0 = arith.constant 0 : i32
    %c0_i32_1 = arith.constant 0 : i32
    return %arg1, %c0_i32, %c0_i32_0 : i32, i32, i32
  }
  func.func @transform_13(%arg0: i32, %arg1: i32) -> (i32, i32, i32) {
    %c0_i32 = arith.constant 0 : i32
    %c0_i32_0 = arith.constant 0 : i32
    %c0_i32_1 = arith.constant 0 : i32
    return %arg1, %c0_i32, %c0_i32_0 : i32, i32, i32
  }
  func.func @transform_14(%arg0: i32, %arg1: i32) -> (i32, i32, i32) {
    %c0_i32 = arith.constant 0 : i32
    %c0_i32_0 = arith.constant 0 : i32
    %c0_i32_1 = arith.constant 0 : i32
    return %arg1, %c0_i32, %c0_i32_0 : i32, i32, i32
  }
  func.func @transform_15(%arg0: i32, %arg1: i32) -> (i32, i32, i32) {
    %c0_i32 = arith.constant 0 : i32
    %c0_i32_0 = arith.constant 0 : i32
    %c0_i32_1 = arith.constant 0 : i32
    return %arg1, %c0_i32, %c0_i32_0 : i32, i32, i32
  }
  func.func @transform_16(%arg0: i32, %arg1: i32) -> (i32, i32, i32) {
    %c0_i32 = arith.constant 0 : i32
    %c0_i32_0 = arith.constant 0 : i32
    %c0_i32_1 = arith.constant 0 : i32
    return %arg1, %c0_i32, %c0_i32_0 : i32, i32, i32
  }
  func.func @transform_17(%arg0: i32, %arg1: i32) -> (i32, i32, i32) {
    %c0_i32 = arith.constant 0 : i32
    %c0_i32_0 = arith.constant 0 : i32
    %c0_i32_1 = arith.constant 0 : i32
    return %arg1, %c0_i32, %c0_i32_0 : i32, i32, i32
  }
  func.func @transform_18(%arg0: i32, %arg1: i32) -> (i32, i32, i32) {
    %c0_i32 = arith.constant 0 : i32
    %c0_i32_0 = arith.constant 0 : i32
    %c0_i32_1 = arith.constant 0 : i32
    return %arg1, %c0_i32, %c0_i32_0 : i32, i32, i32
  }
  func.func @transform_19(%arg0: i32, %arg1: i32) -> (i32, i32, i32) {
    %c0_i32 = arith.constant 0 : i32
    %c0_i32_0 = arith.constant 0 : i32
    %c0_i32_1 = arith.constant 0 : i32
    return %arg1, %c0_i32, %c0_i32_0 : i32, i32, i32
  }
  func.func @transform_20(%arg0: i32, %arg1: i32) -> (i32, i32, i32) {
    %c0_i32 = arith.constant 0 : i32
    %c0_i32_0 = arith.constant 0 : i32
    %c0_i32_1 = arith.constant 0 : i32
    return %arg1, %c0_i32, %c0_i32_0 : i32, i32, i32
  }
  func.func @transform_21(%arg0: i32, %arg1: i32) -> (i32, i32, i32) {
    %c0_i32 = arith.constant 0 : i32
    %c0_i32_0 = arith.constant 0 : i32
    %c0_i32_1 = arith.constant 0 : i32
    return %arg1, %c0_i32, %c0_i32_0 : i32, i32, i32
  }
  func.func @transform_22(%arg0: i32, %arg1: i32) -> (i32, i32, i32) {
    %c0_i32 = arith.constant 0 : i32
    %c0_i32_0 = arith.constant 0 : i32
    %c0_i32_1 = arith.constant 0 : i32
    return %arg1, %c0_i32, %c0_i32_0 : i32, i32, i32
  }
  func.func @transform_23(%arg0: i32, %arg1: i32) -> (i32, i32, i32) {
    %c0_i32 = arith.constant 0 : i32
    %c0_i32_0 = arith.constant 0 : i32
    %c0_i32_1 = arith.constant 0 : i32
    return %arg1, %c0_i32, %c0_i32_0 : i32, i32, i32
  }
  func.func @transform_24(%arg0: i32, %arg1: i32) -> (i32, i32, i32) {
    %c0_i32 = arith.constant 0 : i32
    %c0_i32_0 = arith.constant 0 : i32
    %c0_i32_1 = arith.constant 0 : i32
    return %arg1, %c0_i32, %c0_i32_0 : i32, i32, i32
  }
  func.func @transform_25(%arg0: i32, %arg1: i32) -> (i32, i32) {
    %c0_i32 = arith.constant 0 : i32
    %c0_i32_0 = arith.constant 0 : i32
    %c0_i32_1 = arith.constant 0 : i32
    return %c0_i32, %c0_i32_0 : i32, i32
  }
  func.func @transform_26(%arg0: i32, %arg1: i32) -> (i32, i32) {
    %c0_i32 = arith.constant 0 : i32
    %c0_i32_0 = arith.constant 0 : i32
    %c0_i32_1 = arith.constant 0 : i32
    return %c0_i32, %c0_i32_0 : i32, i32
  }
  func.func @transform_27(%arg0: i32, %arg1: i32) -> (i32, i32) {
    %c0_i32 = arith.constant 0 : i32
    %c0_i32_0 = arith.constant 0 : i32
    %c0_i32_1 = arith.constant 0 : i32
    return %c0_i32, %c0_i32_0 : i32, i32
  }
  func.func @transform_28(%arg0: i32, %arg1: i32) -> (i32, i32) {
    %c0_i32 = arith.constant 0 : i32
    %c0_i32_0 = arith.constant 0 : i32
    %c0_i32_1 = arith.constant 0 : i32
    return %c0_i32, %c0_i32_0 : i32, i32
  }
  func.func @transform_29(%arg0: i32, %arg1: i32) -> (i32, i32) {
    %c0_i32 = arith.constant 0 : i32
    %c0_i32_0 = arith.constant 0 : i32
    %c0_i32_1 = arith.constant 0 : i32
    return %c0_i32, %c0_i32_0 : i32, i32
  }
  func.func @transform_30(%arg0: i32, %arg1: i32) -> (i32, i32) {
    %c0_i32 = arith.constant 0 : i32
    %c0_i32_0 = arith.constant 0 : i32
    %c0_i32_1 = arith.constant 0 : i32
    return %c0_i32, %c0_i32_0 : i32, i32
  }
  func.func @transform_31(%arg0: i32, %arg1: i32) -> (i32, i32) {
    %c0_i32 = arith.constant 0 : i32
    %c0_i32_0 = arith.constant 0 : i32
    %c0_i32_1 = arith.constant 0 : i32
    return %c0_i32, %c0_i32_0 : i32, i32
  }
  func.func @transform_32(%arg0: i32, %arg1: i32) -> (i32, i32, i32) {
    %c0_i32 = arith.constant 0 : i32
    %c0_i32_0 = arith.constant 0 : i32
    %c0_i32_1 = arith.constant 0 : i32
    return %arg0, %c0_i32, %c0_i32_0 : i32, i32, i32
  }
}

</mosaic_0001>

<llo_original>
// kernel: tpu_custom_call.1
$region0: #{tpu_custom_call.1}
  #allocation0 [shape = 'u32[]', space=smem, size = 0x4, offset = 0x4, fixed_abs, tag = 'smem constant byte address 0x4 - core index']
  #allocation1 [shape = 'u32[144,128]{1,0:T(1,128)}', space=vmem, size = 0x12000, scoped, tag = 'internal scratch']
  #allocation2 [shape = 'f32[128,32]{1,0:T(8,128)}', space=vmem, size = 0x10000, scoped, tag = 'scratch operand']
  #allocation3 [shape = 'f32[128,64]{1,0:T(8,128)}', space=vmem, size = 0x10000, scoped, tag = 'scratch operand']
  %s0 = inlined_call_operand.smem [shape: u32[33], index: -1, kind: input, shape index: {}]
  %s1 = sld [smem:[%s0]]
  %s2 = scalar_lea.smem %s0, 1
  %s3 = sld [smem:[%s2]]
  %s4 = scalar_lea.smem %s0, 2
  %s5 = sld [smem:[%s4]]
  %s6 = scalar_lea.smem %s0, 3
  %s7 = sld [smem:[%s6]]
  %s8 = scalar_lea.smem %s0, 4
  %s9 = sld [smem:[%s8]]
  %s10 = scalar_lea.smem %s0, 5
  %s11 = sld [smem:[%s10]]
  %s12 = scalar_lea.smem %s0, 6
  %s13 = sld [smem:[%s12]]
  %s14 = scalar_lea.smem %s0, 7
  %s15 = sld [smem:[%s14]]
  %s16 = scalar_lea.smem %s0, 8
  %s17 = sld [smem:[%s16]]
  %s18 = scalar_lea.smem %s0, 9
  %s19 = sld [smem:[%s18]]
  %s20 = scalar_lea.smem %s0, 10
  %s21 = sld [smem:[%s20]]
  %s22 = scalar_lea.smem %s0, 11
  %s23 = sld [smem:[%s22]]
  %s24 = scalar_lea.smem %s0, 12
  %s25 = sld [smem:[%s24]]
  %s26 = scalar_lea.smem %s0, 13
  %s27 = sld [smem:[%s26]]
  %s28 = scalar_lea.smem %s0, 14
  %s29 = sld [smem:[%s28]]
  %s30 = scalar_lea.smem %s0, 15
  %s31 = sld [smem:[%s30]]
  %s32 = scalar_lea.smem %s0, 16
  %s33 = sld [smem:[%s32]]
  %s34 = scalar_lea.smem %s0, 17
  %s35 = sld [smem:[%s34]]
  %s36 = scalar_lea.smem %s0, 18
  %s37 = sld [smem:[%s36]]
  %s38 = scalar_lea.smem %s0, 19
  %s39 = sld [smem:[%s38]]
  %s40 = scalar_lea.smem %s0, 20
  %s41 = sld [smem:[%s40]]
  %s42 = scalar_lea.smem %s0, 21
  %s43 = sld [smem:[%s42]]
  %s44 = scalar_lea.smem %s0, 22
  %s45 = sld [smem:[%s44]]
  %s46 = scalar_lea.smem %s0, 23
  %s47 = sld [smem:[%s46]]
  %s48 = scalar_lea.smem %s0, 24
  %s49 = sld [smem:[%s48]]
  %s50 = scalar_lea.smem %s0, 25
  %s51 = sld [smem:[%s50]]
  %s52 = scalar_lea.smem %s0, 26
  %s53 = sld [smem:[%s52]]
  %s54 = scalar_lea.smem %s0, 27
  %s55 = sld [smem:[%s54]]
  %s56 = scalar_lea.smem %s0, 28
  %s57 = sld [smem:[%s56]]
  %s58 = scalar_lea.smem %s0, 29
  %s59 = sld [smem:[%s58]]
  %s60 = scalar_lea.smem %s0, 30
  %s61 = sld [smem:[%s60]]
  %s62 = scalar_lea.smem %s0, 31
  %s63 = sld [smem:[%s62]]
  %s64 = scalar_lea.smem %s0, 32
  %s65 = sld [smem:[%s64]]
  %s66 = sld [smem:[#allocation0]]
  $region169: #{tpu_custom_call.1} parent=0
    _
  %s68 = ssub.s32 1, %s66
  %s69 = scalar_select 0, %s68, %s66
  loop: start=0, step=1, limit=6
  $region2: #{tpu_custom_call.1} parent=0 // loop_pre_header
    _
  $region3: #{tpu_custom_call.1} parent=0 // loop_header
    %s71 = sphi 0, %s75
    %p72 = scmp.ge.s32.totalorder %s71, 6
    %s78 = sphi 0, %s90
    %s79 = sphi 0, %s86
    %s80 = sphi 0, %s78
    %s81 = sphi 0, %s79
    %s82 = sphi 0, %s80
    %s83 = sphi 0, %s81
    %s93 = sphi 0, %s95
    %s96 = sphi 0, %s93
    %s97 = sphi 0, %s96
    %s113 = sphi 0, %s97
    %s119 = sphi 0, %s121
    %s122 = sphi 0, %s119
    %s123 = sphi 0, %s122
    %s139 = sphi 0, %s123
    %s143 = sphi 0, %s143
    %s145 = sphi 0, %s143
    %s146 = sphi 0, %s145
    %s160 = sphi 0, %s146
    %s164 = sphi 0, %s164
    %s166 = sphi 0, %s164
    %s167 = sphi 0, %s166
    %s181 = sphi 0, %s167
    %s185 = sphi 0, %s185
    %s187 = sphi 0, %s185
    %s188 = sphi 0, %s187
    %s202 = sphi 0, %s188
    %s206 = sphi 0, %s206
    %s208 = sphi 0, %s206
    %s209 = sphi 0, %s208
    %s223 = sphi 0, %s209
    %s227 = sphi 0, %s227
    %s229 = sphi 0, %s227
    %s230 = sphi 0, %s229
    %s244 = sphi 0, %s230
    %s248 = sphi 0, %s248
    %s250 = sphi 0, %s248
    %s251 = sphi 0, %s250
    %s265 = sphi 0, %s251
    %s269 = sphi 0, %s269
    %s271 = sphi 0, %s269
    %s272 = sphi 0, %s271
    %s286 = sphi 0, %s272
    %s290 = sphi 0, %s290
    %s292 = sphi 0, %s290
    %s293 = sphi 0, %s292
    %s307 = sphi 0, %s293
    %s313 = sphi 0, %s315
    %s316 = sphi 0, %s313
    %s317 = sphi 0, %s316
    %s333 = sphi 0, %s317
    %s339 = sphi 0, %s341
    %s342 = sphi 0, %s339
    %s343 = sphi 0, %s342
    %s359 = sphi 0, %s343
    %s365 = sphi 0, %s367
    %s368 = sphi 0, %s365
    %s369 = sphi 0, %s368
    %s385 = sphi 0, %s369
    %s391 = sphi 0, %s393
    %s394 = sphi 0, %s391
    %s395 = sphi 0, %s394
    %s411 = sphi 0, %s395
    %s417 = sphi 0, %s419
    %s420 = sphi 0, %s417
    %s421 = sphi 0, %s420
    %s437 = sphi 0, %s421
    %s443 = sphi 0, %s445
    %s446 = sphi 0, %s443
    %s447 = sphi 0, %s446
    %s463 = sphi 0, %s447
    %s469 = sphi 0, %s471
    %s472 = sphi 0, %s469
    %s473 = sphi 0, %s472
    %s489 = sphi 0, %s473
    %s495 = sphi 0, %s497
    %s498 = sphi 0, %s495
    %s499 = sphi 0, %s498
    %s515 = sphi 0, %s499
    %s521 = sphi 0, %s523
    %s524 = sphi 0, %s521
    %s525 = sphi 0, %s524
    %s541 = sphi 0, %s525
    %s547 = sphi 0, %s549
    %s550 = sphi 0, %s547
    %s551 = sphi 0, %s550
    %s567 = sphi 0, %s551
    %s573 = sphi 0, %s575
    %s576 = sphi 0, %s573
    %s577 = sphi 0, %s576
    %s593 = sphi 0, %s577
    %s599 = sphi 0, %s601
    %s602 = sphi 0, %s599
    %s603 = sphi 0, %s602
    %s619 = sphi 0, %s603
    %s625 = sphi 0, %s627
    %s628 = sphi 0, %s625
    %s629 = sphi 0, %s628
    %s645 = sphi 0, %s629
    %s651 = sphi 0, %s653
    %s654 = sphi 0, %s651
    %s655 = sphi 0, %s654
    %s671 = sphi 0, %s655
    %s677 = sphi 0, %s679
    %s680 = sphi 0, %s677
    %s681 = sphi 0, %s680
    %s697 = sphi 0, %s681
    %s701 = sphi 0, %s701
    %s703 = sphi 0, %s701
    %s704 = sphi 0, %s703
    %s718 = sphi 0, %s704
    %s722 = sphi 0, %s722
    %s724 = sphi 0, %s722
    %s725 = sphi 0, %s724
    %s739 = sphi 0, %s725
    %s743 = sphi 0, %s743
    %s745 = sphi 0, %s743
    %s746 = sphi 0, %s745
    %s760 = sphi 0, %s746
    %s764 = sphi 0, %s764
    %s766 = sphi 0, %s764
    %s767 = sphi 0, %s766
    %s781 = sphi 0, %s767
    %s785 = sphi 0, %s785
    %s787 = sphi 0, %s785
    %s788 = sphi 0, %s787
    %s802 = sphi 0, %s788
    %s806 = sphi 0, %s806
    %s808 = sphi 0, %s806
    %s809 = sphi 0, %s808
    %s823 = sphi 0, %s809
    %s827 = sphi 0, %s827
    %s829 = sphi 0, %s827
    %s830 = sphi 0, %s829
    %s844 = sphi 0, %s830
    %s850 = sphi 0, %s852
    %s853 = sphi 0, %s850
    %s854 = sphi 0, %s853
    %s870 = sphi 0, %s854
  $region4: #{tpu_custom_call.1} parent=0 // loop_header_branch
    %74 = sbr.rel (%p72) target = $region8
  $region5: #{tpu_custom_call.1} parent=0 // loop_body
    %s76 = ssub.s32 %s71, 1
    %s77 = ssub.s32 %s71, 2
    %s84 = sadd.s32 1, %s79
    %p85 = scmp.ge.s32.totalorder %s84, 2
    %s86 = scalar_select %p85, 0, %s84
    %s87 = sadd.s32 1, %s78
    %s88 = scalar_select %p85, %s87, %s78
    %p89 = scmp.ge.s32.totalorder %s88, 2
    %s90 = scalar_select %p89, 0, %s88
    %s91 = ssub.s32 %s78, %s90
    %p92 = scmp.eq.s32.totalorder %s91, 0
    %s94 = sadd.s32 %s93, 1
    %s95 = scalar_select %p92, %s93, %s94
    %p98 = pneg %p92
    %p99 = scmp.eq.s32.totalorder %s71, 3
    %p100 = por %p98, %p99
    %p101 = scmp.ne.s32.totalorder %s93, %s96
    %p102 = scmp.eq.s32.totalorder %s71, 0
    %p103 = por %p101, %p102
    %p104 = scmp.ne.s32.totalorder %s93, %s96
    %p105 = scmp.eq.s32.totalorder %s76, 3
    %p106 = por %p104, %p105
    %p107 = scmp.ne.s32.totalorder %s96, %s97
    %p108 = scmp.eq.s32.totalorder %s76, 0
    %p109 = por %p107, %p108
    %p110 = scmp.ne.s32.totalorder %s96, %s97
    %p111 = scmp.eq.s32.totalorder %s77, 3
    %p112 = por %p110, %p111
    %p114 = scmp.ne.s32.totalorder %s97, %s113
    %p115 = scmp.eq.s32.totalorder %s77, 0
    %p116 = por %p114, %p115
    %s117 = ssub.s32 %s78, %s90
    %p118 = scmp.eq.s32.totalorder %s117, 0
    %s120 = sadd.s32 %s119, 1
    %s121 = scalar_select %p118, %s119, %s120
    %p124 = pneg %p118
    %p125 = scmp.eq.s32.totalorder %s71, 3
    %p126 = por %p124, %p125
    %p127 = scmp.ne.s32.totalorder %s119, %s122
    %p128 = scmp.eq.s32.totalorder %s71, 0
    %p129 = por %p127, %p128
    %p130 = scmp.ne.s32.totalorder %s119, %s122
    %p131 = scmp.eq.s32.totalorder %s76, 3
    %p132 = por %p130, %p131
    %p133 = scmp.ne.s32.totalorder %s122, %s123
    %p134 = scmp.eq.s32.totalorder %s76, 0
    %p135 = por %p133, %p134
    %p136 = scmp.ne.s32.totalorder %s122, %s123
    %p137 = scmp.eq.s32.totalorder %s77, 3
    %p138 = por %p136, %p137
    %p140 = scmp.ne.s32.totalorder %s123, %s139
    %p141 = scmp.eq.s32.totalorder %s77, 0
    %p142 = por %p140, %p141
    %s144 = sadd.s32 %s143, 1
    %p147 = scmp.eq.s32.totalorder %s71, 3
    %p148 = scmp.ne.s32.totalorder %s143, %s145
    %p149 = scmp.eq.s32.totalorder %s71, 0
    %p150 = por %p148, %p149
    %p151 = scmp.ne.s32.totalorder %s143, %s145
    %p152 = scmp.eq.s32.totalorder %s76, 3
    %p153 = por %p151, %p152
    %p154 = scmp.ne.s32.totalorder %s145, %s146
    %p155 = scmp.eq.s32.totalorder %s76, 0
    %p156 = por %p154, %p155
    %p157 = scmp.ne.s32.totalorder %s145, %s146
    %p158 = scmp.eq.s32.totalorder %s77, 3
    %p159 = por %p157, %p158
    %p161 = scmp.ne.s32.totalorder %s146, %s160
    %p162 = scmp.eq.s32.totalorder %s77, 0
    %p163 = por %p161, %p162
    %s165 = sadd.s32 %s164, 1
    %p168 = scmp.eq.s32.totalorder %s71, 3
    %p169 = scmp.ne.s32.totalorder %s164, %s166
    %p170 = scmp.eq.s32.totalorder %s71, 0
    %p171 = por %p169, %p170
    %p172 = scmp.ne.s32.totalorder %s164, %s166
    %p173 = scmp.eq.s32.totalorder %s76, 3
    %p174 = por %p172, %p173
    %p175 = scmp.ne.s32.totalorder %s166, %s167
    %p176 = scmp.eq.s32.totalorder %s76, 0
    %p177 = por %p175, %p176
    %p178 = scmp.ne.s32.totalorder %s166, %s167
    %p179 = scmp.eq.s32.totalorder %s77, 3
    %p180 = por %p178, %p179
    %p182 = scmp.ne.s32.totalorder %s167, %s181
    %p183 = scmp.eq.s32.totalorder %s77, 0
    %p184 = por %p182, %p183
    %s186 = sadd.s32 %s185, 1
    %p189 = scmp.eq.s32.totalorder %s71, 3
    %p190 = scmp.ne.s32.totalorder %s185, %s187
    %p191 = scmp.eq.s32.totalorder %s71, 0
    %p192 = por %p190, %p191
    %p193 = scmp.ne.s32.totalorder %s185, %s187
    %p194 = scmp.eq.s32.totalorder %s76, 3
    %p195 = por %p193, %p194
    %p196 = scmp.ne.s32.totalorder %s187, %s188
    %p197 = scmp.eq.s32.totalorder %s76, 0
    %p198 = por %p196, %p197
    %p199 = scmp.ne.s32.totalorder %s187, %s188
    %p200 = scmp.eq.s32.totalorder %s77, 3
    %p201 = por %p199, %p200
    %p203 = scmp.ne.s32.totalorder %s188, %s202
    %p204 = scmp.eq.s32.totalorder %s77, 0
    %p205 = por %p203, %p204
    %s207 = sadd.s32 %s206, 1
    %p210 = scmp.eq.s32.totalorder %s71, 3
    %p211 = scmp.ne.s32.totalorder %s206, %s208
    %p212 = scmp.eq.s32.totalorder %s71, 0
    %p213 = por %p211, %p212
    %p214 = scmp.ne.s32.totalorder %s206, %s208
    %p215 = scmp.eq.s32.totalorder %s76, 3
    %p216 = por %p214, %p215
    %p217 = scmp.ne.s32.totalorder %s208, %s209
    %p218 = scmp.eq.s32.totalorder %s76, 0
    %p219 = por %p217, %p218
    %p220 = scmp.ne.s32.totalorder %s208, %s209
    %p221 = scmp.eq.s32.totalorder %s77, 3
    %p222 = por %p220, %p221
    %p224 = scmp.ne.s32.totalorder %s209, %s223
    %p225 = scmp.eq.s32.totalorder %s77, 0
    %p226 = por %p224, %p225
    %s228 = sadd.s32 %s227, 1
    %p231 = scmp.eq.s32.totalorder %s71, 3
    %p232 = scmp.ne.s32.totalorder %s227, %s229
    %p233 = scmp.eq.s32.totalorder %s71, 0
    %p234 = por %p232, %p233
    %p235 = scmp.ne.s32.totalorder %s227, %s229
    %p236 = scmp.eq.s32.totalorder %s76, 3
    %p237 = por %p235, %p236
    %p238 = scmp.ne.s32.totalorder %s229, %s230
    %p239 = scmp.eq.s32.totalorder %s76, 0
    %p240 = por %p238, %p239
    %p241 = scmp.ne.s32.totalorder %s229, %s230
    %p242 = scmp.eq.s32.totalorder %s77, 3
    %p243 = por %p241, %p242
    %p245 = scmp.ne.s32.totalorder %s230, %s244
    %p246 = scmp.eq.s32.totalorder %s77, 0
    %p247 = por %p245, %p246
    %s249 = sadd.s32 %s248, 1
    %p252 = scmp.eq.s32.totalorder %s71, 3
    %p253 = scmp.ne.s32.totalorder %s248, %s250
    %p254 = scmp.eq.s32.totalorder %s71, 0
    %p255 = por %p253, %p254
    %p256 = scmp.ne.s32.totalorder %s248, %s250
    %p257 = scmp.eq.s32.totalorder %s76, 3
    %p258 = por %p256, %p257
    %p259 = scmp.ne.s32.totalorder %s250, %s251
    %p260 = scmp.eq.s32.totalorder %s76, 0
    %p261 = por %p259, %p260
    %p262 = scmp.ne.s32.totalorder %s250, %s251
    %p263 = scmp.eq.s32.totalorder %s77, 3
    %p264 = por %p262, %p263
    %p266 = scmp.ne.s32.totalorder %s251, %s265
    %p267 = scmp.eq.s32.totalorder %s77, 0
    %p268 = por %p266, %p267
    %s270 = sadd.s32 %s269, 1
    %p273 = scmp.eq.s32.totalorder %s71, 3
    %p274 = scmp.ne.s32.totalorder %s269, %s271
    %p275 = scmp.eq.s32.totalorder %s71, 0
    %p276 = por %p274, %p275
    %p277 = scmp.ne.s32.totalorder %s269, %s271
    %p278 = scmp.eq.s32.totalorder %s76, 3
    %p279 = por %p277, %p278
    %p280 = scmp.ne.s32.totalorder %s271, %s272
    %p281 = scmp.eq.s32.totalorder %s76, 0
    %p282 = por %p280, %p281
    %p283 = scmp.ne.s32.totalorder %s271, %s272
    %p284 = scmp.eq.s32.totalorder %s77, 3
    %p285 = por %p283, %p284
    %p287 = scmp.ne.s32.totalorder %s272, %s286
    %p288 = scmp.eq.s32.totalorder %s77, 0
    %p289 = por %p287, %p288
    %s291 = sadd.s32 %s290, 1
    %p294 = scmp.eq.s32.totalorder %s71, 3
    %p295 = scmp.ne.s32.totalorder %s290, %s292
    %p296 = scmp.eq.s32.totalorder %s71, 0
    %p297 = por %p295, %p296
    %p298 = scmp.ne.s32.totalorder %s290, %s292
    %p299 = scmp.eq.s32.totalorder %s76, 3
    %p300 = por %p298, %p299
    %p301 = scmp.ne.s32.totalorder %s292, %s293
    %p302 = scmp.eq.s32.totalorder %s76, 0
    %p303 = por %p301, %p302
    %p304 = scmp.ne.s32.totalorder %s292, %s293
    %p305 = scmp.eq.s32.totalorder %s77, 3
    %p306 = por %p304, %p305
    %p308 = scmp.ne.s32.totalorder %s293, %s307
    %p309 = scmp.eq.s32.totalorder %s77, 0
    %p310 = por %p308, %p309
    %s311 = ssub.s32 %s79, %s86
    %p312 = scmp.eq.s32.totalorder %s311, 0
    %s314 = sadd.s32 %s313, 1
    %s315 = scalar_select %p312, %s313, %s314
    %p318 = pneg %p312
    %p319 = scmp.eq.s32.totalorder %s71, 3
    %p320 = por %p318, %p319
    %p321 = scmp.ne.s32.totalorder %s313, %s316
    %p322 = scmp.eq.s32.totalorder %s71, 0
    %p323 = por %p321, %p322
    %p324 = scmp.ne.s32.totalorder %s313, %s316
    %p325 = scmp.eq.s32.totalorder %s76, 3
    %p326 = por %p324, %p325
    %p327 = scmp.ne.s32.totalorder %s316, %s317
    %p328 = scmp.eq.s32.totalorder %s76, 0
    %p329 = por %p327, %p328
    %p330 = scmp.ne.s32.totalorder %s316, %s317
    %p331 = scmp.eq.s32.totalorder %s77, 3
    %p332 = por %p330, %p331
    %p334 = scmp.ne.s32.totalorder %s317, %s333
    %p335 = scmp.eq.s32.totalorder %s77, 0
    %p336 = por %p334, %p335
    %s337 = ssub.s32 %s79, %s86
    %p338 = scmp.eq.s32.totalorder %s337, 0
    %s340 = sadd.s32 %s339, 1
    %s341 = scalar_select %p338, %s339, %s340
    %p344 = pneg %p338
    %p345 = scmp.eq.s32.totalorder %s71, 3
    %p346 = por %p344, %p345
    %p347 = scmp.ne.s32.totalorder %s339, %s342
    %p348 = scmp.eq.s32.totalorder %s71, 0
    %p349 = por %p347, %p348
    %p350 = scmp.ne.s32.totalorder %s339, %s342
    %p351 = scmp.eq.s32.totalorder %s76, 3
    %p352 = por %p350, %p351
    %p353 = scmp.ne.s32.totalorder %s342, %s343
    %p354 = scmp.eq.s32.totalorder %s76, 0
    %p355 = por %p353, %p354
    %p356 = scmp.ne.s32.totalorder %s342, %s343
    %p357 = scmp.eq.s32.totalorder %s77, 3
    %p358 = por %p356, %p357
    %p360 = scmp.ne.s32.totalorder %s343, %s359
    %p361 = scmp.eq.s32.totalorder %s77, 0
    %p362 = por %p360, %p361
    %s363 = ssub.s32 %s79, %s86
    %p364 = scmp.eq.s32.totalorder %s363, 0
    %s366 = sadd.s32 %s365, 1
    %s367 = scalar_select %p364, %s365, %s366
    %p370 = pneg %p364
    %p371 = scmp.eq.s32.totalorder %s71, 3
    %p372 = por %p370, %p371
    %p373 = scmp.ne.s32.totalorder %s365, %s368
    %p374 = scmp.eq.s32.totalorder %s71, 0
    %p375 = por %p373, %p374
    %p376 = scmp.ne.s32.totalorder %s365, %s368
    %p377 = scmp.eq.s32.totalorder %s76, 3
    %p378 = por %p376, %p377
    %p379 = scmp.ne.s32.totalorder %s368, %s369
    %p380 = scmp.eq.s32.totalorder %s76, 0
    %p381 = por %p379, %p380
    %p382 = scmp.ne.s32.totalorder %s368, %s369
    %p383 = scmp.eq.s32.totalorder %s77, 3
    %p384 = por %p382, %p383
    %p386 = scmp.ne.s32.totalorder %s369, %s385
    %p387 = scmp.eq.s32.totalorder %s77, 0
    %p388 = por %p386, %p387
    %s389 = ssub.s32 %s79, %s86
    %p390 = scmp.eq.s32.totalorder %s389, 0
    %s392 = sadd.s32 %s391, 1
    %s393 = scalar_select %p390, %s391, %s392
    %p396 = pneg %p390
    %p397 = scmp.eq.s32.totalorder %s71, 3
    %p398 = por %p396, %p397
    %p399 = scmp.ne.s32.totalorder %s391, %s394
    %p400 = scmp.eq.s32.totalorder %s71, 0
    %p401 = por %p399, %p400
    %p402 = scmp.ne.s32.totalorder %s391, %s394
    %p403 = scmp.eq.s32.totalorder %s76, 3
    %p404 = por %p402, %p403
    %p405 = scmp.ne.s32.totalorder %s394, %s395
    %p406 = scmp.eq.s32.totalorder %s76, 0
    %p407 = por %p405, %p406
    %p408 = scmp.ne.s32.totalorder %s394, %s395
    %p409 = scmp.eq.s32.totalorder %s77, 3
    %p410 = por %p408, %p409
    %p412 = scmp.ne.s32.totalorder %s395, %s411
    %p413 = scmp.eq.s32.totalorder %s77, 0
    %p414 = por %p412, %p413
    %s415 = ssub.s32 %s79, %s86
    %p416 = scmp.eq.s32.totalorder %s415, 0
    %s418 = sadd.s32 %s417, 1
    %s419 = scalar_select %p416, %s417, %s418
    %p422 = pneg %p416
    %p423 = scmp.eq.s32.totalorder %s71, 3
    %p424 = por %p422, %p423
    %p425 = scmp.ne.s32.totalorder %s417, %s420
    %p426 = scmp.eq.s32.totalorder %s71, 0
    %p427 = por %p425, %p426
    %p428 = scmp.ne.s32.totalorder %s417, %s420
    %p429 = scmp.eq.s32.totalorder %s76, 3
    %p430 = por %p428, %p429
    %p431 = scmp.ne.s32.totalorder %s420, %s421
    %p432 = scmp.eq.s32.totalorder %s76, 0
    %p433 = por %p431, %p432
    %p434 = scmp.ne.s32.totalorder %s420, %s421
    %p435 = scmp.eq.s32.totalorder %s77, 3
    %p436 = por %p434, %p435
    %p438 = scmp.ne.s32.totalorder %s421, %s437
    %p439 = scmp.eq.s32.totalorder %s77, 0
    %p440 = por %p438, %p439
    %s441 = ssub.s32 %s79, %s86
    %p442 = scmp.eq.s32.totalorder %s441, 0
    %s444 = sadd.s32 %s443, 1
    %s445 = scalar_select %p442, %s443, %s444
    %p448 = pneg %p442
    %p449 = scmp.eq.s32.totalorder %s71, 3
    %p450 = por %p448, %p449
    %p451 = scmp.ne.s32.totalorder %s443, %s446
    %p452 = scmp.eq.s32.totalorder %s71, 0
    %p453 = por %p451, %p452
    %p454 = scmp.ne.s32.totalorder %s443, %s446
    %p455 = scmp.eq.s32.totalorder %s76, 3
    %p456 = por %p454, %p455
    %p457 = scmp.ne.s32.totalorder %s446, %s447
    %p458 = scmp.eq.s32.totalorder %s76, 0
    %p459 = por %p457, %p458
    %p460 = scmp.ne.s32.totalorder %s446, %s447
    %p461 = scmp.eq.s32.totalorder %s77, 3
    %p462 = por %p460, %p461
    %p464 = scmp.ne.s32.totalorder %s447, %s463
    %p465 = scmp.eq.s32.totalorder %s77, 0
    %p466 = por %p464, %p465
    %s467 = ssub.s32 %s79, %s86
    %p468 = scmp.eq.s32.totalorder %s467, 0
    %s470 = sadd.s32 %s469, 1
    %s471 = scalar_select %p468, %s469, %s470
    %p474 = pneg %p468
    %p475 = scmp.eq.s32.totalorder %s71, 3
    %p476 = por %p474, %p475
    %p477 = scmp.ne.s32.totalorder %s469, %s472
    %p478 = scmp.eq.s32.totalorder %s71, 0
    %p479 = por %p477, %p478
    %p480 = scmp.ne.s32.totalorder %s469, %s472
    %p481 = scmp.eq.s32.totalorder %s76, 3
    %p482 = por %p480, %p481
    %p483 = scmp.ne.s32.totalorder %s472, %s473
    %p484 = scmp.eq.s32.totalorder %s76, 0
    %p485 = por %p483, %p484
    %p486 = scmp.ne.s32.totalorder %s472, %s473
    %p487 = scmp.eq.s32.totalorder %s77, 3
    %p488 = por %p486, %p487
    %p490 = scmp.ne.s32.totalorder %s473, %s489
    %p491 = scmp.eq.s32.totalorder %s77, 0
    %p492 = por %p490, %p491
    %s493 = ssub.s32 %s79, %s86
    %p494 = scmp.eq.s32.totalorder %s493, 0
    %s496 = sadd.s32 %s495, 1
    %s497 = scalar_select %p494, %s495, %s496
    %p500 = pneg %p494
    %p501 = scmp.eq.s32.totalorder %s71, 3
    %p502 = por %p500, %p501
    %p503 = scmp.ne.s32.totalorder %s495, %s498
    %p504 = scmp.eq.s32.totalorder %s71, 0
    %p505 = por %p503, %p504
    %p506 = scmp.ne.s32.totalorder %s495, %s498
    %p507 = scmp.eq.s32.totalorder %s76, 3
    %p508 = por %p506, %p507
    %p509 = scmp.ne.s32.totalorder %s498, %s499
    %p510 = scmp.eq.s32.totalorder %s76, 0
    %p511 = por %p509, %p510
    %p512 = scmp.ne.s32.totalorder %s498, %s499
    %p513 = scmp.eq.s32.totalorder %s77, 3
    %p514 = por %p512, %p513
    %p516 = scmp.ne.s32.totalorder %s499, %s515
    %p517 = scmp.eq.s32.totalorder %s77, 0
    %p518 = por %p516, %p517
    %s519 = ssub.s32 %s79, %s86
    %p520 = scmp.eq.s32.totalorder %s519, 0
    %s522 = sadd.s32 %s521, 1
    %s523 = scalar_select %p520, %s521, %s522
    %p526 = pneg %p520
    %p527 = scmp.eq.s32.totalorder %s71, 3
    %p528 = por %p526, %p527
    %p529 = scmp.ne.s32.totalorder %s521, %s524
    %p530 = scmp.eq.s32.totalorder %s71, 0
    %p531 = por %p529, %p530
    %p532 = scmp.ne.s32.totalorder %s521, %s524
    %p533 = scmp.eq.s32.totalorder %s76, 3
    %p534 = por %p532, %p533
    %p535 = scmp.ne.s32.totalorder %s524, %s525
    %p536 = scmp.eq.s32.totalorder %s76, 0
    %p537 = por %p535, %p536
    %p538 = scmp.ne.s32.totalorder %s524, %s525
    %p539 = scmp.eq.s32.totalorder %s77, 3
    %p540 = por %p538, %p539
    %p542 = scmp.ne.s32.totalorder %s525, %s541
    %p543 = scmp.eq.s32.totalorder %s77, 0
    %p544 = por %p542, %p543
    %s545 = ssub.s32 %s79, %s86
    %p546 = scmp.eq.s32.totalorder %s545, 0
    %s548 = sadd.s32 %s547, 1
    %s549 = scalar_select %p546, %s547, %s548
    %p552 = pneg %p546
    %p553 = scmp.eq.s32.totalorder %s71, 3
    %p554 = por %p552, %p553
    %p555 = scmp.ne.s32.totalorder %s547, %s550
    %p556 = scmp.eq.s32.totalorder %s71, 0
    %p557 = por %p555, %p556
    %p558 = scmp.ne.s32.totalorder %s547, %s550
    %p559 = scmp.eq.s32.totalorder %s76, 3
    %p560 = por %p558, %p559
    %p561 = scmp.ne.s32.totalorder %s550, %s551
    %p562 = scmp.eq.s32.totalorder %s76, 0
    %p563 = por %p561, %p562
    %p564 = scmp.ne.s32.totalorder %s550, %s551
    %p565 = scmp.eq.s32.totalorder %s77, 3
    %p566 = por %p564, %p565
    %p568 = scmp.ne.s32.totalorder %s551, %s567
    %p569 = scmp.eq.s32.totalorder %s77, 0
    %p570 = por %p568, %p569
    %s571 = ssub.s32 %s79, %s86
    %p572 = scmp.eq.s32.totalorder %s571, 0
    %s574 = sadd.s32 %s573, 1
    %s575 = scalar_select %p572, %s573, %s574
    %p578 = pneg %p572
    %p579 = scmp.eq.s32.totalorder %s71, 3
    %p580 = por %p578, %p579
    %p581 = scmp.ne.s32.totalorder %s573, %s576
    %p582 = scmp.eq.s32.totalorder %s71, 0
    %p583 = por %p581, %p582
    %p584 = scmp.ne.s32.totalorder %s573, %s576
    %p585 = scmp.eq.s32.totalorder %s76, 3
    %p586 = por %p584, %p585
    %p587 = scmp.ne.s32.totalorder %s576, %s577
    %p588 = scmp.eq.s32.totalorder %s76, 0
    %p589 = por %p587, %p588
    %p590 = scmp.ne.s32.totalorder %s576, %s577
    %p591 = scmp.eq.s32.totalorder %s77, 3
    %p592 = por %p590, %p591
    %p594 = scmp.ne.s32.totalorder %s577, %s593
    %p595 = scmp.eq.s32.totalorder %s77, 0
    %p596 = por %p594, %p595
    %s597 = ssub.s32 %s79, %s86
    %p598 = scmp.eq.s32.totalorder %s597, 0
    %s600 = sadd.s32 %s599, 1
    %s601 = scalar_select %p598, %s599, %s600
    %p604 = pneg %p598
    %p605 = scmp.eq.s32.totalorder %s71, 3
    %p606 = por %p604, %p605
    %p607 = scmp.ne.s32.totalorder %s599, %s602
    %p608 = scmp.eq.s32.totalorder %s71, 0
    %p609 = por %p607, %p608
    %p610 = scmp.ne.s32.totalorder %s599, %s602
    %p611 = scmp.eq.s32.totalorder %s76, 3
    %p612 = por %p610, %p611
    %p613 = scmp.ne.s32.totalorder %s602, %s603
    %p614 = scmp.eq.s32.totalorder %s76, 0
    %p615 = por %p613, %p614
    %p616 = scmp.ne.s32.totalorder %s602, %s603
    %p617 = scmp.eq.s32.totalorder %s77, 3
    %p618 = por %p616, %p617
    %p620 = scmp.ne.s32.totalorder %s603, %s619
    %p621 = scmp.eq.s32.totalorder %s77, 0
    %p622 = por %p620, %p621
    %s623 = ssub.s32 %s79, %s86
    %p624 = scmp.eq.s32.totalorder %s623, 0
    %s626 = sadd.s32 %s625, 1
    %s627 = scalar_select %p624, %s625, %s626
    %p630 = pneg %p624
    %p631 = scmp.eq.s32.totalorder %s71, 3
    %p632 = por %p630, %p631
    %p633 = scmp.ne.s32.totalorder %s625, %s628
    %p634 = scmp.eq.s32.totalorder %s71, 0
    %p635 = por %p633, %p634
    %p636 = scmp.ne.s32.totalorder %s625, %s628
    %p637 = scmp.eq.s32.totalorder %s76, 3
    %p638 = por %p636, %p637
    %p639 = scmp.ne.s32.totalorder %s628, %s629
    %p640 = scmp.eq.s32.totalorder %s76, 0
    %p641 = por %p639, %p640
    %p642 = scmp.ne.s32.totalorder %s628, %s629
    %p643 = scmp.eq.s32.totalorder %s77, 3
    %p644 = por %p642, %p643
    %p646 = scmp.ne.s32.totalorder %s629, %s645
    %p647 = scmp.eq.s32.totalorder %s77, 0
    %p648 = por %p646, %p647
    %s649 = ssub.s32 %s79, %s86
    %p650 = scmp.eq.s32.totalorder %s649, 0
    %s652 = sadd.s32 %s651, 1
    %s653 = scalar_select %p650, %s651, %s652
    %p656 = pneg %p650
    %p657 = scmp.eq.s32.totalorder %s71, 3
    %p658 = por %p656, %p657
    %p659 = scmp.ne.s32.totalorder %s651, %s654
    %p660 = scmp.eq.s32.totalorder %s71, 0
    %p661 = por %p659, %p660
    %p662 = scmp.ne.s32.totalorder %s651, %s654
    %p663 = scmp.eq.s32.totalorder %s76, 3
    %p664 = por %p662, %p663
    %p665 = scmp.ne.s32.totalorder %s654, %s655
    %p666 = scmp.eq.s32.totalorder %s76, 0
    %p667 = por %p665, %p666
    %p668 = scmp.ne.s32.totalorder %s654, %s655
    %p669 = scmp.eq.s32.totalorder %s77, 3
    %p670 = por %p668, %p669
    %p672 = scmp.ne.s32.totalorder %s655, %s671
    %p673 = scmp.eq.s32.totalorder %s77, 0
    %p674 = por %p672, %p673
    %s675 = ssub.s32 %s79, %s86
    %p676 = scmp.eq.s32.totalorder %s675, 0
    %s678 = sadd.s32 %s677, 1
    %s679 = scalar_select %p676, %s677, %s678
    %p682 = pneg %p676
    %p683 = scmp.eq.s32.totalorder %s71, 3
    %p684 = por %p682, %p683
    %p685 = scmp.ne.s32.totalorder %s677, %s680
    %p686 = scmp.eq.s32.totalorder %s71, 0
    %p687 = por %p685, %p686
    %p688 = scmp.ne.s32.totalorder %s677, %s680
    %p689 = scmp.eq.s32.totalorder %s76, 3
    %p690 = por %p688, %p689
    %p691 = scmp.ne.s32.totalorder %s680, %s681
    %p692 = scmp.eq.s32.totalorder %s76, 0
    %p693 = por %p691, %p692
    %p694 = scmp.ne.s32.totalorder %s680, %s681
    %p695 = scmp.eq.s32.totalorder %s77, 3
    %p696 = por %p694, %p695
    %p698 = scmp.ne.s32.totalorder %s681, %s697
    %p699 = scmp.eq.s32.totalorder %s77, 0
    %p700 = por %p698, %p699
    %s702 = sadd.s32 %s701, 1
    %p705 = scmp.eq.s32.totalorder %s71, 3
    %p706 = scmp.ne.s32.totalorder %s701, %s703
    %p707 = scmp.eq.s32.totalorder %s71, 0
    %p708 = por %p706, %p707
    %p709 = scmp.ne.s32.totalorder %s701, %s703
    %p710 = scmp.eq.s32.totalorder %s76, 3
    %p711 = por %p709, %p710
    %p712 = scmp.ne.s32.totalorder %s703, %s704
    %p713 = scmp.eq.s32.totalorder %s76, 0
    %p714 = por %p712, %p713
    %p715 = scmp.ne.s32.totalorder %s703, %s704
    %p716 = scmp.eq.s32.totalorder %s77, 3
    %p717 = por %p715, %p716
    %p719 = scmp.ne.s32.totalorder %s704, %s718
    %p720 = scmp.eq.s32.totalorder %s77, 0
    %p721 = por %p719, %p720
    %s723 = sadd.s32 %s722, 1
    %p726 = scmp.eq.s32.totalorder %s71, 3
    %p727 = scmp.ne.s32.totalorder %s722, %s724
    %p728 = scmp.eq.s32.totalorder %s71, 0
    %p729 = por %p727, %p728
    %p730 = scmp.ne.s32.totalorder %s722, %s724
    %p731 = scmp.eq.s32.totalorder %s76, 3
    %p732 = por %p730, %p731
    %p733 = scmp.ne.s32.totalorder %s724, %s725
    %p734 = scmp.eq.s32.totalorder %s76, 0
    %p735 = por %p733, %p734
    %p736 = scmp.ne.s32.totalorder %s724, %s725
    %p737 = scmp.eq.s32.totalorder %s77, 3
    %p738 = por %p736, %p737
    %p740 = scmp.ne.s32.totalorder %s725, %s739
    %p741 = scmp.eq.s32.totalorder %s77, 0
    %p742 = por %p740, %p741
    %s744 = sadd.s32 %s743, 1
    %p747 = scmp.eq.s32.totalorder %s71, 3
    %p748 = scmp.ne.s32.totalorder %s743, %s745
    %p749 = scmp.eq.s32.totalorder %s71, 0
    %p750 = por %p748, %p749
    %p751 = scmp.ne.s32.totalorder %s743, %s745
    %p752 = scmp.eq.s32.totalorder %s76, 3
    %p753 = por %p751, %p752
    %p754 = scmp.ne.s32.totalorder %s745, %s746
    %p755 = scmp.eq.s32.totalorder %s76, 0
    %p756 = por %p754, %p755
    %p757 = scmp.ne.s32.totalorder %s745, %s746
    %p758 = scmp.eq.s32.totalorder %s77, 3
    %p759 = por %p757, %p758
    %p761 = scmp.ne.s32.totalorder %s746, %s760
    %p762 = scmp.eq.s32.totalorder %s77, 0
    %p763 = por %p761, %p762
    %s765 = sadd.s32 %s764, 1
    %p768 = scmp.eq.s32.totalorder %s71, 3
    %p769 = scmp.ne.s32.totalorder %s764, %s766
    %p770 = scmp.eq.s32.totalorder %s71, 0
    %p771 = por %p769, %p770
    %p772 = scmp.ne.s32.totalorder %s764, %s766
    %p773 = scmp.eq.s32.totalorder %s76, 3
    %p774 = por %p772, %p773
    %p775 = scmp.ne.s32.totalorder %s766, %s767
    %p776 = scmp.eq.s32.totalorder %s76, 0
    %p777 = por %p775, %p776
    %p778 = scmp.ne.s32.totalorder %s766, %s767
    %p779 = scmp.eq.s32.totalorder %s77, 3
    %p780 = por %p778, %p779
    %p782 = scmp.ne.s32.totalorder %s767, %s781
    %p783 = scmp.eq.s32.totalorder %s77, 0
    %p784 = por %p782, %p783
    %s786 = sadd.s32 %s785, 1
    %p789 = scmp.eq.s32.totalorder %s71, 3
    %p790 = scmp.ne.s32.totalorder %s785, %s787
    %p791 = scmp.eq.s32.totalorder %s71, 0
    %p792 = por %p790, %p791
    %p793 = scmp.ne.s32.totalorder %s785, %s787
    %p794 = scmp.eq.s32.totalorder %s76, 3
    %p795 = por %p793, %p794
    %p796 = scmp.ne.s32.totalorder %s787, %s788
    %p797 = scmp.eq.s32.totalorder %s76, 0
    %p798 = por %p796, %p797
    %p799 = scmp.ne.s32.totalorder %s787, %s788
    %p800 = scmp.eq.s32.totalorder %s77, 3
    %p801 = por %p799, %p800
    %p803 = scmp.ne.s32.totalorder %s788, %s802
    %p804 = scmp.eq.s32.totalorder %s77, 0
    %p805 = por %p803, %p804
    %s807 = sadd.s32 %s806, 1
    %p810 = scmp.eq.s32.totalorder %s71, 3
    %p811 = scmp.ne.s32.totalorder %s806, %s808
    %p812 = scmp.eq.s32.totalorder %s71, 0
    %p813 = por %p811, %p812
    %p814 = scmp.ne.s32.totalorder %s806, %s808
    %p815 = scmp.eq.s32.totalorder %s76, 3
    %p816 = por %p814, %p815
    %p817 = scmp.ne.s32.totalorder %s808, %s809
    %p818 = scmp.eq.s32.totalorder %s76, 0
    %p819 = por %p817, %p818
    %p820 = scmp.ne.s32.totalorder %s808, %s809
    %p821 = scmp.eq.s32.totalorder %s77, 3
    %p822 = por %p820, %p821
    %p824 = scmp.ne.s32.totalorder %s809, %s823
    %p825 = scmp.eq.s32.totalorder %s77, 0
    %p826 = por %p824, %p825
    %s828 = sadd.s32 %s827, 1
    %p831 = scmp.eq.s32.totalorder %s71, 3
    %p832 = scmp.ne.s32.totalorder %s827, %s829
    %p833 = scmp.eq.s32.totalorder %s71, 0
    %p834 = por %p832, %p833
    %p835 = scmp.ne.s32.totalorder %s827, %s829
    %p836 = scmp.eq.s32.totalorder %s76, 3
    %p837 = por %p835, %p836
    %p838 = scmp.ne.s32.totalorder %s829, %s830
    %p839 = scmp.eq.s32.totalorder %s76, 0
    %p840 = por %p838, %p839
    %p841 = scmp.ne.s32.totalorder %s829, %s830
    %p842 = scmp.eq.s32.totalorder %s77, 3
    %p843 = por %p841, %p842
    %p845 = scmp.ne.s32.totalorder %s830, %s844
    %p846 = scmp.eq.s32.totalorder %s77, 0
    %p847 = por %p845, %p846
    %s848 = ssub.s32 %s78, %s90
    %p849 = scmp.eq.s32.totalorder %s848, 0
    %s851 = sadd.s32 %s850, 1
    %s852 = scalar_select %p849, %s850, %s851
    %p855 = pneg %p849
    %p856 = scmp.eq.s32.totalorder %s71, 3
    %p857 = por %p855, %p856
    %p858 = scmp.ne.s32.totalorder %s850, %s853
    %p859 = scmp.eq.s32.totalorder %s71, 0
    %p860 = por %p858, %p859
    %p861 = scmp.ne.s32.totalorder %s850, %s853
    %p862 = scmp.eq.s32.totalorder %s76, 3
    %p863 = por %p861, %p862
    %p864 = scmp.ne.s32.totalorder %s853, %s854
    %p865 = scmp.eq.s32.totalorder %s76, 0
    %p866 = por %p864, %p865
    %p867 = scmp.ne.s32.totalorder %s853, %s854
    %p868 = scmp.eq.s32.totalorder %s77, 3
    %p869 = por %p867, %p868
    %p871 = scmp.ne.s32.totalorder %s854, %s870
    %p872 = scmp.eq.s32.totalorder %s77, 0
    %p873 = por %p871, %p872
    %p874 = scmp.le.s32.totalorder 1, %s71
    %p875 = scmp.lt.s32.totalorder %s71, 5
    %p876 = pnand %p874, %p875
    %p877 = pneg %p876
    // Predicated region
    $region9: #{tpu_custom_call.1} parent=5 // pred_check
      _
    $region10: #{tpu_custom_call.1} parent=5 // pred_check_branch
      %879 = sbr.rel (%p876) target = $region12
    $region11: #{tpu_custom_call.1} parent=5 // pred_region
      %s880 = ssub.s32 %s71, 1
      // Predicated region
      $region13: #{tpu_custom_call.1} parent=11 // pred_check
        %p881 = pneg %p156
      $region14: #{tpu_custom_call.1} parent=11 // pred_check_branch
        %883 = sbr.rel (%p881) target = $region16
      $region15: #{tpu_custom_call.1} parent=11 // pred_region
        _
      $region16: #{tpu_custom_call.1} parent=11 // pred_fallthru
        _
      // Predicated region
      $region17: #{tpu_custom_call.1} parent=11 // pred_check
        %p884 = pneg %p177
      $region18: #{tpu_custom_call.1} parent=11 // pred_check_branch
        %886 = sbr.rel (%p884) target = $region20
      $region19: #{tpu_custom_call.1} parent=11 // pred_region
        _
      $region20: #{tpu_custom_call.1} parent=11 // pred_fallthru
        _
      // Predicated region
      $region21: #{tpu_custom_call.1} parent=11 // pred_check
        %p887 = pneg %p198
      $region22: #{tpu_custom_call.1} parent=11 // pred_check_branch
        %889 = sbr.rel (%p887) target = $region24
      $region23: #{tpu_custom_call.1} parent=11 // pred_region
        _
      $region24: #{tpu_custom_call.1} parent=11 // pred_fallthru
        _
      // Predicated region
      $region25: #{tpu_custom_call.1} parent=11 // pred_check
        %p890 = pneg %p219
      $region26: #{tpu_custom_call.1} parent=11 // pred_check_branch
        %892 = sbr.rel (%p890) target = $region28
      $region27: #{tpu_custom_call.1} parent=11 // pred_region
        _
      $region28: #{tpu_custom_call.1} parent=11 // pred_fallthru
        _
      // Predicated region
      $region29: #{tpu_custom_call.1} parent=11 // pred_check
        %p893 = pneg %p240
      $region30: #{tpu_custom_call.1} parent=11 // pred_check_branch
        %895 = sbr.rel (%p893) target = $region32
      $region31: #{tpu_custom_call.1} parent=11 // pred_region
        _
      $region32: #{tpu_custom_call.1} parent=11 // pred_fallthru
        _
      // Predicated region
      $region33: #{tpu_custom_call.1} parent=11 // pred_check
        %p896 = pneg %p261
      $region34: #{tpu_custom_call.1} parent=11 // pred_check_branch
        %898 = sbr.rel (%p896) target = $region36
      $region35: #{tpu_custom_call.1} parent=11 // pred_region
        _
      $region36: #{tpu_custom_call.1} parent=11 // pred_fallthru
        _
      // Predicated region
      $region37: #{tpu_custom_call.1} parent=11 // pred_check
        %p899 = pneg %p282
      $region38: #{tpu_custom_call.1} parent=11 // pred_check_branch
        %901 = sbr.rel (%p899) target = $region40
      $region39: #{tpu_custom_call.1} parent=11 // pred_region
        _
      $region40: #{tpu_custom_call.1} parent=11 // pred_fallthru
        _
      // Predicated region
      $region41: #{tpu_custom_call.1} parent=11 // pred_check
        %p902 = pneg %p303
      $region42: #{tpu_custom_call.1} parent=11 // pred_check_branch
        %904 = sbr.rel (%p902) target = $region44
      $region43: #{tpu_custom_call.1} parent=11 // pred_region
        _
      $region44: #{tpu_custom_call.1} parent=11 // pred_fallthru
        _
      // Predicated region
      $region45: #{tpu_custom_call.1} parent=11 // pred_check
        %p905 = pneg %p714
      $region46: #{tpu_custom_call.1} parent=11 // pred_check_branch
        %907 = sbr.rel (%p905) target = $region48
      $region47: #{tpu_custom_call.1} parent=11 // pred_region
        _
      $region48: #{tpu_custom_call.1} parent=11 // pred_fallthru
        _
      // Predicated region
      $region49: #{tpu_custom_call.1} parent=11 // pred_check
        %p908 = pneg %p735
      $region50: #{tpu_custom_call.1} parent=11 // pred_check_branch
        %910 = sbr.rel (%p908) target = $region52
      $region51: #{tpu_custom_call.1} parent=11 // pred_region
        _
      $region52: #{tpu_custom_call.1} parent=11 // pred_fallthru
        _
      // Predicated region
      $region53: #{tpu_custom_call.1} parent=11 // pred_check
        %p911 = pneg %p756
      $region54: #{tpu_custom_call.1} parent=11 // pred_check_branch
        %913 = sbr.rel (%p911) target = $region56
      $region55: #{tpu_custom_call.1} parent=11 // pred_region
        _
      $region56: #{tpu_custom_call.1} parent=11 // pred_fallthru
        _
      // Predicated region
      $region57: #{tpu_custom_call.1} parent=11 // pred_check
        %p914 = pneg %p777
      $region58: #{tpu_custom_call.1} parent=11 // pred_check_branch
        %916 = sbr.rel (%p914) target = $region60
      $region59: #{tpu_custom_call.1} parent=11 // pred_region
        _
      $region60: #{tpu_custom_call.1} parent=11 // pred_fallthru
        _
      // Predicated region
      $region61: #{tpu_custom_call.1} parent=11 // pred_check
        %p917 = pneg %p798
      $region62: #{tpu_custom_call.1} parent=11 // pred_check_branch
        %919 = sbr.rel (%p917) target = $region64
      $region63: #{tpu_custom_call.1} parent=11 // pred_region
        _
      $region64: #{tpu_custom_call.1} parent=11 // pred_fallthru
        _
      // Predicated region
      $region65: #{tpu_custom_call.1} parent=11 // pred_check
        %p920 = pneg %p819
      $region66: #{tpu_custom_call.1} parent=11 // pred_check_branch
        %922 = sbr.rel (%p920) target = $region68
      $region67: #{tpu_custom_call.1} parent=11 // pred_region
        _
      $region68: #{tpu_custom_call.1} parent=11 // pred_fallthru
        _
      // Predicated region
      $region69: #{tpu_custom_call.1} parent=11 // pred_check
        %p923 = pneg %p840
      $region70: #{tpu_custom_call.1} parent=11 // pred_check_branch
        %925 = sbr.rel (%p923) target = $region72
      $region71: #{tpu_custom_call.1} parent=11 // pred_region
        _
      $region72: #{tpu_custom_call.1} parent=11 // pred_fallthru
        _
    $region12: #{tpu_custom_call.1} parent=5 // pred_fallthru
      _
    %p926 = scmp.lt.s32.totalorder %s71, 4
    // Predicated region
    $region73: #{tpu_custom_call.1} parent=5 // pred_check
      %p927 = pneg %p926
    $region74: #{tpu_custom_call.1} parent=5 // pred_check_branch
      %929 = sbr.rel (%p927) target = $region76
    $region75: #{tpu_custom_call.1} parent=5 // pred_region
      // Predicated region
      $region77: #{tpu_custom_call.1} parent=75 // pred_check
        %p930 = pneg %p103
      $region78: #{tpu_custom_call.1} parent=75 // pred_check_branch
        %932 = sbr.rel (%p930) target = $region80
      $region79: #{tpu_custom_call.1} parent=75 // pred_region
        %p933 = scmp.lt.s32.totalorder %s78, 1
        %s934 = scalar_select %p933, %s78, 1
        %s935 = smul.addr %s934, 16
        %s936 = smul.addr %s935, 8
        %s937 = scalar_lea.vmem %s1, %s936
      $region80: #{tpu_custom_call.1} parent=75 // pred_fallthru
        _
      // Predicated region
      $region81: #{tpu_custom_call.1} parent=75 // pred_check
        %p938 = pneg %p129
      $region82: #{tpu_custom_call.1} parent=75 // pred_check_branch
        %940 = sbr.rel (%p938) target = $region84
      $region83: #{tpu_custom_call.1} parent=75 // pred_region
        %p941 = scmp.lt.s32.totalorder %s78, 1
        %s942 = scalar_select %p941, %s78, 1
        %s943 = scalar_lea.vmem %s3, %s942
      $region84: #{tpu_custom_call.1} parent=75 // pred_fallthru
        _
      // Predicated region
      $region85: #{tpu_custom_call.1} parent=75 // pred_check
        %p944 = pneg %p323
      $region86: #{tpu_custom_call.1} parent=75 // pred_check_branch
        %946 = sbr.rel (%p944) target = $region88
      $region87: #{tpu_custom_call.1} parent=75 // pred_region
        %p947 = scmp.lt.s32.totalorder %s79, 1
        %s948 = scalar_select %p947, %s79, 1
        %s949 = scalar_lea.vmem %s21, %s948
      $region88: #{tpu_custom_call.1} parent=75 // pred_fallthru
        _
      // Predicated region
      $region89: #{tpu_custom_call.1} parent=75 // pred_check
        %p950 = pneg %p349
      $region90: #{tpu_custom_call.1} parent=75 // pred_check_branch
        %952 = sbr.rel (%p950) target = $region92
      $region91: #{tpu_custom_call.1} parent=75 // pred_region
        %p953 = scmp.lt.s32.totalorder %s79, 1
        %s954 = scalar_select %p953, %s79, 1
        %s955 = scalar_lea.vmem %s23, %s954
      $region92: #{tpu_custom_call.1} parent=75 // pred_fallthru
        _
      // Predicated region
      $region93: #{tpu_custom_call.1} parent=75 // pred_check
        %p956 = pneg %p375
      $region94: #{tpu_custom_call.1} parent=75 // pred_check_branch
        %958 = sbr.rel (%p956) target = $region96
      $region95: #{tpu_custom_call.1} parent=75 // pred_region
        %p959 = scmp.lt.s32.totalorder %s79, 1
        %s960 = scalar_select %p959, %s79, 1
        %s961 = smul.addr %s960, 8
        %s962 = smul.addr %s961, 4
        %s963 = scalar_lea.vmem %s25, %s962
      $region96: #{tpu_custom_call.1} parent=75 // pred_fallthru
        _
      // Predicated region
      $region97: #{tpu_custom_call.1} parent=75 // pred_check
        %p964 = pneg %p401
      $region98: #{tpu_custom_call.1} parent=75 // pred_check_branch
        %966 = sbr.rel (%p964) target = $region100
      $region99: #{tpu_custom_call.1} parent=75 // pred_region
        %p967 = scmp.lt.s32.totalorder %s79, 1
        %s968 = scalar_select %p967, %s79, 1
        %s969 = scalar_lea.vmem %s27, %s968
      $region100: #{tpu_custom_call.1} parent=75 // pred_fallthru
        _
      // Predicated region
      $region101: #{tpu_custom_call.1} parent=75 // pred_check
        %p970 = pneg %p427
      $region102: #{tpu_custom_call.1} parent=75 // pred_check_branch
        %972 = sbr.rel (%p970) target = $region104
      $region103: #{tpu_custom_call.1} parent=75 // pred_region
        %p973 = scmp.lt.s32.totalorder %s79, 1
        %s974 = scalar_select %p973, %s79, 1
        %s975 = scalar_lea.vmem %s29, %s974
      $region104: #{tpu_custom_call.1} parent=75 // pred_fallthru
        _
      // Predicated region
      $region105: #{tpu_custom_call.1} parent=75 // pred_check
        %p976 = pneg %p453
      $region106: #{tpu_custom_call.1} parent=75 // pred_check_branch
        %978 = sbr.rel (%p976) target = $region108
      $region107: #{tpu_custom_call.1} parent=75 // pred_region
        %p979 = scmp.lt.s32.totalorder %s79, 1
        %s980 = scalar_select %p979, %s79, 1
        %s981 = scalar_lea.vmem %s31, %s980
      $region108: #{tpu_custom_call.1} parent=75 // pred_fallthru
        _
      // Predicated region
      $region109: #{tpu_custom_call.1} parent=75 // pred_check
        %p982 = pneg %p479
      $region110: #{tpu_custom_call.1} parent=75 // pred_check_branch
        %984 = sbr.rel (%p982) target = $region112
      $region111: #{tpu_custom_call.1} parent=75 // pred_region
        %p985 = scmp.lt.s32.totalorder %s79, 1
        %s986 = scalar_select %p985, %s79, 1
        %s987 = smul.addr %s986, 8
        %s988 = smul.addr %s987, 4
        %s989 = scalar_lea.vmem %s33, %s988
      $region112: #{tpu_custom_call.1} parent=75 // pred_fallthru
        _
      // Predicated region
      $region113: #{tpu_custom_call.1} parent=75 // pred_check
        %p990 = pneg %p505
      $region114: #{tpu_custom_call.1} parent=75 // pred_check_branch
        %992 = sbr.rel (%p990) target = $region116
      $region115: #{tpu_custom_call.1} parent=75 // pred_region
        %p993 = scmp.lt.s32.totalorder %s79, 1
        %s994 = scalar_select %p993, %s79, 1
        %s995 = scalar_lea.vmem %s35, %s994
      $region116: #{tpu_custom_call.1} parent=75 // pred_fallthru
        _
      // Predicated region
      $region117: #{tpu_custom_call.1} parent=75 // pred_check
        %p996 = pneg %p531
      $region118: #{tpu_custom_call.1} parent=75 // pred_check_branch
        %998 = sbr.rel (%p996) target = $region120
      $region119: #{tpu_custom_call.1} parent=75 // pred_region
        %p999 = scmp.lt.s32.totalorder %s79, 1
        %s1000 = scalar_select %p999, %s79, 1
        %s1001 = smul.addr %s1000, 8
        %s1002 = smul.addr %s1001, 8
        %s1003 = scalar_lea.vmem %s37, %s1002
      $region120: #{tpu_custom_call.1} parent=75 // pred_fallthru
        _
      // Predicated region
      $region121: #{tpu_custom_call.1} parent=75 // pred_check
        %p1004 = pneg %p557
      $region122: #{tpu_custom_call.1} parent=75 // pred_check_branch
        %1006 = sbr.rel (%p1004) target = $region124
      $region123: #{tpu_custom_call.1} parent=75 // pred_region
        %p1007 = scmp.lt.s32.totalorder %s79, 1
        %s1008 = scalar_select %p1007, %s79, 1
        %s1009 = scalar_lea.vmem %s39, %s1008
      $region124: #{tpu_custom_call.1} parent=75 // pred_fallthru
        _
      // Predicated region
      $region125: #{tpu_custom_call.1} parent=75 // pred_check
        %p1010 = pneg %p583
      $region126: #{tpu_custom_call.1} parent=75 // pred_check_branch
        %1012 = sbr.rel (%p1010) target = $region128
      $region127: #{tpu_custom_call.1} parent=75 // pred_region
        %p1013 = scmp.lt.s32.totalorder %s79, 1
        %s1014 = scalar_select %p1013, %s79, 1
        %s1015 = smul.addr %s1014, 2
        %s1016 = smul.addr %s1015, 8
        %s1017 = scalar_lea.vmem %s41, %s1016
      $region128: #{tpu_custom_call.1} parent=75 // pred_fallthru
        _
      // Predicated region
      $region129: #{tpu_custom_call.1} parent=75 // pred_check
        %p1018 = pneg %p609
      $region130: #{tpu_custom_call.1} parent=75 // pred_check_branch
        %1020 = sbr.rel (%p1018) target = $region132
      $region131: #{tpu_custom_call.1} parent=75 // pred_region
        %p1021 = scmp.lt.s32.totalorder %s79, 1
        %s1022 = scalar_select %p1021, %s79, 1
        %s1023 = scalar_lea.vmem %s43, %s1022
      $region132: #{tpu_custom_call.1} parent=75 // pred_fallthru
        _
      // Predicated region
      $region133: #{tpu_custom_call.1} parent=75 // pred_check
        %p1024 = pneg %p635
      $region134: #{tpu_custom_call.1} parent=75 // pred_check_branch
        %1026 = sbr.rel (%p1024) target = $region136
      $region135: #{tpu_custom_call.1} parent=75 // pred_region
        %p1027 = scmp.lt.s32.totalorder %s79, 1
        %s1028 = scalar_select %p1027, %s79, 1
        %s1029 = smul.addr %s1028, 4
        %s1030 = smul.addr %s1029, 4
        %s1031 = scalar_lea.vmem %s45, %s1030
      $region136: #{tpu_custom_call.1} parent=75 // pred_fallthru
        _
      // Predicated region
      $region137: #{tpu_custom_call.1} parent=75 // pred_check
        %p1032 = pneg %p661
      $region138: #{tpu_custom_call.1} parent=75 // pred_check_branch
        %1034 = sbr.rel (%p1032) target = $region140
      $region139: #{tpu_custom_call.1} parent=75 // pred_region
        %p1035 = scmp.lt.s32.totalorder %s79, 1
        %s1036 = scalar_select %p1035, %s79, 1
        %s1037 = smul.addr %s1036, 4
        %s1038 = smul.addr %s1037, 8
        %s1039 = scalar_lea.vmem %s47, %s1038
      $region140: #{tpu_custom_call.1} parent=75 // pred_fallthru
        _
      // Predicated region
      $region141: #{tpu_custom_call.1} parent=75 // pred_check
        %p1040 = pneg %p687
      $region142: #{tpu_custom_call.1} parent=75 // pred_check_branch
        %1042 = sbr.rel (%p1040) target = $region144
      $region143: #{tpu_custom_call.1} parent=75 // pred_region
        %p1043 = scmp.lt.s32.totalorder %s79, 1
        %s1044 = scalar_select %p1043, %s79, 1
        %s1045 = scalar_lea.vmem %s49, %s1044
      $region144: #{tpu_custom_call.1} parent=75 // pred_fallthru
        _
    $region76: #{tpu_custom_call.1} parent=5 // pred_fallthru
      _
    %p1046 = scmp.le.s32.totalorder 1, %s71
    %p1047 = scmp.lt.s32.totalorder %s71, 5
    %p1048 = pnand %p1046, %p1047
    %p1049 = pneg %p1048
    // Predicated region
    $region145: #{tpu_custom_call.1} parent=5 // pred_check
      _
    $region146: #{tpu_custom_call.1} parent=5 // pred_check_branch
      %1051 = sbr.rel (%p1048) target = $region148
    $region147: #{tpu_custom_call.1} parent=5 // pred_region
      %s1052 = ssub.s32 %s71, 1
      %p1053 = scmp.lt.s32.totalorder %s80, 1
      %s1054 = scalar_select %p1053, %s80, 1
      %s1055 = smul.addr %s1054, 16
      %s1056 = smul.addr %s1055, 8
      %s1057 = scalar_lea.vmem %s1, %s1056
      %p1058 = pneg %p109
      %p1059 = pneg %p106
      %p1060 = scmp.lt.s32.totalorder %s80, 1
      %s1061 = scalar_select %p1060, %s80, 1
      %s1062 = scalar_lea.vmem %s3, %s1061
      %p1063 = pneg %p135
      %p1064 = pneg %p132
      %p1065 = pneg %p156
      %p1066 = pneg %p153
      %p1067 = pneg %p177
      %p1068 = pneg %p174
      %p1069 = pneg %p198
      %p1070 = pneg %p195
      %p1071 = pneg %p219
      %p1072 = pneg %p216
      %p1073 = pneg %p240
      %p1074 = pneg %p237
      %p1075 = pneg %p261
      %p1076 = pneg %p258
      %p1077 = pneg %p282
      %p1078 = pneg %p279
      %p1079 = pneg %p303
      %p1080 = pneg %p300
      %p1081 = scmp.lt.s32.totalorder %s81, 1
      %s1082 = scalar_select %p1081, %s81, 1
      %s1083 = scalar_lea.vmem %s21, %s1082
      %p1084 = pneg %p329
      %p1085 = pneg %p326
      %p1086 = scmp.lt.s32.totalorder %s81, 1
      %s1087 = scalar_select %p1086, %s81, 1
      %s1088 = scalar_lea.vmem %s23, %s1087
      %p1089 = pneg %p355
      %p1090 = pneg %p352
      %p1091 = scmp.lt.s32.totalorder %s81, 1
      %s1092 = scalar_select %p1091, %s81, 1
      %s1093 = smul.addr %s1092, 8
      %s1094 = smul.addr %s1093, 4
      %s1095 = scalar_lea.vmem %s25, %s1094
      %p1096 = pneg %p381
      %p1097 = pneg %p378
      %p1098 = scmp.lt.s32.totalorder %s81, 1
      %s1099 = scalar_select %p1098, %s81, 1
      %s1100 = scalar_lea.vmem %s27, %s1099
      %p1101 = pneg %p407
      %p1102 = pneg %p404
      %p1103 = scmp.lt.s32.totalorder %s81, 1
      %s1104 = scalar_select %p1103, %s81, 1
      %s1105 = scalar_lea.vmem %s29, %s1104
      %p1106 = pneg %p433
      %p1107 = pneg %p430
      %p1108 = scmp.lt.s32.totalorder %s81, 1
      %s1109 = scalar_select %p1108, %s81, 1
      %s1110 = scalar_lea.vmem %s31, %s1109
      %p1111 = pneg %p459
      %p1112 = pneg %p456
      %p1113 = scmp.lt.s32.totalorder %s81, 1
      %s1114 = scalar_select %p1113, %s81, 1
      %s1115 = smul.addr %s1114, 8
      %s1116 = smul.addr %s1115, 4
      %s1117 = scalar_lea.vmem %s33, %s1116
      %p1118 = pneg %p485
      %p1119 = pneg %p482
      %p1120 = scmp.lt.s32.totalorder %s81, 1
      %s1121 = scalar_select %p1120, %s81, 1
      %s1122 = scalar_lea.vmem %s35, %s1121
      %p1123 = pneg %p511
      %p1124 = pneg %p508
      %p1125 = scmp.lt.s32.totalorder %s81, 1
      %s1126 = scalar_select %p1125, %s81, 1
      %s1127 = smul.addr %s1126, 8
      %s1128 = smul.addr %s1127, 8
      %s1129 = scalar_lea.vmem %s37, %s1128
      %p1130 = pneg %p537
      %p1131 = pneg %p534
      %p1132 = scmp.lt.s32.totalorder %s81, 1
      %s1133 = scalar_select %p1132, %s81, 1
      %s1134 = scalar_lea.vmem %s39, %s1133
      %p1135 = pneg %p563
      %p1136 = pneg %p560
      %p1137 = scmp.lt.s32.totalorder %s81, 1
      %s1138 = scalar_select %p1137, %s81, 1
      %s1139 = smul.addr %s1138, 2
      %s1140 = smul.addr %s1139, 8
      %s1141 = scalar_lea.vmem %s41, %s1140
      %p1142 = pneg %p589
      %p1143 = pneg %p586
      %p1144 = scmp.lt.s32.totalorder %s81, 1
      %s1145 = scalar_select %p1144, %s81, 1
      %s1146 = scalar_lea.vmem %s43, %s1145
      %p1147 = pneg %p615
      %p1148 = pneg %p612
      %p1149 = scmp.lt.s32.totalorder %s81, 1
      %s1150 = scalar_select %p1149, %s81, 1
      %s1151 = smul.addr %s1150, 4
      %s1152 = smul.addr %s1151, 4
      %s1153 = scalar_lea.vmem %s45, %s1152
      %p1154 = pneg %p641
      %p1155 = pneg %p638
      %p1156 = scmp.lt.s32.totalorder %s81, 1
      %s1157 = scalar_select %p1156, %s81, 1
      %s1158 = smul.addr %s1157, 4
      %s1159 = smul.addr %s1158, 8
      %s1160 = scalar_lea.vmem %s47, %s1159
      %p1161 = pneg %p667
      %p1162 = pneg %p664
      %p1163 = scmp.lt.s32.totalorder %s81, 1
      %s1164 = scalar_select %p1163, %s81, 1
      %s1165 = scalar_lea.vmem %s49, %s1164
      %p1166 = pneg %p693
      %p1167 = pneg %p690
      %p1168 = pneg %p714
      %p1169 = pneg %p711
      %p1170 = pneg %p735
      %p1171 = pneg %p732
      %p1172 = pneg %p756
      %p1173 = pneg %p753
      %p1174 = pneg %p777
      %p1175 = pneg %p774
      %p1176 = pneg %p798
      %p1177 = pneg %p795
      %p1178 = pneg %p819
      %p1179 = pneg %p816
      %p1180 = pneg %p840
      %p1181 = pneg %p837
      %p1182 = pneg %p866
      %p1183 = pneg %p863
      %p1184 = scmp.lt.s32.totalorder %s80, 1
      %s1185 = scalar_select %p1184, %s80, 1
      %s1186 = smul.addr %s1185, 16
      %s1187 = smul.addr %s1186, 8
      %s1188 = scalar_lea.vmem %s65, %s1187
      %p1189 = scmp.lt.s32.totalorder %s80, 1
      %s1190 = scalar_select %p1189, %s80, 1
      %s1191 = smul.addr %s1190, 16
      %s1192 = smul.addr %s1191, 8
      %s1193 = scalar_lea.vmem %s1, %s1192
      %p1194 = scmp.lt.s32.totalorder %s80, 1
      %s1195 = scalar_select %p1194, %s80, 1
      %s1196 = scalar_lea.vmem %s3, %s1195
      %p1197 = scmp.lt.s32.totalorder %s81, 1
      %s1198 = scalar_select %p1197, %s81, 1
      %s1199 = scalar_lea.vmem %s21, %s1198
      %p1200 = scmp.lt.s32.totalorder %s81, 1
      %s1201 = scalar_select %p1200, %s81, 1
      %s1202 = scalar_lea.vmem %s23, %s1201
      %p1203 = scmp.lt.s32.totalorder %s81, 1
      %s1204 = scalar_select %p1203, %s81, 1
      %s1205 = smul.addr %s1204, 8
      %s1206 = smul.addr %s1205, 4
      %s1207 = scalar_lea.vmem %s25, %s1206
      %p1208 = scmp.lt.s32.totalorder %s81, 1
      %s1209 = scalar_select %p1208, %s81, 1
      %s1210 = scalar_lea.vmem %s27, %s1209
      %p1211 = scmp.lt.s32.totalorder %s81, 1
      %s1212 = scalar_select %p1211, %s81, 1
      %s1213 = scalar_lea.vmem %s29, %s1212
      %p1214 = scmp.lt.s32.totalorder %s81, 1
      %s1215 = scalar_select %p1214, %s81, 1
      %s1216 = scalar_lea.vmem %s31, %s1215
      %p1217 = scmp.lt.s32.totalorder %s81, 1
      %s1218 = scalar_select %p1217, %s81, 1
      %s1219 = smul.addr %s1218, 8
      %s1220 = smul.addr %s1219, 4
      %s1221 = scalar_lea.vmem %s33, %s1220
      %p1222 = scmp.lt.s32.totalorder %s81, 1
      %s1223 = scalar_select %p1222, %s81, 1
      %s1224 = scalar_lea.vmem %s35, %s1223
      %p1225 = scmp.lt.s32.totalorder %s81, 1
      %s1226 = scalar_select %p1225, %s81, 1
      %s1227 = smul.addr %s1226, 8
      %s1228 = smul.addr %s1227, 8
      %s1229 = scalar_lea.vmem %s37, %s1228
      %p1230 = scmp.lt.s32.totalorder %s81, 1
      %s1231 = scalar_select %p1230, %s81, 1
      %s1232 = scalar_lea.vmem %s39, %s1231
      %p1233 = scmp.lt.s32.totalorder %s81, 1
      %s1234 = scalar_select %p1233, %s81, 1
      %s1235 = smul.addr %s1234, 2
      %s1236 = smul.addr %s1235, 8
      %s1237 = scalar_lea.vmem %s41, %s1236
      %p1238 = scmp.lt.s32.totalorder %s81, 1
      %s1239 = scalar_select %p1238, %s81, 1
      %s1240 = scalar_lea.vmem %s43, %s1239
      %p1241 = scmp.lt.s32.totalorder %s81, 1
      %s1242 = scalar_select %p1241, %s81, 1
      %s1243 = smul.addr %s1242, 4
      %s1244 = smul.addr %s1243, 4
      %s1245 = scalar_lea.vmem %s45, %s1244
      %p1246 = scmp.lt.s32.totalorder %s81, 1
      %s1247 = scalar_select %p1246, %s81, 1
      %s1248 = smul.addr %s1247, 4
      %s1249 = smul.addr %s1248, 8
      %s1250 = scalar_lea.vmem %s47, %s1249
      %p1251 = scmp.lt.s32.totalorder %s81, 1
      %s1252 = scalar_select %p1251, %s81, 1
      %s1253 = scalar_lea.vmem %s49, %s1252
      %p1254 = scmp.lt.s32.totalorder %s80, 1
      %s1255 = scalar_select %p1254, %s80, 1
      %s1256 = smul.addr %s1255, 16
      %s1257 = smul.addr %s1256, 8
      %s1258 = scalar_lea.vmem %s65, %s1257
      %v1260 = vld [vmem:[%s1196] sm:$0x1]
      %p1261 = scmp.eq.s32.totalorder %s81, 0
      // Predicated region
      $region149: #{tpu_custom_call.1} parent=147 // pred_check
        %p1262 = pneg %p1261
      $region150: #{tpu_custom_call.1} parent=147 // pred_check_branch
        %1264 = sbr.rel (%p1262) target = $region152
      $region151: #{tpu_custom_call.1} parent=147 // pred_region
        %v1265 = vld [vmem:[%s1193] sm:$0xff]
        %v1266 = vld [vmem:[%s1193 + $0x8] sm:$0xff]
        %v1267 = vld [vmem:[%s1193 + $0x10] sm:$0xff]
        %v1268 = vld [vmem:[%s1193 + $0x18] sm:$0xff]
        %v1269 = vld [vmem:[%s1193 + $0x20] sm:$0xff]
        %v1270 = vld [vmem:[%s1193 + $0x28] sm:$0xff]
        %v1271 = vld [vmem:[%s1193 + $0x30] sm:$0xff]
        %v1272 = vld [vmem:[%s1193 + $0x38] sm:$0xff]
        %v1273 = vld [vmem:[%s1193 + $0x40] sm:$0xff]
        %v1274 = vld [vmem:[%s1193 + $0x48] sm:$0xff]
        %v1275 = vld [vmem:[%s1193 + $0x50] sm:$0xff]
        %v1276 = vld [vmem:[%s1193 + $0x58] sm:$0xff]
        %v1277 = vld [vmem:[%s1193 + $0x60] sm:$0xff]
        %v1278 = vld [vmem:[%s1193 + $0x68] sm:$0xff]
        %v1279 = vld [vmem:[%s1193 + $0x70] sm:$0xff]
        %v1280 = vld [vmem:[%s1193 + $0x78] sm:$0xff]
        %v1281 = vld [vmem:[%s5] sm:$0xff]
        %vm1282 = vcmask 64512
        %v1284 = vsel %vm1282, %v1265, 0
        %v1287 = vsel %vm1282, %v1266, 0
        %v1290 = vsel %vm1282, %v1267, 0
        %v1293 = vsel %vm1282, %v1268, 0
        %v1296 = vsel %vm1282, %v1269, 0
        %v1299 = vsel %vm1282, %v1270, 0
        %v1302 = vsel %vm1282, %v1271, 0
        %v1305 = vsel %vm1282, %v1272, 0
        %v1308 = vsel %vm1282, %v1273, 0
        %v1311 = vsel %vm1282, %v1274, 0
        %v1314 = vsel %vm1282, %v1275, 0
        %v1317 = vsel %vm1282, %v1276, 0
        %v1320 = vsel %vm1282, %v1277, 0
        %v1323 = vsel %vm1282, %v1278, 0
        %v1326 = vsel %vm1282, %v1279, 0
        %v1329 = vsel %vm1282, %v1280, 0
        %1331 = vmatprep.subr.mxu0 0.0
        %1332 = vmatpush1.msra.mxu0 %v1281
        %1333 = vmatprep.subr.mxu0 0.0
        %1334 = vmatpush1.msra.mxu0 0.0
        %1335 = vmatprep.subr.mxu0 0.0
        %1336 = vmatpush1.msra.mxu0 0.0
        %1337 = vmatprep.subr.mxu0 0.0
        %1338 = vmatpush1.msra.mxu0 0.0
        %1339 = vmatprep.subr.mxu0 0.0
        %1340 = vmatpush1.msra.mxu0 0.0
        %1341 = vmatprep.subr.mxu0 0.0
        %1342 = vmatpush1.msra.mxu0 0.0
        %1343 = vmatprep.subr.mxu0 0.0
        %1344 = vmatpush1.msra.mxu0 0.0
        %1345 = vmatprep.subr.mxu0 0.0
        %1346 = vmatpush1.msra.mxu0 0.0
        %1347 = vmatprep.subr.mxu0 0.0
        %1348 = vmatpush1.msra.mxu0 0.0
        %1349 = vmatprep.subr.mxu0 0.0
        %1350 = vmatpush1.msra.mxu0 0.0
        %1351 = vmatprep.subr.mxu0 0.0
        %1352 = vmatpush1.msra.mxu0 0.0
        %1353 = vmatprep.subr.mxu0 0.0
        %1354 = vmatpush1.msra.mxu0 0.0
        %1355 = vmatprep.subr.mxu0 0.0
        %1356 = vmatpush1.msra.mxu0 0.0
        %1357 = vmatprep.subr.mxu0 0.0
        %1358 = vmatpush1.msra.mxu0 0.0
        %1359 = vmatprep.subr.mxu0 0.0
        %1360 = vmatpush1.msra.mxu0 0.0
        %1361 = vmatprep.subr.mxu0 0.0
        %1362 = vmatpush1.msra.mxu0 0.0
        %1363 = vmatprep.subr.mxu0 0.0
        %1364 = vmatpush1.msra.mxu0 0.0
        %1365 = vmatprep.subr.mxu0 0.0
        %1366 = vmatpush1.msra.mxu0 0.0
        %1367 = vmatprep.subr.mxu0 0.0
        %1368 = vmatpush1.msra.mxu0 0.0
        %1369 = vmatprep.subr.mxu0 0.0
        %1370 = vmatpush1.msra.mxu0 0.0
        %1371 = vmatprep.subr.mxu0 0.0
        %1372 = vmatpush1.msra.mxu0 0.0
        %1373 = vmatprep.subr.mxu0 0.0
        %1374 = vmatpush1.msra.mxu0 0.0
        %1375 = vmatprep.subr.mxu0 0.0
        %1376 = vmatpush1.msra.mxu0 0.0
        %1377 = vmatprep.subr.mxu0 0.0
        %1378 = vmatpush1.msra.mxu0 0.0
        %1379 = vmatprep.subr.mxu0 0.0
        %1380 = vmatpush1.msra.mxu0 0.0
        %1381 = vmatprep.subr.mxu0 0.0
        %1382 = vmatpush1.msra.mxu0 0.0
        %1383 = vmatprep.subr.mxu0 0.0
        %1384 = vmatpush1.msra.mxu0 0.0
        %1385 = vmatprep.subr.mxu0 0.0
        %1386 = vmatpush1.msra.mxu0 0.0
        %1387 = vmatprep.subr.mxu0 0.0
        %1388 = vmatpush1.msra.mxu0 0.0
        %1389 = vmatprep.subr.mxu0 0.0
        %1390 = vmatpush1.msra.mxu0 0.0
        %1391 = vmatprep.subr.mxu0 0.0
        %1392 = vmatpush1.msra.mxu0 0.0
        %1393 = vmatprep.subr.mxu0 0.0
        %1394 = vmatpush1.msra.mxu0 0.0
        %1395 = vmatprep.mubr.f32.mxu0 0.0
        %1396 = vmatmul.mubr.f32.gmra.mrb[0].mxu0 %v1284
        %v1397 = vpop.f32.mrb[0].mxu0
        %v1398 = vadd.f32 0.0, %v1397
        %v1399 = vpop.f32.mrb[0].mxu0
        %1400 = vmatprep.mubr.f32.mxu0 0.0
        %1401 = vmatmul.mubr.f32.gmra.mrb[0].mxu0 %v1287
        %v1402 = vpop.f32.mrb[0].mxu0
        %v1403 = vadd.f32 0.0, %v1402
        %v1404 = vpop.f32.mrb[0].mxu0
        %1405 = vmatprep.mubr.f32.mxu0 0.0
        %1406 = vmatmul.mubr.f32.gmra.mrb[0].mxu0 %v1290
        %v1407 = vpop.f32.mrb[0].mxu0
        %v1408 = vadd.f32 0.0, %v1407
        %v1409 = vpop.f32.mrb[0].mxu0
        %1410 = vmatprep.mubr.f32.mxu0 0.0
        %1411 = vmatmul.mubr.f32.gmra.mrb[0].mxu0 %v1293
        %v1412 = vpop.f32.mrb[0].mxu0
        %v1413 = vadd.f32 0.0, %v1412
        %v1414 = vpop.f32.mrb[0].mxu0
        %1415 = vmatprep.mubr.f32.mxu0 0.0
        %1416 = vmatmul.mubr.f32.gmra.mrb[0].mxu0 %v1296
        %v1417 = vpop.f32.mrb[0].mxu0
        %v1418 = vadd.f32 0.0, %v1417
        %v1419 = vpop.f32.mrb[0].mxu0
        %1420 = vmatprep.mubr.f32.mxu0 0.0
        %1421 = vmatmul.mubr.f32.gmra.mrb[0].mxu0 %v1299
        %v1422 = vpop.f32.mrb[0].mxu0
        %v1423 = vadd.f32 0.0, %v1422
        %v1424 = vpop.f32.mrb[0].mxu0
        %1425 = vmatprep.mubr.f32.mxu0 0.0
        %1426 = vmatmul.mubr.f32.gmra.mrb[0].mxu0 %v1302
        %v1427 = vpop.f32.mrb[0].mxu0
        %v1428 = vadd.f32 0.0, %v1427
        %v1429 = vpop.f32.mrb[0].mxu0
        %1430 = vmatprep.mubr.f32.mxu0 0.0
        %1431 = vmatmul.mubr.f32.gmra.mrb[0].mxu0 %v1305
        %v1432 = vpop.f32.mrb[0].mxu0
        %v1433 = vadd.f32 0.0, %v1432
        %v1434 = vpop.f32.mrb[0].mxu0
        %1435 = vmatprep.mubr.f32.mxu0 0.0
        %1436 = vmatmul.mubr.f32.gmra.mrb[0].mxu0 %v1308
        %v1437 = vpop.f32.mrb[0].mxu0
        %v1438 = vadd.f32 0.0, %v1437
        %v1439 = vpop.f32.mrb[0].mxu0
        %1440 = vmatprep.mubr.f32.mxu0 0.0
        %1441 = vmatmul.mubr.f32.gmra.mrb[0].mxu0 %v1311
        %v1442 = vpop.f32.mrb[0].mxu0
        %v1443 = vadd.f32 0.0, %v1442
        %v1444 = vpop.f32.mrb[0].mxu0
        %1445 = vmatprep.mubr.f32.mxu0 0.0
        %1446 = vmatmul.mubr.f32.gmra.mrb[0].mxu0 %v1314
        %v1447 = vpop.f32.mrb[0].mxu0
        %v1448 = vadd.f32 0.0, %v1447
        %v1449 = vpop.f32.mrb[0].mxu0
        %1450 = vmatprep.mubr.f32.mxu0 0.0
        %1451 = vmatmul.mubr.f32.gmra.mrb[0].mxu0 %v1317
        %v1452 = vpop.f32.mrb[0].mxu0
        %v1453 = vadd.f32 0.0, %v1452
        %v1454 = vpop.f32.mrb[0].mxu0
        %1455 = vmatprep.mubr.f32.mxu0 0.0
        %1456 = vmatmul.mubr.f32.gmra.mrb[0].mxu0 %v1320
        %v1457 = vpop.f32.mrb[0].mxu0
        %v1458 = vadd.f32 0.0, %v1457
        %v1459 = vpop.f32.mrb[0].mxu0
        %1460 = vmatprep.mubr.f32.mxu0 0.0
        %1461 = vmatmul.mubr.f32.gmra.mrb[0].mxu0 %v1323
        %v1462 = vpop.f32.mrb[0].mxu0
        %v1463 = vadd.f32 0.0, %v1462
        %v1464 = vpop.f32.mrb[0].mxu0
        %1465 = vmatprep.mubr.f32.mxu0 0.0
        %1466 = vmatmul.mubr.f32.gmra.mrb[0].mxu0 %v1326
        %v1467 = vpop.f32.mrb[0].mxu0
        %v1468 = vadd.f32 0.0, %v1467
        %v1469 = vpop.f32.mrb[0].mxu0
        %1470 = vmatprep.mubr.f32.mxu0 0.0
        %1471 = vmatmul.mubr.f32.gmra.mrb[0].mxu0 %v1329
        %v1472 = vpop.f32.mrb[0].mxu0
        %v1473 = vadd.f32 0.0, %v1472
        %v1474 = vpop.f32.mrb[0].mxu0
        %1475 = vdwg.mxu0
        %v1476 = vand.u32 2147483647, %v1398
        %vm1477 = vcmp.le.f32.partialorder %v1476, 0.7853982
        %vm1478 = vcmp.lt.s32.totalorder %v1398, 0
        %v1479 = vand.u32 %v1398, 2139095040
        %v1480 = vshrl.u32 %v1479, 23
        %v1481 = vsub.s32 %v1480, 127
        %v1482 = vand.u32 2147483647, %v1398
        %v1483 = vand.u32 %v1482, 8388607
        %v1484 = vor.u32 %v1483, 8388608
        %v1485 = vsub.s32 0, %v1484
        %v1486 = vadd.s32 %v1481, 1
        %vm1487 = vcmp.gt.s32.totalorder %v1486, 0
        %v1488 = vsel %vm1487, %v1486, 0
        %v1489 = vshrl.u32 %v1488, 5
        %v1490 = vand.u32 %v1488, 31
        %v1491 = vsub.s32 32, %v1490
        %v1492 = vshrl.u32 683565275, %v1491
        %v1493 = vshll.u32 683565275, %v1490
        %v1494 = vshrl.u32 2475754826, %v1491
        %v1495 = vor.u32 %v1493, %v1494
        %v1496 = vshll.u32 2475754826, %v1490
        %v1497 = vshrl.u32 2131351028, %v1491
        %v1498 = vor.u32 %v1496, %v1497
        %v1499 = vshll.u32 2131351028, %v1490
        %v1500 = vshrl.u32 2102212464, %v1491
        %v1501 = vor.u32 %v1499, %v1500
        %v1502 = vshll.u32 2102212464, %v1490
        %v1503 = vshrl.u32 920167782, %v1491
        %v1504 = vor.u32 %v1502, %v1503
        %v1505 = vshll.u32 920167782, %v1490
        %v1506 = vshrl.u32 1326507024, %v1491
        %v1507 = vor.u32 %v1505, %v1506
        %vm1508 = vcmp.lt.s32.totalorder %v1489, 1
        %vm1509 = vcmp.lt.s32.totalorder %v1489, 2
        %vm1510 = vcmp.lt.s32.totalorder %v1489, 3
        %vm1511 = vcmp.lt.s32.totalorder %v1489, 4
        %v1512 = vsel %vm1508, %v1492, %v1495
        %v1513 = vsel %vm1511, %v1501, 2102212464
        %v1514 = vsel %vm1510, %v1498, %v1513
        %v1515 = vsel %vm1509, %v1512, %v1514
        %v1516 = vsel %vm1508, %v1495, %v1498
        %v1517 = vsel %vm1511, %v1504, 920167782
        %v1518 = vsel %vm1510, %v1501, %v1517
        %v1519 = vsel %vm1509, %v1516, %v1518
        %v1520 = vsel %vm1508, %v1498, %v1501
        %v1521 = vsel %vm1511, %v1507, 1326507024
        %v1522 = vsel %vm1510, %v1504, %v1521
        %v1523 = vsel %vm1509, %v1520, %v1522
        %v1524 = vshll.u32 %v1484, 8
        %v1525 = vmul.u32.u64.compose %v1524, %v1523
        %v1526 = vextract.low.u32 %v1525
        %v1527 = vextract.high.u32 %v1525
        %v1528 = vmul.u32.u64.compose %v1524, %v1519
        %v1529 = vextract.low.u32 %v1528
        %v1530 = vextract.high.u32 %v1528
        %v1531 = vmul.u32 %v1524, %v1515
        %v1532 = vadd.s32 %v1527, %v1529
        %vm1533 = vc.u32 %v1527, %v1529
        %v1534 = vadd.s32 %v1530, 1
        %v1535 = vsel %vm1533, %v1534, %v1530
        %v1536 = vadd.s32 %v1531, %v1535
        %v1537 = vadd.s32 %v1536, 536870912
        %v1538 = vshrl.u32 %v1537, 30
        %v1539 = vshll.u32 %v1538, 30
        %v1540 = vsub.s32 %v1536, %v1539
        %vm1541 = vcmp.lt.s32.totalorder %v1540, 0
        %v1542 = vsub.s32 0, %v1540
        %v1543 = vsel %vm1541, %v1542, %v1540
        %v1544 = vclz %v1543
        %v1545 = vsub.s32 %v1544, 2
        %vm1546 = vcmp.gt.s32.totalorder 0, %v1545
        %v1547 = vsel %vm1546, 0, %v1545
        %v1548 = vsub.s32 32, %v1547
        %v1549 = vshll.u32 %v1540, %v1547
        %v1550 = vshrl.u32 %v1532, %v1548
        %v1551 = vor.u32 %v1549, %v1550
        %v1552 = vsub.s32 4294967266, %v1547
        %v1553 = vadd.s32 %v1552, 127
        %v1554 = vshll.u32 %v1553, 23
        %v1555 = vor.u32 4788187, %v1554
        %v1556 = vand.u32 2147483647, %v1555
        %v1558 = vcvt.s32.f32 %v1551
        %v1559 = vmul.f32 %v1558, %v1556
        %v1560 = vxor.u32 %v1559, 2147483648
        %v1561 = vsel %vm1478, %v1560, %v1559
        %v1562 = vsub.s32 4, %v1538
        %v1563 = vsel %vm1478, %v1562, %v1538
        %v1564 = vsel %vm1477, %v1398, %v1561
        %v1565 = vsel %vm1477, 0, %v1563
        %v1566 = vcosq.f32.pop %v1564
        %v1567 = vsinq.f32.pop %v1564
        %vm1568 = vweird.f32 %v1398
        %v1569 = vadd.s32 %v1565, 3
        %v1570 = vand.u32 %v1569, 3
        %vm1571 = vcmp.lt.s32.totalorder %v1570, 2
        %vm1572 = vcmp.eq.s32.totalorder %v1570, 0
        %v1573 = vxor.u32 %v1567, 2147483648
        %v1574 = vsel %vm1572, %v1566, %v1573
        %vm1575 = vcmp.eq.s32.totalorder %v1570, 2
        %v1576 = vxor.u32 %v1566, 2147483648
        %v1577 = vsel %vm1575, %v1576, %v1567
        %v1578 = vsel %vm1571, %v1574, %v1577
        %v1579 = vsel %vm1568, nan, %v1578
        %v1580 = vand.u32 2147483647, %v1403
        %vm1581 = vcmp.le.f32.partialorder %v1580, 0.7853982
        %vm1582 = vcmp.lt.s32.totalorder %v1403, 0
        %v1583 = vand.u32 %v1403, 2139095040
        %v1584 = vshrl.u32 %v1583, 23
        %v1585 = vsub.s32 %v1584, 127
        %v1586 = vand.u32 2147483647, %v1403
        %v1587 = vand.u32 %v1586, 8388607
        %v1588 = vor.u32 %v1587, 8388608
        %v1589 = vsub.s32 0, %v1588
        %v1590 = vadd.s32 %v1585, 1
        %vm1591 = vcmp.gt.s32.totalorder %v1590, 0
        %v1592 = vsel %vm1591, %v1590, 0
        %v1593 = vshrl.u32 %v1592, 5
        %v1594 = vand.u32 %v1592, 31
        %v1595 = vsub.s32 32, %v1594
        %v1596 = vshrl.u32 683565275, %v1595
        %v1597 = vshll.u32 683565275, %v1594
        %v1598 = vshrl.u32 2475754826, %v1595
        %v1599 = vor.u32 %v1597, %v1598
        %v1600 = vshll.u32 2475754826, %v1594
        %v1601 = vshrl.u32 2131351028, %v1595
        %v1602 = vor.u32 %v1600, %v1601
        %v1603 = vshll.u32 2131351028, %v1594
        %v1604 = vshrl.u32 2102212464, %v1595
        %v1605 = vor.u32 %v1603, %v1604
        %v1606 = vshll.u32 2102212464, %v1594
        %v1607 = vshrl.u32 920167782, %v1595
        %v1608 = vor.u32 %v1606, %v1607
        %v1609 = vshll.u32 920167782, %v1594
        %v1610 = vshrl.u32 1326507024, %v1595
        %v1611 = vor.u32 %v1609, %v1610
        %vm1612 = vcmp.lt.s32.totalorder %v1593, 1
        %vm1613 = vcmp.lt.s32.totalorder %v1593, 2
        %vm1614 = vcmp.lt.s32.totalorder %v1593, 3
        %vm1615 = vcmp.lt.s32.totalorder %v1593, 4
        %v1616 = vsel %vm1612, %v1596, %v1599
        %v1617 = vsel %vm1615, %v1605, 2102212464
        %v1618 = vsel %vm1614, %v1602, %v1617
        %v1619 = vsel %vm1613, %v1616, %v1618
        %v1620 = vsel %vm1612, %v1599, %v1602
        %v1621 = vsel %vm1615, %v1608, 920167782
        %v1622 = vsel %vm1614, %v1605, %v1621
        %v1623 = vsel %vm1613, %v1620, %v1622
        %v1624 = vsel %vm1612, %v1602, %v1605
        %v1625 = vsel %vm1615, %v1611, 1326507024
        %v1626 = vsel %vm1614, %v1608, %v1625
        %v1627 = vsel %vm1613, %v1624, %v1626
        %v1628 = vshll.u32 %v1588, 8
        %v1629 = vmul.u32.u64.compose %v1628, %v1627
        %v1630 = vextract.low.u32 %v1629
        %v1631 = vextract.high.u32 %v1629
        %v1632 = vmul.u32.u64.compose %v1628, %v1623
        %v1633 = vextract.low.u32 %v1632
        %v1634 = vextract.high.u32 %v1632
        %v1635 = vmul.u32 %v1628, %v1619
        %v1636 = vadd.s32 %v1631, %v1633
        %vm1637 = vc.u32 %v1631, %v1633
        %v1638 = vadd.s32 %v1634, 1
        %v1639 = vsel %vm1637, %v1638, %v1634
        %v1640 = vadd.s32 %v1635, %v1639
        %v1641 = vadd.s32 %v1640, 536870912
        %v1642 = vshrl.u32 %v1641, 30
        %v1643 = vshll.u32 %v1642, 30
        %v1644 = vsub.s32 %v1640, %v1643
        %vm1645 = vcmp.lt.s32.totalorder %v1644, 0
        %v1646 = vsub.s32 0, %v1644
        %v1647 = vsel %vm1645, %v1646, %v1644
        %v1648 = vclz %v1647
        %v1649 = vsub.s32 %v1648, 2
        %vm1650 = vcmp.gt.s32.totalorder 0, %v1649
        %v1651 = vsel %vm1650, 0, %v1649
        %v1652 = vsub.s32 32, %v1651
        %v1653 = vshll.u32 %v1644, %v1651
        %v1654 = vshrl.u32 %v1636, %v1652
        %v1655 = vor.u32 %v1653, %v1654
        %v1656 = vsub.s32 4294967266, %v1651
        %v1657 = vadd.s32 %v1656, 127
        %v1658 = vshll.u32 %v1657, 23
        %v1659 = vor.u32 4788187, %v1658
        %v1660 = vand.u32 2147483647, %v1659
        %v1662 = vcvt.s32.f32 %v1655
        %v1663 = vmul.f32 %v1662, %v1660
        %v1664 = vxor.u32 %v1663, 2147483648
        %v1665 = vsel %vm1582, %v1664, %v1663
        %v1666 = vsub.s32 4, %v1642
        %v1667 = vsel %vm1582, %v1666, %v1642
        %v1668 = vsel %vm1581, %v1403, %v1665
        %v1669 = vsel %vm1581, 0, %v1667
        %v1670 = vcosq.f32.pop %v1668
        %v1671 = vsinq.f32.pop %v1668
        %vm1672 = vweird.f32 %v1403
        %v1673 = vadd.s32 %v1669, 3
        %v1674 = vand.u32 %v1673, 3
        %vm1675 = vcmp.lt.s32.totalorder %v1674, 2
        %vm1676 = vcmp.eq.s32.totalorder %v1674, 0
        %v1677 = vxor.u32 %v1671, 2147483648
        %v1678 = vsel %vm1676, %v1670, %v1677
        %vm1679 = vcmp.eq.s32.totalorder %v1674, 2
        %v1680 = vxor.u32 %v1670, 2147483648
        %v1681 = vsel %vm1679, %v1680, %v1671
        %v1682 = vsel %vm1675, %v1678, %v1681
        %v1683 = vsel %vm1672, nan, %v1682
        %v1684 = vand.u32 2147483647, %v1408
        %vm1685 = vcmp.le.f32.partialorder %v1684, 0.7853982
        %vm1686 = vcmp.lt.s32.totalorder %v1408, 0
        %v1687 = vand.u32 %v1408, 2139095040
        %v1688 = vshrl.u32 %v1687, 23
        %v1689 = vsub.s32 %v1688, 127
        %v1690 = vand.u32 2147483647, %v1408
        %v1691 = vand.u32 %v1690, 8388607
        %v1692 = vor.u32 %v1691, 8388608
        %v1693 = vsub.s32 0, %v1692
        %v1694 = vadd.s32 %v1689, 1
        %vm1695 = vcmp.gt.s32.totalorder %v1694, 0
        %v1696 = vsel %vm1695, %v1694, 0
        %v1697 = vshrl.u32 %v1696, 5
        %v1698 = vand.u32 %v1696, 31
        %v1699 = vsub.s32 32, %v1698
        %v1700 = vshrl.u32 683565275, %v1699
        %v1701 = vshll.u32 683565275, %v1698
        %v1702 = vshrl.u32 2475754826, %v1699
        %v1703 = vor.u32 %v1701, %v1702
        %v1704 = vshll.u32 2475754826, %v1698
        %v1705 = vshrl.u32 2131351028, %v1699
        %v1706 = vor.u32 %v1704, %v1705
        %v1707 = vshll.u32 2131351028, %v1698
        %v1708 = vshrl.u32 2102212464, %v1699
        %v1709 = vor.u32 %v1707, %v1708
        %v1710 = vshll.u32 2102212464, %v1698
        %v1711 = vshrl.u32 920167782, %v1699
        %v1712 = vor.u32 %v1710, %v1711
        %v1713 = vshll.u32 920167782, %v1698
        %v1714 = vshrl.u32 1326507024, %v1699
        %v1715 = vor.u32 %v1713, %v1714
        %vm1716 = vcmp.lt.s32.totalorder %v1697, 1
        %vm1717 = vcmp.lt.s32.totalorder %v1697, 2
        %vm1718 = vcmp.lt.s32.totalorder %v1697, 3
        %vm1719 = vcmp.lt.s32.totalorder %v1697, 4
        %v1720 = vsel %vm1716, %v1700, %v1703
        %v1721 = vsel %vm1719, %v1709, 2102212464
        %v1722 = vsel %vm1718, %v1706, %v1721
        %v1723 = vsel %vm1717, %v1720, %v1722
        %v1724 = vsel %vm1716, %v1703, %v1706
        %v1725 = vsel %vm1719, %v1712, 920167782
        %v1726 = vsel %vm1718, %v1709, %v1725
        %v1727 = vsel %vm1717, %v1724, %v1726
        %v1728 = vsel %vm1716, %v1706, %v1709
        %v1729 = vsel %vm1719, %v1715, 1326507024
        %v1730 = vsel %vm1718, %v1712, %v1729
        %v1731 = vsel %vm1717, %v1728, %v1730
        %v1732 = vshll.u32 %v1692, 8
        %v1733 = vmul.u32.u64.compose %v1732, %v1731
        %v1734 = vextract.low.u32 %v1733
        %v1735 = vextract.high.u32 %v1733
        %v1736 = vmul.u32.u64.compose %v1732, %v1727
        %v1737 = vextract.low.u32 %v1736
        %v1738 = vextract.high.u32 %v1736
        %v1739 = vmul.u32 %v1732, %v1723
        %v1740 = vadd.s32 %v1735, %v1737
        %vm1741 = vc.u32 %v1735, %v1737
        %v1742 = vadd.s32 %v1738, 1
        %v1743 = vsel %vm1741, %v1742, %v1738
        %v1744 = vadd.s32 %v1739, %v1743
        %v1745 = vadd.s32 %v1744, 536870912
        %v1746 = vshrl.u32 %v1745, 30
        %v1747 = vshll.u32 %v1746, 30
        %v1748 = vsub.s32 %v1744, %v1747
        %vm1749 = vcmp.lt.s32.totalorder %v1748, 0
        %v1750 = vsub.s32 0, %v1748
        %v1751 = vsel %vm1749, %v1750, %v1748
        %v1752 = vclz %v1751
        %v1753 = vsub.s32 %v1752, 2
        %vm1754 = vcmp.gt.s32.totalorder 0, %v1753
        %v1755 = vsel %vm1754, 0, %v1753
        %v1756 = vsub.s32 32, %v1755
        %v1757 = vshll.u32 %v1748, %v1755
        %v1758 = vshrl.u32 %v1740, %v1756
        %v1759 = vor.u32 %v1757, %v1758
        %v1760 = vsub.s32 4294967266, %v1755
        %v1761 = vadd.s32 %v1760, 127
        %v1762 = vshll.u32 %v1761, 23
        %v1763 = vor.u32 4788187, %v1762
        %v1764 = vand.u32 2147483647, %v1763
        %v1766 = vcvt.s32.f32 %v1759
        %v1767 = vmul.f32 %v1766, %v1764
        %v1768 = vxor.u32 %v1767, 2147483648
        %v1769 = vsel %vm1686, %v1768, %v1767
        %v1770 = vsub.s32 4, %v1746
        %v1771 = vsel %vm1686, %v1770, %v1746
        %v1772 = vsel %vm1685, %v1408, %v1769
        %v1773 = vsel %vm1685, 0, %v1771
        %v1774 = vcosq.f32.pop %v1772
        %v1775 = vsinq.f32.pop %v1772
        %vm1776 = vweird.f32 %v1408
        %v1777 = vadd.s32 %v1773, 3
        %v1778 = vand.u32 %v1777, 3
        %vm1779 = vcmp.lt.s32.totalorder %v1778, 2
        %vm1780 = vcmp.eq.s32.totalorder %v1778, 0
        %v1781 = vxor.u32 %v1775, 2147483648
        %v1782 = vsel %vm1780, %v1774, %v1781
        %vm1783 = vcmp.eq.s32.totalorder %v1778, 2
        %v1784 = vxor.u32 %v1774, 2147483648
        %v1785 = vsel %vm1783, %v1784, %v1775
        %v1786 = vsel %vm1779, %v1782, %v1785
        %v1787 = vsel %vm1776, nan, %v1786
        %v1788 = vand.u32 2147483647, %v1413
        %vm1789 = vcmp.le.f32.partialorder %v1788, 0.7853982
        %vm1790 = vcmp.lt.s32.totalorder %v1413, 0
        %v1791 = vand.u32 %v1413, 2139095040
        %v1792 = vshrl.u32 %v1791, 23
        %v1793 = vsub.s32 %v1792, 127
        %v1794 = vand.u32 2147483647, %v1413
        %v1795 = vand.u32 %v1794, 8388607
        %v1796 = vor.u32 %v1795, 8388608
        %v1797 = vsub.s32 0, %v1796
        %v1798 = vadd.s32 %v1793, 1
        %vm1799 = vcmp.gt.s32.totalorder %v1798, 0
        %v1800 = vsel %vm1799, %v1798, 0
        %v1801 = vshrl.u32 %v1800, 5
        %v1802 = vand.u32 %v1800, 31
        %v1803 = vsub.s32 32, %v1802
        %v1804 = vshrl.u32 683565275, %v1803
        %v1805 = vshll.u32 683565275, %v1802
        %v1806 = vshrl.u32 2475754826, %v1803
        %v1807 = vor.u32 %v1805, %v1806
        %v1808 = vshll.u32 2475754826, %v1802
        %v1809 = vshrl.u32 2131351028, %v1803
        %v1810 = vor.u32 %v1808, %v1809
        %v1811 = vshll.u32 2131351028, %v1802
        %v1812 = vshrl.u32 2102212464, %v1803
        %v1813 = vor.u32 %v1811, %v1812
        %v1814 = vshll.u32 2102212464, %v1802
        %v1815 = vshrl.u32 920167782, %v1803
        %v1816 = vor.u32 %v1814, %v1815
        %v1817 = vshll.u32 920167782, %v1802
        %v1818 = vshrl.u32 1326507024, %v1803
        %v1819 = vor.u32 %v1817, %v1818
        %vm1820 = vcmp.lt.s32.totalorder %v1801, 1
        %vm1821 = vcmp.lt.s32.totalorder %v1801, 2
        %vm1822 = vcmp.lt.s32.totalorder %v1801, 3
        %vm1823 = vcmp.lt.s32.totalorder %v1801, 4
        %v1824 = vsel %vm1820, %v1804, %v1807
        %v1825 = vsel %vm1823, %v1813, 2102212464
        %v1826 = vsel %vm1822, %v1810, %v1825
        %v1827 = vsel %vm1821, %v1824, %v1826
        %v1828 = vsel %vm1820, %v1807, %v1810
        %v1829 = vsel %vm1823, %v1816, 920167782
        %v1830 = vsel %vm1822, %v1813, %v1829
        %v1831 = vsel %vm1821, %v1828, %v1830
        %v1832 = vsel %vm1820, %v1810, %v1813
        %v1833 = vsel %vm1823, %v1819, 1326507024
        %v1834 = vsel %vm1822, %v1816, %v1833
        %v1835 = vsel %vm1821, %v1832, %v1834
        %v1836 = vshll.u32 %v1796, 8
        %v1837 = vmul.u32.u64.compose %v1836, %v1835
        %v1838 = vextract.low.u32 %v1837
        %v1839 = vextract.high.u32 %v1837
        %v1840 = vmul.u32.u64.compose %v1836, %v1831
        %v1841 = vextract.low.u32 %v1840
        %v1842 = vextract.high.u32 %v1840
        %v1843 = vmul.u32 %v1836, %v1827
        %v1844 = vadd.s32 %v1839, %v1841
        %vm1845 = vc.u32 %v1839, %v1841
        %v1846 = vadd.s32 %v1842, 1
        %v1847 = vsel %vm1845, %v1846, %v1842
        %v1848 = vadd.s32 %v1843, %v1847
        %v1849 = vadd.s32 %v1848, 536870912
        %v1850 = vshrl.u32 %v1849, 30
        %v1851 = vshll.u32 %v1850, 30
        %v1852 = vsub.s32 %v1848, %v1851
        %vm1853 = vcmp.lt.s32.totalorder %v1852, 0
        %v1854 = vsub.s32 0, %v1852
        %v1855 = vsel %vm1853, %v1854, %v1852
        %v1856 = vclz %v1855
        %v1857 = vsub.s32 %v1856, 2
        %vm1858 = vcmp.gt.s32.totalorder 0, %v1857
        %v1859 = vsel %vm1858, 0, %v1857
        %v1860 = vsub.s32 32, %v1859
        %v1861 = vshll.u32 %v1852, %v1859
        %v1862 = vshrl.u32 %v1844, %v1860
        %v1863 = vor.u32 %v1861, %v1862
        %v1864 = vsub.s32 4294967266, %v1859
        %v1865 = vadd.s32 %v1864, 127
        %v1866 = vshll.u32 %v1865, 23
        %v1867 = vor.u32 4788187, %v1866
        %v1868 = vand.u32 2147483647, %v1867
        %v1870 = vcvt.s32.f32 %v1863
        %v1871 = vmul.f32 %v1870, %v1868
        %v1872 = vxor.u32 %v1871, 2147483648
        %v1873 = vsel %vm1790, %v1872, %v1871
        %v1874 = vsub.s32 4, %v1850
        %v1875 = vsel %vm1790, %v1874, %v1850
        %v1876 = vsel %vm1789, %v1413, %v1873
        %v1877 = vsel %vm1789, 0, %v1875
        %v1878 = vcosq.f32.pop %v1876
        %v1879 = vsinq.f32.pop %v1876
        %vm1880 = vweird.f32 %v1413
        %v1881 = vadd.s32 %v1877, 3
        %v1882 = vand.u32 %v1881, 3
        %vm1883 = vcmp.lt.s32.totalorder %v1882, 2
        %vm1884 = vcmp.eq.s32.totalorder %v1882, 0
        %v1885 = vxor.u32 %v1879, 2147483648
        %v1886 = vsel %vm1884, %v1878, %v1885
        %vm1887 = vcmp.eq.s32.totalorder %v1882, 2
        %v1888 = vxor.u32 %v1878, 2147483648
        %v1889 = vsel %vm1887, %v1888, %v1879
        %v1890 = vsel %vm1883, %v1886, %v1889
        %v1891 = vsel %vm1880, nan, %v1890
        %v1892 = vand.u32 2147483647, %v1418
        %vm1893 = vcmp.le.f32.partialorder %v1892, 0.7853982
        %vm1894 = vcmp.lt.s32.totalorder %v1418, 0
        %v1895 = vand.u32 %v1418, 2139095040
        %v1896 = vshrl.u32 %v1895, 23
        %v1897 = vsub.s32 %v1896, 127
        %v1898 = vand.u32 2147483647, %v1418
        %v1899 = vand.u32 %v1898, 8388607
        %v1900 = vor.u32 %v1899, 8388608
        %v1901 = vsub.s32 0, %v1900
        %v1902 = vadd.s32 %v1897, 1
        %vm1903 = vcmp.gt.s32.totalorder %v1902, 0
        %v1904 = vsel %vm1903, %v1902, 0
        %v1905 = vshrl.u32 %v1904, 5
        %v1906 = vand.u32 %v1904, 31
        %v1907 = vsub.s32 32, %v1906
        %v1908 = vshrl.u32 683565275, %v1907
        %v1909 = vshll.u32 683565275, %v1906
        %v1910 = vshrl.u32 2475754826, %v1907
        %v1911 = vor.u32 %v1909, %v1910
        %v1912 = vshll.u32 2475754826, %v1906
        %v1913 = vshrl.u32 2131351028, %v1907
        %v1914 = vor.u32 %v1912, %v1913
        %v1915 = vshll.u32 2131351028, %v1906
        %v1916 = vshrl.u32 2102212464, %v1907
        %v1917 = vor.u32 %v1915, %v1916
        %v1918 = vshll.u32 2102212464, %v1906
        %v1919 = vshrl.u32 920167782, %v1907
        %v1920 = vor.u32 %v1918, %v1919
        %v1921 = vshll.u32 920167782, %v1906
        %v1922 = vshrl.u32 1326507024, %v1907
        %v1923 = vor.u32 %v1921, %v1922
        %vm1924 = vcmp.lt.s32.totalorder %v1905, 1
        %vm1925 = vcmp.lt.s32.totalorder %v1905, 2
        %vm1926 = vcmp.lt.s32.totalorder %v1905, 3
        %vm1927 = vcmp.lt.s32.totalorder %v1905, 4
        %v1928 = vsel %vm1924, %v1908, %v1911
        %v1929 = vsel %vm1927, %v1917, 2102212464
        %v1930 = vsel %vm1926, %v1914, %v1929
        %v1931 = vsel %vm1925, %v1928, %v1930
        %v1932 = vsel %vm1924, %v1911, %v1914
        %v1933 = vsel %vm1927, %v1920, 920167782
        %v1934 = vsel %vm1926, %v1917, %v1933
        %v1935 = vsel %vm1925, %v1932, %v1934
        %v1936 = vsel %vm1924, %v1914, %v1917
        %v1937 = vsel %vm1927, %v1923, 1326507024
        %v1938 = vsel %vm1926, %v1920, %v1937
        %v1939 = vsel %vm1925, %v1936, %v1938
        %v1940 = vshll.u32 %v1900, 8
        %v1941 = vmul.u32.u64.compose %v1940, %v1939
        %v1942 = vextract.low.u32 %v1941
        %v1943 = vextract.high.u32 %v1941
        %v1944 = vmul.u32.u64.compose %v1940, %v1935
        %v1945 = vextract.low.u32 %v1944
        %v1946 = vextract.high.u32 %v1944
        %v1947 = vmul.u32 %v1940, %v1931
        %v1948 = vadd.s32 %v1943, %v1945
        %vm1949 = vc.u32 %v1943, %v1945
        %v1950 = vadd.s32 %v1946, 1
        %v1951 = vsel %vm1949, %v1950, %v1946
        %v1952 = vadd.s32 %v1947, %v1951
        %v1953 = vadd.s32 %v1952, 536870912
        %v1954 = vshrl.u32 %v1953, 30
        %v1955 = vshll.u32 %v1954, 30
        %v1956 = vsub.s32 %v1952, %v1955
        %vm1957 = vcmp.lt.s32.totalorder %v1956, 0
        %v1958 = vsub.s32 0, %v1956
        %v1959 = vsel %vm1957, %v1958, %v1956
        %v1960 = vclz %v1959
        %v1961 = vsub.s32 %v1960, 2
        %vm1962 = vcmp.gt.s32.totalorder 0, %v1961
        %v1963 = vsel %vm1962, 0, %v1961
        %v1964 = vsub.s32 32, %v1963
        %v1965 = vshll.u32 %v1956, %v1963
        %v1966 = vshrl.u32 %v1948, %v1964
        %v1967 = vor.u32 %v1965, %v1966
        %v1968 = vsub.s32 4294967266, %v1963
        %v1969 = vadd.s32 %v1968, 127
        %v1970 = vshll.u32 %v1969, 23
        %v1971 = vor.u32 4788187, %v1970
        %v1972 = vand.u32 2147483647, %v1971
        %v1974 = vcvt.s32.f32 %v1967
        %v1975 = vmul.f32 %v1974, %v1972
        %v1976 = vxor.u32 %v1975, 2147483648
        %v1977 = vsel %vm1894, %v1976, %v1975
        %v1978 = vsub.s32 4, %v1954
        %v1979 = vsel %vm1894, %v1978, %v1954
        %v1980 = vsel %vm1893, %v1418, %v1977
        %v1981 = vsel %vm1893, 0, %v1979
        %v1982 = vcosq.f32.pop %v1980
        %v1983 = vsinq.f32.pop %v1980
        %vm1984 = vweird.f32 %v1418
        %v1985 = vadd.s32 %v1981, 3
        %v1986 = vand.u32 %v1985, 3
        %vm1987 = vcmp.lt.s32.totalorder %v1986, 2
        %vm1988 = vcmp.eq.s32.totalorder %v1986, 0
        %v1989 = vxor.u32 %v1983, 2147483648
        %v1990 = vsel %vm1988, %v1982, %v1989
        %vm1991 = vcmp.eq.s32.totalorder %v1986, 2
        %v1992 = vxor.u32 %v1982, 2147483648
        %v1993 = vsel %vm1991, %v1992, %v1983
        %v1994 = vsel %vm1987, %v1990, %v1993
        %v1995 = vsel %vm1984, nan, %v1994
        %v1996 = vand.u32 2147483647, %v1423
        %vm1997 = vcmp.le.f32.partialorder %v1996, 0.7853982
        %vm1998 = vcmp.lt.s32.totalorder %v1423, 0
        %v1999 = vand.u32 %v1423, 2139095040
        %v2000 = vshrl.u32 %v1999, 23
        %v2001 = vsub.s32 %v2000, 127
        %v2002 = vand.u32 2147483647, %v1423
        %v2003 = vand.u32 %v2002, 8388607
        %v2004 = vor.u32 %v2003, 8388608
        %v2005 = vsub.s32 0, %v2004
        %v2006 = vadd.s32 %v2001, 1
        %vm2007 = vcmp.gt.s32.totalorder %v2006, 0
        %v2008 = vsel %vm2007, %v2006, 0
        %v2009 = vshrl.u32 %v2008, 5
        %v2010 = vand.u32 %v2008, 31
        %v2011 = vsub.s32 32, %v2010
        %v2012 = vshrl.u32 683565275, %v2011
        %v2013 = vshll.u32 683565275, %v2010
        %v2014 = vshrl.u32 2475754826, %v2011
        %v2015 = vor.u32 %v2013, %v2014
        %v2016 = vshll.u32 2475754826, %v2010
        %v2017 = vshrl.u32 2131351028, %v2011
        %v2018 = vor.u32 %v2016, %v2017
        %v2019 = vshll.u32 2131351028, %v2010
        %v2020 = vshrl.u32 2102212464, %v2011
        %v2021 = vor.u32 %v2019, %v2020
        %v2022 = vshll.u32 2102212464, %v2010
        %v2023 = vshrl.u32 920167782, %v2011
        %v2024 = vor.u32 %v2022, %v2023
        %v2025 = vshll.u32 920167782, %v2010
        %v2026 = vshrl.u32 1326507024, %v2011
        %v2027 = vor.u32 %v2025, %v2026
        %vm2028 = vcmp.lt.s32.totalorder %v2009, 1
        %vm2029 = vcmp.lt.s32.totalorder %v2009, 2
        %vm2030 = vcmp.lt.s32.totalorder %v2009, 3
        %vm2031 = vcmp.lt.s32.totalorder %v2009, 4
        %v2032 = vsel %vm2028, %v2012, %v2015
        %v2033 = vsel %vm2031, %v2021, 2102212464
        %v2034 = vsel %vm2030, %v2018, %v2033
        %v2035 = vsel %vm2029, %v2032, %v2034
        %v2036 = vsel %vm2028, %v2015, %v2018
        %v2037 = vsel %vm2031, %v2024, 920167782
        %v2038 = vsel %vm2030, %v2021, %v2037
        %v2039 = vsel %vm2029, %v2036, %v2038
        %v2040 = vsel %vm2028, %v2018, %v2021
        %v2041 = vsel %vm2031, %v2027, 1326507024
        %v2042 = vsel %vm2030, %v2024, %v2041
        %v2043 = vsel %vm2029, %v2040, %v2042
        %v2044 = vshll.u32 %v2004, 8
        %v2045 = vmul.u32.u64.compose %v2044, %v2043
        %v2046 = vextract.low.u32 %v2045
        %v2047 = vextract.high.u32 %v2045
        %v2048 = vmul.u32.u64.compose %v2044, %v2039
        %v2049 = vextract.low.u32 %v2048
        %v2050 = vextract.high.u32 %v2048
        %v2051 = vmul.u32 %v2044, %v2035
        %v2052 = vadd.s32 %v2047, %v2049
        %vm2053 = vc.u32 %v2047, %v2049
        %v2054 = vadd.s32 %v2050, 1
        %v2055 = vsel %vm2053, %v2054, %v2050
        %v2056 = vadd.s32 %v2051, %v2055
        %v2057 = vadd.s32 %v2056, 536870912
        %v2058 = vshrl.u32 %v2057, 30
        %v2059 = vshll.u32 %v2058, 30
        %v2060 = vsub.s32 %v2056, %v2059
        %vm2061 = vcmp.lt.s32.totalorder %v2060, 0
        %v2062 = vsub.s32 0, %v2060
        %v2063 = vsel %vm2061, %v2062, %v2060
        %v2064 = vclz %v2063
        %v2065 = vsub.s32 %v2064, 2
        %vm2066 = vcmp.gt.s32.totalorder 0, %v2065
        %v2067 = vsel %vm2066, 0, %v2065
        %v2068 = vsub.s32 32, %v2067
        %v2069 = vshll.u32 %v2060, %v2067
        %v2070 = vshrl.u32 %v2052, %v2068
        %v2071 = vor.u32 %v2069, %v2070
        %v2072 = vsub.s32 4294967266, %v2067
        %v2073 = vadd.s32 %v2072, 127
        %v2074 = vshll.u32 %v2073, 23
        %v2075 = vor.u32 4788187, %v2074
        %v2076 = vand.u32 2147483647, %v2075
        %v2078 = vcvt.s32.f32 %v2071
        %v2079 = vmul.f32 %v2078, %v2076
        %v2080 = vxor.u32 %v2079, 2147483648
        %v2081 = vsel %vm1998, %v2080, %v2079
        %v2082 = vsub.s32 4, %v2058
        %v2083 = vsel %vm1998, %v2082, %v2058
        %v2084 = vsel %vm1997, %v1423, %v2081
        %v2085 = vsel %vm1997, 0, %v2083
        %v2086 = vcosq.f32.pop %v2084
        %v2087 = vsinq.f32.pop %v2084
        %vm2088 = vweird.f32 %v1423
        %v2089 = vadd.s32 %v2085, 3
        %v2090 = vand.u32 %v2089, 3
        %vm2091 = vcmp.lt.s32.totalorder %v2090, 2
        %vm2092 = vcmp.eq.s32.totalorder %v2090, 0
        %v2093 = vxor.u32 %v2087, 2147483648
        %v2094 = vsel %vm2092, %v2086, %v2093
        %vm2095 = vcmp.eq.s32.totalorder %v2090, 2
        %v2096 = vxor.u32 %v2086, 2147483648
        %v2097 = vsel %vm2095, %v2096, %v2087
        %v2098 = vsel %vm2091, %v2094, %v2097
        %v2099 = vsel %vm2088, nan, %v2098
        %v2100 = vand.u32 2147483647, %v1428
        %vm2101 = vcmp.le.f32.partialorder %v2100, 0.7853982
        %vm2102 = vcmp.lt.s32.totalorder %v1428, 0
        %v2103 = vand.u32 %v1428, 2139095040
        %v2104 = vshrl.u32 %v2103, 23
        %v2105 = vsub.s32 %v2104, 127
        %v2106 = vand.u32 2147483647, %v1428
        %v2107 = vand.u32 %v2106, 8388607
        %v2108 = vor.u32 %v2107, 8388608
        %v2109 = vsub.s32 0, %v2108
        %v2110 = vadd.s32 %v2105, 1
        %vm2111 = vcmp.gt.s32.totalorder %v2110, 0
        %v2112 = vsel %vm2111, %v2110, 0
        %v2113 = vshrl.u32 %v2112, 5
        %v2114 = vand.u32 %v2112, 31
        %v2115 = vsub.s32 32, %v2114
        %v2116 = vshrl.u32 683565275, %v2115
        %v2117 = vshll.u32 683565275, %v2114
        %v2118 = vshrl.u32 2475754826, %v2115
        %v2119 = vor.u32 %v2117, %v2118
        %v2120 = vshll.u32 2475754826, %v2114
        %v2121 = vshrl.u32 2131351028, %v2115
        %v2122 = vor.u32 %v2120, %v2121
        %v2123 = vshll.u32 2131351028, %v2114
        %v2124 = vshrl.u32 2102212464, %v2115
        %v2125 = vor.u32 %v2123, %v2124
        %v2126 = vshll.u32 2102212464, %v2114
        %v2127 = vshrl.u32 920167782, %v2115
        %v2128 = vor.u32 %v2126, %v2127
        %v2129 = vshll.u32 920167782, %v2114
        %v2130 = vshrl.u32 1326507024, %v2115
        %v2131 = vor.u32 %v2129, %v2130
        %vm2132 = vcmp.lt.s32.totalorder %v2113, 1
        %vm2133 = vcmp.lt.s32.totalorder %v2113, 2
        %vm2134 = vcmp.lt.s32.totalorder %v2113, 3
        %vm2135 = vcmp.lt.s32.totalorder %v2113, 4
        %v2136 = vsel %vm2132, %v2116, %v2119
        %v2137 = vsel %vm2135, %v2125, 2102212464
        %v2138 = vsel %vm2134, %v2122, %v2137
        %v2139 = vsel %vm2133, %v2136, %v2138
        %v2140 = vsel %vm2132, %v2119, %v2122
        %v2141 = vsel %vm2135, %v2128, 920167782
        %v2142 = vsel %vm2134, %v2125, %v2141
        %v2143 = vsel %vm2133, %v2140, %v2142
        %v2144 = vsel %vm2132, %v2122, %v2125
        %v2145 = vsel %vm2135, %v2131, 1326507024
        %v2146 = vsel %vm2134, %v2128, %v2145
        %v2147 = vsel %vm2133, %v2144, %v2146
        %v2148 = vshll.u32 %v2108, 8
        %v2149 = vmul.u32.u64.compose %v2148, %v2147
        %v2150 = vextract.low.u32 %v2149
        %v2151 = vextract.high.u32 %v2149
        %v2152 = vmul.u32.u64.compose %v2148, %v2143
        %v2153 = vextract.low.u32 %v2152
        %v2154 = vextract.high.u32 %v2152
        %v2155 = vmul.u32 %v2148, %v2139
        %v2156 = vadd.s32 %v2151, %v2153
        %vm2157 = vc.u32 %v2151, %v2153
        %v2158 = vadd.s32 %v2154, 1
        %v2159 = vsel %vm2157, %v2158, %v2154
        %v2160 = vadd.s32 %v2155, %v2159
        %v2161 = vadd.s32 %v2160, 536870912
        %v2162 = vshrl.u32 %v2161, 30
        %v2163 = vshll.u32 %v2162, 30
        %v2164 = vsub.s32 %v2160, %v2163
        %vm2165 = vcmp.lt.s32.totalorder %v2164, 0
        %v2166 = vsub.s32 0, %v2164
        %v2167 = vsel %vm2165, %v2166, %v2164
        %v2168 = vclz %v2167
        %v2169 = vsub.s32 %v2168, 2
        %vm2170 = vcmp.gt.s32.totalorder 0, %v2169
        %v2171 = vsel %vm2170, 0, %v2169
        %v2172 = vsub.s32 32, %v2171
        %v2173 = vshll.u32 %v2164, %v2171
        %v2174 = vshrl.u32 %v2156, %v2172
        %v2175 = vor.u32 %v2173, %v2174
        %v2176 = vsub.s32 4294967266, %v2171
        %v2177 = vadd.s32 %v2176, 127
        %v2178 = vshll.u32 %v2177, 23
        %v2179 = vor.u32 4788187, %v2178
        %v2180 = vand.u32 2147483647, %v2179
        %v2182 = vcvt.s32.f32 %v2175
        %v2183 = vmul.f32 %v2182, %v2180
        %v2184 = vxor.u32 %v2183, 2147483648
        %v2185 = vsel %vm2102, %v2184, %v2183
        %v2186 = vsub.s32 4, %v2162
        %v2187 = vsel %vm2102, %v2186, %v2162
        %v2188 = vsel %vm2101, %v1428, %v2185
        %v2189 = vsel %vm2101, 0, %v2187
        %v2190 = vcosq.f32.pop %v2188
        %v2191 = vsinq.f32.pop %v2188
        %vm2192 = vweird.f32 %v1428
        %v2193 = vadd.s32 %v2189, 3
        %v2194 = vand.u32 %v2193, 3
        %vm2195 = vcmp.lt.s32.totalorder %v2194, 2
        %vm2196 = vcmp.eq.s32.totalorder %v2194, 0
        %v2197 = vxor.u32 %v2191, 2147483648
        %v2198 = vsel %vm2196, %v2190, %v2197
        %vm2199 = vcmp.eq.s32.totalorder %v2194, 2
        %v2200 = vxor.u32 %v2190, 2147483648
        %v2201 = vsel %vm2199, %v2200, %v2191
        %v2202 = vsel %vm2195, %v2198, %v2201
        %v2203 = vsel %vm2192, nan, %v2202
        %v2204 = vand.u32 2147483647, %v1433
        %vm2205 = vcmp.le.f32.partialorder %v2204, 0.7853982
        %vm2206 = vcmp.lt.s32.totalorder %v1433, 0
        %v2207 = vand.u32 %v1433, 2139095040
        %v2208 = vshrl.u32 %v2207, 23
        %v2209 = vsub.s32 %v2208, 127
        %v2210 = vand.u32 2147483647, %v1433
        %v2211 = vand.u32 %v2210, 8388607
        %v2212 = vor.u32 %v2211, 8388608
        %v2213 = vsub.s32 0, %v2212
        %v2214 = vadd.s32 %v2209, 1
        %vm2215 = vcmp.gt.s32.totalorder %v2214, 0
        %v2216 = vsel %vm2215, %v2214, 0
        %v2217 = vshrl.u32 %v2216, 5
        %v2218 = vand.u32 %v2216, 31
        %v2219 = vsub.s32 32, %v2218
        %v2220 = vshrl.u32 683565275, %v2219
        %v2221 = vshll.u32 683565275, %v2218
        %v2222 = vshrl.u32 2475754826, %v2219
        %v2223 = vor.u32 %v2221, %v2222
        %v2224 = vshll.u32 2475754826, %v2218
        %v2225 = vshrl.u32 2131351028, %v2219
        %v2226 = vor.u32 %v2224, %v2225
        %v2227 = vshll.u32 2131351028, %v2218
        %v2228 = vshrl.u32 2102212464, %v2219
        %v2229 = vor.u32 %v2227, %v2228
        %v2230 = vshll.u32 2102212464, %v2218
        %v2231 = vshrl.u32 920167782, %v2219
        %v2232 = vor.u32 %v2230, %v2231
        %v2233 = vshll.u32 920167782, %v2218
        %v2234 = vshrl.u32 1326507024, %v2219
        %v2235 = vor.u32 %v2233, %v2234
        %vm2236 = vcmp.lt.s32.totalorder %v2217, 1
        %vm2237 = vcmp.lt.s32.totalorder %v2217, 2
        %vm2238 = vcmp.lt.s32.totalorder %v2217, 3
        %vm2239 = vcmp.lt.s32.totalorder %v2217, 4
        %v2240 = vsel %vm2236, %v2220, %v2223
        %v2241 = vsel %vm2239, %v2229, 2102212464
        %v2242 = vsel %vm2238, %v2226, %v2241
        %v2243 = vsel %vm2237, %v2240, %v2242
        %v2244 = vsel %vm2236, %v2223, %v2226
        %v2245 = vsel %vm2239, %v2232, 920167782
        %v2246 = vsel %vm2238, %v2229, %v2245
        %v2247 = vsel %vm2237, %v2244, %v2246
        %v2248 = vsel %vm2236, %v2226, %v2229
        %v2249 = vsel %vm2239, %v2235, 1326507024
        %v2250 = vsel %vm2238, %v2232, %v2249
        %v2251 = vsel %vm2237, %v2248, %v2250
        %v2252 = vshll.u32 %v2212, 8
        %v2253 = vmul.u32.u64.compose %v2252, %v2251
        %v2254 = vextract.low.u32 %v2253
        %v2255 = vextract.high.u32 %v2253
        %v2256 = vmul.u32.u64.compose %v2252, %v2247
        %v2257 = vextract.low.u32 %v2256
        %v2258 = vextract.high.u32 %v2256
        %v2259 = vmul.u32 %v2252, %v2243
        %v2260 = vadd.s32 %v2255, %v2257
        %vm2261 = vc.u32 %v2255, %v2257
        %v2262 = vadd.s32 %v2258, 1
        %v2263 = vsel %vm2261, %v2262, %v2258
        %v2264 = vadd.s32 %v2259, %v2263
        %v2265 = vadd.s32 %v2264, 536870912
        %v2266 = vshrl.u32 %v2265, 30
        %v2267 = vshll.u32 %v2266, 30
        %v2268 = vsub.s32 %v2264, %v2267
        %vm2269 = vcmp.lt.s32.totalorder %v2268, 0
        %v2270 = vsub.s32 0, %v2268
        %v2271 = vsel %vm2269, %v2270, %v2268
        %v2272 = vclz %v2271
        %v2273 = vsub.s32 %v2272, 2
        %vm2274 = vcmp.gt.s32.totalorder 0, %v2273
        %v2275 = vsel %vm2274, 0, %v2273
        %v2276 = vsub.s32 32, %v2275
        %v2277 = vshll.u32 %v2268, %v2275
        %v2278 = vshrl.u32 %v2260, %v2276
        %v2279 = vor.u32 %v2277, %v2278
        %v2280 = vsub.s32 4294967266, %v2275
        %v2281 = vadd.s32 %v2280, 127
        %v2282 = vshll.u32 %v2281, 23
        %v2283 = vor.u32 4788187, %v2282
        %v2284 = vand.u32 2147483647, %v2283
        %v2286 = vcvt.s32.f32 %v2279
        %v2287 = vmul.f32 %v2286, %v2284
        %v2288 = vxor.u32 %v2287, 2147483648
        %v2289 = vsel %vm2206, %v2288, %v2287
        %v2290 = vsub.s32 4, %v2266
        %v2291 = vsel %vm2206, %v2290, %v2266
        %v2292 = vsel %vm2205, %v1433, %v2289
        %v2293 = vsel %vm2205, 0, %v2291
        %v2294 = vcosq.f32.pop %v2292
        %v2295 = vsinq.f32.pop %v2292
        %vm2296 = vweird.f32 %v1433
        %v2297 = vadd.s32 %v2293, 3
        %v2298 = vand.u32 %v2297, 3
        %vm2299 = vcmp.lt.s32.totalorder %v2298, 2
        %vm2300 = vcmp.eq.s32.totalorder %v2298, 0
        %v2301 = vxor.u32 %v2295, 2147483648
        %v2302 = vsel %vm2300, %v2294, %v2301
        %vm2303 = vcmp.eq.s32.totalorder %v2298, 2
        %v2304 = vxor.u32 %v2294, 2147483648
        %v2305 = vsel %vm2303, %v2304, %v2295
        %v2306 = vsel %vm2299, %v2302, %v2305
        %v2307 = vsel %vm2296, nan, %v2306
        %v2308 = vand.u32 2147483647, %v1438
        %vm2309 = vcmp.le.f32.partialorder %v2308, 0.7853982
        %vm2310 = vcmp.lt.s32.totalorder %v1438, 0
        %v2311 = vand.u32 %v1438, 2139095040
        %v2312 = vshrl.u32 %v2311, 23
        %v2313 = vsub.s32 %v2312, 127
        %v2314 = vand.u32 2147483647, %v1438
        %v2315 = vand.u32 %v2314, 8388607
        %v2316 = vor.u32 %v2315, 8388608
        %v2317 = vsub.s32 0, %v2316
        %v2318 = vadd.s32 %v2313, 1
        %vm2319 = vcmp.gt.s32.totalorder %v2318, 0
        %v2320 = vsel %vm2319, %v2318, 0
        %v2321 = vshrl.u32 %v2320, 5
        %v2322 = vand.u32 %v2320, 31
        %v2323 = vsub.s32 32, %v2322
        %v2324 = vshrl.u32 683565275, %v2323
        %v2325 = vshll.u32 683565275, %v2322
        %v2326 = vshrl.u32 2475754826, %v2323
        %v2327 = vor.u32 %v2325, %v2326
        %v2328 = vshll.u32 2475754826, %v2322
        %v2329 = vshrl.u32 2131351028, %v2323
        %v2330 = vor.u32 %v2328, %v2329
        %v2331 = vshll.u32 2131351028, %v2322
        %v2332 = vshrl.u32 2102212464, %v2323
        %v2333 = vor.u32 %v2331, %v2332
        %v2334 = vshll.u32 2102212464, %v2322
        %v2335 = vshrl.u32 920167782, %v2323
        %v2336 = vor.u32 %v2334, %v2335
        %v2337 = vshll.u32 920167782, %v2322
        %v2338 = vshrl.u32 1326507024, %v2323
        %v2339 = vor.u32 %v2337, %v2338
        %vm2340 = vcmp.lt.s32.totalorder %v2321, 1
        %vm2341 = vcmp.lt.s32.totalorder %v2321, 2
        %vm2342 = vcmp.lt.s32.totalorder %v2321, 3
        %vm2343 = vcmp.lt.s32.totalorder %v2321, 4
        %v2344 = vsel %vm2340, %v2324, %v2327
        %v2345 = vsel %vm2343, %v2333, 2102212464
        %v2346 = vsel %vm2342, %v2330, %v2345
        %v2347 = vsel %vm2341, %v2344, %v2346
        %v2348 = vsel %vm2340, %v2327, %v2330
        %v2349 = vsel %vm2343, %v2336, 920167782
        %v2350 = vsel %vm2342, %v2333, %v2349
        %v2351 = vsel %vm2341, %v2348, %v2350
        %v2352 = vsel %vm2340, %v2330, %v2333
        %v2353 = vsel %vm2343, %v2339, 1326507024
        %v2354 = vsel %vm2342, %v2336, %v2353
        %v2355 = vsel %vm2341, %v2352, %v2354
        %v2356 = vshll.u32 %v2316, 8
        %v2357 = vmul.u32.u64.compose %v2356, %v2355
        %v2358 = vextract.low.u32 %v2357
        %v2359 = vextract.high.u32 %v2357
        %v2360 = vmul.u32.u64.compose %v2356, %v2351
        %v2361 = vextract.low.u32 %v2360
        %v2362 = vextract.high.u32 %v2360
        %v2363 = vmul.u32 %v2356, %v2347
        %v2364 = vadd.s32 %v2359, %v2361
        %vm2365 = vc.u32 %v2359, %v2361
        %v2366 = vadd.s32 %v2362, 1
        %v2367 = vsel %vm2365, %v2366, %v2362
        %v2368 = vadd.s32 %v2363, %v2367
        %v2369 = vadd.s32 %v2368, 536870912
        %v2370 = vshrl.u32 %v2369, 30
        %v2371 = vshll.u32 %v2370, 30
        %v2372 = vsub.s32 %v2368, %v2371
        %vm2373 = vcmp.lt.s32.totalorder %v2372, 0
        %v2374 = vsub.s32 0, %v2372
        %v2375 = vsel %vm2373, %v2374, %v2372
        %v2376 = vclz %v2375
        %v2377 = vsub.s32 %v2376, 2
        %vm2378 = vcmp.gt.s32.totalorder 0, %v2377
        %v2379 = vsel %vm2378, 0, %v2377
        %v2380 = vsub.s32 32, %v2379
        %v2381 = vshll.u32 %v2372, %v2379
        %v2382 = vshrl.u32 %v2364, %v2380
        %v2383 = vor.u32 %v2381, %v2382
        %v2384 = vsub.s32 4294967266, %v2379
        %v2385 = vadd.s32 %v2384, 127
        %v2386 = vshll.u32 %v2385, 23
        %v2387 = vor.u32 4788187, %v2386
        %v2388 = vand.u32 2147483647, %v2387
        %v2390 = vcvt.s32.f32 %v2383
        %v2391 = vmul.f32 %v2390, %v2388
        %v2392 = vxor.u32 %v2391, 2147483648
        %v2393 = vsel %vm2310, %v2392, %v2391
        %v2394 = vsub.s32 4, %v2370
        %v2395 = vsel %vm2310, %v2394, %v2370
        %v2396 = vsel %vm2309, %v1438, %v2393
        %v2397 = vsel %vm2309, 0, %v2395
        %v2398 = vcosq.f32.pop %v2396
        %v2399 = vsinq.f32.pop %v2396
        %vm2400 = vweird.f32 %v1438
        %v2401 = vadd.s32 %v2397, 3
        %v2402 = vand.u32 %v2401, 3
        %vm2403 = vcmp.lt.s32.totalorder %v2402, 2
        %vm2404 = vcmp.eq.s32.totalorder %v2402, 0
        %v2405 = vxor.u32 %v2399, 2147483648
        %v2406 = vsel %vm2404, %v2398, %v2405
        %vm2407 = vcmp.eq.s32.totalorder %v2402, 2
        %v2408 = vxor.u32 %v2398, 2147483648
        %v2409 = vsel %vm2407, %v2408, %v2399
        %v2410 = vsel %vm2403, %v2406, %v2409
        %v2411 = vsel %vm2400, nan, %v2410
        %v2412 = vand.u32 2147483647, %v1443
        %vm2413 = vcmp.le.f32.partialorder %v2412, 0.7853982
        %vm2414 = vcmp.lt.s32.totalorder %v1443, 0
        %v2415 = vand.u32 %v1443, 2139095040
        %v2416 = vshrl.u32 %v2415, 23
        %v2417 = vsub.s32 %v2416, 127
        %v2418 = vand.u32 2147483647, %v1443
        %v2419 = vand.u32 %v2418, 8388607
        %v2420 = vor.u32 %v2419, 8388608
        %v2421 = vsub.s32 0, %v2420
        %v2422 = vadd.s32 %v2417, 1
        %vm2423 = vcmp.gt.s32.totalorder %v2422, 0
        %v2424 = vsel %vm2423, %v2422, 0
        %v2425 = vshrl.u32 %v2424, 5
        %v2426 = vand.u32 %v2424, 31
        %v2427 = vsub.s32 32, %v2426
        %v2428 = vshrl.u32 683565275, %v2427
        %v2429 = vshll.u32 683565275, %v2426
        %v2430 = vshrl.u32 2475754826, %v2427
        %v2431 = vor.u32 %v2429, %v2430
        %v2432 = vshll.u32 2475754826, %v2426
        %v2433 = vshrl.u32 2131351028, %v2427
        %v2434 = vor.u32 %v2432, %v2433
        %v2435 = vshll.u32 2131351028, %v2426
        %v2436 = vshrl.u32 2102212464, %v2427
        %v2437 = vor.u32 %v2435, %v2436
        %v2438 = vshll.u32 2102212464, %v2426
        %v2439 = vshrl.u32 920167782, %v2427
        %v2440 = vor.u32 %v2438, %v2439
        %v2441 = vshll.u32 920167782, %v2426
        %v2442 = vshrl.u32 1326507024, %v2427
        %v2443 = vor.u32 %v2441, %v2442
        %vm2444 = vcmp.lt.s32.totalorder %v2425, 1
        %vm2445 = vcmp.lt.s32.totalorder %v2425, 2
        %vm2446 = vcmp.lt.s32.totalorder %v2425, 3
        %vm2447 = vcmp.lt.s32.totalorder %v2425, 4
        %v2448 = vsel %vm2444, %v2428, %v2431
        %v2449 = vsel %vm2447, %v2437, 2102212464
        %v2450 = vsel %vm2446, %v2434, %v2449
        %v2451 = vsel %vm2445, %v2448, %v2450
        %v2452 = vsel %vm2444, %v2431, %v2434
        %v2453 = vsel %vm2447, %v2440, 920167782
        %v2454 = vsel %vm2446, %v2437, %v2453
        %v2455 = vsel %vm2445, %v2452, %v2454
        %v2456 = vsel %vm2444, %v2434, %v2437
        %v2457 = vsel %vm2447, %v2443, 1326507024
        %v2458 = vsel %vm2446, %v2440, %v2457
        %v2459 = vsel %vm2445, %v2456, %v2458
        %v2460 = vshll.u32 %v2420, 8
        %v2461 = vmul.u32.u64.compose %v2460, %v2459
        %v2462 = vextract.low.u32 %v2461
        %v2463 = vextract.high.u32 %v2461
        %v2464 = vmul.u32.u64.compose %v2460, %v2455
        %v2465 = vextract.low.u32 %v2464
        %v2466 = vextract.high.u32 %v2464
        %v2467 = vmul.u32 %v2460, %v2451
        %v2468 = vadd.s32 %v2463, %v2465
        %vm2469 = vc.u32 %v2463, %v2465
        %v2470 = vadd.s32 %v2466, 1
        %v2471 = vsel %vm2469, %v2470, %v2466
        %v2472 = vadd.s32 %v2467, %v2471
        %v2473 = vadd.s32 %v2472, 536870912
        %v2474 = vshrl.u32 %v2473, 30
        %v2475 = vshll.u32 %v2474, 30
        %v2476 = vsub.s32 %v2472, %v2475
        %vm2477 = vcmp.lt.s32.totalorder %v2476, 0
        %v2478 = vsub.s32 0, %v2476
        %v2479 = vsel %vm2477, %v2478, %v2476
        %v2480 = vclz %v2479
        %v2481 = vsub.s32 %v2480, 2
        %vm2482 = vcmp.gt.s32.totalorder 0, %v2481
        %v2483 = vsel %vm2482, 0, %v2481
        %v2484 = vsub.s32 32, %v2483
        %v2485 = vshll.u32 %v2476, %v2483
        %v2486 = vshrl.u32 %v2468, %v2484
        %v2487 = vor.u32 %v2485, %v2486
        %v2488 = vsub.s32 4294967266, %v2483
        %v2489 = vadd.s32 %v2488, 127
        %v2490 = vshll.u32 %v2489, 23
        %v2491 = vor.u32 4788187, %v2490
        %v2492 = vand.u32 2147483647, %v2491
        %v2494 = vcvt.s32.f32 %v2487
        %v2495 = vmul.f32 %v2494, %v2492
        %v2496 = vxor.u32 %v2495, 2147483648
        %v2497 = vsel %vm2414, %v2496, %v2495
        %v2498 = vsub.s32 4, %v2474
        %v2499 = vsel %vm2414, %v2498, %v2474
        %v2500 = vsel %vm2413, %v1443, %v2497
        %v2501 = vsel %vm2413, 0, %v2499
        %v2502 = vcosq.f32.pop %v2500
        %v2503 = vsinq.f32.pop %v2500
        %vm2504 = vweird.f32 %v1443
        %v2505 = vadd.s32 %v2501, 3
        %v2506 = vand.u32 %v2505, 3
        %vm2507 = vcmp.lt.s32.totalorder %v2506, 2
        %vm2508 = vcmp.eq.s32.totalorder %v2506, 0
        %v2509 = vxor.u32 %v2503, 2147483648
        %v2510 = vsel %vm2508, %v2502, %v2509
        %vm2511 = vcmp.eq.s32.totalorder %v2506, 2
        %v2512 = vxor.u32 %v2502, 2147483648
        %v2513 = vsel %vm2511, %v2512, %v2503
        %v2514 = vsel %vm2507, %v2510, %v2513
        %v2515 = vsel %vm2504, nan, %v2514
        %v2516 = vand.u32 2147483647, %v1448
        %vm2517 = vcmp.le.f32.partialorder %v2516, 0.7853982
        %vm2518 = vcmp.lt.s32.totalorder %v1448, 0
        %v2519 = vand.u32 %v1448, 2139095040
        %v2520 = vshrl.u32 %v2519, 23
        %v2521 = vsub.s32 %v2520, 127
        %v2522 = vand.u32 2147483647, %v1448
        %v2523 = vand.u32 %v2522, 8388607
        %v2524 = vor.u32 %v2523, 8388608
        %v2525 = vsub.s32 0, %v2524
        %v2526 = vadd.s32 %v2521, 1
        %vm2527 = vcmp.gt.s32.totalorder %v2526, 0
        %v2528 = vsel %vm2527, %v2526, 0
        %v2529 = vshrl.u32 %v2528, 5
        %v2530 = vand.u32 %v2528, 31
        %v2531 = vsub.s32 32, %v2530
        %v2532 = vshrl.u32 683565275, %v2531
        %v2533 = vshll.u32 683565275, %v2530
        %v2534 = vshrl.u32 2475754826, %v2531
        %v2535 = vor.u32 %v2533, %v2534
        %v2536 = vshll.u32 2475754826, %v2530
        %v2537 = vshrl.u32 2131351028, %v2531
        %v2538 = vor.u32 %v2536, %v2537
        %v2539 = vshll.u32 2131351028, %v2530
        %v2540 = vshrl.u32 2102212464, %v2531
        %v2541 = vor.u32 %v2539, %v2540
        %v2542 = vshll.u32 2102212464, %v2530
        %v2543 = vshrl.u32 920167782, %v2531
        %v2544 = vor.u32 %v2542, %v2543
        %v2545 = vshll.u32 920167782, %v2530
        %v2546 = vshrl.u32 1326507024, %v2531
        %v2547 = vor.u32 %v2545, %v2546
        %vm2548 = vcmp.lt.s32.totalorder %v2529, 1
        %vm2549 = vcmp.lt.s32.totalorder %v2529, 2
        %vm2550 = vcmp.lt.s32.totalorder %v2529, 3
        %vm2551 = vcmp.lt.s32.totalorder %v2529, 4
        %v2552 = vsel %vm2548, %v2532, %v2535
        %v2553 = vsel %vm2551, %v2541, 2102212464
        %v2554 = vsel %vm2550, %v2538, %v2553
        %v2555 = vsel %vm2549, %v2552, %v2554
        %v2556 = vsel %vm2548, %v2535, %v2538
        %v2557 = vsel %vm2551, %v2544, 920167782
        %v2558 = vsel %vm2550, %v2541, %v2557
        %v2559 = vsel %vm2549, %v2556, %v2558
        %v2560 = vsel %vm2548, %v2538, %v2541
        %v2561 = vsel %vm2551, %v2547, 1326507024
        %v2562 = vsel %vm2550, %v2544, %v2561
        %v2563 = vsel %vm2549, %v2560, %v2562
        %v2564 = vshll.u32 %v2524, 8
        %v2565 = vmul.u32.u64.compose %v2564, %v2563
        %v2566 = vextract.low.u32 %v2565
        %v2567 = vextract.high.u32 %v2565
        %v2568 = vmul.u32.u64.compose %v2564, %v2559
        %v2569 = vextract.low.u32 %v2568
        %v2570 = vextract.high.u32 %v2568
        %v2571 = vmul.u32 %v2564, %v2555
        %v2572 = vadd.s32 %v2567, %v2569
        %vm2573 = vc.u32 %v2567, %v2569
        %v2574 = vadd.s32 %v2570, 1
        %v2575 = vsel %vm2573, %v2574, %v2570
        %v2576 = vadd.s32 %v2571, %v2575
        %v2577 = vadd.s32 %v2576, 536870912
        %v2578 = vshrl.u32 %v2577, 30
        %v2579 = vshll.u32 %v2578, 30
        %v2580 = vsub.s32 %v2576, %v2579
        %vm2581 = vcmp.lt.s32.totalorder %v2580, 0
        %v2582 = vsub.s32 0, %v2580
        %v2583 = vsel %vm2581, %v2582, %v2580
        %v2584 = vclz %v2583
        %v2585 = vsub.s32 %v2584, 2
        %vm2586 = vcmp.gt.s32.totalorder 0, %v2585
        %v2587 = vsel %vm2586, 0, %v2585
        %v2588 = vsub.s32 32, %v2587
        %v2589 = vshll.u32 %v2580, %v2587
        %v2590 = vshrl.u32 %v2572, %v2588
        %v2591 = vor.u32 %v2589, %v2590
        %v2592 = vsub.s32 4294967266, %v2587
        %v2593 = vadd.s32 %v2592, 127
        %v2594 = vshll.u32 %v2593, 23
        %v2595 = vor.u32 4788187, %v2594
        %v2596 = vand.u32 2147483647, %v2595
        %v2598 = vcvt.s32.f32 %v2591
        %v2599 = vmul.f32 %v2598, %v2596
        %v2600 = vxor.u32 %v2599, 2147483648
        %v2601 = vsel %vm2518, %v2600, %v2599
        %v2602 = vsub.s32 4, %v2578
        %v2603 = vsel %vm2518, %v2602, %v2578
        %v2604 = vsel %vm2517, %v1448, %v2601
        %v2605 = vsel %vm2517, 0, %v2603
        %v2606 = vcosq.f32.pop %v2604
        %v2607 = vsinq.f32.pop %v2604
        %vm2608 = vweird.f32 %v1448
        %v2609 = vadd.s32 %v2605, 3
        %v2610 = vand.u32 %v2609, 3
        %vm2611 = vcmp.lt.s32.totalorder %v2610, 2
        %vm2612 = vcmp.eq.s32.totalorder %v2610, 0
        %v2613 = vxor.u32 %v2607, 2147483648
        %v2614 = vsel %vm2612, %v2606, %v2613
        %vm2615 = vcmp.eq.s32.totalorder %v2610, 2
        %v2616 = vxor.u32 %v2606, 2147483648
        %v2617 = vsel %vm2615, %v2616, %v2607
        %v2618 = vsel %vm2611, %v2614, %v2617
        %v2619 = vsel %vm2608, nan, %v2618
        %v2620 = vand.u32 2147483647, %v1453
        %vm2621 = vcmp.le.f32.partialorder %v2620, 0.7853982
        %vm2622 = vcmp.lt.s32.totalorder %v1453, 0
        %v2623 = vand.u32 %v1453, 2139095040
        %v2624 = vshrl.u32 %v2623, 23
        %v2625 = vsub.s32 %v2624, 127
        %v2626 = vand.u32 2147483647, %v1453
        %v2627 = vand.u32 %v2626, 8388607
        %v2628 = vor.u32 %v2627, 8388608
        %v2629 = vsub.s32 0, %v2628
        %v2630 = vadd.s32 %v2625, 1
        %vm2631 = vcmp.gt.s32.totalorder %v2630, 0
        %v2632 = vsel %vm2631, %v2630, 0
        %v2633 = vshrl.u32 %v2632, 5
        %v2634 = vand.u32 %v2632, 31
        %v2635 = vsub.s32 32, %v2634
        %v2636 = vshrl.u32 683565275, %v2635
        %v2637 = vshll.u32 683565275, %v2634
        %v2638 = vshrl.u32 2475754826, %v2635
        %v2639 = vor.u32 %v2637, %v2638
        %v2640 = vshll.u32 2475754826, %v2634
        %v2641 = vshrl.u32 2131351028, %v2635
        %v2642 = vor.u32 %v2640, %v2641
        %v2643 = vshll.u32 2131351028, %v2634
        %v2644 = vshrl.u32 2102212464, %v2635
        %v2645 = vor.u32 %v2643, %v2644
        %v2646 = vshll.u32 2102212464, %v2634
        %v2647 = vshrl.u32 920167782, %v2635
        %v2648 = vor.u32 %v2646, %v2647
        %v2649 = vshll.u32 920167782, %v2634
        %v2650 = vshrl.u32 1326507024, %v2635
        %v2651 = vor.u32 %v2649, %v2650
        %vm2652 = vcmp.lt.s32.totalorder %v2633, 1
        %vm2653 = vcmp.lt.s32.totalorder %v2633, 2
        %vm2654 = vcmp.lt.s32.totalorder %v2633, 3
        %vm2655 = vcmp.lt.s32.totalorder %v2633, 4
        %v2656 = vsel %vm2652, %v2636, %v2639
        %v2657 = vsel %vm2655, %v2645, 2102212464
        %v2658 = vsel %vm2654, %v2642, %v2657
        %v2659 = vsel %vm2653, %v2656, %v2658
        %v2660 = vsel %vm2652, %v2639, %v2642
        %v2661 = vsel %vm2655, %v2648, 920167782
        %v2662 = vsel %vm2654, %v2645, %v2661
        %v2663 = vsel %vm2653, %v2660, %v2662
        %v2664 = vsel %vm2652, %v2642, %v2645
        %v2665 = vsel %vm2655, %v2651, 1326507024
        %v2666 = vsel %vm2654, %v2648, %v2665
        %v2667 = vsel %vm2653, %v2664, %v2666
        %v2668 = vshll.u32 %v2628, 8
        %v2669 = vmul.u32.u64.compose %v2668, %v2667
        %v2670 = vextract.low.u32 %v2669
        %v2671 = vextract.high.u32 %v2669
        %v2672 = vmul.u32.u64.compose %v2668, %v2663
        %v2673 = vextract.low.u32 %v2672
        %v2674 = vextract.high.u32 %v2672
        %v2675 = vmul.u32 %v2668, %v2659
        %v2676 = vadd.s32 %v2671, %v2673
        %vm2677 = vc.u32 %v2671, %v2673
        %v2678 = vadd.s32 %v2674, 1
        %v2679 = vsel %vm2677, %v2678, %v2674
        %v2680 = vadd.s32 %v2675, %v2679
        %v2681 = vadd.s32 %v2680, 536870912
        %v2682 = vshrl.u32 %v2681, 30
        %v2683 = vshll.u32 %v2682, 30
        %v2684 = vsub.s32 %v2680, %v2683
        %vm2685 = vcmp.lt.s32.totalorder %v2684, 0
        %v2686 = vsub.s32 0, %v2684
        %v2687 = vsel %vm2685, %v2686, %v2684
        %v2688 = vclz %v2687
        %v2689 = vsub.s32 %v2688, 2
        %vm2690 = vcmp.gt.s32.totalorder 0, %v2689
        %v2691 = vsel %vm2690, 0, %v2689
        %v2692 = vsub.s32 32, %v2691
        %v2693 = vshll.u32 %v2684, %v2691
        %v2694 = vshrl.u32 %v2676, %v2692
        %v2695 = vor.u32 %v2693, %v2694
        %v2696 = vsub.s32 4294967266, %v2691
        %v2697 = vadd.s32 %v2696, 127
        %v2698 = vshll.u32 %v2697, 23
        %v2699 = vor.u32 4788187, %v2698
        %v2700 = vand.u32 2147483647, %v2699
        %v2702 = vcvt.s32.f32 %v2695
        %v2703 = vmul.f32 %v2702, %v2700
        %v2704 = vxor.u32 %v2703, 2147483648
        %v2705 = vsel %vm2622, %v2704, %v2703
        %v2706 = vsub.s32 4, %v2682
        %v2707 = vsel %vm2622, %v2706, %v2682
        %v2708 = vsel %vm2621, %v1453, %v2705
        %v2709 = vsel %vm2621, 0, %v2707
        %v2710 = vcosq.f32.pop %v2708
        %v2711 = vsinq.f32.pop %v2708
        %vm2712 = vweird.f32 %v1453
        %v2713 = vadd.s32 %v2709, 3
        %v2714 = vand.u32 %v2713, 3
        %vm2715 = vcmp.lt.s32.totalorder %v2714, 2
        %vm2716 = vcmp.eq.s32.totalorder %v2714, 0
        %v2717 = vxor.u32 %v2711, 2147483648
        %v2718 = vsel %vm2716, %v2710, %v2717
        %vm2719 = vcmp.eq.s32.totalorder %v2714, 2
        %v2720 = vxor.u32 %v2710, 2147483648
        %v2721 = vsel %vm2719, %v2720, %v2711
        %v2722 = vsel %vm2715, %v2718, %v2721
        %v2723 = vsel %vm2712, nan, %v2722
        %v2724 = vand.u32 2147483647, %v1458
        %vm2725 = vcmp.le.f32.partialorder %v2724, 0.7853982
        %vm2726 = vcmp.lt.s32.totalorder %v1458, 0
        %v2727 = vand.u32 %v1458, 2139095040
        %v2728 = vshrl.u32 %v2727, 23
        %v2729 = vsub.s32 %v2728, 127
        %v2730 = vand.u32 2147483647, %v1458
        %v2731 = vand.u32 %v2730, 8388607
        %v2732 = vor.u32 %v2731, 8388608
        %v2733 = vsub.s32 0, %v2732
        %v2734 = vadd.s32 %v2729, 1
        %vm2735 = vcmp.gt.s32.totalorder %v2734, 0
        %v2736 = vsel %vm2735, %v2734, 0
        %v2737 = vshrl.u32 %v2736, 5
        %v2738 = vand.u32 %v2736, 31
        %v2739 = vsub.s32 32, %v2738
        %v2740 = vshrl.u32 683565275, %v2739
        %v2741 = vshll.u32 683565275, %v2738
        %v2742 = vshrl.u32 2475754826, %v2739
        %v2743 = vor.u32 %v2741, %v2742
        %v2744 = vshll.u32 2475754826, %v2738
        %v2745 = vshrl.u32 2131351028, %v2739
        %v2746 = vor.u32 %v2744, %v2745
        %v2747 = vshll.u32 2131351028, %v2738
        %v2748 = vshrl.u32 2102212464, %v2739
        %v2749 = vor.u32 %v2747, %v2748
        %v2750 = vshll.u32 2102212464, %v2738
        %v2751 = vshrl.u32 920167782, %v2739
        %v2752 = vor.u32 %v2750, %v2751
        %v2753 = vshll.u32 920167782, %v2738
        %v2754 = vshrl.u32 1326507024, %v2739
        %v2755 = vor.u32 %v2753, %v2754
        %vm2756 = vcmp.lt.s32.totalorder %v2737, 1
        %vm2757 = vcmp.lt.s32.totalorder %v2737, 2
        %vm2758 = vcmp.lt.s32.totalorder %v2737, 3
        %vm2759 = vcmp.lt.s32.totalorder %v2737, 4
        %v2760 = vsel %vm2756, %v2740, %v2743
        %v2761 = vsel %vm2759, %v2749, 2102212464
        %v2762 = vsel %vm2758, %v2746, %v2761
        %v2763 = vsel %vm2757, %v2760, %v2762
        %v2764 = vsel %vm2756, %v2743, %v2746
        %v2765 = vsel %vm2759, %v2752, 920167782
        %v2766 = vsel %vm2758, %v2749, %v2765
        %v2767 = vsel %vm2757, %v2764, %v2766
        %v2768 = vsel %vm2756, %v2746, %v2749
        %v2769 = vsel %vm2759, %v2755, 1326507024
        %v2770 = vsel %vm2758, %v2752, %v2769
        %v2771 = vsel %vm2757, %v2768, %v2770
        %v2772 = vshll.u32 %v2732, 8
        %v2773 = vmul.u32.u64.compose %v2772, %v2771
        %v2774 = vextract.low.u32 %v2773
        %v2775 = vextract.high.u32 %v2773
        %v2776 = vmul.u32.u64.compose %v2772, %v2767
        %v2777 = vextract.low.u32 %v2776
        %v2778 = vextract.high.u32 %v2776
        %v2779 = vmul.u32 %v2772, %v2763
        %v2780 = vadd.s32 %v2775, %v2777
        %vm2781 = vc.u32 %v2775, %v2777
        %v2782 = vadd.s32 %v2778, 1
        %v2783 = vsel %vm2781, %v2782, %v2778
        %v2784 = vadd.s32 %v2779, %v2783
        %v2785 = vadd.s32 %v2784, 536870912
        %v2786 = vshrl.u32 %v2785, 30
        %v2787 = vshll.u32 %v2786, 30
        %v2788 = vsub.s32 %v2784, %v2787
        %vm2789 = vcmp.lt.s32.totalorder %v2788, 0
        %v2790 = vsub.s32 0, %v2788
        %v2791 = vsel %vm2789, %v2790, %v2788
        %v2792 = vclz %v2791
        %v2793 = vsub.s32 %v2792, 2
        %vm2794 = vcmp.gt.s32.totalorder 0, %v2793
        %v2795 = vsel %vm2794, 0, %v2793
        %v2796 = vsub.s32 32, %v2795
        %v2797 = vshll.u32 %v2788, %v2795
        %v2798 = vshrl.u32 %v2780, %v2796
        %v2799 = vor.u32 %v2797, %v2798
        %v2800 = vsub.s32 4294967266, %v2795
        %v2801 = vadd.s32 %v2800, 127
        %v2802 = vshll.u32 %v2801, 23
        %v2803 = vor.u32 4788187, %v2802
        %v2804 = vand.u32 2147483647, %v2803
        %v2806 = vcvt.s32.f32 %v2799
        %v2807 = vmul.f32 %v2806, %v2804
        %v2808 = vxor.u32 %v2807, 2147483648
        %v2809 = vsel %vm2726, %v2808, %v2807
        %v2810 = vsub.s32 4, %v2786
        %v2811 = vsel %vm2726, %v2810, %v2786
        %v2812 = vsel %vm2725, %v1458, %v2809
        %v2813 = vsel %vm2725, 0, %v2811
        %v2814 = vcosq.f32.pop %v2812
        %v2815 = vsinq.f32.pop %v2812
        %vm2816 = vweird.f32 %v1458
        %v2817 = vadd.s32 %v2813, 3
        %v2818 = vand.u32 %v2817, 3
        %vm2819 = vcmp.lt.s32.totalorder %v2818, 2
        %vm2820 = vcmp.eq.s32.totalorder %v2818, 0
        %v2821 = vxor.u32 %v2815, 2147483648
        %v2822 = vsel %vm2820, %v2814, %v2821
        %vm2823 = vcmp.eq.s32.totalorder %v2818, 2
        %v2824 = vxor.u32 %v2814, 2147483648
        %v2825 = vsel %vm2823, %v2824, %v2815
        %v2826 = vsel %vm2819, %v2822, %v2825
        %v2827 = vsel %vm2816, nan, %v2826
        %v2828 = vand.u32 2147483647, %v1463
        %vm2829 = vcmp.le.f32.partialorder %v2828, 0.7853982
        %vm2830 = vcmp.lt.s32.totalorder %v1463, 0
        %v2831 = vand.u32 %v1463, 2139095040
        %v2832 = vshrl.u32 %v2831, 23
        %v2833 = vsub.s32 %v2832, 127
        %v2834 = vand.u32 2147483647, %v1463
        %v2835 = vand.u32 %v2834, 8388607
        %v2836 = vor.u32 %v2835, 8388608
        %v2837 = vsub.s32 0, %v2836
        %v2838 = vadd.s32 %v2833, 1
        %vm2839 = vcmp.gt.s32.totalorder %v2838, 0
        %v2840 = vsel %vm2839, %v2838, 0
        %v2841 = vshrl.u32 %v2840, 5
        %v2842 = vand.u32 %v2840, 31
        %v2843 = vsub.s32 32, %v2842
        %v2844 = vshrl.u32 683565275, %v2843
        %v2845 = vshll.u32 683565275, %v2842
        %v2846 = vshrl.u32 2475754826, %v2843
        %v2847 = vor.u32 %v2845, %v2846
        %v2848 = vshll.u32 2475754826, %v2842
        %v2849 = vshrl.u32 2131351028, %v2843
        %v2850 = vor.u32 %v2848, %v2849
        %v2851 = vshll.u32 2131351028, %v2842
        %v2852 = vshrl.u32 2102212464, %v2843
        %v2853 = vor.u32 %v2851, %v2852
        %v2854 = vshll.u32 2102212464, %v2842
        %v2855 = vshrl.u32 920167782, %v2843
        %v2856 = vor.u32 %v2854, %v2855
        %v2857 = vshll.u32 920167782, %v2842
        %v2858 = vshrl.u32 1326507024, %v2843
        %v2859 = vor.u32 %v2857, %v2858
        %vm2860 = vcmp.lt.s32.totalorder %v2841, 1
        %vm2861 = vcmp.lt.s32.totalorder %v2841, 2
        %vm2862 = vcmp.lt.s32.totalorder %v2841, 3
        %vm2863 = vcmp.lt.s32.totalorder %v2841, 4
        %v2864 = vsel %vm2860, %v2844, %v2847
        %v2865 = vsel %vm2863, %v2853, 2102212464
        %v2866 = vsel %vm2862, %v2850, %v2865
        %v2867 = vsel %vm2861, %v2864, %v2866
        %v2868 = vsel %vm2860, %v2847, %v2850
        %v2869 = vsel %vm2863, %v2856, 920167782
        %v2870 = vsel %vm2862, %v2853, %v2869
        %v2871 = vsel %vm2861, %v2868, %v2870
        %v2872 = vsel %vm2860, %v2850, %v2853
        %v2873 = vsel %vm2863, %v2859, 1326507024
        %v2874 = vsel %vm2862, %v2856, %v2873
        %v2875 = vsel %vm2861, %v2872, %v2874
        %v2876 = vshll.u32 %v2836, 8
        %v2877 = vmul.u32.u64.compose %v2876, %v2875
        %v2878 = vextract.low.u32 %v2877
        %v2879 = vextract.high.u32 %v2877
        %v2880 = vmul.u32.u64.compose %v2876, %v2871
        %v2881 = vextract.low.u32 %v2880
        %v2882 = vextract.high.u32 %v2880
        %v2883 = vmul.u32 %v2876, %v2867
        %v2884 = vadd.s32 %v2879, %v2881
        %vm2885 = vc.u32 %v2879, %v2881
        %v2886 = vadd.s32 %v2882, 1
        %v2887 = vsel %vm2885, %v2886, %v2882
        %v2888 = vadd.s32 %v2883, %v2887
        %v2889 = vadd.s32 %v2888, 536870912
        %v2890 = vshrl.u32 %v2889, 30
        %v2891 = vshll.u32 %v2890, 30
        %v2892 = vsub.s32 %v2888, %v2891
        %vm2893 = vcmp.lt.s32.totalorder %v2892, 0
        %v2894 = vsub.s32 0, %v2892
        %v2895 = vsel %vm2893, %v2894, %v2892
        %v2896 = vclz %v2895
        %v2897 = vsub.s32 %v2896, 2
        %vm2898 = vcmp.gt.s32.totalorder 0, %v2897
        %v2899 = vsel %vm2898, 0, %v2897
        %v2900 = vsub.s32 32, %v2899
        %v2901 = vshll.u32 %v2892, %v2899
        %v2902 = vshrl.u32 %v2884, %v2900
        %v2903 = vor.u32 %v2901, %v2902
        %v2904 = vsub.s32 4294967266, %v2899
        %v2905 = vadd.s32 %v2904, 127
        %v2906 = vshll.u32 %v2905, 23
        %v2907 = vor.u32 4788187, %v2906
        %v2908 = vand.u32 2147483647, %v2907
        %v2910 = vcvt.s32.f32 %v2903
        %v2911 = vmul.f32 %v2910, %v2908
        %v2912 = vxor.u32 %v2911, 2147483648
        %v2913 = vsel %vm2830, %v2912, %v2911
        %v2914 = vsub.s32 4, %v2890
        %v2915 = vsel %vm2830, %v2914, %v2890
        %v2916 = vsel %vm2829, %v1463, %v2913
        %v2917 = vsel %vm2829, 0, %v2915
        %v2918 = vcosq.f32.pop %v2916
        %v2919 = vsinq.f32.pop %v2916
        %vm2920 = vweird.f32 %v1463
        %v2921 = vadd.s32 %v2917, 3
        %v2922 = vand.u32 %v2921, 3
        %vm2923 = vcmp.lt.s32.totalorder %v2922, 2
        %vm2924 = vcmp.eq.s32.totalorder %v2922, 0
        %v2925 = vxor.u32 %v2919, 2147483648
        %v2926 = vsel %vm2924, %v2918, %v2925
        %vm2927 = vcmp.eq.s32.totalorder %v2922, 2
        %v2928 = vxor.u32 %v2918, 2147483648
        %v2929 = vsel %vm2927, %v2928, %v2919
        %v2930 = vsel %vm2923, %v2926, %v2929
        %v2931 = vsel %vm2920, nan, %v2930
        %v2932 = vand.u32 2147483647, %v1468
        %vm2933 = vcmp.le.f32.partialorder %v2932, 0.7853982
        %vm2934 = vcmp.lt.s32.totalorder %v1468, 0
        %v2935 = vand.u32 %v1468, 2139095040
        %v2936 = vshrl.u32 %v2935, 23
        %v2937 = vsub.s32 %v2936, 127
        %v2938 = vand.u32 2147483647, %v1468
        %v2939 = vand.u32 %v2938, 8388607
        %v2940 = vor.u32 %v2939, 8388608
        %v2941 = vsub.s32 0, %v2940
        %v2942 = vadd.s32 %v2937, 1
        %vm2943 = vcmp.gt.s32.totalorder %v2942, 0
        %v2944 = vsel %vm2943, %v2942, 0
        %v2945 = vshrl.u32 %v2944, 5
        %v2946 = vand.u32 %v2944, 31
        %v2947 = vsub.s32 32, %v2946
        %v2948 = vshrl.u32 683565275, %v2947
        %v2949 = vshll.u32 683565275, %v2946
        %v2950 = vshrl.u32 2475754826, %v2947
        %v2951 = vor.u32 %v2949, %v2950
        %v2952 = vshll.u32 2475754826, %v2946
        %v2953 = vshrl.u32 2131351028, %v2947
        %v2954 = vor.u32 %v2952, %v2953
        %v2955 = vshll.u32 2131351028, %v2946
        %v2956 = vshrl.u32 2102212464, %v2947
        %v2957 = vor.u32 %v2955, %v2956
        %v2958 = vshll.u32 2102212464, %v2946
        %v2959 = vshrl.u32 920167782, %v2947
        %v2960 = vor.u32 %v2958, %v2959
        %v2961 = vshll.u32 920167782, %v2946
        %v2962 = vshrl.u32 1326507024, %v2947
        %v2963 = vor.u32 %v2961, %v2962
        %vm2964 = vcmp.lt.s32.totalorder %v2945, 1
        %vm2965 = vcmp.lt.s32.totalorder %v2945, 2
        %vm2966 = vcmp.lt.s32.totalorder %v2945, 3
        %vm2967 = vcmp.lt.s32.totalorder %v2945, 4
        %v2968 = vsel %vm2964, %v2948, %v2951
        %v2969 = vsel %vm2967, %v2957, 2102212464
        %v2970 = vsel %vm2966, %v2954, %v2969
        %v2971 = vsel %vm2965, %v2968, %v2970
        %v2972 = vsel %vm2964, %v2951, %v2954
        %v2973 = vsel %vm2967, %v2960, 920167782
        %v2974 = vsel %vm2966, %v2957, %v2973
        %v2975 = vsel %vm2965, %v2972, %v2974
        %v2976 = vsel %vm2964, %v2954, %v2957
        %v2977 = vsel %vm2967, %v2963, 1326507024
        %v2978 = vsel %vm2966, %v2960, %v2977
        %v2979 = vsel %vm2965, %v2976, %v2978
        %v2980 = vshll.u32 %v2940, 8
        %v2981 = vmul.u32.u64.compose %v2980, %v2979
        %v2982 = vextract.low.u32 %v2981
        %v2983 = vextract.high.u32 %v2981
        %v2984 = vmul.u32.u64.compose %v2980, %v2975
        %v2985 = vextract.low.u32 %v2984
        %v2986 = vextract.high.u32 %v2984
        %v2987 = vmul.u32 %v2980, %v2971
        %v2988 = vadd.s32 %v2983, %v2985
        %vm2989 = vc.u32 %v2983, %v2985
        %v2990 = vadd.s32 %v2986, 1
        %v2991 = vsel %vm2989, %v2990, %v2986
        %v2992 = vadd.s32 %v2987, %v2991
        %v2993 = vadd.s32 %v2992, 536870912
        %v2994 = vshrl.u32 %v2993, 30
        %v2995 = vshll.u32 %v2994, 30
        %v2996 = vsub.s32 %v2992, %v2995
        %vm2997 = vcmp.lt.s32.totalorder %v2996, 0
        %v2998 = vsub.s32 0, %v2996
        %v2999 = vsel %vm2997, %v2998, %v2996
        %v3000 = vclz %v2999
        %v3001 = vsub.s32 %v3000, 2
        %vm3002 = vcmp.gt.s32.totalorder 0, %v3001
        %v3003 = vsel %vm3002, 0, %v3001
        %v3004 = vsub.s32 32, %v3003
        %v3005 = vshll.u32 %v2996, %v3003
        %v3006 = vshrl.u32 %v2988, %v3004
        %v3007 = vor.u32 %v3005, %v3006
        %v3008 = vsub.s32 4294967266, %v3003
        %v3009 = vadd.s32 %v3008, 127
        %v3010 = vshll.u32 %v3009, 23
        %v3011 = vor.u32 4788187, %v3010
        %v3012 = vand.u32 2147483647, %v3011
        %v3014 = vcvt.s32.f32 %v3007
        %v3015 = vmul.f32 %v3014, %v3012
        %v3016 = vxor.u32 %v3015, 2147483648
        %v3017 = vsel %vm2934, %v3016, %v3015
        %v3018 = vsub.s32 4, %v2994
        %v3019 = vsel %vm2934, %v3018, %v2994
        %v3020 = vsel %vm2933, %v1468, %v3017
        %v3021 = vsel %vm2933, 0, %v3019
        %v3022 = vcosq.f32.pop %v3020
        %v3023 = vsinq.f32.pop %v3020
        %vm3024 = vweird.f32 %v1468
        %v3025 = vadd.s32 %v3021, 3
        %v3026 = vand.u32 %v3025, 3
        %vm3027 = vcmp.lt.s32.totalorder %v3026, 2
        %vm3028 = vcmp.eq.s32.totalorder %v3026, 0
        %v3029 = vxor.u32 %v3023, 2147483648
        %v3030 = vsel %vm3028, %v3022, %v3029
        %vm3031 = vcmp.eq.s32.totalorder %v3026, 2
        %v3032 = vxor.u32 %v3022, 2147483648
        %v3033 = vsel %vm3031, %v3032, %v3023
        %v3034 = vsel %vm3027, %v3030, %v3033
        %v3035 = vsel %vm3024, nan, %v3034
        %v3036 = vand.u32 2147483647, %v1473
        %vm3037 = vcmp.le.f32.partialorder %v3036, 0.7853982
        %vm3038 = vcmp.lt.s32.totalorder %v1473, 0
        %v3039 = vand.u32 %v1473, 2139095040
        %v3040 = vshrl.u32 %v3039, 23
        %v3041 = vsub.s32 %v3040, 127
        %v3042 = vand.u32 2147483647, %v1473
        %v3043 = vand.u32 %v3042, 8388607
        %v3044 = vor.u32 %v3043, 8388608
        %v3045 = vsub.s32 0, %v3044
        %v3046 = vadd.s32 %v3041, 1
        %vm3047 = vcmp.gt.s32.totalorder %v3046, 0
        %v3048 = vsel %vm3047, %v3046, 0
        %v3049 = vshrl.u32 %v3048, 5
        %v3050 = vand.u32 %v3048, 31
        %v3051 = vsub.s32 32, %v3050
        %v3052 = vshrl.u32 683565275, %v3051
        %v3053 = vshll.u32 683565275, %v3050
        %v3054 = vshrl.u32 2475754826, %v3051
        %v3055 = vor.u32 %v3053, %v3054
        %v3056 = vshll.u32 2475754826, %v3050
        %v3057 = vshrl.u32 2131351028, %v3051
        %v3058 = vor.u32 %v3056, %v3057
        %v3059 = vshll.u32 2131351028, %v3050
        %v3060 = vshrl.u32 2102212464, %v3051
        %v3061 = vor.u32 %v3059, %v3060
        %v3062 = vshll.u32 2102212464, %v3050
        %v3063 = vshrl.u32 920167782, %v3051
        %v3064 = vor.u32 %v3062, %v3063
        %v3065 = vshll.u32 920167782, %v3050
        %v3066 = vshrl.u32 1326507024, %v3051
        %v3067 = vor.u32 %v3065, %v3066
        %vm3068 = vcmp.lt.s32.totalorder %v3049, 1
        %vm3069 = vcmp.lt.s32.totalorder %v3049, 2
        %vm3070 = vcmp.lt.s32.totalorder %v3049, 3
        %vm3071 = vcmp.lt.s32.totalorder %v3049, 4
        %v3072 = vsel %vm3068, %v3052, %v3055
        %v3073 = vsel %vm3071, %v3061, 2102212464
        %v3074 = vsel %vm3070, %v3058, %v3073
        %v3075 = vsel %vm3069, %v3072, %v3074
        %v3076 = vsel %vm3068, %v3055, %v3058
        %v3077 = vsel %vm3071, %v3064, 920167782
        %v3078 = vsel %vm3070, %v3061, %v3077
        %v3079 = vsel %vm3069, %v3076, %v3078
        %v3080 = vsel %vm3068, %v3058, %v3061
        %v3081 = vsel %vm3071, %v3067, 1326507024
        %v3082 = vsel %vm3070, %v3064, %v3081
        %v3083 = vsel %vm3069, %v3080, %v3082
        %v3084 = vshll.u32 %v3044, 8
        %v3085 = vmul.u32.u64.compose %v3084, %v3083
        %v3086 = vextract.low.u32 %v3085
        %v3087 = vextract.high.u32 %v3085
        %v3088 = vmul.u32.u64.compose %v3084, %v3079
        %v3089 = vextract.low.u32 %v3088
        %v3090 = vextract.high.u32 %v3088
        %v3091 = vmul.u32 %v3084, %v3075
        %v3092 = vadd.s32 %v3087, %v3089
        %vm3093 = vc.u32 %v3087, %v3089
        %v3094 = vadd.s32 %v3090, 1
        %v3095 = vsel %vm3093, %v3094, %v3090
        %v3096 = vadd.s32 %v3091, %v3095
        %v3097 = vadd.s32 %v3096, 536870912
        %v3098 = vshrl.u32 %v3097, 30
        %v3099 = vshll.u32 %v3098, 30
        %v3100 = vsub.s32 %v3096, %v3099
        %vm3101 = vcmp.lt.s32.totalorder %v3100, 0
        %v3102 = vsub.s32 0, %v3100
        %v3103 = vsel %vm3101, %v3102, %v3100
        %v3104 = vclz %v3103
        %v3105 = vsub.s32 %v3104, 2
        %vm3106 = vcmp.gt.s32.totalorder 0, %v3105
        %v3107 = vsel %vm3106, 0, %v3105
        %v3108 = vsub.s32 32, %v3107
        %v3109 = vshll.u32 %v3100, %v3107
        %v3110 = vshrl.u32 %v3092, %v3108
        %v3111 = vor.u32 %v3109, %v3110
        %v3112 = vsub.s32 4294967266, %v3107
        %v3113 = vadd.s32 %v3112, 127
        %v3114 = vshll.u32 %v3113, 23
        %v3115 = vor.u32 4788187, %v3114
        %v3116 = vand.u32 2147483647, %v3115
        %v3118 = vcvt.s32.f32 %v3111
        %v3119 = vmul.f32 %v3118, %v3116
        %v3120 = vxor.u32 %v3119, 2147483648
        %v3121 = vsel %vm3038, %v3120, %v3119
        %v3122 = vsub.s32 4, %v3098
        %v3123 = vsel %vm3038, %v3122, %v3098
        %v3124 = vsel %vm3037, %v1473, %v3121
        %v3125 = vsel %vm3037, 0, %v3123
        %v3126 = vcosq.f32.pop %v3124
        %v3127 = vsinq.f32.pop %v3124
        %vm3128 = vweird.f32 %v1473
        %v3129 = vadd.s32 %v3125, 3
        %v3130 = vand.u32 %v3129, 3
        %vm3131 = vcmp.lt.s32.totalorder %v3130, 2
        %vm3132 = vcmp.eq.s32.totalorder %v3130, 0
        %v3133 = vxor.u32 %v3127, 2147483648
        %v3134 = vsel %vm3132, %v3126, %v3133
        %vm3135 = vcmp.eq.s32.totalorder %v3130, 2
        %v3136 = vxor.u32 %v3126, 2147483648
        %v3137 = vsel %vm3135, %v3136, %v3127
        %v3138 = vsel %vm3131, %v3134, %v3137
        %v3139 = vsel %vm3128, nan, %v3138
        %v3140 = vld [vmem:[%s7] sm:$0xff]
        %v3141 = vld [vmem:[%s7 + $0x8] sm:$0xff]
        %v3142 = vld [vmem:[%s7 + $0x10] sm:$0xff]
        %v3143 = vand.u32 2147483647, %v1398
        %vm3144 = vcmp.le.f32.partialorder %v3143, 0.7853982
        %vm3145 = vcmp.lt.s32.totalorder %v1398, 0
        %v3146 = vand.u32 %v1398, 2139095040
        %v3147 = vshrl.u32 %v3146, 23
        %v3148 = vsub.s32 %v3147, 127
        %v3149 = vand.u32 2147483647, %v1398
        %v3150 = vand.u32 %v3149, 8388607
        %v3151 = vor.u32 %v3150, 8388608
        %v3152 = vsub.s32 0, %v3151
        %v3153 = vadd.s32 %v3148, 1
        %vm3154 = vcmp.gt.s32.totalorder %v3153, 0
        %v3155 = vsel %vm3154, %v3153, 0
        %v3156 = vshrl.u32 %v3155, 5
        %v3157 = vand.u32 %v3155, 31
        %v3158 = vsub.s32 32, %v3157
        %v3159 = vshrl.u32 683565275, %v3158
        %v3160 = vshll.u32 683565275, %v3157
        %v3161 = vshrl.u32 2475754826, %v3158
        %v3162 = vor.u32 %v3160, %v3161
        %v3163 = vshll.u32 2475754826, %v3157
        %v3164 = vshrl.u32 2131351028, %v3158
        %v3165 = vor.u32 %v3163, %v3164
        %v3166 = vshll.u32 2131351028, %v3157
        %v3167 = vshrl.u32 2102212464, %v3158
        %v3168 = vor.u32 %v3166, %v3167
        %v3169 = vshll.u32 2102212464, %v3157
        %v3170 = vshrl.u32 920167782, %v3158
        %v3171 = vor.u32 %v3169, %v3170
        %v3172 = vshll.u32 920167782, %v3157
        %v3173 = vshrl.u32 1326507024, %v3158
        %v3174 = vor.u32 %v3172, %v3173
        %vm3175 = vcmp.lt.s32.totalorder %v3156, 1
        %vm3176 = vcmp.lt.s32.totalorder %v3156, 2
        %vm3177 = vcmp.lt.s32.totalorder %v3156, 3
        %vm3178 = vcmp.lt.s32.totalorder %v3156, 4
        %v3179 = vsel %vm3175, %v3159, %v3162
        %v3180 = vsel %vm3178, %v3168, 2102212464
        %v3181 = vsel %vm3177, %v3165, %v3180
        %v3182 = vsel %vm3176, %v3179, %v3181
        %v3183 = vsel %vm3175, %v3162, %v3165
        %v3184 = vsel %vm3178, %v3171, 920167782
        %v3185 = vsel %vm3177, %v3168, %v3184
        %v3186 = vsel %vm3176, %v3183, %v3185
        %v3187 = vsel %vm3175, %v3165, %v3168
        %v3188 = vsel %vm3178, %v3174, 1326507024
        %v3189 = vsel %vm3177, %v3171, %v3188
        %v3190 = vsel %vm3176, %v3187, %v3189
        %v3191 = vshll.u32 %v3151, 8
        %v3192 = vmul.u32.u64.compose %v3191, %v3190
        %v3193 = vextract.low.u32 %v3192
        %v3194 = vextract.high.u32 %v3192
        %v3195 = vmul.u32.u64.compose %v3191, %v3186
        %v3196 = vextract.low.u32 %v3195
        %v3197 = vextract.high.u32 %v3195
        %v3198 = vmul.u32 %v3191, %v3182
        %v3199 = vadd.s32 %v3194, %v3196
        %vm3200 = vc.u32 %v3194, %v3196
        %v3201 = vadd.s32 %v3197, 1
        %v3202 = vsel %vm3200, %v3201, %v3197
        %v3203 = vadd.s32 %v3198, %v3202
        %v3204 = vadd.s32 %v3203, 536870912
        %v3205 = vshrl.u32 %v3204, 30
        %v3206 = vshll.u32 %v3205, 30
        %v3207 = vsub.s32 %v3203, %v3206
        %vm3208 = vcmp.lt.s32.totalorder %v3207, 0
        %v3209 = vsub.s32 0, %v3207
        %v3210 = vsel %vm3208, %v3209, %v3207
        %v3211 = vclz %v3210
        %v3212 = vsub.s32 %v3211, 2
        %vm3213 = vcmp.gt.s32.totalorder 0, %v3212
        %v3214 = vsel %vm3213, 0, %v3212
        %v3215 = vsub.s32 32, %v3214
        %v3216 = vshll.u32 %v3207, %v3214
        %v3217 = vshrl.u32 %v3199, %v3215
        %v3218 = vor.u32 %v3216, %v3217
        %v3219 = vsub.s32 4294967266, %v3214
        %v3220 = vadd.s32 %v3219, 127
        %v3221 = vshll.u32 %v3220, 23
        %v3222 = vor.u32 4788187, %v3221
        %v3223 = vand.u32 2147483647, %v3222
        %v3225 = vcvt.s32.f32 %v3218
        %v3226 = vmul.f32 %v3225, %v3223
        %v3227 = vxor.u32 %v3226, 2147483648
        %v3228 = vsel %vm3145, %v3227, %v3226
        %v3229 = vsub.s32 4, %v3205
        %v3230 = vsel %vm3145, %v3229, %v3205
        %v3231 = vsel %vm3144, %v1398, %v3228
        %v3232 = vsel %vm3144, 0, %v3230
        %v3233 = vcosq.f32.pop %v3231
        %v3234 = vsinq.f32.pop %v3231
        %vm3235 = vweird.f32 %v1398
        %v3236 = vand.u32 %v3232, 3
        %vm3237 = vcmp.lt.s32.totalorder %v3236, 2
        %vm3238 = vcmp.eq.s32.totalorder %v3236, 0
        %v3239 = vxor.u32 %v3234, 2147483648
        %v3240 = vsel %vm3238, %v3233, %v3239
        %vm3241 = vcmp.eq.s32.totalorder %v3236, 2
        %v3242 = vxor.u32 %v3233, 2147483648
        %v3243 = vsel %vm3241, %v3242, %v3234
        %v3244 = vsel %vm3237, %v3240, %v3243
        %v3245 = vsel %vm3235, nan, %v3244
        %v3246 = vand.u32 2147483647, %v1403
        %vm3247 = vcmp.le.f32.partialorder %v3246, 0.7853982
        %vm3248 = vcmp.lt.s32.totalorder %v1403, 0
        %v3249 = vand.u32 %v1403, 2139095040
        %v3250 = vshrl.u32 %v3249, 23
        %v3251 = vsub.s32 %v3250, 127
        %v3252 = vand.u32 2147483647, %v1403
        %v3253 = vand.u32 %v3252, 8388607
        %v3254 = vor.u32 %v3253, 8388608
        %v3255 = vsub.s32 0, %v3254
        %v3256 = vadd.s32 %v3251, 1
        %vm3257 = vcmp.gt.s32.totalorder %v3256, 0
        %v3258 = vsel %vm3257, %v3256, 0
        %v3259 = vshrl.u32 %v3258, 5
        %v3260 = vand.u32 %v3258, 31
        %v3261 = vsub.s32 32, %v3260
        %v3262 = vshrl.u32 683565275, %v3261
        %v3263 = vshll.u32 683565275, %v3260
        %v3264 = vshrl.u32 2475754826, %v3261
        %v3265 = vor.u32 %v3263, %v3264
        %v3266 = vshll.u32 2475754826, %v3260
        %v3267 = vshrl.u32 2131351028, %v3261
        %v3268 = vor.u32 %v3266, %v3267
        %v3269 = vshll.u32 2131351028, %v3260
        %v3270 = vshrl.u32 2102212464, %v3261
        %v3271 = vor.u32 %v3269, %v3270
        %v3272 = vshll.u32 2102212464, %v3260
        %v3273 = vshrl.u32 920167782, %v3261
        %v3274 = vor.u32 %v3272, %v3273
        %v3275 = vshll.u32 920167782, %v3260
        %v3276 = vshrl.u32 1326507024, %v3261
        %v3277 = vor.u32 %v3275, %v3276
        %vm3278 = vcmp.lt.s32.totalorder %v3259, 1
        %vm3279 = vcmp.lt.s32.totalorder %v3259, 2
        %vm3280 = vcmp.lt.s32.totalorder %v3259, 3
        %vm3281 = vcmp.lt.s32.totalorder %v3259, 4
        %v3282 = vsel %vm3278, %v3262, %v3265
        %v3283 = vsel %vm3281, %v3271, 2102212464
        %v3284 = vsel %vm3280, %v3268, %v3283
        %v3285 = vsel %vm3279, %v3282, %v3284
        %v3286 = vsel %vm3278, %v3265, %v3268
        %v3287 = vsel %vm3281, %v3274, 920167782
        %v3288 = vsel %vm3280, %v3271, %v3287
        %v3289 = vsel %vm3279, %v3286, %v3288
        %v3290 = vsel %vm3278, %v3268, %v3271
        %v3291 = vsel %vm3281, %v3277, 1326507024
        %v3292 = vsel %vm3280, %v3274, %v3291
        %v3293 = vsel %vm3279, %v3290, %v3292
        %v3294 = vshll.u32 %v3254, 8
        %v3295 = vmul.u32.u64.compose %v3294, %v3293
        %v3296 = vextract.low.u32 %v3295
        %v3297 = vextract.high.u32 %v3295
        %v3298 = vmul.u32.u64.compose %v3294, %v3289
        %v3299 = vextract.low.u32 %v3298
        %v3300 = vextract.high.u32 %v3298
        %v3301 = vmul.u32 %v3294, %v3285
        %v3302 = vadd.s32 %v3297, %v3299
        %vm3303 = vc.u32 %v3297, %v3299
        %v3304 = vadd.s32 %v3300, 1
        %v3305 = vsel %vm3303, %v3304, %v3300
        %v3306 = vadd.s32 %v3301, %v3305
        %v3307 = vadd.s32 %v3306, 536870912
        %v3308 = vshrl.u32 %v3307, 30
        %v3309 = vshll.u32 %v3308, 30
        %v3310 = vsub.s32 %v3306, %v3309
        %vm3311 = vcmp.lt.s32.totalorder %v3310, 0
        %v3312 = vsub.s32 0, %v3310
        %v3313 = vsel %vm3311, %v3312, %v3310
        %v3314 = vclz %v3313
        %v3315 = vsub.s32 %v3314, 2
        %vm3316 = vcmp.gt.s32.totalorder 0, %v3315
        %v3317 = vsel %vm3316, 0, %v3315
        %v3318 = vsub.s32 32, %v3317
        %v3319 = vshll.u32 %v3310, %v3317
        %v3320 = vshrl.u32 %v3302, %v3318
        %v3321 = vor.u32 %v3319, %v3320
        %v3322 = vsub.s32 4294967266, %v3317
        %v3323 = vadd.s32 %v3322, 127
        %v3324 = vshll.u32 %v3323, 23
        %v3325 = vor.u32 4788187, %v3324
        %v3326 = vand.u32 2147483647, %v3325
        %v3328 = vcvt.s32.f32 %v3321
        %v3329 = vmul.f32 %v3328, %v3326
        %v3330 = vxor.u32 %v3329, 2147483648
        %v3331 = vsel %vm3248, %v3330, %v3329
        %v3332 = vsub.s32 4, %v3308
        %v3333 = vsel %vm3248, %v3332, %v3308
        %v3334 = vsel %vm3247, %v1403, %v3331
        %v3335 = vsel %vm3247, 0, %v3333
        %v3336 = vcosq.f32.pop %v3334
        %v3337 = vsinq.f32.pop %v3334
        %vm3338 = vweird.f32 %v1403
        %v3339 = vand.u32 %v3335, 3
        %vm3340 = vcmp.lt.s32.totalorder %v3339, 2
        %vm3341 = vcmp.eq.s32.totalorder %v3339, 0
        %v3342 = vxor.u32 %v3337, 2147483648
        %v3343 = vsel %vm3341, %v3336, %v3342
        %vm3344 = vcmp.eq.s32.totalorder %v3339, 2
        %v3345 = vxor.u32 %v3336, 2147483648
        %v3346 = vsel %vm3344, %v3345, %v3337
        %v3347 = vsel %vm3340, %v3343, %v3346
        %v3348 = vsel %vm3338, nan, %v3347
        %v3349 = vand.u32 2147483647, %v1408
        %vm3350 = vcmp.le.f32.partialorder %v3349, 0.7853982
        %vm3351 = vcmp.lt.s32.totalorder %v1408, 0
        %v3352 = vand.u32 %v1408, 2139095040
        %v3353 = vshrl.u32 %v3352, 23
        %v3354 = vsub.s32 %v3353, 127
        %v3355 = vand.u32 2147483647, %v1408
        %v3356 = vand.u32 %v3355, 8388607
        %v3357 = vor.u32 %v3356, 8388608
        %v3358 = vsub.s32 0, %v3357
        %v3359 = vadd.s32 %v3354, 1
        %vm3360 = vcmp.gt.s32.totalorder %v3359, 0
        %v3361 = vsel %vm3360, %v3359, 0
        %v3362 = vshrl.u32 %v3361, 5
        %v3363 = vand.u32 %v3361, 31
        %v3364 = vsub.s32 32, %v3363
        %v3365 = vshrl.u32 683565275, %v3364
        %v3366 = vshll.u32 683565275, %v3363
        %v3367 = vshrl.u32 2475754826, %v3364
        %v3368 = vor.u32 %v3366, %v3367
        %v3369 = vshll.u32 2475754826, %v3363
        %v3370 = vshrl.u32 2131351028, %v3364
        %v3371 = vor.u32 %v3369, %v3370
        %v3372 = vshll.u32 2131351028, %v3363
        %v3373 = vshrl.u32 2102212464, %v3364
        %v3374 = vor.u32 %v3372, %v3373
        %v3375 = vshll.u32 2102212464, %v3363
        %v3376 = vshrl.u32 920167782, %v3364
        %v3377 = vor.u32 %v3375, %v3376
        %v3378 = vshll.u32 920167782, %v3363
        %v3379 = vshrl.u32 1326507024, %v3364
        %v3380 = vor.u32 %v3378, %v3379
        %vm3381 = vcmp.lt.s32.totalorder %v3362, 1
        %vm3382 = vcmp.lt.s32.totalorder %v3362, 2
        %vm3383 = vcmp.lt.s32.totalorder %v3362, 3
        %vm3384 = vcmp.lt.s32.totalorder %v3362, 4
        %v3385 = vsel %vm3381, %v3365, %v3368
        %v3386 = vsel %vm3384, %v3374, 2102212464
        %v3387 = vsel %vm3383, %v3371, %v3386
        %v3388 = vsel %vm3382, %v3385, %v3387
        %v3389 = vsel %vm3381, %v3368, %v3371
        %v3390 = vsel %vm3384, %v3377, 920167782
        %v3391 = vsel %vm3383, %v3374, %v3390
        %v3392 = vsel %vm3382, %v3389, %v3391
        %v3393 = vsel %vm3381, %v3371, %v3374
        %v3394 = vsel %vm3384, %v3380, 1326507024
        %v3395 = vsel %vm3383, %v3377, %v3394
        %v3396 = vsel %vm3382, %v3393, %v3395
        %v3397 = vshll.u32 %v3357, 8
        %v3398 = vmul.u32.u64.compose %v3397, %v3396
        %v3399 = vextract.low.u32 %v3398
        %v3400 = vextract.high.u32 %v3398
        %v3401 = vmul.u32.u64.compose %v3397, %v3392
        %v3402 = vextract.low.u32 %v3401
        %v3403 = vextract.high.u32 %v3401
        %v3404 = vmul.u32 %v3397, %v3388
        %v3405 = vadd.s32 %v3400, %v3402
        %vm3406 = vc.u32 %v3400, %v3402
        %v3407 = vadd.s32 %v3403, 1
        %v3408 = vsel %vm3406, %v3407, %v3403
        %v3409 = vadd.s32 %v3404, %v3408
        %v3410 = vadd.s32 %v3409, 536870912
        %v3411 = vshrl.u32 %v3410, 30
        %v3412 = vshll.u32 %v3411, 30
        %v3413 = vsub.s32 %v3409, %v3412
        %vm3414 = vcmp.lt.s32.totalorder %v3413, 0
        %v3415 = vsub.s32 0, %v3413
        %v3416 = vsel %vm3414, %v3415, %v3413
        %v3417 = vclz %v3416
        %v3418 = vsub.s32 %v3417, 2
        %vm3419 = vcmp.gt.s32.totalorder 0, %v3418
        %v3420 = vsel %vm3419, 0, %v3418
        %v3421 = vsub.s32 32, %v3420
        %v3422 = vshll.u32 %v3413, %v3420
        %v3423 = vshrl.u32 %v3405, %v3421
        %v3424 = vor.u32 %v3422, %v3423
        %v3425 = vsub.s32 4294967266, %v3420
        %v3426 = vadd.s32 %v3425, 127
        %v3427 = vshll.u32 %v3426, 23
        %v3428 = vor.u32 4788187, %v3427
        %v3429 = vand.u32 2147483647, %v3428
        %v3431 = vcvt.s32.f32 %v3424
        %v3432 = vmul.f32 %v3431, %v3429
        %v3433 = vxor.u32 %v3432, 2147483648
        %v3434 = vsel %vm3351, %v3433, %v3432
        %v3435 = vsub.s32 4, %v3411
        %v3436 = vsel %vm3351, %v3435, %v3411
        %v3437 = vsel %vm3350, %v1408, %v3434
        %v3438 = vsel %vm3350, 0, %v3436
        %v3439 = vcosq.f32.pop %v3437
        %v3440 = vsinq.f32.pop %v3437
        %vm3441 = vweird.f32 %v1408
        %v3442 = vand.u32 %v3438, 3
        %vm3443 = vcmp.lt.s32.totalorder %v3442, 2
        %vm3444 = vcmp.eq.s32.totalorder %v3442, 0
        %v3445 = vxor.u32 %v3440, 2147483648
        %v3446 = vsel %vm3444, %v3439, %v3445
        %vm3447 = vcmp.eq.s32.totalorder %v3442, 2
        %v3448 = vxor.u32 %v3439, 2147483648
        %v3449 = vsel %vm3447, %v3448, %v3440
        %v3450 = vsel %vm3443, %v3446, %v3449
        %v3451 = vsel %vm3441, nan, %v3450
        %v3452 = vand.u32 2147483647, %v1413
        %vm3453 = vcmp.le.f32.partialorder %v3452, 0.7853982
        %vm3454 = vcmp.lt.s32.totalorder %v1413, 0
        %v3455 = vand.u32 %v1413, 2139095040
        %v3456 = vshrl.u32 %v3455, 23
        %v3457 = vsub.s32 %v3456, 127
        %v3458 = vand.u32 2147483647, %v1413
        %v3459 = vand.u32 %v3458, 8388607
        %v3460 = vor.u32 %v3459, 8388608
        %v3461 = vsub.s32 0, %v3460
        %v3462 = vadd.s32 %v3457, 1
        %vm3463 = vcmp.gt.s32.totalorder %v3462, 0
        %v3464 = vsel %vm3463, %v3462, 0
        %v3465 = vshrl.u32 %v3464, 5
        %v3466 = vand.u32 %v3464, 31
        %v3467 = vsub.s32 32, %v3466
        %v3468 = vshrl.u32 683565275, %v3467
        %v3469 = vshll.u32 683565275, %v3466
        %v3470 = vshrl.u32 2475754826, %v3467
        %v3471 = vor.u32 %v3469, %v3470
        %v3472 = vshll.u32 2475754826, %v3466
        %v3473 = vshrl.u32 2131351028, %v3467
        %v3474 = vor.u32 %v3472, %v3473
        %v3475 = vshll.u32 2131351028, %v3466
        %v3476 = vshrl.u32 2102212464, %v3467
        %v3477 = vor.u32 %v3475, %v3476
        %v3478 = vshll.u32 2102212464, %v3466
        %v3479 = vshrl.u32 920167782, %v3467
        %v3480 = vor.u32 %v3478, %v3479
        %v3481 = vshll.u32 920167782, %v3466
        %v3482 = vshrl.u32 1326507024, %v3467
        %v3483 = vor.u32 %v3481, %v3482
        %vm3484 = vcmp.lt.s32.totalorder %v3465, 1
        %vm3485 = vcmp.lt.s32.totalorder %v3465, 2
        %vm3486 = vcmp.lt.s32.totalorder %v3465, 3
        %vm3487 = vcmp.lt.s32.totalorder %v3465, 4
        %v3488 = vsel %vm3484, %v3468, %v3471
        %v3489 = vsel %vm3487, %v3477, 2102212464
        %v3490 = vsel %vm3486, %v3474, %v3489
        %v3491 = vsel %vm3485, %v3488, %v3490
        %v3492 = vsel %vm3484, %v3471, %v3474
        %v3493 = vsel %vm3487, %v3480, 920167782
        %v3494 = vsel %vm3486, %v3477, %v3493
        %v3495 = vsel %vm3485, %v3492, %v3494
        %v3496 = vsel %vm3484, %v3474, %v3477
        %v3497 = vsel %vm3487, %v3483, 1326507024
        %v3498 = vsel %vm3486, %v3480, %v3497
        %v3499 = vsel %vm3485, %v3496, %v3498
        %v3500 = vshll.u32 %v3460, 8
        %v3501 = vmul.u32.u64.compose %v3500, %v3499
        %v3502 = vextract.low.u32 %v3501
        %v3503 = vextract.high.u32 %v3501
        %v3504 = vmul.u32.u64.compose %v3500, %v3495
        %v3505 = vextract.low.u32 %v3504
        %v3506 = vextract.high.u32 %v3504
        %v3507 = vmul.u32 %v3500, %v3491
        %v3508 = vadd.s32 %v3503, %v3505
        %vm3509 = vc.u32 %v3503, %v3505
        %v3510 = vadd.s32 %v3506, 1
        %v3511 = vsel %vm3509, %v3510, %v3506
        %v3512 = vadd.s32 %v3507, %v3511
        %v3513 = vadd.s32 %v3512, 536870912
        %v3514 = vshrl.u32 %v3513, 30
        %v3515 = vshll.u32 %v3514, 30
        %v3516 = vsub.s32 %v3512, %v3515
        %vm3517 = vcmp.lt.s32.totalorder %v3516, 0
        %v3518 = vsub.s32 0, %v3516
        %v3519 = vsel %vm3517, %v3518, %v3516
        %v3520 = vclz %v3519
        %v3521 = vsub.s32 %v3520, 2
        %vm3522 = vcmp.gt.s32.totalorder 0, %v3521
        %v3523 = vsel %vm3522, 0, %v3521
        %v3524 = vsub.s32 32, %v3523
        %v3525 = vshll.u32 %v3516, %v3523
        %v3526 = vshrl.u32 %v3508, %v3524
        %v3527 = vor.u32 %v3525, %v3526
        %v3528 = vsub.s32 4294967266, %v3523
        %v3529 = vadd.s32 %v3528, 127
        %v3530 = vshll.u32 %v3529, 23
        %v3531 = vor.u32 4788187, %v3530
        %v3532 = vand.u32 2147483647, %v3531
        %v3534 = vcvt.s32.f32 %v3527
        %v3535 = vmul.f32 %v3534, %v3532
        %v3536 = vxor.u32 %v3535, 2147483648
        %v3537 = vsel %vm3454, %v3536, %v3535
        %v3538 = vsub.s32 4, %v3514
        %v3539 = vsel %vm3454, %v3538, %v3514
        %v3540 = vsel %vm3453, %v1413, %v3537
        %v3541 = vsel %vm3453, 0, %v3539
        %v3542 = vcosq.f32.pop %v3540
        %v3543 = vsinq.f32.pop %v3540
        %vm3544 = vweird.f32 %v1413
        %v3545 = vand.u32 %v3541, 3
        %vm3546 = vcmp.lt.s32.totalorder %v3545, 2
        %vm3547 = vcmp.eq.s32.totalorder %v3545, 0
        %v3548 = vxor.u32 %v3543, 2147483648
        %v3549 = vsel %vm3547, %v3542, %v3548
        %vm3550 = vcmp.eq.s32.totalorder %v3545, 2
        %v3551 = vxor.u32 %v3542, 2147483648
        %v3552 = vsel %vm3550, %v3551, %v3543
        %v3553 = vsel %vm3546, %v3549, %v3552
        %v3554 = vsel %vm3544, nan, %v3553
        %v3555 = vand.u32 2147483647, %v1418
        %vm3556 = vcmp.le.f32.partialorder %v3555, 0.7853982
        %vm3557 = vcmp.lt.s32.totalorder %v1418, 0
        %v3558 = vand.u32 %v1418, 2139095040
        %v3559 = vshrl.u32 %v3558, 23
        %v3560 = vsub.s32 %v3559, 127
        %v3561 = vand.u32 2147483647, %v1418
        %v3562 = vand.u32 %v3561, 8388607
        %v3563 = vor.u32 %v3562, 8388608
        %v3564 = vsub.s32 0, %v3563
        %v3565 = vadd.s32 %v3560, 1
        %vm3566 = vcmp.gt.s32.totalorder %v3565, 0
        %v3567 = vsel %vm3566, %v3565, 0
        %v3568 = vshrl.u32 %v3567, 5
        %v3569 = vand.u32 %v3567, 31
        %v3570 = vsub.s32 32, %v3569
        %v3571 = vshrl.u32 683565275, %v3570
        %v3572 = vshll.u32 683565275, %v3569
        %v3573 = vshrl.u32 2475754826, %v3570
        %v3574 = vor.u32 %v3572, %v3573
        %v3575 = vshll.u32 2475754826, %v3569
        %v3576 = vshrl.u32 2131351028, %v3570
        %v3577 = vor.u32 %v3575, %v3576
        %v3578 = vshll.u32 2131351028, %v3569
        %v3579 = vshrl.u32 2102212464, %v3570
        %v3580 = vor.u32 %v3578, %v3579
        %v3581 = vshll.u32 2102212464, %v3569
        %v3582 = vshrl.u32 920167782, %v3570
        %v3583 = vor.u32 %v3581, %v3582
        %v3584 = vshll.u32 920167782, %v3569
        %v3585 = vshrl.u32 1326507024, %v3570
        %v3586 = vor.u32 %v3584, %v3585
        %vm3587 = vcmp.lt.s32.totalorder %v3568, 1
        %vm3588 = vcmp.lt.s32.totalorder %v3568, 2
        %vm3589 = vcmp.lt.s32.totalorder %v3568, 3
        %vm3590 = vcmp.lt.s32.totalorder %v3568, 4
        %v3591 = vsel %vm3587, %v3571, %v3574
        %v3592 = vsel %vm3590, %v3580, 2102212464
        %v3593 = vsel %vm3589, %v3577, %v3592
        %v3594 = vsel %vm3588, %v3591, %v3593
        %v3595 = vsel %vm3587, %v3574, %v3577
        %v3596 = vsel %vm3590, %v3583, 920167782
        %v3597 = vsel %vm3589, %v3580, %v3596
        %v3598 = vsel %vm3588, %v3595, %v3597
        %v3599 = vsel %vm3587, %v3577, %v3580
        %v3600 = vsel %vm3590, %v3586, 1326507024
        %v3601 = vsel %vm3589, %v3583, %v3600
        %v3602 = vsel %vm3588, %v3599, %v3601
        %v3603 = vshll.u32 %v3563, 8
        %v3604 = vmul.u32.u64.compose %v3603, %v3602
        %v3605 = vextract.low.u32 %v3604
        %v3606 = vextract.high.u32 %v3604
        %v3607 = vmul.u32.u64.compose %v3603, %v3598
        %v3608 = vextract.low.u32 %v3607
        %v3609 = vextract.high.u32 %v3607
        %v3610 = vmul.u32 %v3603, %v3594
        %v3611 = vadd.s32 %v3606, %v3608
        %vm3612 = vc.u32 %v3606, %v3608
        %v3613 = vadd.s32 %v3609, 1
        %v3614 = vsel %vm3612, %v3613, %v3609
        %v3615 = vadd.s32 %v3610, %v3614
        %v3616 = vadd.s32 %v3615, 536870912
        %v3617 = vshrl.u32 %v3616, 30
        %v3618 = vshll.u32 %v3617, 30
        %v3619 = vsub.s32 %v3615, %v3618
        %vm3620 = vcmp.lt.s32.totalorder %v3619, 0
        %v3621 = vsub.s32 0, %v3619
        %v3622 = vsel %vm3620, %v3621, %v3619
        %v3623 = vclz %v3622
        %v3624 = vsub.s32 %v3623, 2
        %vm3625 = vcmp.gt.s32.totalorder 0, %v3624
        %v3626 = vsel %vm3625, 0, %v3624
        %v3627 = vsub.s32 32, %v3626
        %v3628 = vshll.u32 %v3619, %v3626
        %v3629 = vshrl.u32 %v3611, %v3627
        %v3630 = vor.u32 %v3628, %v3629
        %v3631 = vsub.s32 4294967266, %v3626
        %v3632 = vadd.s32 %v3631, 127
        %v3633 = vshll.u32 %v3632, 23
        %v3634 = vor.u32 4788187, %v3633
        %v3635 = vand.u32 2147483647, %v3634
        %v3637 = vcvt.s32.f32 %v3630
        %v3638 = vmul.f32 %v3637, %v3635
        %v3639 = vxor.u32 %v3638, 2147483648
        %v3640 = vsel %vm3557, %v3639, %v3638
        %v3641 = vsub.s32 4, %v3617
        %v3642 = vsel %vm3557, %v3641, %v3617
        %v3643 = vsel %vm3556, %v1418, %v3640
        %v3644 = vsel %vm3556, 0, %v3642
        %v3645 = vcosq.f32.pop %v3643
        %v3646 = vsinq.f32.pop %v3643
        %vm3647 = vweird.f32 %v1418
        %v3648 = vand.u32 %v3644, 3
        %vm3649 = vcmp.lt.s32.totalorder %v3648, 2
        %vm3650 = vcmp.eq.s32.totalorder %v3648, 0
        %v3651 = vxor.u32 %v3646, 2147483648
        %v3652 = vsel %vm3650, %v3645, %v3651
        %vm3653 = vcmp.eq.s32.totalorder %v3648, 2
        %v3654 = vxor.u32 %v3645, 2147483648
        %v3655 = vsel %vm3653, %v3654, %v3646
        %v3656 = vsel %vm3649, %v3652, %v3655
        %v3657 = vsel %vm3647, nan, %v3656
        %v3658 = vand.u32 2147483647, %v1423
        %vm3659 = vcmp.le.f32.partialorder %v3658, 0.7853982
        %vm3660 = vcmp.lt.s32.totalorder %v1423, 0
        %v3661 = vand.u32 %v1423, 2139095040
        %v3662 = vshrl.u32 %v3661, 23
        %v3663 = vsub.s32 %v3662, 127
        %v3664 = vand.u32 2147483647, %v1423
        %v3665 = vand.u32 %v3664, 8388607
        %v3666 = vor.u32 %v3665, 8388608
        %v3667 = vsub.s32 0, %v3666
        %v3668 = vadd.s32 %v3663, 1
        %vm3669 = vcmp.gt.s32.totalorder %v3668, 0
        %v3670 = vsel %vm3669, %v3668, 0
        %v3671 = vshrl.u32 %v3670, 5
        %v3672 = vand.u32 %v3670, 31
        %v3673 = vsub.s32 32, %v3672
        %v3674 = vshrl.u32 683565275, %v3673
        %v3675 = vshll.u32 683565275, %v3672
        %v3676 = vshrl.u32 2475754826, %v3673
        %v3677 = vor.u32 %v3675, %v3676
        %v3678 = vshll.u32 2475754826, %v3672
        %v3679 = vshrl.u32 2131351028, %v3673
        %v3680 = vor.u32 %v3678, %v3679
        %v3681 = vshll.u32 2131351028, %v3672
        %v3682 = vshrl.u32 2102212464, %v3673
        %v3683 = vor.u32 %v3681, %v3682
        %v3684 = vshll.u32 2102212464, %v3672
        %v3685 = vshrl.u32 920167782, %v3673
        %v3686 = vor.u32 %v3684, %v3685
        %v3687 = vshll.u32 920167782, %v3672
        %v3688 = vshrl.u32 1326507024, %v3673
        %v3689 = vor.u32 %v3687, %v3688
        %vm3690 = vcmp.lt.s32.totalorder %v3671, 1
        %vm3691 = vcmp.lt.s32.totalorder %v3671, 2
        %vm3692 = vcmp.lt.s32.totalorder %v3671, 3
        %vm3693 = vcmp.lt.s32.totalorder %v3671, 4
        %v3694 = vsel %vm3690, %v3674, %v3677
        %v3695 = vsel %vm3693, %v3683, 2102212464
        %v3696 = vsel %vm3692, %v3680, %v3695
        %v3697 = vsel %vm3691, %v3694, %v3696
        %v3698 = vsel %vm3690, %v3677, %v3680
        %v3699 = vsel %vm3693, %v3686, 920167782
        %v3700 = vsel %vm3692, %v3683, %v3699
        %v3701 = vsel %vm3691, %v3698, %v3700
        %v3702 = vsel %vm3690, %v3680, %v3683
        %v3703 = vsel %vm3693, %v3689, 1326507024
        %v3704 = vsel %vm3692, %v3686, %v3703
        %v3705 = vsel %vm3691, %v3702, %v3704
        %v3706 = vshll.u32 %v3666, 8
        %v3707 = vmul.u32.u64.compose %v3706, %v3705
        %v3708 = vextract.low.u32 %v3707
        %v3709 = vextract.high.u32 %v3707
        %v3710 = vmul.u32.u64.compose %v3706, %v3701
        %v3711 = vextract.low.u32 %v3710
        %v3712 = vextract.high.u32 %v3710
        %v3713 = vmul.u32 %v3706, %v3697
        %v3714 = vadd.s32 %v3709, %v3711
        %vm3715 = vc.u32 %v3709, %v3711
        %v3716 = vadd.s32 %v3712, 1
        %v3717 = vsel %vm3715, %v3716, %v3712
        %v3718 = vadd.s32 %v3713, %v3717
        %v3719 = vadd.s32 %v3718, 536870912
        %v3720 = vshrl.u32 %v3719, 30
        %v3721 = vshll.u32 %v3720, 30
        %v3722 = vsub.s32 %v3718, %v3721
        %vm3723 = vcmp.lt.s32.totalorder %v3722, 0
        %v3724 = vsub.s32 0, %v3722
        %v3725 = vsel %vm3723, %v3724, %v3722
        %v3726 = vclz %v3725
        %v3727 = vsub.s32 %v3726, 2
        %vm3728 = vcmp.gt.s32.totalorder 0, %v3727
        %v3729 = vsel %vm3728, 0, %v3727
        %v3730 = vsub.s32 32, %v3729
        %v3731 = vshll.u32 %v3722, %v3729
        %v3732 = vshrl.u32 %v3714, %v3730
        %v3733 = vor.u32 %v3731, %v3732
        %v3734 = vsub.s32 4294967266, %v3729
        %v3735 = vadd.s32 %v3734, 127
        %v3736 = vshll.u32 %v3735, 23
        %v3737 = vor.u32 4788187, %v3736
        %v3738 = vand.u32 2147483647, %v3737
        %v3740 = vcvt.s32.f32 %v3733
        %v3741 = vmul.f32 %v3740, %v3738
        %v3742 = vxor.u32 %v3741, 2147483648
        %v3743 = vsel %vm3660, %v3742, %v3741
        %v3744 = vsub.s32 4, %v3720
        %v3745 = vsel %vm3660, %v3744, %v3720
        %v3746 = vsel %vm3659, %v1423, %v3743
        %v3747 = vsel %vm3659, 0, %v3745
        %v3748 = vcosq.f32.pop %v3746
        %v3749 = vsinq.f32.pop %v3746
        %vm3750 = vweird.f32 %v1423
        %v3751 = vand.u32 %v3747, 3
        %vm3752 = vcmp.lt.s32.totalorder %v3751, 2
        %vm3753 = vcmp.eq.s32.totalorder %v3751, 0
        %v3754 = vxor.u32 %v3749, 2147483648
        %v3755 = vsel %vm3753, %v3748, %v3754
        %vm3756 = vcmp.eq.s32.totalorder %v3751, 2
        %v3757 = vxor.u32 %v3748, 2147483648
        %v3758 = vsel %vm3756, %v3757, %v3749
        %v3759 = vsel %vm3752, %v3755, %v3758
        %v3760 = vsel %vm3750, nan, %v3759
        %v3761 = vand.u32 2147483647, %v1428
        %vm3762 = vcmp.le.f32.partialorder %v3761, 0.7853982
        %vm3763 = vcmp.lt.s32.totalorder %v1428, 0
        %v3764 = vand.u32 %v1428, 2139095040
        %v3765 = vshrl.u32 %v3764, 23
        %v3766 = vsub.s32 %v3765, 127
        %v3767 = vand.u32 2147483647, %v1428
        %v3768 = vand.u32 %v3767, 8388607
        %v3769 = vor.u32 %v3768, 8388608
        %v3770 = vsub.s32 0, %v3769
        %v3771 = vadd.s32 %v3766, 1
        %vm3772 = vcmp.gt.s32.totalorder %v3771, 0
        %v3773 = vsel %vm3772, %v3771, 0
        %v3774 = vshrl.u32 %v3773, 5
        %v3775 = vand.u32 %v3773, 31
        %v3776 = vsub.s32 32, %v3775
        %v3777 = vshrl.u32 683565275, %v3776
        %v3778 = vshll.u32 683565275, %v3775
        %v3779 = vshrl.u32 2475754826, %v3776
        %v3780 = vor.u32 %v3778, %v3779
        %v3781 = vshll.u32 2475754826, %v3775
        %v3782 = vshrl.u32 2131351028, %v3776
        %v3783 = vor.u32 %v3781, %v3782
        %v3784 = vshll.u32 2131351028, %v3775
        %v3785 = vshrl.u32 2102212464, %v3776
        %v3786 = vor.u32 %v3784, %v3785
        %v3787 = vshll.u32 2102212464, %v3775
        %v3788 = vshrl.u32 920167782, %v3776
        %v3789 = vor.u32 %v3787, %v3788
        %v3790 = vshll.u32 920167782, %v3775
        %v3791 = vshrl.u32 1326507024, %v3776
        %v3792 = vor.u32 %v3790, %v3791
        %vm3793 = vcmp.lt.s32.totalorder %v3774, 1
        %vm3794 = vcmp.lt.s32.totalorder %v3774, 2
        %vm3795 = vcmp.lt.s32.totalorder %v3774, 3
        %vm3796 = vcmp.lt.s32.totalorder %v3774, 4
        %v3797 = vsel %vm3793, %v3777, %v3780
        %v3798 = vsel %vm3796, %v3786, 2102212464
        %v3799 = vsel %vm3795, %v3783, %v3798
        %v3800 = vsel %vm3794, %v3797, %v3799
        %v3801 = vsel %vm3793, %v3780, %v3783
        %v3802 = vsel %vm3796, %v3789, 920167782
        %v3803 = vsel %vm3795, %v3786, %v3802
        %v3804 = vsel %vm3794, %v3801, %v3803
        %v3805 = vsel %vm3793, %v3783, %v3786
        %v3806 = vsel %vm3796, %v3792, 1326507024
        %v3807 = vsel %vm3795, %v3789, %v3806
        %v3808 = vsel %vm3794, %v3805, %v3807
        %v3809 = vshll.u32 %v3769, 8
        %v3810 = vmul.u32.u64.compose %v3809, %v3808
        %v3811 = vextract.low.u32 %v3810
        %v3812 = vextract.high.u32 %v3810
        %v3813 = vmul.u32.u64.compose %v3809, %v3804
        %v3814 = vextract.low.u32 %v3813
        %v3815 = vextract.high.u32 %v3813
        %v3816 = vmul.u32 %v3809, %v3800
        %v3817 = vadd.s32 %v3812, %v3814
        %vm3818 = vc.u32 %v3812, %v3814
        %v3819 = vadd.s32 %v3815, 1
        %v3820 = vsel %vm3818, %v3819, %v3815
        %v3821 = vadd.s32 %v3816, %v3820
        %v3822 = vadd.s32 %v3821, 536870912
        %v3823 = vshrl.u32 %v3822, 30
        %v3824 = vshll.u32 %v3823, 30
        %v3825 = vsub.s32 %v3821, %v3824
        %vm3826 = vcmp.lt.s32.totalorder %v3825, 0
        %v3827 = vsub.s32 0, %v3825
        %v3828 = vsel %vm3826, %v3827, %v3825
        %v3829 = vclz %v3828
        %v3830 = vsub.s32 %v3829, 2
        %vm3831 = vcmp.gt.s32.totalorder 0, %v3830
        %v3832 = vsel %vm3831, 0, %v3830
        %v3833 = vsub.s32 32, %v3832
        %v3834 = vshll.u32 %v3825, %v3832
        %v3835 = vshrl.u32 %v3817, %v3833
        %v3836 = vor.u32 %v3834, %v3835
        %v3837 = vsub.s32 4294967266, %v3832
        %v3838 = vadd.s32 %v3837, 127
        %v3839 = vshll.u32 %v3838, 23
        %v3840 = vor.u32 4788187, %v3839
        %v3841 = vand.u32 2147483647, %v3840
        %v3843 = vcvt.s32.f32 %v3836
        %v3844 = vmul.f32 %v3843, %v3841
        %v3845 = vxor.u32 %v3844, 2147483648
        %v3846 = vsel %vm3763, %v3845, %v3844
        %v3847 = vsub.s32 4, %v3823
        %v3848 = vsel %vm3763, %v3847, %v3823
        %v3849 = vsel %vm3762, %v1428, %v3846
        %v3850 = vsel %vm3762, 0, %v3848
        %v3851 = vcosq.f32.pop %v3849
        %v3852 = vsinq.f32.pop %v3849
        %vm3853 = vweird.f32 %v1428
        %v3854 = vand.u32 %v3850, 3
        %vm3855 = vcmp.lt.s32.totalorder %v3854, 2
        %vm3856 = vcmp.eq.s32.totalorder %v3854, 0
        %v3857 = vxor.u32 %v3852, 2147483648
        %v3858 = vsel %vm3856, %v3851, %v3857
        %vm3859 = vcmp.eq.s32.totalorder %v3854, 2
        %v3860 = vxor.u32 %v3851, 2147483648
        %v3861 = vsel %vm3859, %v3860, %v3852
        %v3862 = vsel %vm3855, %v3858, %v3861
        %v3863 = vsel %vm3853, nan, %v3862
        %v3864 = vand.u32 2147483647, %v1433
        %vm3865 = vcmp.le.f32.partialorder %v3864, 0.7853982
        %vm3866 = vcmp.lt.s32.totalorder %v1433, 0
        %v3867 = vand.u32 %v1433, 2139095040
        %v3868 = vshrl.u32 %v3867, 23
        %v3869 = vsub.s32 %v3868, 127
        %v3870 = vand.u32 2147483647, %v1433
        %v3871 = vand.u32 %v3870, 8388607
        %v3872 = vor.u32 %v3871, 8388608
        %v3873 = vsub.s32 0, %v3872
        %v3874 = vadd.s32 %v3869, 1
        %vm3875 = vcmp.gt.s32.totalorder %v3874, 0
        %v3876 = vsel %vm3875, %v3874, 0
        %v3877 = vshrl.u32 %v3876, 5
        %v3878 = vand.u32 %v3876, 31
        %v3879 = vsub.s32 32, %v3878
        %v3880 = vshrl.u32 683565275, %v3879
        %v3881 = vshll.u32 683565275, %v3878
        %v3882 = vshrl.u32 2475754826, %v3879
        %v3883 = vor.u32 %v3881, %v3882
        %v3884 = vshll.u32 2475754826, %v3878
        %v3885 = vshrl.u32 2131351028, %v3879
        %v3886 = vor.u32 %v3884, %v3885
        %v3887 = vshll.u32 2131351028, %v3878
        %v3888 = vshrl.u32 2102212464, %v3879
        %v3889 = vor.u32 %v3887, %v3888
        %v3890 = vshll.u32 2102212464, %v3878
        %v3891 = vshrl.u32 920167782, %v3879
        %v3892 = vor.u32 %v3890, %v3891
        %v3893 = vshll.u32 920167782, %v3878
        %v3894 = vshrl.u32 1326507024, %v3879
        %v3895 = vor.u32 %v3893, %v3894
        %vm3896 = vcmp.lt.s32.totalorder %v3877, 1
        %vm3897 = vcmp.lt.s32.totalorder %v3877, 2
        %vm3898 = vcmp.lt.s32.totalorder %v3877, 3
        %vm3899 = vcmp.lt.s32.totalorder %v3877, 4
        %v3900 = vsel %vm3896, %v3880, %v3883
        %v3901 = vsel %vm3899, %v3889, 2102212464
        %v3902 = vsel %vm3898, %v3886, %v3901
        %v3903 = vsel %vm3897, %v3900, %v3902
        %v3904 = vsel %vm3896, %v3883, %v3886
        %v3905 = vsel %vm3899, %v3892, 920167782
        %v3906 = vsel %vm3898, %v3889, %v3905
        %v3907 = vsel %vm3897, %v3904, %v3906
        %v3908 = vsel %vm3896, %v3886, %v3889
        %v3909 = vsel %vm3899, %v3895, 1326507024
        %v3910 = vsel %vm3898, %v3892, %v3909
        %v3911 = vsel %vm3897, %v3908, %v3910
        %v3912 = vshll.u32 %v3872, 8
        %v3913 = vmul.u32.u64.compose %v3912, %v3911
        %v3914 = vextract.low.u32 %v3913
        %v3915 = vextract.high.u32 %v3913
        %v3916 = vmul.u32.u64.compose %v3912, %v3907
        %v3917 = vextract.low.u32 %v3916
        %v3918 = vextract.high.u32 %v3916
        %v3919 = vmul.u32 %v3912, %v3903
        %v3920 = vadd.s32 %v3915, %v3917
        %vm3921 = vc.u32 %v3915, %v3917
        %v3922 = vadd.s32 %v3918, 1
        %v3923 = vsel %vm3921, %v3922, %v3918
        %v3924 = vadd.s32 %v3919, %v3923
        %v3925 = vadd.s32 %v3924, 536870912
        %v3926 = vshrl.u32 %v3925, 30
        %v3927 = vshll.u32 %v3926, 30
        %v3928 = vsub.s32 %v3924, %v3927
        %vm3929 = vcmp.lt.s32.totalorder %v3928, 0
        %v3930 = vsub.s32 0, %v3928
        %v3931 = vsel %vm3929, %v3930, %v3928
        %v3932 = vclz %v3931
        %v3933 = vsub.s32 %v3932, 2
        %vm3934 = vcmp.gt.s32.totalorder 0, %v3933
        %v3935 = vsel %vm3934, 0, %v3933
        %v3936 = vsub.s32 32, %v3935
        %v3937 = vshll.u32 %v3928, %v3935
        %v3938 = vshrl.u32 %v3920, %v3936
        %v3939 = vor.u32 %v3937, %v3938
        %v3940 = vsub.s32 4294967266, %v3935
        %v3941 = vadd.s32 %v3940, 127
        %v3942 = vshll.u32 %v3941, 23
        %v3943 = vor.u32 4788187, %v3942
        %v3944 = vand.u32 2147483647, %v3943
        %v3946 = vcvt.s32.f32 %v3939
        %v3947 = vmul.f32 %v3946, %v3944
        %v3948 = vxor.u32 %v3947, 2147483648
        %v3949 = vsel %vm3866, %v3948, %v3947
        %v3950 = vsub.s32 4, %v3926
        %v3951 = vsel %vm3866, %v3950, %v3926
        %v3952 = vsel %vm3865, %v1433, %v3949
        %v3953 = vsel %vm3865, 0, %v3951
        %v3954 = vcosq.f32.pop %v3952
        %v3955 = vsinq.f32.pop %v3952
        %vm3956 = vweird.f32 %v1433
        %v3957 = vand.u32 %v3953, 3
        %vm3958 = vcmp.lt.s32.totalorder %v3957, 2
        %vm3959 = vcmp.eq.s32.totalorder %v3957, 0
        %v3960 = vxor.u32 %v3955, 2147483648
        %v3961 = vsel %vm3959, %v3954, %v3960
        %vm3962 = vcmp.eq.s32.totalorder %v3957, 2
        %v3963 = vxor.u32 %v3954, 2147483648
        %v3964 = vsel %vm3962, %v3963, %v3955
        %v3965 = vsel %vm3958, %v3961, %v3964
        %v3966 = vsel %vm3956, nan, %v3965
        %v3967 = vand.u32 2147483647, %v1438
        %vm3968 = vcmp.le.f32.partialorder %v3967, 0.7853982
        %vm3969 = vcmp.lt.s32.totalorder %v1438, 0
        %v3970 = vand.u32 %v1438, 2139095040
        %v3971 = vshrl.u32 %v3970, 23
        %v3972 = vsub.s32 %v3971, 127
        %v3973 = vand.u32 2147483647, %v1438
        %v3974 = vand.u32 %v3973, 8388607
        %v3975 = vor.u32 %v3974, 8388608
        %v3976 = vsub.s32 0, %v3975
        %v3977 = vadd.s32 %v3972, 1
        %vm3978 = vcmp.gt.s32.totalorder %v3977, 0
        %v3979 = vsel %vm3978, %v3977, 0
        %v3980 = vshrl.u32 %v3979, 5
        %v3981 = vand.u32 %v3979, 31
        %v3982 = vsub.s32 32, %v3981
        %v3983 = vshrl.u32 683565275, %v3982
        %v3984 = vshll.u32 683565275, %v3981
        %v3985 = vshrl.u32 2475754826, %v3982
        %v3986 = vor.u32 %v3984, %v3985
        %v3987 = vshll.u32 2475754826, %v3981
        %v3988 = vshrl.u32 2131351028, %v3982
        %v3989 = vor.u32 %v3987, %v3988
        %v3990 = vshll.u32 2131351028, %v3981
        %v3991 = vshrl.u32 2102212464, %v3982
        %v3992 = vor.u32 %v3990, %v3991
        %v3993 = vshll.u32 2102212464, %v3981
        %v3994 = vshrl.u32 920167782, %v3982
        %v3995 = vor.u32 %v3993, %v3994
        %v3996 = vshll.u32 920167782, %v3981
        %v3997 = vshrl.u32 1326507024, %v3982
        %v3998 = vor.u32 %v3996, %v3997
        %vm3999 = vcmp.lt.s32.totalorder %v3980, 1
        %vm4000 = vcmp.lt.s32.totalorder %v3980, 2
        %vm4001 = vcmp.lt.s32.totalorder %v3980, 3
        %vm4002 = vcmp.lt.s32.totalorder %v3980, 4
        %v4003 = vsel %vm3999, %v3983, %v3986
        %v4004 = vsel %vm4002, %v3992, 2102212464
        %v4005 = vsel %vm4001, %v3989, %v4004
        %v4006 = vsel %vm4000, %v4003, %v4005
        %v4007 = vsel %vm3999, %v3986, %v3989
        %v4008 = vsel %vm4002, %v3995, 920167782
        %v4009 = vsel %vm4001, %v3992, %v4008
        %v4010 = vsel %vm4000, %v4007, %v4009
        %v4011 = vsel %vm3999, %v3989, %v3992
        %v4012 = vsel %vm4002, %v3998, 1326507024
        %v4013 = vsel %vm4001, %v3995, %v4012
        %v4014 = vsel %vm4000, %v4011, %v4013
        %v4015 = vshll.u32 %v3975, 8
        %v4016 = vmul.u32.u64.compose %v4015, %v4014
        %v4017 = vextract.low.u32 %v4016
        %v4018 = vextract.high.u32 %v4016
        %v4019 = vmul.u32.u64.compose %v4015, %v4010
        %v4020 = vextract.low.u32 %v4019
        %v4021 = vextract.high.u32 %v4019
        %v4022 = vmul.u32 %v4015, %v4006
        %v4023 = vadd.s32 %v4018, %v4020
        %vm4024 = vc.u32 %v4018, %v4020
        %v4025 = vadd.s32 %v4021, 1
        %v4026 = vsel %vm4024, %v4025, %v4021
        %v4027 = vadd.s32 %v4022, %v4026
        %v4028 = vadd.s32 %v4027, 536870912
        %v4029 = vshrl.u32 %v4028, 30
        %v4030 = vshll.u32 %v4029, 30
        %v4031 = vsub.s32 %v4027, %v4030
        %vm4032 = vcmp.lt.s32.totalorder %v4031, 0
        %v4033 = vsub.s32 0, %v4031
        %v4034 = vsel %vm4032, %v4033, %v4031
        %v4035 = vclz %v4034
        %v4036 = vsub.s32 %v4035, 2
        %vm4037 = vcmp.gt.s32.totalorder 0, %v4036
        %v4038 = vsel %vm4037, 0, %v4036
        %v4039 = vsub.s32 32, %v4038
        %v4040 = vshll.u32 %v4031, %v4038
        %v4041 = vshrl.u32 %v4023, %v4039
        %v4042 = vor.u32 %v4040, %v4041
        %v4043 = vsub.s32 4294967266, %v4038
        %v4044 = vadd.s32 %v4043, 127
        %v4045 = vshll.u32 %v4044, 23
        %v4046 = vor.u32 4788187, %v4045
        %v4047 = vand.u32 2147483647, %v4046
        %v4049 = vcvt.s32.f32 %v4042
        %v4050 = vmul.f32 %v4049, %v4047
        %v4051 = vxor.u32 %v4050, 2147483648
        %v4052 = vsel %vm3969, %v4051, %v4050
        %v4053 = vsub.s32 4, %v4029
        %v4054 = vsel %vm3969, %v4053, %v4029
        %v4055 = vsel %vm3968, %v1438, %v4052
        %v4056 = vsel %vm3968, 0, %v4054
        %v4057 = vcosq.f32.pop %v4055
        %v4058 = vsinq.f32.pop %v4055
        %vm4059 = vweird.f32 %v1438
        %v4060 = vand.u32 %v4056, 3
        %vm4061 = vcmp.lt.s32.totalorder %v4060, 2
        %vm4062 = vcmp.eq.s32.totalorder %v4060, 0
        %v4063 = vxor.u32 %v4058, 2147483648
        %v4064 = vsel %vm4062, %v4057, %v4063
        %vm4065 = vcmp.eq.s32.totalorder %v4060, 2
        %v4066 = vxor.u32 %v4057, 2147483648
        %v4067 = vsel %vm4065, %v4066, %v4058
        %v4068 = vsel %vm4061, %v4064, %v4067
        %v4069 = vsel %vm4059, nan, %v4068
        %v4070 = vand.u32 2147483647, %v1443
        %vm4071 = vcmp.le.f32.partialorder %v4070, 0.7853982
        %vm4072 = vcmp.lt.s32.totalorder %v1443, 0
        %v4073 = vand.u32 %v1443, 2139095040
        %v4074 = vshrl.u32 %v4073, 23
        %v4075 = vsub.s32 %v4074, 127
        %v4076 = vand.u32 2147483647, %v1443
        %v4077 = vand.u32 %v4076, 8388607
        %v4078 = vor.u32 %v4077, 8388608
        %v4079 = vsub.s32 0, %v4078
        %v4080 = vadd.s32 %v4075, 1
        %vm4081 = vcmp.gt.s32.totalorder %v4080, 0
        %v4082 = vsel %vm4081, %v4080, 0
        %v4083 = vshrl.u32 %v4082, 5
        %v4084 = vand.u32 %v4082, 31
        %v4085 = vsub.s32 32, %v4084
        %v4086 = vshrl.u32 683565275, %v4085
        %v4087 = vshll.u32 683565275, %v4084
        %v4088 = vshrl.u32 2475754826, %v4085
        %v4089 = vor.u32 %v4087, %v4088
        %v4090 = vshll.u32 2475754826, %v4084
        %v4091 = vshrl.u32 2131351028, %v4085
        %v4092 = vor.u32 %v4090, %v4091
        %v4093 = vshll.u32 2131351028, %v4084
        %v4094 = vshrl.u32 2102212464, %v4085
        %v4095 = vor.u32 %v4093, %v4094
        %v4096 = vshll.u32 2102212464, %v4084
        %v4097 = vshrl.u32 920167782, %v4085
        %v4098 = vor.u32 %v4096, %v4097
        %v4099 = vshll.u32 920167782, %v4084
        %v4100 = vshrl.u32 1326507024, %v4085
        %v4101 = vor.u32 %v4099, %v4100
        %vm4102 = vcmp.lt.s32.totalorder %v4083, 1
        %vm4103 = vcmp.lt.s32.totalorder %v4083, 2
        %vm4104 = vcmp.lt.s32.totalorder %v4083, 3
        %vm4105 = vcmp.lt.s32.totalorder %v4083, 4
        %v4106 = vsel %vm4102, %v4086, %v4089
        %v4107 = vsel %vm4105, %v4095, 2102212464
        %v4108 = vsel %vm4104, %v4092, %v4107
        %v4109 = vsel %vm4103, %v4106, %v4108
        %v4110 = vsel %vm4102, %v4089, %v4092
        %v4111 = vsel %vm4105, %v4098, 920167782
        %v4112 = vsel %vm4104, %v4095, %v4111
        %v4113 = vsel %vm4103, %v4110, %v4112
        %v4114 = vsel %vm4102, %v4092, %v4095
        %v4115 = vsel %vm4105, %v4101, 1326507024
        %v4116 = vsel %vm4104, %v4098, %v4115
        %v4117 = vsel %vm4103, %v4114, %v4116
        %v4118 = vshll.u32 %v4078, 8
        %v4119 = vmul.u32.u64.compose %v4118, %v4117
        %v4120 = vextract.low.u32 %v4119
        %v4121 = vextract.high.u32 %v4119
        %v4122 = vmul.u32.u64.compose %v4118, %v4113
        %v4123 = vextract.low.u32 %v4122
        %v4124 = vextract.high.u32 %v4122
        %v4125 = vmul.u32 %v4118, %v4109
        %v4126 = vadd.s32 %v4121, %v4123
        %vm4127 = vc.u32 %v4121, %v4123
        %v4128 = vadd.s32 %v4124, 1
        %v4129 = vsel %vm4127, %v4128, %v4124
        %v4130 = vadd.s32 %v4125, %v4129
        %v4131 = vadd.s32 %v4130, 536870912
        %v4132 = vshrl.u32 %v4131, 30
        %v4133 = vshll.u32 %v4132, 30
        %v4134 = vsub.s32 %v4130, %v4133
        %vm4135 = vcmp.lt.s32.totalorder %v4134, 0
        %v4136 = vsub.s32 0, %v4134
        %v4137 = vsel %vm4135, %v4136, %v4134
        %v4138 = vclz %v4137
        %v4139 = vsub.s32 %v4138, 2
        %vm4140 = vcmp.gt.s32.totalorder 0, %v4139
        %v4141 = vsel %vm4140, 0, %v4139
        %v4142 = vsub.s32 32, %v4141
        %v4143 = vshll.u32 %v4134, %v4141
        %v4144 = vshrl.u32 %v4126, %v4142
        %v4145 = vor.u32 %v4143, %v4144
        %v4146 = vsub.s32 4294967266, %v4141
        %v4147 = vadd.s32 %v4146, 127
        %v4148 = vshll.u32 %v4147, 23
        %v4149 = vor.u32 4788187, %v4148
        %v4150 = vand.u32 2147483647, %v4149
        %v4152 = vcvt.s32.f32 %v4145
        %v4153 = vmul.f32 %v4152, %v4150
        %v4154 = vxor.u32 %v4153, 2147483648
        %v4155 = vsel %vm4072, %v4154, %v4153
        %v4156 = vsub.s32 4, %v4132
        %v4157 = vsel %vm4072, %v4156, %v4132
        %v4158 = vsel %vm4071, %v1443, %v4155
        %v4159 = vsel %vm4071, 0, %v4157
        %v4160 = vcosq.f32.pop %v4158
        %v4161 = vsinq.f32.pop %v4158
        %vm4162 = vweird.f32 %v1443
        %v4163 = vand.u32 %v4159, 3
        %vm4164 = vcmp.lt.s32.totalorder %v4163, 2
        %vm4165 = vcmp.eq.s32.totalorder %v4163, 0
        %v4166 = vxor.u32 %v4161, 2147483648
        %v4167 = vsel %vm4165, %v4160, %v4166
        %vm4168 = vcmp.eq.s32.totalorder %v4163, 2
        %v4169 = vxor.u32 %v4160, 2147483648
        %v4170 = vsel %vm4168, %v4169, %v4161
        %v4171 = vsel %vm4164, %v4167, %v4170
        %v4172 = vsel %vm4162, nan, %v4171
        %v4173 = vand.u32 2147483647, %v1448
        %vm4174 = vcmp.le.f32.partialorder %v4173, 0.7853982
        %vm4175 = vcmp.lt.s32.totalorder %v1448, 0
        %v4176 = vand.u32 %v1448, 2139095040
        %v4177 = vshrl.u32 %v4176, 23
        %v4178 = vsub.s32 %v4177, 127
        %v4179 = vand.u32 2147483647, %v1448
        %v4180 = vand.u32 %v4179, 8388607
        %v4181 = vor.u32 %v4180, 8388608
        %v4182 = vsub.s32 0, %v4181
        %v4183 = vadd.s32 %v4178, 1
        %vm4184 = vcmp.gt.s32.totalorder %v4183, 0
        %v4185 = vsel %vm4184, %v4183, 0
        %v4186 = vshrl.u32 %v4185, 5
        %v4187 = vand.u32 %v4185, 31
        %v4188 = vsub.s32 32, %v4187
        %v4189 = vshrl.u32 683565275, %v4188
        %v4190 = vshll.u32 683565275, %v4187
        %v4191 = vshrl.u32 2475754826, %v4188
        %v4192 = vor.u32 %v4190, %v4191
        %v4193 = vshll.u32 2475754826, %v4187
        %v4194 = vshrl.u32 2131351028, %v4188
        %v4195 = vor.u32 %v4193, %v4194
        %v4196 = vshll.u32 2131351028, %v4187
        %v4197 = vshrl.u32 2102212464, %v4188
        %v4198 = vor.u32 %v4196, %v4197
        %v4199 = vshll.u32 2102212464, %v4187
        %v4200 = vshrl.u32 920167782, %v4188
        %v4201 = vor.u32 %v4199, %v4200
        %v4202 = vshll.u32 920167782, %v4187
        %v4203 = vshrl.u32 1326507024, %v4188
        %v4204 = vor.u32 %v4202, %v4203
        %vm4205 = vcmp.lt.s32.totalorder %v4186, 1
        %vm4206 = vcmp.lt.s32.totalorder %v4186, 2
        %vm4207 = vcmp.lt.s32.totalorder %v4186, 3
        %vm4208 = vcmp.lt.s32.totalorder %v4186, 4
        %v4209 = vsel %vm4205, %v4189, %v4192
        %v4210 = vsel %vm4208, %v4198, 2102212464
        %v4211 = vsel %vm4207, %v4195, %v4210
        %v4212 = vsel %vm4206, %v4209, %v4211
        %v4213 = vsel %vm4205, %v4192, %v4195
        %v4214 = vsel %vm4208, %v4201, 920167782
        %v4215 = vsel %vm4207, %v4198, %v4214
        %v4216 = vsel %vm4206, %v4213, %v4215
        %v4217 = vsel %vm4205, %v4195, %v4198
        %v4218 = vsel %vm4208, %v4204, 1326507024
        %v4219 = vsel %vm4207, %v4201, %v4218
        %v4220 = vsel %vm4206, %v4217, %v4219
        %v4221 = vshll.u32 %v4181, 8
        %v4222 = vmul.u32.u64.compose %v4221, %v4220
        %v4223 = vextract.low.u32 %v4222
        %v4224 = vextract.high.u32 %v4222
        %v4225 = vmul.u32.u64.compose %v4221, %v4216
        %v4226 = vextract.low.u32 %v4225
        %v4227 = vextract.high.u32 %v4225
        %v4228 = vmul.u32 %v4221, %v4212
        %v4229 = vadd.s32 %v4224, %v4226
        %vm4230 = vc.u32 %v4224, %v4226
        %v4231 = vadd.s32 %v4227, 1
        %v4232 = vsel %vm4230, %v4231, %v4227
        %v4233 = vadd.s32 %v4228, %v4232
        %v4234 = vadd.s32 %v4233, 536870912
        %v4235 = vshrl.u32 %v4234, 30
        %v4236 = vshll.u32 %v4235, 30
        %v4237 = vsub.s32 %v4233, %v4236
        %vm4238 = vcmp.lt.s32.totalorder %v4237, 0
        %v4239 = vsub.s32 0, %v4237
        %v4240 = vsel %vm4238, %v4239, %v4237
        %v4241 = vclz %v4240
        %v4242 = vsub.s32 %v4241, 2
        %vm4243 = vcmp.gt.s32.totalorder 0, %v4242
        %v4244 = vsel %vm4243, 0, %v4242
        %v4245 = vsub.s32 32, %v4244
        %v4246 = vshll.u32 %v4237, %v4244
        %v4247 = vshrl.u32 %v4229, %v4245
        %v4248 = vor.u32 %v4246, %v4247
        %v4249 = vsub.s32 4294967266, %v4244
        %v4250 = vadd.s32 %v4249, 127
        %v4251 = vshll.u32 %v4250, 23
        %v4252 = vor.u32 4788187, %v4251
        %v4253 = vand.u32 2147483647, %v4252
        %v4255 = vcvt.s32.f32 %v4248
        %v4256 = vmul.f32 %v4255, %v4253
        %v4257 = vxor.u32 %v4256, 2147483648
        %v4258 = vsel %vm4175, %v4257, %v4256
        %v4259 = vsub.s32 4, %v4235
        %v4260 = vsel %vm4175, %v4259, %v4235
        %v4261 = vsel %vm4174, %v1448, %v4258
        %v4262 = vsel %vm4174, 0, %v4260
        %v4263 = vcosq.f32.pop %v4261
        %v4264 = vsinq.f32.pop %v4261
        %vm4265 = vweird.f32 %v1448
        %v4266 = vand.u32 %v4262, 3
        %vm4267 = vcmp.lt.s32.totalorder %v4266, 2
        %vm4268 = vcmp.eq.s32.totalorder %v4266, 0
        %v4269 = vxor.u32 %v4264, 2147483648
        %v4270 = vsel %vm4268, %v4263, %v4269
        %vm4271 = vcmp.eq.s32.totalorder %v4266, 2
        %v4272 = vxor.u32 %v4263, 2147483648
        %v4273 = vsel %vm4271, %v4272, %v4264
        %v4274 = vsel %vm4267, %v4270, %v4273
        %v4275 = vsel %vm4265, nan, %v4274
        %v4276 = vand.u32 2147483647, %v1453
        %vm4277 = vcmp.le.f32.partialorder %v4276, 0.7853982
        %vm4278 = vcmp.lt.s32.totalorder %v1453, 0
        %v4279 = vand.u32 %v1453, 2139095040
        %v4280 = vshrl.u32 %v4279, 23
        %v4281 = vsub.s32 %v4280, 127
        %v4282 = vand.u32 2147483647, %v1453
        %v4283 = vand.u32 %v4282, 8388607
        %v4284 = vor.u32 %v4283, 8388608
        %v4285 = vsub.s32 0, %v4284
        %v4286 = vadd.s32 %v4281, 1
        %vm4287 = vcmp.gt.s32.totalorder %v4286, 0
        %v4288 = vsel %vm4287, %v4286, 0
        %v4289 = vshrl.u32 %v4288, 5
        %v4290 = vand.u32 %v4288, 31
        %v4291 = vsub.s32 32, %v4290
        %v4292 = vshrl.u32 683565275, %v4291
        %v4293 = vshll.u32 683565275, %v4290
        %v4294 = vshrl.u32 2475754826, %v4291
        %v4295 = vor.u32 %v4293, %v4294
        %v4296 = vshll.u32 2475754826, %v4290
        %v4297 = vshrl.u32 2131351028, %v4291
        %v4298 = vor.u32 %v4296, %v4297
        %v4299 = vshll.u32 2131351028, %v4290
        %v4300 = vshrl.u32 2102212464, %v4291
        %v4301 = vor.u32 %v4299, %v4300
        %v4302 = vshll.u32 2102212464, %v4290
        %v4303 = vshrl.u32 920167782, %v4291
        %v4304 = vor.u32 %v4302, %v4303
        %v4305 = vshll.u32 920167782, %v4290
        %v4306 = vshrl.u32 1326507024, %v4291
        %v4307 = vor.u32 %v4305, %v4306
        %vm4308 = vcmp.lt.s32.totalorder %v4289, 1
        %vm4309 = vcmp.lt.s32.totalorder %v4289, 2
        %vm4310 = vcmp.lt.s32.totalorder %v4289, 3
        %vm4311 = vcmp.lt.s32.totalorder %v4289, 4
        %v4312 = vsel %vm4308, %v4292, %v4295
        %v4313 = vsel %vm4311, %v4301, 2102212464
        %v4314 = vsel %vm4310, %v4298, %v4313
        %v4315 = vsel %vm4309, %v4312, %v4314
        %v4316 = vsel %vm4308, %v4295, %v4298
        %v4317 = vsel %vm4311, %v4304, 920167782
        %v4318 = vsel %vm4310, %v4301, %v4317
        %v4319 = vsel %vm4309, %v4316, %v4318
        %v4320 = vsel %vm4308, %v4298, %v4301
        %v4321 = vsel %vm4311, %v4307, 1326507024
        %v4322 = vsel %vm4310, %v4304, %v4321
        %v4323 = vsel %vm4309, %v4320, %v4322
        %v4324 = vshll.u32 %v4284, 8
        %v4325 = vmul.u32.u64.compose %v4324, %v4323
        %v4326 = vextract.low.u32 %v4325
        %v4327 = vextract.high.u32 %v4325
        %v4328 = vmul.u32.u64.compose %v4324, %v4319
        %v4329 = vextract.low.u32 %v4328
        %v4330 = vextract.high.u32 %v4328
        %v4331 = vmul.u32 %v4324, %v4315
        %v4332 = vadd.s32 %v4327, %v4329
        %vm4333 = vc.u32 %v4327, %v4329
        %v4334 = vadd.s32 %v4330, 1
        %v4335 = vsel %vm4333, %v4334, %v4330
        %v4336 = vadd.s32 %v4331, %v4335
        %v4337 = vadd.s32 %v4336, 536870912
        %v4338 = vshrl.u32 %v4337, 30
        %v4339 = vshll.u32 %v4338, 30
        %v4340 = vsub.s32 %v4336, %v4339
        %vm4341 = vcmp.lt.s32.totalorder %v4340, 0
        %v4342 = vsub.s32 0, %v4340
        %v4343 = vsel %vm4341, %v4342, %v4340
        %v4344 = vclz %v4343
        %v4345 = vsub.s32 %v4344, 2
        %vm4346 = vcmp.gt.s32.totalorder 0, %v4345
        %v4347 = vsel %vm4346, 0, %v4345
        %v4348 = vsub.s32 32, %v4347
        %v4349 = vshll.u32 %v4340, %v4347
        %v4350 = vshrl.u32 %v4332, %v4348
        %v4351 = vor.u32 %v4349, %v4350
        %v4352 = vsub.s32 4294967266, %v4347
        %v4353 = vadd.s32 %v4352, 127
        %v4354 = vshll.u32 %v4353, 23
        %v4355 = vor.u32 4788187, %v4354
        %v4356 = vand.u32 2147483647, %v4355
        %v4358 = vcvt.s32.f32 %v4351
        %v4359 = vmul.f32 %v4358, %v4356
        %v4360 = vxor.u32 %v4359, 2147483648
        %v4361 = vsel %vm4278, %v4360, %v4359
        %v4362 = vsub.s32 4, %v4338
        %v4363 = vsel %vm4278, %v4362, %v4338
        %v4364 = vsel %vm4277, %v1453, %v4361
        %v4365 = vsel %vm4277, 0, %v4363
        %v4366 = vcosq.f32.pop %v4364
        %v4367 = vsinq.f32.pop %v4364
        %vm4368 = vweird.f32 %v1453
        %v4369 = vand.u32 %v4365, 3
        %vm4370 = vcmp.lt.s32.totalorder %v4369, 2
        %vm4371 = vcmp.eq.s32.totalorder %v4369, 0
        %v4372 = vxor.u32 %v4367, 2147483648
        %v4373 = vsel %vm4371, %v4366, %v4372
        %vm4374 = vcmp.eq.s32.totalorder %v4369, 2
        %v4375 = vxor.u32 %v4366, 2147483648
        %v4376 = vsel %vm4374, %v4375, %v4367
        %v4377 = vsel %vm4370, %v4373, %v4376
        %v4378 = vsel %vm4368, nan, %v4377
        %v4379 = vand.u32 2147483647, %v1458
        %vm4380 = vcmp.le.f32.partialorder %v4379, 0.7853982
        %vm4381 = vcmp.lt.s32.totalorder %v1458, 0
        %v4382 = vand.u32 %v1458, 2139095040
        %v4383 = vshrl.u32 %v4382, 23
        %v4384 = vsub.s32 %v4383, 127
        %v4385 = vand.u32 2147483647, %v1458
        %v4386 = vand.u32 %v4385, 8388607
        %v4387 = vor.u32 %v4386, 8388608
        %v4388 = vsub.s32 0, %v4387
        %v4389 = vadd.s32 %v4384, 1
        %vm4390 = vcmp.gt.s32.totalorder %v4389, 0
        %v4391 = vsel %vm4390, %v4389, 0
        %v4392 = vshrl.u32 %v4391, 5
        %v4393 = vand.u32 %v4391, 31
        %v4394 = vsub.s32 32, %v4393
        %v4395 = vshrl.u32 683565275, %v4394
        %v4396 = vshll.u32 683565275, %v4393
        %v4397 = vshrl.u32 2475754826, %v4394
        %v4398 = vor.u32 %v4396, %v4397
        %v4399 = vshll.u32 2475754826, %v4393
        %v4400 = vshrl.u32 2131351028, %v4394
        %v4401 = vor.u32 %v4399, %v4400
        %v4402 = vshll.u32 2131351028, %v4393
        %v4403 = vshrl.u32 2102212464, %v4394
        %v4404 = vor.u32 %v4402, %v4403
        %v4405 = vshll.u32 2102212464, %v4393
        %v4406 = vshrl.u32 920167782, %v4394
        %v4407 = vor.u32 %v4405, %v4406
        %v4408 = vshll.u32 920167782, %v4393
        %v4409 = vshrl.u32 1326507024, %v4394
        %v4410 = vor.u32 %v4408, %v4409
        %vm4411 = vcmp.lt.s32.totalorder %v4392, 1
        %vm4412 = vcmp.lt.s32.totalorder %v4392, 2
        %vm4413 = vcmp.lt.s32.totalorder %v4392, 3
        %vm4414 = vcmp.lt.s32.totalorder %v4392, 4
        %v4415 = vsel %vm4411, %v4395, %v4398
        %v4416 = vsel %vm4414, %v4404, 2102212464
        %v4417 = vsel %vm4413, %v4401, %v4416
        %v4418 = vsel %vm4412, %v4415, %v4417
        %v4419 = vsel %vm4411, %v4398, %v4401
        %v4420 = vsel %vm4414, %v4407, 920167782
        %v4421 = vsel %vm4413, %v4404, %v4420
        %v4422 = vsel %vm4412, %v4419, %v4421
        %v4423 = vsel %vm4411, %v4401, %v4404
        %v4424 = vsel %vm4414, %v4410, 1326507024
        %v4425 = vsel %vm4413, %v4407, %v4424
        %v4426 = vsel %vm4412, %v4423, %v4425
        %v4427 = vshll.u32 %v4387, 8
        %v4428 = vmul.u32.u64.compose %v4427, %v4426
        %v4429 = vextract.low.u32 %v4428
        %v4430 = vextract.high.u32 %v4428
        %v4431 = vmul.u32.u64.compose %v4427, %v4422
        %v4432 = vextract.low.u32 %v4431
        %v4433 = vextract.high.u32 %v4431
        %v4434 = vmul.u32 %v4427, %v4418
        %v4435 = vadd.s32 %v4430, %v4432
        %vm4436 = vc.u32 %v4430, %v4432
        %v4437 = vadd.s32 %v4433, 1
        %v4438 = vsel %vm4436, %v4437, %v4433
        %v4439 = vadd.s32 %v4434, %v4438
        %v4440 = vadd.s32 %v4439, 536870912
        %v4441 = vshrl.u32 %v4440, 30
        %v4442 = vshll.u32 %v4441, 30
        %v4443 = vsub.s32 %v4439, %v4442
        %vm4444 = vcmp.lt.s32.totalorder %v4443, 0
        %v4445 = vsub.s32 0, %v4443
        %v4446 = vsel %vm4444, %v4445, %v4443
        %v4447 = vclz %v4446
        %v4448 = vsub.s32 %v4447, 2
        %vm4449 = vcmp.gt.s32.totalorder 0, %v4448
        %v4450 = vsel %vm4449, 0, %v4448
        %v4451 = vsub.s32 32, %v4450
        %v4452 = vshll.u32 %v4443, %v4450
        %v4453 = vshrl.u32 %v4435, %v4451
        %v4454 = vor.u32 %v4452, %v4453
        %v4455 = vsub.s32 4294967266, %v4450
        %v4456 = vadd.s32 %v4455, 127
        %v4457 = vshll.u32 %v4456, 23
        %v4458 = vor.u32 4788187, %v4457
        %v4459 = vand.u32 2147483647, %v4458
        %v4461 = vcvt.s32.f32 %v4454
        %v4462 = vmul.f32 %v4461, %v4459
        %v4463 = vxor.u32 %v4462, 2147483648
        %v4464 = vsel %vm4381, %v4463, %v4462
        %v4465 = vsub.s32 4, %v4441
        %v4466 = vsel %vm4381, %v4465, %v4441
        %v4467 = vsel %vm4380, %v1458, %v4464
        %v4468 = vsel %vm4380, 0, %v4466
        %v4469 = vcosq.f32.pop %v4467
        %v4470 = vsinq.f32.pop %v4467
        %vm4471 = vweird.f32 %v1458
        %v4472 = vand.u32 %v4468, 3
        %vm4473 = vcmp.lt.s32.totalorder %v4472, 2
        %vm4474 = vcmp.eq.s32.totalorder %v4472, 0
        %v4475 = vxor.u32 %v4470, 2147483648
        %v4476 = vsel %vm4474, %v4469, %v4475
        %vm4477 = vcmp.eq.s32.totalorder %v4472, 2
        %v4478 = vxor.u32 %v4469, 2147483648
        %v4479 = vsel %vm4477, %v4478, %v4470
        %v4480 = vsel %vm4473, %v4476, %v4479
        %v4481 = vsel %vm4471, nan, %v4480
        %v4482 = vand.u32 2147483647, %v1463
        %vm4483 = vcmp.le.f32.partialorder %v4482, 0.7853982
        %vm4484 = vcmp.lt.s32.totalorder %v1463, 0
        %v4485 = vand.u32 %v1463, 2139095040
        %v4486 = vshrl.u32 %v4485, 23
        %v4487 = vsub.s32 %v4486, 127
        %v4488 = vand.u32 2147483647, %v1463
        %v4489 = vand.u32 %v4488, 8388607
        %v4490 = vor.u32 %v4489, 8388608
        %v4491 = vsub.s32 0, %v4490
        %v4492 = vadd.s32 %v4487, 1
        %vm4493 = vcmp.gt.s32.totalorder %v4492, 0
        %v4494 = vsel %vm4493, %v4492, 0
        %v4495 = vshrl.u32 %v4494, 5
        %v4496 = vand.u32 %v4494, 31
        %v4497 = vsub.s32 32, %v4496
        %v4498 = vshrl.u32 683565275, %v4497
        %v4499 = vshll.u32 683565275, %v4496
        %v4500 = vshrl.u32 2475754826, %v4497
        %v4501 = vor.u32 %v4499, %v4500
        %v4502 = vshll.u32 2475754826, %v4496
        %v4503 = vshrl.u32 2131351028, %v4497
        %v4504 = vor.u32 %v4502, %v4503
        %v4505 = vshll.u32 2131351028, %v4496
        %v4506 = vshrl.u32 2102212464, %v4497
        %v4507 = vor.u32 %v4505, %v4506
        %v4508 = vshll.u32 2102212464, %v4496
        %v4509 = vshrl.u32 920167782, %v4497
        %v4510 = vor.u32 %v4508, %v4509
        %v4511 = vshll.u32 920167782, %v4496
        %v4512 = vshrl.u32 1326507024, %v4497
        %v4513 = vor.u32 %v4511, %v4512
        %vm4514 = vcmp.lt.s32.totalorder %v4495, 1
        %vm4515 = vcmp.lt.s32.totalorder %v4495, 2
        %vm4516 = vcmp.lt.s32.totalorder %v4495, 3
        %vm4517 = vcmp.lt.s32.totalorder %v4495, 4
        %v4518 = vsel %vm4514, %v4498, %v4501
        %v4519 = vsel %vm4517, %v4507, 2102212464
        %v4520 = vsel %vm4516, %v4504, %v4519
        %v4521 = vsel %vm4515, %v4518, %v4520
        %v4522 = vsel %vm4514, %v4501, %v4504
        %v4523 = vsel %vm4517, %v4510, 920167782
        %v4524 = vsel %vm4516, %v4507, %v4523
        %v4525 = vsel %vm4515, %v4522, %v4524
        %v4526 = vsel %vm4514, %v4504, %v4507
        %v4527 = vsel %vm4517, %v4513, 1326507024
        %v4528 = vsel %vm4516, %v4510, %v4527
        %v4529 = vsel %vm4515, %v4526, %v4528
        %v4530 = vshll.u32 %v4490, 8
        %v4531 = vmul.u32.u64.compose %v4530, %v4529
        %v4532 = vextract.low.u32 %v4531
        %v4533 = vextract.high.u32 %v4531
        %v4534 = vmul.u32.u64.compose %v4530, %v4525
        %v4535 = vextract.low.u32 %v4534
        %v4536 = vextract.high.u32 %v4534
        %v4537 = vmul.u32 %v4530, %v4521
        %v4538 = vadd.s32 %v4533, %v4535
        %vm4539 = vc.u32 %v4533, %v4535
        %v4540 = vadd.s32 %v4536, 1
        %v4541 = vsel %vm4539, %v4540, %v4536
        %v4542 = vadd.s32 %v4537, %v4541
        %v4543 = vadd.s32 %v4542, 536870912
        %v4544 = vshrl.u32 %v4543, 30
        %v4545 = vshll.u32 %v4544, 30
        %v4546 = vsub.s32 %v4542, %v4545
        %vm4547 = vcmp.lt.s32.totalorder %v4546, 0
        %v4548 = vsub.s32 0, %v4546
        %v4549 = vsel %vm4547, %v4548, %v4546
        %v4550 = vclz %v4549
        %v4551 = vsub.s32 %v4550, 2
        %vm4552 = vcmp.gt.s32.totalorder 0, %v4551
        %v4553 = vsel %vm4552, 0, %v4551
        %v4554 = vsub.s32 32, %v4553
        %v4555 = vshll.u32 %v4546, %v4553
        %v4556 = vshrl.u32 %v4538, %v4554
        %v4557 = vor.u32 %v4555, %v4556
        %v4558 = vsub.s32 4294967266, %v4553
        %v4559 = vadd.s32 %v4558, 127
        %v4560 = vshll.u32 %v4559, 23
        %v4561 = vor.u32 4788187, %v4560
        %v4562 = vand.u32 2147483647, %v4561
        %v4564 = vcvt.s32.f32 %v4557
        %v4565 = vmul.f32 %v4564, %v4562
        %v4566 = vxor.u32 %v4565, 2147483648
        %v4567 = vsel %vm4484, %v4566, %v4565
        %v4568 = vsub.s32 4, %v4544
        %v4569 = vsel %vm4484, %v4568, %v4544
        %v4570 = vsel %vm4483, %v1463, %v4567
        %v4571 = vsel %vm4483, 0, %v4569
        %v4572 = vcosq.f32.pop %v4570
        %v4573 = vsinq.f32.pop %v4570
        %vm4574 = vweird.f32 %v1463
        %v4575 = vand.u32 %v4571, 3
        %vm4576 = vcmp.lt.s32.totalorder %v4575, 2
        %vm4577 = vcmp.eq.s32.totalorder %v4575, 0
        %v4578 = vxor.u32 %v4573, 2147483648
        %v4579 = vsel %vm4577, %v4572, %v4578
        %vm4580 = vcmp.eq.s32.totalorder %v4575, 2
        %v4581 = vxor.u32 %v4572, 2147483648
        %v4582 = vsel %vm4580, %v4581, %v4573
        %v4583 = vsel %vm4576, %v4579, %v4582
        %v4584 = vsel %vm4574, nan, %v4583
        %v4585 = vand.u32 2147483647, %v1468
        %vm4586 = vcmp.le.f32.partialorder %v4585, 0.7853982
        %vm4587 = vcmp.lt.s32.totalorder %v1468, 0
        %v4588 = vand.u32 %v1468, 2139095040
        %v4589 = vshrl.u32 %v4588, 23
        %v4590 = vsub.s32 %v4589, 127
        %v4591 = vand.u32 2147483647, %v1468
        %v4592 = vand.u32 %v4591, 8388607
        %v4593 = vor.u32 %v4592, 8388608
        %v4594 = vsub.s32 0, %v4593
        %v4595 = vadd.s32 %v4590, 1
        %vm4596 = vcmp.gt.s32.totalorder %v4595, 0
        %v4597 = vsel %vm4596, %v4595, 0
        %v4598 = vshrl.u32 %v4597, 5
        %v4599 = vand.u32 %v4597, 31
        %v4600 = vsub.s32 32, %v4599
        %v4601 = vshrl.u32 683565275, %v4600
        %v4602 = vshll.u32 683565275, %v4599
        %v4603 = vshrl.u32 2475754826, %v4600
        %v4604 = vor.u32 %v4602, %v4603
        %v4605 = vshll.u32 2475754826, %v4599
        %v4606 = vshrl.u32 2131351028, %v4600
        %v4607 = vor.u32 %v4605, %v4606
        %v4608 = vshll.u32 2131351028, %v4599
        %v4609 = vshrl.u32 2102212464, %v4600
        %v4610 = vor.u32 %v4608, %v4609
        %v4611 = vshll.u32 2102212464, %v4599
        %v4612 = vshrl.u32 920167782, %v4600
        %v4613 = vor.u32 %v4611, %v4612
        %v4614 = vshll.u32 920167782, %v4599
        %v4615 = vshrl.u32 1326507024, %v4600
        %v4616 = vor.u32 %v4614, %v4615
        %vm4617 = vcmp.lt.s32.totalorder %v4598, 1
        %vm4618 = vcmp.lt.s32.totalorder %v4598, 2
        %vm4619 = vcmp.lt.s32.totalorder %v4598, 3
        %vm4620 = vcmp.lt.s32.totalorder %v4598, 4
        %v4621 = vsel %vm4617, %v4601, %v4604
        %v4622 = vsel %vm4620, %v4610, 2102212464
        %v4623 = vsel %vm4619, %v4607, %v4622
        %v4624 = vsel %vm4618, %v4621, %v4623
        %v4625 = vsel %vm4617, %v4604, %v4607
        %v4626 = vsel %vm4620, %v4613, 920167782
        %v4627 = vsel %vm4619, %v4610, %v4626
        %v4628 = vsel %vm4618, %v4625, %v4627
        %v4629 = vsel %vm4617, %v4607, %v4610
        %v4630 = vsel %vm4620, %v4616, 1326507024
        %v4631 = vsel %vm4619, %v4613, %v4630
        %v4632 = vsel %vm4618, %v4629, %v4631
        %v4633 = vshll.u32 %v4593, 8
        %v4634 = vmul.u32.u64.compose %v4633, %v4632
        %v4635 = vextract.low.u32 %v4634
        %v4636 = vextract.high.u32 %v4634
        %v4637 = vmul.u32.u64.compose %v4633, %v4628
        %v4638 = vextract.low.u32 %v4637
        %v4639 = vextract.high.u32 %v4637
        %v4640 = vmul.u32 %v4633, %v4624
        %v4641 = vadd.s32 %v4636, %v4638
        %vm4642 = vc.u32 %v4636, %v4638
        %v4643 = vadd.s32 %v4639, 1
        %v4644 = vsel %vm4642, %v4643, %v4639
        %v4645 = vadd.s32 %v4640, %v4644
        %v4646 = vadd.s32 %v4645, 536870912
        %v4647 = vshrl.u32 %v4646, 30
        %v4648 = vshll.u32 %v4647, 30
        %v4649 = vsub.s32 %v4645, %v4648
        %vm4650 = vcmp.lt.s32.totalorder %v4649, 0
        %v4651 = vsub.s32 0, %v4649
        %v4652 = vsel %vm4650, %v4651, %v4649
        %v4653 = vclz %v4652
        %v4654 = vsub.s32 %v4653, 2
        %vm4655 = vcmp.gt.s32.totalorder 0, %v4654
        %v4656 = vsel %vm4655, 0, %v4654
        %v4657 = vsub.s32 32, %v4656
        %v4658 = vshll.u32 %v4649, %v4656
        %v4659 = vshrl.u32 %v4641, %v4657
        %v4660 = vor.u32 %v4658, %v4659
        %v4661 = vsub.s32 4294967266, %v4656
        %v4662 = vadd.s32 %v4661, 127
        %v4663 = vshll.u32 %v4662, 23
        %v4664 = vor.u32 4788187, %v4663
        %v4665 = vand.u32 2147483647, %v4664
        %v4667 = vcvt.s32.f32 %v4660
        %v4668 = vmul.f32 %v4667, %v4665
        %v4669 = vxor.u32 %v4668, 2147483648
        %v4670 = vsel %vm4587, %v4669, %v4668
        %v4671 = vsub.s32 4, %v4647
        %v4672 = vsel %vm4587, %v4671, %v4647
        %v4673 = vsel %vm4586, %v1468, %v4670
        %v4674 = vsel %vm4586, 0, %v4672
        %v4675 = vcosq.f32.pop %v4673
        %v4676 = vsinq.f32.pop %v4673
        %vm4677 = vweird.f32 %v1468
        %v4678 = vand.u32 %v4674, 3
        %vm4679 = vcmp.lt.s32.totalorder %v4678, 2
        %vm4680 = vcmp.eq.s32.totalorder %v4678, 0
        %v4681 = vxor.u32 %v4676, 2147483648
        %v4682 = vsel %vm4680, %v4675, %v4681
        %vm4683 = vcmp.eq.s32.totalorder %v4678, 2
        %v4684 = vxor.u32 %v4675, 2147483648
        %v4685 = vsel %vm4683, %v4684, %v4676
        %v4686 = vsel %vm4679, %v4682, %v4685
        %v4687 = vsel %vm4677, nan, %v4686
        %v4688 = vand.u32 2147483647, %v1473
        %vm4689 = vcmp.le.f32.partialorder %v4688, 0.7853982
        %vm4690 = vcmp.lt.s32.totalorder %v1473, 0
        %v4691 = vand.u32 %v1473, 2139095040
        %v4692 = vshrl.u32 %v4691, 23
        %v4693 = vsub.s32 %v4692, 127
        %v4694 = vand.u32 2147483647, %v1473
        %v4695 = vand.u32 %v4694, 8388607
        %v4696 = vor.u32 %v4695, 8388608
        %v4697 = vsub.s32 0, %v4696
        %v4698 = vadd.s32 %v4693, 1
        %vm4699 = vcmp.gt.s32.totalorder %v4698, 0
        %v4700 = vsel %vm4699, %v4698, 0
        %v4701 = vshrl.u32 %v4700, 5
        %v4702 = vand.u32 %v4700, 31
        %v4703 = vsub.s32 32, %v4702
        %v4704 = vshrl.u32 683565275, %v4703
        %v4705 = vshll.u32 683565275, %v4702
        %v4706 = vshrl.u32 2475754826, %v4703
        %v4707 = vor.u32 %v4705, %v4706
        %v4708 = vshll.u32 2475754826, %v4702
        %v4709 = vshrl.u32 2131351028, %v4703
        %v4710 = vor.u32 %v4708, %v4709
        %v4711 = vshll.u32 2131351028, %v4702
        %v4712 = vshrl.u32 2102212464, %v4703
        %v4713 = vor.u32 %v4711, %v4712
        %v4714 = vshll.u32 2102212464, %v4702
        %v4715 = vshrl.u32 920167782, %v4703
        %v4716 = vor.u32 %v4714, %v4715
        %v4717 = vshll.u32 920167782, %v4702
        %v4718 = vshrl.u32 1326507024, %v4703
        %v4719 = vor.u32 %v4717, %v4718
        %vm4720 = vcmp.lt.s32.totalorder %v4701, 1
        %vm4721 = vcmp.lt.s32.totalorder %v4701, 2
        %vm4722 = vcmp.lt.s32.totalorder %v4701, 3
        %vm4723 = vcmp.lt.s32.totalorder %v4701, 4
        %v4724 = vsel %vm4720, %v4704, %v4707
        %v4725 = vsel %vm4723, %v4713, 2102212464
        %v4726 = vsel %vm4722, %v4710, %v4725
        %v4727 = vsel %vm4721, %v4724, %v4726
        %v4728 = vsel %vm4720, %v4707, %v4710
        %v4729 = vsel %vm4723, %v4716, 920167782
        %v4730 = vsel %vm4722, %v4713, %v4729
        %v4731 = vsel %vm4721, %v4728, %v4730
        %v4732 = vsel %vm4720, %v4710, %v4713
        %v4733 = vsel %vm4723, %v4719, 1326507024
        %v4734 = vsel %vm4722, %v4716, %v4733
        %v4735 = vsel %vm4721, %v4732, %v4734
        %v4736 = vshll.u32 %v4696, 8
        %v4737 = vmul.u32.u64.compose %v4736, %v4735
        %v4738 = vextract.low.u32 %v4737
        %v4739 = vextract.high.u32 %v4737
        %v4740 = vmul.u32.u64.compose %v4736, %v4731
        %v4741 = vextract.low.u32 %v4740
        %v4742 = vextract.high.u32 %v4740
        %v4743 = vmul.u32 %v4736, %v4727
        %v4744 = vadd.s32 %v4739, %v4741
        %vm4745 = vc.u32 %v4739, %v4741
        %v4746 = vadd.s32 %v4742, 1
        %v4747 = vsel %vm4745, %v4746, %v4742
        %v4748 = vadd.s32 %v4743, %v4747
        %v4749 = vadd.s32 %v4748, 536870912
        %v4750 = vshrl.u32 %v4749, 30
        %v4751 = vshll.u32 %v4750, 30
        %v4752 = vsub.s32 %v4748, %v4751
        %vm4753 = vcmp.lt.s32.totalorder %v4752, 0
        %v4754 = vsub.s32 0, %v4752
        %v4755 = vsel %vm4753, %v4754, %v4752
        %v4756 = vclz %v4755
        %v4757 = vsub.s32 %v4756, 2
        %vm4758 = vcmp.gt.s32.totalorder 0, %v4757
        %v4759 = vsel %vm4758, 0, %v4757
        %v4760 = vsub.s32 32, %v4759
        %v4761 = vshll.u32 %v4752, %v4759
        %v4762 = vshrl.u32 %v4744, %v4760
        %v4763 = vor.u32 %v4761, %v4762
        %v4764 = vsub.s32 4294967266, %v4759
        %v4765 = vadd.s32 %v4764, 127
        %v4766 = vshll.u32 %v4765, 23
        %v4767 = vor.u32 4788187, %v4766
        %v4768 = vand.u32 2147483647, %v4767
        %v4770 = vcvt.s32.f32 %v4763
        %v4771 = vmul.f32 %v4770, %v4768
        %v4772 = vxor.u32 %v4771, 2147483648
        %v4773 = vsel %vm4690, %v4772, %v4771
        %v4774 = vsub.s32 4, %v4750
        %v4775 = vsel %vm4690, %v4774, %v4750
        %v4776 = vsel %vm4689, %v1473, %v4773
        %v4777 = vsel %vm4689, 0, %v4775
        %v4778 = vcosq.f32.pop %v4776
        %v4779 = vsinq.f32.pop %v4776
        %vm4780 = vweird.f32 %v1473
        %v4781 = vand.u32 %v4777, 3
        %vm4782 = vcmp.lt.s32.totalorder %v4781, 2
        %vm4783 = vcmp.eq.s32.totalorder %v4781, 0
        %v4784 = vxor.u32 %v4779, 2147483648
        %v4785 = vsel %vm4783, %v4778, %v4784
        %vm4786 = vcmp.eq.s32.totalorder %v4781, 2
        %v4787 = vxor.u32 %v4778, 2147483648
        %v4788 = vsel %vm4786, %v4787, %v4779
        %v4789 = vsel %vm4782, %v4785, %v4788
        %v4790 = vsel %vm4780, nan, %v4789
        %v4791 = vld [vmem:[%s9] sm:$0xff]
        %v4792 = vld [vmem:[%s9 + $0x8] sm:$0xff]
        %v4793 = vld [vmem:[%s9 + $0x10] sm:$0xff]
        %vm4794 = vcmask 195584
        %v4796 = vsel %vm4794, %v3245, 0
        %v4799 = vsel %vm4794, %v3348, 0
        %v4802 = vsel %vm4794, %v3451, 0
        %v4805 = vsel %vm4794, %v3554, 0
        %v4808 = vsel %vm4794, %v3657, 0
        %v4811 = vsel %vm4794, %v3760, 0
        %v4814 = vsel %vm4794, %v3863, 0
        %v4817 = vsel %vm4794, %v3966, 0
        %v4820 = vsel %vm4794, %v4069, 0
        %v4823 = vsel %vm4794, %v4172, 0
        %v4826 = vsel %vm4794, %v4275, 0
        %v4829 = vsel %vm4794, %v4378, 0
        %v4832 = vsel %vm4794, %v4481, 0
        %v4835 = vsel %vm4794, %v4584, 0
        %v4838 = vsel %vm4794, %v4687, 0
        %v4841 = vsel %vm4794, %v4790, 0
        %4843 = vmatprep.subr.mxu0 0.0
        %4844 = vmatpush1.msra.mxu0 %v4791
        %4845 = vmatprep.subr.mxu0 0.0
        %4846 = vmatpush1.msra.mxu0 %v4792
        %4847 = vmatprep.subr.mxu0 0.0
        %4848 = vmatpush1.msra.mxu0 %v4793
        %4849 = vmatprep.subr.mxu0 0.0
        %4850 = vmatpush1.msra.mxu0 0.0
        %4851 = vmatprep.subr.mxu0 0.0
        %4852 = vmatpush1.msra.mxu0 0.0
        %4853 = vmatprep.subr.mxu0 0.0
        %4854 = vmatpush1.msra.mxu0 0.0
        %4855 = vmatprep.subr.mxu0 0.0
        %4856 = vmatpush1.msra.mxu0 0.0
        %4857 = vmatprep.subr.mxu0 0.0
        %4858 = vmatpush1.msra.mxu0 0.0
        %4859 = vmatprep.subr.mxu0 0.0
        %4860 = vmatpush1.msra.mxu0 0.0
        %4861 = vmatprep.subr.mxu0 0.0
        %4862 = vmatpush1.msra.mxu0 0.0
        %4863 = vmatprep.subr.mxu0 0.0
        %4864 = vmatpush1.msra.mxu0 0.0
        %4865 = vmatprep.subr.mxu0 0.0
        %4866 = vmatpush1.msra.mxu0 0.0
        %4867 = vmatprep.subr.mxu0 0.0
        %4868 = vmatpush1.msra.mxu0 0.0
        %4869 = vmatprep.subr.mxu0 0.0
        %4870 = vmatpush1.msra.mxu0 0.0
        %4871 = vmatprep.subr.mxu0 0.0
        %4872 = vmatpush1.msra.mxu0 0.0
        %4873 = vmatprep.subr.mxu0 0.0
        %4874 = vmatpush1.msra.mxu0 0.0
        %4875 = vmatprep.subr.mxu0 0.0
        %4876 = vmatpush1.msra.mxu0 0.0
        %4877 = vmatprep.subr.mxu0 0.0
        %4878 = vmatpush1.msra.mxu0 0.0
        %4879 = vmatprep.subr.mxu0 0.0
        %4880 = vmatpush1.msra.mxu0 0.0
        %4881 = vmatprep.subr.mxu0 0.0
        %4882 = vmatpush1.msra.mxu0 0.0
        %4883 = vmatprep.subr.mxu0 0.0
        %4884 = vmatpush1.msra.mxu0 0.0
        %4885 = vmatprep.subr.mxu0 0.0
        %4886 = vmatpush1.msra.mxu0 0.0
        %4887 = vmatprep.subr.mxu0 0.0
        %4888 = vmatpush1.msra.mxu0 0.0
        %4889 = vmatprep.subr.mxu0 0.0
        %4890 = vmatpush1.msra.mxu0 0.0
        %4891 = vmatprep.subr.mxu0 0.0
        %4892 = vmatpush1.msra.mxu0 0.0
        %4893 = vmatprep.subr.mxu0 0.0
        %4894 = vmatpush1.msra.mxu0 0.0
        %4895 = vmatprep.subr.mxu0 0.0
        %4896 = vmatpush1.msra.mxu0 0.0
        %4897 = vmatprep.subr.mxu0 0.0
        %4898 = vmatpush1.msra.mxu0 0.0
        %4899 = vmatprep.subr.mxu0 0.0
        %4900 = vmatpush1.msra.mxu0 0.0
        %4901 = vmatprep.subr.mxu0 0.0
        %4902 = vmatpush1.msra.mxu0 0.0
        %4903 = vmatprep.subr.mxu0 0.0
        %4904 = vmatpush1.msra.mxu0 0.0
        %4905 = vmatprep.subr.mxu0 0.0
        %4906 = vmatpush1.msra.mxu0 0.0
        %4907 = vmatprep.mubr.f32.mxu0 0.0
        %4908 = vmatmul.mubr.f32.gmra.mrb[0].mxu0 %v4796
        %v4909 = vpop.f32.mrb[0].mxu0
        %v4910 = vadd.f32 0.0, %v4909
        %v4911 = vpop.f32.mrb[0].mxu0
        %4912 = vmatprep.mubr.f32.mxu0 0.0
        %4913 = vmatmul.mubr.f32.gmra.mrb[0].mxu0 %v4799
        %v4914 = vpop.f32.mrb[0].mxu0
        %v4915 = vadd.f32 0.0, %v4914
        %v4916 = vpop.f32.mrb[0].mxu0
        %4917 = vmatprep.mubr.f32.mxu0 0.0
        %4918 = vmatmul.mubr.f32.gmra.mrb[0].mxu0 %v4802
        %v4919 = vpop.f32.mrb[0].mxu0
        %v4920 = vadd.f32 0.0, %v4919
        %v4921 = vpop.f32.mrb[0].mxu0
        %4922 = vmatprep.mubr.f32.mxu0 0.0
        %4923 = vmatmul.mubr.f32.gmra.mrb[0].mxu0 %v4805
        %v4924 = vpop.f32.mrb[0].mxu0
        %v4925 = vadd.f32 0.0, %v4924
        %v4926 = vpop.f32.mrb[0].mxu0
        %4927 = vmatprep.mubr.f32.mxu0 0.0
        %4928 = vmatmul.mubr.f32.gmra.mrb[0].mxu0 %v4808
        %v4929 = vpop.f32.mrb[0].mxu0
        %v4930 = vadd.f32 0.0, %v4929
        %v4931 = vpop.f32.mrb[0].mxu0
        %4932 = vmatprep.mubr.f32.mxu0 0.0
        %4933 = vmatmul.mubr.f32.gmra.mrb[0].mxu0 %v4811
        %v4934 = vpop.f32.mrb[0].mxu0
        %v4935 = vadd.f32 0.0, %v4934
        %v4936 = vpop.f32.mrb[0].mxu0
        %4937 = vmatprep.mubr.f32.mxu0 0.0
        %4938 = vmatmul.mubr.f32.gmra.mrb[0].mxu0 %v4814
        %v4939 = vpop.f32.mrb[0].mxu0
        %v4940 = vadd.f32 0.0, %v4939
        %v4941 = vpop.f32.mrb[0].mxu0
        %4942 = vmatprep.mubr.f32.mxu0 0.0
        %4943 = vmatmul.mubr.f32.gmra.mrb[0].mxu0 %v4817
        %v4944 = vpop.f32.mrb[0].mxu0
        %v4945 = vadd.f32 0.0, %v4944
        %v4946 = vpop.f32.mrb[0].mxu0
        %4947 = vmatprep.mubr.f32.mxu0 0.0
        %4948 = vmatmul.mubr.f32.gmra.mrb[0].mxu0 %v4820
        %v4949 = vpop.f32.mrb[0].mxu0
        %v4950 = vadd.f32 0.0, %v4949
        %v4951 = vpop.f32.mrb[0].mxu0
        %4952 = vmatprep.mubr.f32.mxu0 0.0
        %4953 = vmatmul.mubr.f32.gmra.mrb[0].mxu0 %v4823
        %v4954 = vpop.f32.mrb[0].mxu0
        %v4955 = vadd.f32 0.0, %v4954
        %v4956 = vpop.f32.mrb[0].mxu0
        %4957 = vmatprep.mubr.f32.mxu0 0.0
        %4958 = vmatmul.mubr.f32.gmra.mrb[0].mxu0 %v4826
        %v4959 = vpop.f32.mrb[0].mxu0
        %v4960 = vadd.f32 0.0, %v4959
        %v4961 = vpop.f32.mrb[0].mxu0
        %4962 = vmatprep.mubr.f32.mxu0 0.0
        %4963 = vmatmul.mubr.f32.gmra.mrb[0].mxu0 %v4829
        %v4964 = vpop.f32.mrb[0].mxu0
        %v4965 = vadd.f32 0.0, %v4964
        %v4966 = vpop.f32.mrb[0].mxu0
        %4967 = vmatprep.mubr.f32.mxu0 0.0
        %4968 = vmatmul.mubr.f32.gmra.mrb[0].mxu0 %v4832
        %v4969 = vpop.f32.mrb[0].mxu0
        %v4970 = vadd.f32 0.0, %v4969
        %v4971 = vpop.f32.mrb[0].mxu0
        %4972 = vmatprep.mubr.f32.mxu0 0.0
        %4973 = vmatmul.mubr.f32.gmra.mrb[0].mxu0 %v4835
        %v4974 = vpop.f32.mrb[0].mxu0
        %v4975 = vadd.f32 0.0, %v4974
        %v4976 = vpop.f32.mrb[0].mxu0
        %4977 = vmatprep.mubr.f32.mxu0 0.0
        %4978 = vmatmul.mubr.f32.gmra.mrb[0].mxu0 %v4838
        %v4979 = vpop.f32.mrb[0].mxu0
        %v4980 = vadd.f32 0.0, %v4979
        %v4981 = vpop.f32.mrb[0].mxu0
        %4982 = vmatprep.mubr.f32.mxu0 0.0
        %4983 = vmatmul.mubr.f32.gmra.mrb[0].mxu0 %v4841
        %v4984 = vpop.f32.mrb[0].mxu0
        %v4985 = vadd.f32 0.0, %v4984
        %v4986 = vpop.f32.mrb[0].mxu0
        %4987 = vdwg.mxu0
        %v4989 = vsel %vm4794, %v1579, 0
        %v4992 = vsel %vm4794, %v1683, 0
        %v4995 = vsel %vm4794, %v1787, 0
        %v4998 = vsel %vm4794, %v1891, 0
        %v5001 = vsel %vm4794, %v1995, 0
        %v5004 = vsel %vm4794, %v2099, 0
        %v5007 = vsel %vm4794, %v2203, 0
        %v5010 = vsel %vm4794, %v2307, 0
        %v5013 = vsel %vm4794, %v2411, 0
        %v5016 = vsel %vm4794, %v2515, 0
        %v5019 = vsel %vm4794, %v2619, 0
        %v5022 = vsel %vm4794, %v2723, 0
        %v5025 = vsel %vm4794, %v2827, 0
        %v5028 = vsel %vm4794, %v2931, 0
        %v5031 = vsel %vm4794, %v3035, 0
        %v5034 = vsel %vm4794, %v3139, 0
        %5036 = vmatprep.subr.mxu0 0.0
        %5037 = vmatpush1.msra.mxu0 %v3140
        %5038 = vmatprep.subr.mxu0 0.0
        %5039 = vmatpush1.msra.mxu0 %v3141
        %5040 = vmatprep.subr.mxu0 0.0
        %5041 = vmatpush1.msra.mxu0 %v3142
        %5042 = vmatprep.subr.mxu0 0.0
        %5043 = vmatpush1.msra.mxu0 0.0
        %5044 = vmatprep.subr.mxu0 0.0
        %5045 = vmatpush1.msra.mxu0 0.0
        %5046 = vmatprep.subr.mxu0 0.0
        %5047 = vmatpush1.msra.mxu0 0.0
        %5048 = vmatprep.subr.mxu0 0.0
        %5049 = vmatpush1.msra.mxu0 0.0
        %5050 = vmatprep.subr.mxu0 0.0
        %5051 = vmatpush1.msra.mxu0 0.0
        %5052 = vmatprep.subr.mxu0 0.0
        %5053 = vmatpush1.msra.mxu0 0.0
        %5054 = vmatprep.subr.mxu0 0.0
        %5055 = vmatpush1.msra.mxu0 0.0
        %5056 = vmatprep.subr.mxu0 0.0
        %5057 = vmatpush1.msra.mxu0 0.0
        %5058 = vmatprep.subr.mxu0 0.0
        %5059 = vmatpush1.msra.mxu0 0.0
        %5060 = vmatprep.subr.mxu0 0.0
        %5061 = vmatpush1.msra.mxu0 0.0
        %5062 = vmatprep.subr.mxu0 0.0
        %5063 = vmatpush1.msra.mxu0 0.0
        %5064 = vmatprep.subr.mxu0 0.0
        %5065 = vmatpush1.msra.mxu0 0.0
        %5066 = vmatprep.subr.mxu0 0.0
        %5067 = vmatpush1.msra.mxu0 0.0
        %5068 = vmatprep.subr.mxu0 0.0
        %5069 = vmatpush1.msra.mxu0 0.0
        %5070 = vmatprep.subr.mxu0 0.0
        %5071 = vmatpush1.msra.mxu0 0.0
        %5072 = vmatprep.subr.mxu0 0.0
        %5073 = vmatpush1.msra.mxu0 0.0
        %5074 = vmatprep.subr.mxu0 0.0
        %5075 = vmatpush1.msra.mxu0 0.0
        %5076 = vmatprep.subr.mxu0 0.0
        %5077 = vmatpush1.msra.mxu0 0.0
        %5078 = vmatprep.subr.mxu0 0.0
        %5079 = vmatpush1.msra.mxu0 0.0
        %5080 = vmatprep.subr.mxu0 0.0
        %5081 = vmatpush1.msra.mxu0 0.0
        %5082 = vmatprep.subr.mxu0 0.0
        %5083 = vmatpush1.msra.mxu0 0.0
        %5084 = vmatprep.subr.mxu0 0.0
        %5085 = vmatpush1.msra.mxu0 0.0
        %5086 = vmatprep.subr.mxu0 0.0
        %5087 = vmatpush1.msra.mxu0 0.0
        %5088 = vmatprep.subr.mxu0 0.0
        %5089 = vmatpush1.msra.mxu0 0.0
        %5090 = vmatprep.subr.mxu0 0.0
        %5091 = vmatpush1.msra.mxu0 0.0
        %5092 = vmatprep.subr.mxu0 0.0
        %5093 = vmatpush1.msra.mxu0 0.0
        %5094 = vmatprep.subr.mxu0 0.0
        %5095 = vmatpush1.msra.mxu0 0.0
        %5096 = vmatprep.subr.mxu0 0.0
        %5097 = vmatpush1.msra.mxu0 0.0
        %5098 = vmatprep.subr.mxu0 0.0
        %5099 = vmatpush1.msra.mxu0 0.0
        %5100 = vmatprep.mubr.f32.mxu0 0.0
        %5101 = vmatmul.mubr.f32.gmra.mrb[0].mxu0 %v4989
        %v5102 = vpop.f32.mrb[0].mxu0
        %v5103 = vadd.f32 %v4910, %v5102
        %v5104 = vpop.f32.mrb[0].mxu0
        %5105 = vmatprep.mubr.f32.mxu0 0.0
        %5106 = vmatmul.mubr.f32.gmra.mrb[0].mxu0 %v4992
        %v5107 = vpop.f32.mrb[0].mxu0
        %v5108 = vadd.f32 %v4915, %v5107
        %v5109 = vpop.f32.mrb[0].mxu0
        %5110 = vmatprep.mubr.f32.mxu0 0.0
        %5111 = vmatmul.mubr.f32.gmra.mrb[0].mxu0 %v4995
        %v5112 = vpop.f32.mrb[0].mxu0
        %v5113 = vadd.f32 %v4920, %v5112
        %v5114 = vpop.f32.mrb[0].mxu0
        %5115 = vmatprep.mubr.f32.mxu0 0.0
        %5116 = vmatmul.mubr.f32.gmra.mrb[0].mxu0 %v4998
        %v5117 = vpop.f32.mrb[0].mxu0
        %v5118 = vadd.f32 %v4925, %v5117
        %v5119 = vpop.f32.mrb[0].mxu0
        %5120 = vmatprep.mubr.f32.mxu0 0.0
        %5121 = vmatmul.mubr.f32.gmra.mrb[0].mxu0 %v5001
        %v5122 = vpop.f32.mrb[0].mxu0
        %v5123 = vadd.f32 %v4930, %v5122
        %v5124 = vpop.f32.mrb[0].mxu0
        %5125 = vmatprep.mubr.f32.mxu0 0.0
        %5126 = vmatmul.mubr.f32.gmra.mrb[0].mxu0 %v5004
        %v5127 = vpop.f32.mrb[0].mxu0
        %v5128 = vadd.f32 %v4935, %v5127
        %v5129 = vpop.f32.mrb[0].mxu0
        %5130 = vmatprep.mubr.f32.mxu0 0.0
        %5131 = vmatmul.mubr.f32.gmra.mrb[0].mxu0 %v5007
        %v5132 = vpop.f32.mrb[0].mxu0
        %v5133 = vadd.f32 %v4940, %v5132
        %v5134 = vpop.f32.mrb[0].mxu0
        %5135 = vmatprep.mubr.f32.mxu0 0.0
        %5136 = vmatmul.mubr.f32.gmra.mrb[0].mxu0 %v5010
        %v5137 = vpop.f32.mrb[0].mxu0
        %v5138 = vadd.f32 %v4945, %v5137
        %v5139 = vpop.f32.mrb[0].mxu0
        %5140 = vmatprep.mubr.f32.mxu0 0.0
        %5141 = vmatmul.mubr.f32.gmra.mrb[0].mxu0 %v5013
        %v5142 = vpop.f32.mrb[0].mxu0
        %v5143 = vadd.f32 %v4950, %v5142
        %v5144 = vpop.f32.mrb[0].mxu0
        %5145 = vmatprep.mubr.f32.mxu0 0.0
        %5146 = vmatmul.mubr.f32.gmra.mrb[0].mxu0 %v5016
        %v5147 = vpop.f32.mrb[0].mxu0
        %v5148 = vadd.f32 %v4955, %v5147
        %v5149 = vpop.f32.mrb[0].mxu0
        %5150 = vmatprep.mubr.f32.mxu0 0.0
        %5151 = vmatmul.mubr.f32.gmra.mrb[0].mxu0 %v5019
        %v5152 = vpop.f32.mrb[0].mxu0
        %v5153 = vadd.f32 %v4960, %v5152
        %v5154 = vpop.f32.mrb[0].mxu0
        %5155 = vmatprep.mubr.f32.mxu0 0.0
        %5156 = vmatmul.mubr.f32.gmra.mrb[0].mxu0 %v5022
        %v5157 = vpop.f32.mrb[0].mxu0
        %v5158 = vadd.f32 %v4965, %v5157
        %v5159 = vpop.f32.mrb[0].mxu0
        %5160 = vmatprep.mubr.f32.mxu0 0.0
        %5161 = vmatmul.mubr.f32.gmra.mrb[0].mxu0 %v5025
        %v5162 = vpop.f32.mrb[0].mxu0
        %v5163 = vadd.f32 %v4970, %v5162
        %v5164 = vpop.f32.mrb[0].mxu0
        %5165 = vmatprep.mubr.f32.mxu0 0.0
        %5166 = vmatmul.mubr.f32.gmra.mrb[0].mxu0 %v5028
        %v5167 = vpop.f32.mrb[0].mxu0
        %v5168 = vadd.f32 %v4975, %v5167
        %v5169 = vpop.f32.mrb[0].mxu0
        %5170 = vmatprep.mubr.f32.mxu0 0.0
        %5171 = vmatmul.mubr.f32.gmra.mrb[0].mxu0 %v5031
        %v5172 = vpop.f32.mrb[0].mxu0
        %v5173 = vadd.f32 %v4980, %v5172
        %v5174 = vpop.f32.mrb[0].mxu0
        %5175 = vmatprep.mubr.f32.mxu0 0.0
        %5176 = vmatmul.mubr.f32.gmra.mrb[0].mxu0 %v5034
        %v5177 = vpop.f32.mrb[0].mxu0
        %v5178 = vadd.f32 %v4985, %v5177
        %v5179 = vpop.f32.mrb[0].mxu0
        %5180 = vdwg.mxu0
        %v5181 = vld [vmem:[%s11] sm:$0xff]
        %5182 = vmatprep.subr.mxu0 0.0
        %5183 = vmatpush1.msra.mxu0 %v5181
        %5184 = vmatprep.subr.mxu0 0.0
        %5185 = vmatpush1.msra.mxu0 0.0
        %5186 = vmatprep.subr.mxu0 0.0
        %5187 = vmatpush1.msra.mxu0 0.0
        %5188 = vmatprep.subr.mxu0 0.0
        %5189 = vmatpush1.msra.mxu0 0.0
        %5190 = vmatprep.subr.mxu0 0.0
        %5191 = vmatpush1.msra.mxu0 0.0
        %5192 = vmatprep.subr.mxu0 0.0
        %5193 = vmatpush1.msra.mxu0 0.0
        %5194 = vmatprep.subr.mxu0 0.0
        %5195 = vmatpush1.msra.mxu0 0.0
        %5196 = vmatprep.subr.mxu0 0.0
        %5197 = vmatpush1.msra.mxu0 0.0
        %5198 = vmatprep.subr.mxu0 0.0
        %5199 = vmatpush1.msra.mxu0 0.0
        %5200 = vmatprep.subr.mxu0 0.0
        %5201 = vmatpush1.msra.mxu0 0.0
        %5202 = vmatprep.subr.mxu0 0.0
        %5203 = vmatpush1.msra.mxu0 0.0
        %5204 = vmatprep.subr.mxu0 0.0
        %5205 = vmatpush1.msra.mxu0 0.0
        %5206 = vmatprep.subr.mxu0 0.0
        %5207 = vmatpush1.msra.mxu0 0.0
        %5208 = vmatprep.subr.mxu0 0.0
        %5209 = vmatpush1.msra.mxu0 0.0
        %5210 = vmatprep.subr.mxu0 0.0
        %5211 = vmatpush1.msra.mxu0 0.0
        %5212 = vmatprep.subr.mxu0 0.0
        %5213 = vmatpush1.msra.mxu0 0.0
        %5214 = vmatprep.subr.mxu0 0.0
        %5215 = vmatpush1.msra.mxu0 0.0
        %5216 = vmatprep.subr.mxu0 0.0
        %5217 = vmatpush1.msra.mxu0 0.0
        %5218 = vmatprep.subr.mxu0 0.0
        %5219 = vmatpush1.msra.mxu0 0.0
        %5220 = vmatprep.subr.mxu0 0.0
        %5221 = vmatpush1.msra.mxu0 0.0
        %5222 = vmatprep.subr.mxu0 0.0
        %5223 = vmatpush1.msra.mxu0 0.0
        %5224 = vmatprep.subr.mxu0 0.0
        %5225 = vmatpush1.msra.mxu0 0.0
        %5226 = vmatprep.subr.mxu0 0.0
        %5227 = vmatpush1.msra.mxu0 0.0
        %5228 = vmatprep.subr.mxu0 0.0
        %5229 = vmatpush1.msra.mxu0 0.0
        %5230 = vmatprep.subr.mxu0 0.0
        %5231 = vmatpush1.msra.mxu0 0.0
        %5232 = vmatprep.subr.mxu0 0.0
        %5233 = vmatpush1.msra.mxu0 0.0
        %5234 = vmatprep.subr.mxu0 0.0
        %5235 = vmatpush1.msra.mxu0 0.0
        %5236 = vmatprep.subr.mxu0 0.0
        %5237 = vmatpush1.msra.mxu0 0.0
        %5238 = vmatprep.subr.mxu0 0.0
        %5239 = vmatpush1.msra.mxu0 0.0
        %5240 = vmatprep.subr.mxu0 0.0
        %5241 = vmatpush1.msra.mxu0 0.0
        %5242 = vmatprep.subr.mxu0 0.0
        %5243 = vmatpush1.msra.mxu0 0.0
        %5244 = vmatprep.subr.mxu0 0.0
        %5245 = vmatpush1.msra.mxu0 0.0
        %5246 = vmatprep.mubr.f32.mxu0 0.0
        %5247 = vmatmul.mubr.f32.gmra.mrb[0].mxu0 %v1284
        %v5248 = vpop.f32.mrb[0].mxu0
        %v5249 = vadd.f32 0.0, %v5248
        %v5250 = vpop.f32.mrb[0].mxu0
        %5251 = vmatprep.mubr.f32.mxu0 0.0
        %5252 = vmatmul.mubr.f32.gmra.mrb[0].mxu0 %v1287
        %v5253 = vpop.f32.mrb[0].mxu0
        %v5254 = vadd.f32 0.0, %v5253
        %v5255 = vpop.f32.mrb[0].mxu0
        %5256 = vmatprep.mubr.f32.mxu0 0.0
        %5257 = vmatmul.mubr.f32.gmra.mrb[0].mxu0 %v1290
        %v5258 = vpop.f32.mrb[0].mxu0
        %v5259 = vadd.f32 0.0, %v5258
        %v5260 = vpop.f32.mrb[0].mxu0
        %5261 = vmatprep.mubr.f32.mxu0 0.0
        %5262 = vmatmul.mubr.f32.gmra.mrb[0].mxu0 %v1293
        %v5263 = vpop.f32.mrb[0].mxu0
        %v5264 = vadd.f32 0.0, %v5263
        %v5265 = vpop.f32.mrb[0].mxu0
        %5266 = vmatprep.mubr.f32.mxu0 0.0
        %5267 = vmatmul.mubr.f32.gmra.mrb[0].mxu0 %v1296
        %v5268 = vpop.f32.mrb[0].mxu0
        %v5269 = vadd.f32 0.0, %v5268
        %v5270 = vpop.f32.mrb[0].mxu0
        %5271 = vmatprep.mubr.f32.mxu0 0.0
        %5272 = vmatmul.mubr.f32.gmra.mrb[0].mxu0 %v1299
        %v5273 = vpop.f32.mrb[0].mxu0
        %v5274 = vadd.f32 0.0, %v5273
        %v5275 = vpop.f32.mrb[0].mxu0
        %5276 = vmatprep.mubr.f32.mxu0 0.0
        %5277 = vmatmul.mubr.f32.gmra.mrb[0].mxu0 %v1302
        %v5278 = vpop.f32.mrb[0].mxu0
        %v5279 = vadd.f32 0.0, %v5278
        %v5280 = vpop.f32.mrb[0].mxu0
        %5281 = vmatprep.mubr.f32.mxu0 0.0
        %5282 = vmatmul.mubr.f32.gmra.mrb[0].mxu0 %v1305
        %v5283 = vpop.f32.mrb[0].mxu0
        %v5284 = vadd.f32 0.0, %v5283
        %v5285 = vpop.f32.mrb[0].mxu0
        %5286 = vmatprep.mubr.f32.mxu0 0.0
        %5287 = vmatmul.mubr.f32.gmra.mrb[0].mxu0 %v1308
        %v5288 = vpop.f32.mrb[0].mxu0
        %v5289 = vadd.f32 0.0, %v5288
        %v5290 = vpop.f32.mrb[0].mxu0
        %5291 = vmatprep.mubr.f32.mxu0 0.0
        %5292 = vmatmul.mubr.f32.gmra.mrb[0].mxu0 %v1311
        %v5293 = vpop.f32.mrb[0].mxu0
        %v5294 = vadd.f32 0.0, %v5293
        %v5295 = vpop.f32.mrb[0].mxu0
        %5296 = vmatprep.mubr.f32.mxu0 0.0
        %5297 = vmatmul.mubr.f32.gmra.mrb[0].mxu0 %v1314
        %v5298 = vpop.f32.mrb[0].mxu0
        %v5299 = vadd.f32 0.0, %v5298
        %v5300 = vpop.f32.mrb[0].mxu0
        %5301 = vmatprep.mubr.f32.mxu0 0.0
        %5302 = vmatmul.mubr.f32.gmra.mrb[0].mxu0 %v1317
        %v5303 = vpop.f32.mrb[0].mxu0
        %v5304 = vadd.f32 0.0, %v5303
        %v5305 = vpop.f32.mrb[0].mxu0
        %5306 = vmatprep.mubr.f32.mxu0 0.0
        %5307 = vmatmul.mubr.f32.gmra.mrb[0].mxu0 %v1320
        %v5308 = vpop.f32.mrb[0].mxu0
        %v5309 = vadd.f32 0.0, %v5308
        %v5310 = vpop.f32.mrb[0].mxu0
        %5311 = vmatprep.mubr.f32.mxu0 0.0
        %5312 = vmatmul.mubr.f32.gmra.mrb[0].mxu0 %v1323
        %v5313 = vpop.f32.mrb[0].mxu0
        %v5314 = vadd.f32 0.0, %v5313
        %v5315 = vpop.f32.mrb[0].mxu0
        %5316 = vmatprep.mubr.f32.mxu0 0.0
        %5317 = vmatmul.mubr.f32.gmra.mrb[0].mxu0 %v1326
        %v5318 = vpop.f32.mrb[0].mxu0
        %v5319 = vadd.f32 0.0, %v5318
        %v5320 = vpop.f32.mrb[0].mxu0
        %5321 = vmatprep.mubr.f32.mxu0 0.0
        %5322 = vmatmul.mubr.f32.gmra.mrb[0].mxu0 %v1329
        %v5323 = vpop.f32.mrb[0].mxu0
        %v5324 = vadd.f32 0.0, %v5323
        %v5325 = vpop.f32.mrb[0].mxu0
        %5326 = vdwg.mxu0
        %v5327 = vadd.f32 %v5103, %v5249
        %v5328 = vadd.f32 %v5108, %v5254
        %v5329 = vadd.f32 %v5113, %v5259
        %v5330 = vadd.f32 %v5118, %v5264
        %v5331 = vadd.f32 %v5123, %v5269
        %v5332 = vadd.f32 %v5128, %v5274
        %v5333 = vadd.f32 %v5133, %v5279
        %v5334 = vadd.f32 %v5138, %v5284
        %v5335 = vadd.f32 %v5143, %v5289
        %v5336 = vadd.f32 %v5148, %v5294
        %v5337 = vadd.f32 %v5153, %v5299
        %v5338 = vadd.f32 %v5158, %v5304
        %v5339 = vadd.f32 %v5163, %v5309
        %v5340 = vadd.f32 %v5168, %v5314
        %v5341 = vadd.f32 %v5173, %v5319
        %v5342 = vadd.f32 %v5178, %v5324
        %v5343 = vld [vmem:[%s13] sm:$0x1]
        %v5345 = vlaneseq
        %v5346 = vshrl.u32 %v5345, 7
        %v5347 = vsub.s32 0, %v5346
        %v5348 = vrot.slane %v5343, %v5347
        %v5350 = vadd.f32 %v5327, %v5348
        %v5351 = vadd.f32 %v5328, %v5348
        %v5352 = vadd.f32 %v5329, %v5348
        %v5353 = vadd.f32 %v5330, %v5348
        %v5354 = vadd.f32 %v5331, %v5348
        %v5355 = vadd.f32 %v5332, %v5348
        %v5356 = vadd.f32 %v5333, %v5348
        %v5357 = vadd.f32 %v5334, %v5348
        %v5358 = vadd.f32 %v5335, %v5348
        %v5359 = vadd.f32 %v5336, %v5348
        %v5360 = vadd.f32 %v5337, %v5348
        %v5361 = vadd.f32 %v5338, %v5348
        %v5362 = vadd.f32 %v5339, %v5348
        %v5363 = vadd.f32 %v5340, %v5348
        %v5364 = vadd.f32 %v5341, %v5348
        %v5365 = vadd.f32 %v5342, %v5348
        %vm5366 = vcmask 261120
        %5367 = vst.msk [vmem:[#allocation2] sm:$0xff] %vm5366, %v5350
        %5368 = vst.msk [vmem:[#allocation2 + $0x8] sm:$0xff] %vm5366, %v5351
        %5369 = vst.msk [vmem:[#allocation2 + $0x10] sm:$0xff] %vm5366, %v5352
        %5370 = vst.msk [vmem:[#allocation2 + $0x18] sm:$0xff] %vm5366, %v5353
        %5371 = vst.msk [vmem:[#allocation2 + $0x20] sm:$0xff] %vm5366, %v5354
        %5372 = vst.msk [vmem:[#allocation2 + $0x28] sm:$0xff] %vm5366, %v5355
        %5373 = vst.msk [vmem:[#allocation2 + $0x30] sm:$0xff] %vm5366, %v5356
        %5374 = vst.msk [vmem:[#allocation2 + $0x38] sm:$0xff] %vm5366, %v5357
        %5375 = vst.msk [vmem:[#allocation2 + $0x40] sm:$0xff] %vm5366, %v5358
        %5376 = vst.msk [vmem:[#allocation2 + $0x48] sm:$0xff] %vm5366, %v5359
        %5377 = vst.msk [vmem:[#allocation2 + $0x50] sm:$0xff] %vm5366, %v5360
        %5378 = vst.msk [vmem:[#allocation2 + $0x58] sm:$0xff] %vm5366, %v5361
        %5379 = vst.msk [vmem:[#allocation2 + $0x60] sm:$0xff] %vm5366, %v5362
        %5380 = vst.msk [vmem:[#allocation2 + $0x68] sm:$0xff] %vm5366, %v5363
        %5381 = vst.msk [vmem:[#allocation2 + $0x70] sm:$0xff] %vm5366, %v5364
        %5382 = vst.msk [vmem:[#allocation2 + $0x78] sm:$0xff] %vm5366, %v5365
        %v5383 = vpack.c.bf16 %v5351, %v5350
        %v5384 = vpack.c.bf16 %v5353, %v5352
        %v5385 = vpack.c.bf16 %v5355, %v5354
        %v5386 = vpack.c.bf16 %v5357, %v5356
        %v5387 = vpack.c.bf16 %v5359, %v5358
        %v5388 = vpack.c.bf16 %v5361, %v5360
        %v5389 = vpack.c.bf16 %v5363, %v5362
        %v5390 = vpack.c.bf16 %v5365, %v5364
        %v5391 = vld [vmem:[%s15] sm:$0xf]
        %v5392 = vld [vmem:[%s15 + $0x4] sm:$0xf]
        %v5393 = vld [vmem:[%s15 + $0x8] sm:$0xf]
        %v5394 = vld [vmem:[%s15 + $0xc] sm:$0xf]
        %v5395 = vld [vmem:[%s17] sm:$0xff]
        %v5396 = vld [vmem:[%s17 + $0x8] sm:$0xff]
        %v5397 = vld [vmem:[%s17 + $0x10] sm:$0xff]
        %v5398 = vld [vmem:[%s17 + $0x18] sm:$0xff]
        %v5400 = vsel %vm5366, %v1260, 0
        %5402 = vmatprep.subr.mxu0 0.0
        %5403 = vmatpush1.msra.mxu0 %v5395
        %5404 = vmatprep.subr.mxu0 0.0
        %5405 = vmatpush1.msra.mxu0 %v5396
        %5406 = vmatprep.subr.mxu0 0.0
        %5407 = vmatpush1.msra.mxu0 %v5397
        %5408 = vmatprep.subr.mxu0 0.0
        %5409 = vmatpush1.msra.mxu0 %v5398
        %5410 = vmatprep.subr.mxu0 0.0
        %5411 = vmatpush1.msra.mxu0 0.0
        %5412 = vmatprep.subr.mxu0 0.0
        %5413 = vmatpush1.msra.mxu0 0.0
        %5414 = vmatprep.subr.mxu0 0.0
        %5415 = vmatpush1.msra.mxu0 0.0
        %5416 = vmatprep.subr.mxu0 0.0
        %5417 = vmatpush1.msra.mxu0 0.0
        %5418 = vmatprep.subr.mxu0 0.0
        %5419 = vmatpush1.msra.mxu0 0.0
        %5420 = vmatprep.subr.mxu0 0.0
        %5421 = vmatpush1.msra.mxu0 0.0
        %5422 = vmatprep.subr.mxu0 0.0
        %5423 = vmatpush1.msra.mxu0 0.0
        %5424 = vmatprep.subr.mxu0 0.0
        %5425 = vmatpush1.msra.mxu0 0.0
        %5426 = vmatprep.subr.mxu0 0.0
        %5427 = vmatpush1.msra.mxu0 0.0
        %5428 = vmatprep.subr.mxu0 0.0
        %5429 = vmatpush1.msra.mxu0 0.0
        %5430 = vmatprep.subr.mxu0 0.0
        %5431 = vmatpush1.msra.mxu0 0.0
        %5432 = vmatprep.subr.mxu0 0.0
        %5433 = vmatpush1.msra.mxu0 0.0
        %5434 = vmatprep.subr.mxu0 0.0
        %5435 = vmatpush1.msra.mxu0 0.0
        %5436 = vmatprep.subr.mxu0 0.0
        %5437 = vmatpush1.msra.mxu0 0.0
        %5438 = vmatprep.subr.mxu0 0.0
        %5439 = vmatpush1.msra.mxu0 0.0
        %5440 = vmatprep.subr.mxu0 0.0
        %5441 = vmatpush1.msra.mxu0 0.0
        %5442 = vmatprep.subr.mxu0 0.0
        %5443 = vmatpush1.msra.mxu0 0.0
        %5444 = vmatprep.subr.mxu0 0.0
        %5445 = vmatpush1.msra.mxu0 0.0
        %5446 = vmatprep.subr.mxu0 0.0
        %5447 = vmatpush1.msra.mxu0 0.0
        %5448 = vmatprep.subr.mxu0 0.0
        %5449 = vmatpush1.msra.mxu0 0.0
        %5450 = vmatprep.subr.mxu0 0.0
        %5451 = vmatpush1.msra.mxu0 0.0
        %5452 = vmatprep.subr.mxu0 0.0
        %5453 = vmatpush1.msra.mxu0 0.0
        %5454 = vmatprep.subr.mxu0 0.0
        %5455 = vmatpush1.msra.mxu0 0.0
        %5456 = vmatprep.subr.mxu0 0.0
        %5457 = vmatpush1.msra.mxu0 0.0
        %5458 = vmatprep.subr.mxu0 0.0
        %5459 = vmatpush1.msra.mxu0 0.0
        %5460 = vmatprep.subr.mxu0 0.0
        %5461 = vmatpush1.msra.mxu0 0.0
        %5462 = vmatprep.subr.mxu0 0.0
        %5463 = vmatpush1.msra.mxu0 0.0
        %5464 = vmatprep.subr.mxu0 0.0
        %5465 = vmatpush1.msra.mxu0 0.0
        %5466 = vmatprep.mubr.f32.mxu0 0.0
        %5467 = vmatmul.mubr.f32.gmra.mrb[0].mxu0 %v5400
        %v5468 = vpop.f32.mrb[0].mxu0
        %v5469 = vadd.f32 0.0, %v5468
        %v5470 = vpop.f32.mrb[0].mxu0
        %5471 = vdwg.mxu0
        %v5472 = vlaneseq
        %v5473 = vshrl.u32 %v5472, 7
        %v5474 = vsub.s32 0, %v5473
        %v5475 = vrot.slane %v5469, %v5474
        %v5480 = vunpack.c.l.b16 %v5391
        %v5481 = vunpack.c.l.b16 %v5392
        %v5482 = vunpack.c.l.b16 %v5393
        %v5483 = vunpack.c.l.b16 %v5394
        %v5484 = vpack.c.b16 %v5481, %v5480
        %v5485 = vpack.c.b16 %v5483, %v5482
        %v5489 = vsel %vm5366, %v5383, 0
        %v5492 = vsel %vm5366, %v5384, 0
        %v5495 = vsel %vm5366, %v5385, 0
        %v5498 = vsel %vm5366, %v5386, 0
        %v5501 = vsel %vm5366, %v5387, 0
        %v5504 = vsel %vm5366, %v5388, 0
        %v5507 = vsel %vm5366, %v5389, 0
        %v5510 = vsel %vm5366, %v5390, 0
        %5512 = vmatprep.subr.bf16.mxu0 0
        %5513 = vmatpush1.bf16.msra.mxu0 %v5484
        %5514 = vmatprep.subr.bf16.mxu0 0
        %5515 = vmatpush1.bf16.msra.mxu0 %v5485
        %5516 = vmatprep.subr.bf16.mxu0 0
        %5517 = vmatpush1.bf16.msra.mxu0 0
        %5518 = vmatprep.subr.bf16.mxu0 0
        %5519 = vmatpush1.bf16.msra.mxu0 0
        %5520 = vmatprep.subr.bf16.mxu0 0
        %5521 = vmatpush1.bf16.msra.mxu0 0
        %5522 = vmatprep.subr.bf16.mxu0 0
        %5523 = vmatpush1.bf16.msra.mxu0 0
        %5524 = vmatprep.subr.bf16.mxu0 0
        %5525 = vmatpush1.bf16.msra.mxu0 0
        %5526 = vmatprep.subr.bf16.mxu0 0
        %5527 = vmatpush1.bf16.msra.mxu0 0
        %5528 = vmatprep.subr.bf16.mxu0 0
        %5529 = vmatpush1.bf16.msra.mxu0 0
        %5530 = vmatprep.subr.bf16.mxu0 0
        %5531 = vmatpush1.bf16.msra.mxu0 0
        %5532 = vmatprep.subr.bf16.mxu0 0
        %5533 = vmatpush1.bf16.msra.mxu0 0
        %5534 = vmatprep.subr.bf16.mxu0 0
        %5535 = vmatpush1.bf16.msra.mxu0 0
        %5536 = vmatprep.subr.bf16.mxu0 0
        %5537 = vmatpush1.bf16.msra.mxu0 0
        %5538 = vmatprep.subr.bf16.mxu0 0
        %5539 = vmatpush1.bf16.msra.mxu0 0
        %5540 = vmatprep.subr.bf16.mxu0 0
        %5541 = vmatpush1.bf16.msra.mxu0 0
        %5542 = vmatprep.subr.bf16.mxu0 0
        %5543 = vmatpush1.bf16.msra.mxu0 0
        %5544 = vmatprep.mubr.bf16.mxu0 0
        %5545 = vmatmul.mubr.bf16.gmra.mrb[0].mxu0 %v5489
        %v5546 = vpop.f32.mrb[0].mxu0
        %v5547 = vadd.f32 %v5475, %v5546
        %v5548 = vpop.f32.mrb[0].mxu0
        %v5549 = vpop.f32.mrb[0].mxu0
        %v5550 = vadd.f32 %v5475, %v5549
        %v5551 = vpop.f32.mrb[0].mxu0
        %5552 = vmatprep.mubr.bf16.mxu0 0
        %5553 = vmatmul.mubr.bf16.gmra.mrb[0].mxu0 %v5492
        %v5554 = vpop.f32.mrb[0].mxu0
        %v5555 = vadd.f32 %v5475, %v5554
        %v5556 = vpop.f32.mrb[0].mxu0
        %v5557 = vpop.f32.mrb[0].mxu0
        %v5558 = vadd.f32 %v5475, %v5557
        %v5559 = vpop.f32.mrb[0].mxu0
        %5560 = vmatprep.mubr.bf16.mxu0 0
        %5561 = vmatmul.mubr.bf16.gmra.mrb[0].mxu0 %v5495
        %v5562 = vpop.f32.mrb[0].mxu0
        %v5563 = vadd.f32 %v5475, %v5562
        %v5564 = vpop.f32.mrb[0].mxu0
        %v5565 = vpop.f32.mrb[0].mxu0
        %v5566 = vadd.f32 %v5475, %v5565
        %v5567 = vpop.f32.mrb[0].mxu0
        %5568 = vmatprep.mubr.bf16.mxu0 0
        %5569 = vmatmul.mubr.bf16.gmra.mrb[0].mxu0 %v5498
        %v5570 = vpop.f32.mrb[0].mxu0
        %v5571 = vadd.f32 %v5475, %v5570
        %v5572 = vpop.f32.mrb[0].mxu0
        %v5573 = vpop.f32.mrb[0].mxu0
        %v5574 = vadd.f32 %v5475, %v5573
        %v5575 = vpop.f32.mrb[0].mxu0
        %5576 = vmatprep.mubr.bf16.mxu0 0
        %5577 = vmatmul.mubr.bf16.gmra.mrb[0].mxu0 %v5501
        %v5578 = vpop.f32.mrb[0].mxu0
        %v5579 = vadd.f32 %v5475, %v5578
        %v5580 = vpop.f32.mrb[0].mxu0
        %v5581 = vpop.f32.mrb[0].mxu0
        %v5582 = vadd.f32 %v5475, %v5581
        %v5583 = vpop.f32.mrb[0].mxu0
        %5584 = vmatprep.mubr.bf16.mxu0 0
        %5585 = vmatmul.mubr.bf16.gmra.mrb[0].mxu0 %v5504
        %v5586 = vpop.f32.mrb[0].mxu0
        %v5587 = vadd.f32 %v5475, %v5586
        %v5588 = vpop.f32.mrb[0].mxu0
        %v5589 = vpop.f32.mrb[0].mxu0
        %v5590 = vadd.f32 %v5475, %v5589
        %v5591 = vpop.f32.mrb[0].mxu0
        %5592 = vmatprep.mubr.bf16.mxu0 0
        %5593 = vmatmul.mubr.bf16.gmra.mrb[0].mxu0 %v5507
        %v5594 = vpop.f32.mrb[0].mxu0
        %v5595 = vadd.f32 %v5475, %v5594
        %v5596 = vpop.f32.mrb[0].mxu0
        %v5597 = vpop.f32.mrb[0].mxu0
        %v5598 = vadd.f32 %v5475, %v5597
        %v5599 = vpop.f32.mrb[0].mxu0
        %5600 = vmatprep.mubr.bf16.mxu0 0
        %5601 = vmatmul.mubr.bf16.gmra.mrb[0].mxu0 %v5510
        %v5602 = vpop.f32.mrb[0].mxu0
        %v5603 = vadd.f32 %v5475, %v5602
        %v5604 = vpop.f32.mrb[0].mxu0
        %v5605 = vpop.f32.mrb[0].mxu0
        %v5606 = vadd.f32 %v5475, %v5605
        %v5607 = vpop.f32.mrb[0].mxu0
        %5608 = vdwg.mxu0
        %v5609 = vld [vmem:[%s19] sm:$0x1]
        %v5611 = vlaneseq
        %v5612 = vshrl.u32 %v5611, 7
        %v5613 = vsub.s32 0, %v5612
        %v5614 = vrot.slane %v5609, %v5613
        %v5616 = vadd.f32 %v5547, %v5614
        %v5617 = vadd.f32 %v5550, %v5614
        %v5618 = vadd.f32 %v5555, %v5614
        %v5619 = vadd.f32 %v5558, %v5614
        %v5620 = vadd.f32 %v5563, %v5614
        %v5621 = vadd.f32 %v5566, %v5614
        %v5622 = vadd.f32 %v5571, %v5614
        %v5623 = vadd.f32 %v5574, %v5614
        %v5624 = vadd.f32 %v5579, %v5614
        %v5625 = vadd.f32 %v5582, %v5614
        %v5626 = vadd.f32 %v5587, %v5614
        %v5627 = vadd.f32 %v5590, %v5614
        %v5628 = vadd.f32 %v5595, %v5614
        %v5629 = vadd.f32 %v5598, %v5614
        %v5630 = vadd.f32 %v5603, %v5614
        %v5631 = vadd.f32 %v5606, %v5614
        %vm5632 = vcmask 523264
        %5633 = vst.msk [vmem:[#allocation3] sm:$0xff] %vm5632, %v5616
        %5634 = vst.msk [vmem:[#allocation3 + $0x8] sm:$0xff] %vm5632, %v5617
        %5635 = vst.msk [vmem:[#allocation3 + $0x10] sm:$0xff] %vm5632, %v5618
        %5636 = vst.msk [vmem:[#allocation3 + $0x18] sm:$0xff] %vm5632, %v5619
        %5637 = vst.msk [vmem:[#allocation3 + $0x20] sm:$0xff] %vm5632, %v5620
        %5638 = vst.msk [vmem:[#allocation3 + $0x28] sm:$0xff] %vm5632, %v5621
        %5639 = vst.msk [vmem:[#allocation3 + $0x30] sm:$0xff] %vm5632, %v5622
        %5640 = vst.msk [vmem:[#allocation3 + $0x38] sm:$0xff] %vm5632, %v5623
        %5641 = vst.msk [vmem:[#allocation3 + $0x40] sm:$0xff] %vm5632, %v5624
        %5642 = vst.msk [vmem:[#allocation3 + $0x48] sm:$0xff] %vm5632, %v5625
        %5643 = vst.msk [vmem:[#allocation3 + $0x50] sm:$0xff] %vm5632, %v5626
        %5644 = vst.msk [vmem:[#allocation3 + $0x58] sm:$0xff] %vm5632, %v5627
        %5645 = vst.msk [vmem:[#allocation3 + $0x60] sm:$0xff] %vm5632, %v5628
        %5646 = vst.msk [vmem:[#allocation3 + $0x68] sm:$0xff] %vm5632, %v5629
        %5647 = vst.msk [vmem:[#allocation3 + $0x70] sm:$0xff] %vm5632, %v5630
        %5648 = vst.msk [vmem:[#allocation3 + $0x78] sm:$0xff] %vm5632, %v5631
      $region152: #{tpu_custom_call.1} parent=147 // pred_fallthru
        _
      %v5649 = vld [vmem:[#allocation3] sm:$0xff]
      %v5650 = vld [vmem:[#allocation3 + $0x8] sm:$0xff]
      %v5651 = vld [vmem:[#allocation3 + $0x10] sm:$0xff]
      %v5652 = vld [vmem:[#allocation3 + $0x18] sm:$0xff]
      %v5653 = vld [vmem:[#allocation3 + $0x20] sm:$0xff]
      %v5654 = vld [vmem:[#allocation3 + $0x28] sm:$0xff]
      %v5655 = vld [vmem:[#allocation3 + $0x30] sm:$0xff]
      %v5656 = vld [vmem:[#allocation3 + $0x38] sm:$0xff]
      %v5657 = vld [vmem:[#allocation3 + $0x40] sm:$0xff]
      %v5658 = vld [vmem:[#allocation3 + $0x48] sm:$0xff]
      %v5659 = vld [vmem:[#allocation3 + $0x50] sm:$0xff]
      %v5660 = vld [vmem:[#allocation3 + $0x58] sm:$0xff]
      %v5661 = vld [vmem:[#allocation3 + $0x60] sm:$0xff]
      %v5662 = vld [vmem:[#allocation3 + $0x68] sm:$0xff]
      %v5663 = vld [vmem:[#allocation3 + $0x70] sm:$0xff]
      %v5664 = vld [vmem:[#allocation3 + $0x78] sm:$0xff]
      %v5665 = vld [vmem:[#allocation2] sm:$0xff]
      %v5666 = vld [vmem:[#allocation2 + $0x8] sm:$0xff]
      %v5667 = vld [vmem:[#allocation2 + $0x10] sm:$0xff]
      %v5668 = vld [vmem:[#allocation2 + $0x18] sm:$0xff]
      %v5669 = vld [vmem:[#allocation2 + $0x20] sm:$0xff]
      %v5670 = vld [vmem:[#allocation2 + $0x28] sm:$0xff]
      %v5671 = vld [vmem:[#allocation2 + $0x30] sm:$0xff]
      %v5672 = vld [vmem:[#allocation2 + $0x38] sm:$0xff]
      %v5673 = vld [vmem:[#allocation2 + $0x40] sm:$0xff]
      %v5674 = vld [vmem:[#allocation2 + $0x48] sm:$0xff]
      %v5675 = vld [vmem:[#allocation2 + $0x50] sm:$0xff]
      %v5676 = vld [vmem:[#allocation2 + $0x58] sm:$0xff]
      %v5677 = vld [vmem:[#allocation2 + $0x60] sm:$0xff]
      %v5678 = vld [vmem:[#allocation2 + $0x68] sm:$0xff]
      %v5679 = vld [vmem:[#allocation2 + $0x70] sm:$0xff]
      %v5680 = vld [vmem:[#allocation2 + $0x78] sm:$0xff]
      %v5681 = vld [vmem:[%s1199] sm:$0x1]
      %v5683 = vlaneseq
      %v5684 = vshrl.u32 %v5683, 7
      %v5685 = vsub.s32 0, %v5684
      %v5686 = vrot.slane %v5681, %v5685
      %v5688 = vmul.f32 %v5649, %v5686
      %v5689 = vmul.f32 %v5650, %v5686
      %v5690 = vmul.f32 %v5651, %v5686
      %v5691 = vmul.f32 %v5652, %v5686
      %v5692 = vmul.f32 %v5653, %v5686
      %v5693 = vmul.f32 %v5654, %v5686
      %v5694 = vmul.f32 %v5655, %v5686
      %v5695 = vmul.f32 %v5656, %v5686
      %v5696 = vmul.f32 %v5657, %v5686
      %v5697 = vmul.f32 %v5658, %v5686
      %v5698 = vmul.f32 %v5659, %v5686
      %v5699 = vmul.f32 %v5660, %v5686
      %v5700 = vmul.f32 %v5661, %v5686
      %v5701 = vmul.f32 %v5662, %v5686
      %v5702 = vmul.f32 %v5663, %v5686
      %v5703 = vmul.f32 %v5664, %v5686
      %v5704 = vld [vmem:[%s1202] sm:$0x1]
      %v5706 = vlaneseq
      %v5707 = vshrl.u32 %v5706, 7
      %v5708 = vsub.s32 0, %v5707
      %v5709 = vrot.slane %v5704, %v5708
      %v5711 = vadd.f32 %v5688, %v5709
      %v5712 = vadd.f32 %v5689, %v5709
      %v5713 = vadd.f32 %v5690, %v5709
      %v5714 = vadd.f32 %v5691, %v5709
      %v5715 = vadd.f32 %v5692, %v5709
      %v5716 = vadd.f32 %v5693, %v5709
      %v5717 = vadd.f32 %v5694, %v5709
      %v5718 = vadd.f32 %v5695, %v5709
      %v5719 = vadd.f32 %v5696, %v5709
      %v5720 = vadd.f32 %v5697, %v5709
      %v5721 = vadd.f32 %v5698, %v5709
      %v5722 = vadd.f32 %v5699, %v5709
      %v5723 = vadd.f32 %v5700, %v5709
      %v5724 = vadd.f32 %v5701, %v5709
      %v5725 = vadd.f32 %v5702, %v5709
      %v5726 = vadd.f32 %v5703, %v5709
      %v5727 = vmax.f32 %v5711, 0.0
      %v5728 = vmax.f32 %v5712, 0.0
      %v5729 = vmax.f32 %v5713, 0.0
      %v5730 = vmax.f32 %v5714, 0.0
      %v5731 = vmax.f32 %v5715, 0.0
      %v5732 = vmax.f32 %v5716, 0.0
      %v5733 = vmax.f32 %v5717, 0.0
      %v5734 = vmax.f32 %v5718, 0.0
      %v5735 = vmax.f32 %v5719, 0.0
      %v5736 = vmax.f32 %v5720, 0.0
      %v5737 = vmax.f32 %v5721, 0.0
      %v5738 = vmax.f32 %v5722, 0.0
      %v5739 = vmax.f32 %v5723, 0.0
      %v5740 = vmax.f32 %v5724, 0.0
      %v5741 = vmax.f32 %v5725, 0.0
      %v5742 = vmax.f32 %v5726, 0.0
      %v5743 = vpack.c.bf16 %v5728, %v5727
      %v5744 = vpack.c.bf16 %v5730, %v5729
      %v5745 = vpack.c.bf16 %v5732, %v5731
      %v5746 = vpack.c.bf16 %v5734, %v5733
      %v5747 = vpack.c.bf16 %v5736, %v5735
      %v5748 = vpack.c.bf16 %v5738, %v5737
      %v5749 = vpack.c.bf16 %v5740, %v5739
      %v5750 = vpack.c.bf16 %v5742, %v5741
      %v5751 = vld [vmem:[%s1207] sm:$0xf]
      %v5752 = vld [vmem:[%s1207 + $0x4] sm:$0xf]
      %v5753 = vld [vmem:[%s1207 + $0x8] sm:$0xf]
      %v5754 = vld [vmem:[%s1207 + $0xc] sm:$0xf]
      %v5755 = vld [vmem:[%s1207 + $0x10] sm:$0xf]
      %v5756 = vld [vmem:[%s1207 + $0x14] sm:$0xf]
      %v5757 = vld [vmem:[%s1207 + $0x18] sm:$0xf]
      %v5758 = vld [vmem:[%s1207 + $0x1c] sm:$0xf]
      %v5759 = vld [vmem:[%s1210] sm:$0x1]
      %v5761 = vlaneseq
      %v5762 = vshrl.u32 %v5761, 7
      %v5763 = vsub.s32 0, %v5762
      %v5764 = vrot.slane %v5759, %v5763
      %v5774 = vunpack.c.l.b16 %v5751
      %v5775 = vunpack.c.l.b16 %v5752
      %v5776 = vunpack.c.l.b16 %v5753
      %v5777 = vunpack.c.l.b16 %v5754
      %v5778 = vunpack.c.l.b16 %v5755
      %v5779 = vunpack.c.l.b16 %v5756
      %v5780 = vunpack.c.l.b16 %v5757
      %v5781 = vunpack.c.l.b16 %v5758
      %v5782 = vpack.c.b16 %v5775, %v5774
      %v5783 = vpack.c.b16 %v5777, %v5776
      %v5784 = vpack.c.b16 %v5779, %v5778
      %v5785 = vpack.c.b16 %v5781, %v5780
      %vm5790 = vcmask 523264
      %v5792 = vsel %vm5790, %v5743, 0
      %v5795 = vsel %vm5790, %v5744, 0
      %v5798 = vsel %vm5790, %v5745, 0
      %v5801 = vsel %vm5790, %v5746, 0
      %v5804 = vsel %vm5790, %v5747, 0
      %v5807 = vsel %vm5790, %v5748, 0
      %v5810 = vsel %vm5790, %v5749, 0
      %v5813 = vsel %vm5790, %v5750, 0
      %5815 = vmatprep.subr.bf16.mxu0 0
      %5816 = vmatpush1.bf16.msra.mxu0 %v5782
      %5817 = vmatprep.subr.bf16.mxu0 0
      %5818 = vmatpush1.bf16.msra.mxu0 %v5783
      %5819 = vmatprep.subr.bf16.mxu0 0
      %5820 = vmatpush1.bf16.msra.mxu0 %v5784
      %5821 = vmatprep.subr.bf16.mxu0 0
      %5822 = vmatpush1.bf16.msra.mxu0 %v5785
      %5823 = vmatprep.subr.bf16.mxu0 0
      %5824 = vmatpush1.bf16.msra.mxu0 0
      %5825 = vmatprep.subr.bf16.mxu0 0
      %5826 = vmatpush1.bf16.msra.mxu0 0
      %5827 = vmatprep.subr.bf16.mxu0 0
      %5828 = vmatpush1.bf16.msra.mxu0 0
      %5829 = vmatprep.subr.bf16.mxu0 0
      %5830 = vmatpush1.bf16.msra.mxu0 0
      %5831 = vmatprep.subr.bf16.mxu0 0
      %5832 = vmatpush1.bf16.msra.mxu0 0
      %5833 = vmatprep.subr.bf16.mxu0 0
      %5834 = vmatpush1.bf16.msra.mxu0 0
      %5835 = vmatprep.subr.bf16.mxu0 0
      %5836 = vmatpush1.bf16.msra.mxu0 0
      %5837 = vmatprep.subr.bf16.mxu0 0
      %5838 = vmatpush1.bf16.msra.mxu0 0
      %5839 = vmatprep.subr.bf16.mxu0 0
      %5840 = vmatpush1.bf16.msra.mxu0 0
      %5841 = vmatprep.subr.bf16.mxu0 0
      %5842 = vmatpush1.bf16.msra.mxu0 0
      %5843 = vmatprep.subr.bf16.mxu0 0
      %5844 = vmatpush1.bf16.msra.mxu0 0
      %5845 = vmatprep.subr.bf16.mxu0 0
      %5846 = vmatpush1.bf16.msra.mxu0 0
      %5847 = vmatprep.mubr.bf16.mxu0 0
      %5848 = vmatmul.mubr.bf16.gmra.mrb[0].mxu0 %v5792
      %v5849 = vpop.f32.mrb[0].mxu0
      %v5850 = vadd.f32 %v5764, %v5849
      %v5851 = vpop.f32.mrb[0].mxu0
      %v5852 = vpop.f32.mrb[0].mxu0
      %v5853 = vadd.f32 %v5764, %v5852
      %v5854 = vpop.f32.mrb[0].mxu0
      %5855 = vmatprep.mubr.bf16.mxu0 0
      %5856 = vmatmul.mubr.bf16.gmra.mrb[0].mxu0 %v5795
      %v5857 = vpop.f32.mrb[0].mxu0
      %v5858 = vadd.f32 %v5764, %v5857
      %v5859 = vpop.f32.mrb[0].mxu0
      %v5860 = vpop.f32.mrb[0].mxu0
      %v5861 = vadd.f32 %v5764, %v5860
      %v5862 = vpop.f32.mrb[0].mxu0
      %5863 = vmatprep.mubr.bf16.mxu0 0
      %5864 = vmatmul.mubr.bf16.gmra.mrb[0].mxu0 %v5798
      %v5865 = vpop.f32.mrb[0].mxu0
      %v5866 = vadd.f32 %v5764, %v5865
      %v5867 = vpop.f32.mrb[0].mxu0
      %v5868 = vpop.f32.mrb[0].mxu0
      %v5869 = vadd.f32 %v5764, %v5868
      %v5870 = vpop.f32.mrb[0].mxu0
      %5871 = vmatprep.mubr.bf16.mxu0 0
      %5872 = vmatmul.mubr.bf16.gmra.mrb[0].mxu0 %v5801
      %v5873 = vpop.f32.mrb[0].mxu0
      %v5874 = vadd.f32 %v5764, %v5873
      %v5875 = vpop.f32.mrb[0].mxu0
      %v5876 = vpop.f32.mrb[0].mxu0
      %v5877 = vadd.f32 %v5764, %v5876
      %v5878 = vpop.f32.mrb[0].mxu0
      %5879 = vmatprep.mubr.bf16.mxu0 0
      %5880 = vmatmul.mubr.bf16.gmra.mrb[0].mxu0 %v5804
      %v5881 = vpop.f32.mrb[0].mxu0
      %v5882 = vadd.f32 %v5764, %v5881
      %v5883 = vpop.f32.mrb[0].mxu0
      %v5884 = vpop.f32.mrb[0].mxu0
      %v5885 = vadd.f32 %v5764, %v5884
      %v5886 = vpop.f32.mrb[0].mxu0
      %5887 = vmatprep.mubr.bf16.mxu0 0
      %5888 = vmatmul.mubr.bf16.gmra.mrb[0].mxu0 %v5807
      %v5889 = vpop.f32.mrb[0].mxu0
      %v5890 = vadd.f32 %v5764, %v5889
      %v5891 = vpop.f32.mrb[0].mxu0
      %v5892 = vpop.f32.mrb[0].mxu0
      %v5893 = vadd.f32 %v5764, %v5892
      %v5894 = vpop.f32.mrb[0].mxu0
      %5895 = vmatprep.mubr.bf16.mxu0 0
      %5896 = vmatmul.mubr.bf16.gmra.mrb[0].mxu0 %v5810
      %v5897 = vpop.f32.mrb[0].mxu0
      %v5898 = vadd.f32 %v5764, %v5897
      %v5899 = vpop.f32.mrb[0].mxu0
      %v5900 = vpop.f32.mrb[0].mxu0
      %v5901 = vadd.f32 %v5764, %v5900
      %v5902 = vpop.f32.mrb[0].mxu0
      %5903 = vmatprep.mubr.bf16.mxu0 0
      %5904 = vmatmul.mubr.bf16.gmra.mrb[0].mxu0 %v5813
      %v5905 = vpop.f32.mrb[0].mxu0
      %v5906 = vadd.f32 %v5764, %v5905
      %v5907 = vpop.f32.mrb[0].mxu0
      %v5908 = vpop.f32.mrb[0].mxu0
      %v5909 = vadd.f32 %v5764, %v5908
      %v5910 = vpop.f32.mrb[0].mxu0
      %5911 = vdwg.mxu0
      %v5912 = vld [vmem:[%s1213] sm:$0x1]
      %v5914 = vlaneseq
      %v5915 = vshrl.u32 %v5914, 7
      %v5916 = vsub.s32 0, %v5915
      %v5917 = vrot.slane %v5912, %v5916
      %v5919 = vmul.f32 %v5850, %v5917
      %v5920 = vmul.f32 %v5853, %v5917
      %v5921 = vmul.f32 %v5858, %v5917
      %v5922 = vmul.f32 %v5861, %v5917
      %v5923 = vmul.f32 %v5866, %v5917
      %v5924 = vmul.f32 %v5869, %v5917
      %v5925 = vmul.f32 %v5874, %v5917
      %v5926 = vmul.f32 %v5877, %v5917
      %v5927 = vmul.f32 %v5882, %v5917
      %v5928 = vmul.f32 %v5885, %v5917
      %v5929 = vmul.f32 %v5890, %v5917
      %v5930 = vmul.f32 %v5893, %v5917
      %v5931 = vmul.f32 %v5898, %v5917
      %v5932 = vmul.f32 %v5901, %v5917
      %v5933 = vmul.f32 %v5906, %v5917
      %v5934 = vmul.f32 %v5909, %v5917
      %v5935 = vld [vmem:[%s1216] sm:$0x1]
      %v5937 = vlaneseq
      %v5938 = vshrl.u32 %v5937, 7
      %v5939 = vsub.s32 0, %v5938
      %v5940 = vrot.slane %v5935, %v5939
      %v5942 = vadd.f32 %v5919, %v5940
      %v5943 = vadd.f32 %v5920, %v5940
      %v5944 = vadd.f32 %v5921, %v5940
      %v5945 = vadd.f32 %v5922, %v5940
      %v5946 = vadd.f32 %v5923, %v5940
      %v5947 = vadd.f32 %v5924, %v5940
      %v5948 = vadd.f32 %v5925, %v5940
      %v5949 = vadd.f32 %v5926, %v5940
      %v5950 = vadd.f32 %v5927, %v5940
      %v5951 = vadd.f32 %v5928, %v5940
      %v5952 = vadd.f32 %v5929, %v5940
      %v5953 = vadd.f32 %v5930, %v5940
      %v5954 = vadd.f32 %v5931, %v5940
      %v5955 = vadd.f32 %v5932, %v5940
      %v5956 = vadd.f32 %v5933, %v5940
      %v5957 = vadd.f32 %v5934, %v5940
      %v5958 = vmax.f32 %v5942, 0.0
      %v5959 = vmax.f32 %v5943, 0.0
      %v5960 = vmax.f32 %v5944, 0.0
      %v5961 = vmax.f32 %v5945, 0.0
      %v5962 = vmax.f32 %v5946, 0.0
      %v5963 = vmax.f32 %v5947, 0.0
      %v5964 = vmax.f32 %v5948, 0.0
      %v5965 = vmax.f32 %v5949, 0.0
      %v5966 = vmax.f32 %v5950, 0.0
      %v5967 = vmax.f32 %v5951, 0.0
      %v5968 = vmax.f32 %v5952, 0.0
      %v5969 = vmax.f32 %v5953, 0.0
      %v5970 = vmax.f32 %v5954, 0.0
      %v5971 = vmax.f32 %v5955, 0.0
      %v5972 = vmax.f32 %v5956, 0.0
      %v5973 = vmax.f32 %v5957, 0.0
      %v5974 = vpack.c.bf16 %v5959, %v5958
      %v5975 = vpack.c.bf16 %v5961, %v5960
      %v5976 = vpack.c.bf16 %v5963, %v5962
      %v5977 = vpack.c.bf16 %v5965, %v5964
      %v5978 = vpack.c.bf16 %v5967, %v5966
      %v5979 = vpack.c.bf16 %v5969, %v5968
      %v5980 = vpack.c.bf16 %v5971, %v5970
      %v5981 = vpack.c.bf16 %v5973, %v5972
      %v5982 = vld [vmem:[%s1221] sm:$0xf]
      %v5983 = vld [vmem:[%s1221 + $0x4] sm:$0xf]
      %v5984 = vld [vmem:[%s1221 + $0x8] sm:$0xf]
      %v5985 = vld [vmem:[%s1221 + $0xc] sm:$0xf]
      %v5986 = vld [vmem:[%s1221 + $0x10] sm:$0xf]
      %v5987 = vld [vmem:[%s1221 + $0x14] sm:$0xf]
      %v5988 = vld [vmem:[%s1221 + $0x18] sm:$0xf]
      %v5989 = vld [vmem:[%s1221 + $0x1c] sm:$0xf]
      %v5990 = vld [vmem:[%s1224] sm:$0x1]
      %v5992 = vlaneseq
      %v5993 = vshrl.u32 %v5992, 7
      %v5994 = vsub.s32 0, %v5993
      %v5995 = vrot.slane %v5990, %v5994
      %v6005 = vunpack.c.l.b16 %v5982
      %v6006 = vunpack.c.l.b16 %v5983
      %v6007 = vunpack.c.l.b16 %v5984
      %v6008 = vunpack.c.l.b16 %v5985
      %v6009 = vunpack.c.l.b16 %v5986
      %v6010 = vunpack.c.l.b16 %v5987
      %v6011 = vunpack.c.l.b16 %v5988
      %v6012 = vunpack.c.l.b16 %v5989
      %v6013 = vpack.c.b16 %v6006, %v6005
      %v6014 = vpack.c.b16 %v6008, %v6007
      %v6015 = vpack.c.b16 %v6010, %v6009
      %v6016 = vpack.c.b16 %v6012, %v6011
      %v6022 = vsel %vm5790, %v5974, 0
      %v6025 = vsel %vm5790, %v5975, 0
      %v6028 = vsel %vm5790, %v5976, 0
      %v6031 = vsel %vm5790, %v5977, 0
      %v6034 = vsel %vm5790, %v5978, 0
      %v6037 = vsel %vm5790, %v5979, 0
      %v6040 = vsel %vm5790, %v5980, 0
      %v6043 = vsel %vm5790, %v5981, 0
      %6045 = vmatprep.subr.bf16.mxu0 0
      %6046 = vmatpush1.bf16.msra.mxu0 %v6013
      %6047 = vmatprep.subr.bf16.mxu0 0
      %6048 = vmatpush1.bf16.msra.mxu0 %v6014
      %6049 = vmatprep.subr.bf16.mxu0 0
      %6050 = vmatpush1.bf16.msra.mxu0 %v6015
      %6051 = vmatprep.subr.bf16.mxu0 0
      %6052 = vmatpush1.bf16.msra.mxu0 %v6016
      %6053 = vmatprep.subr.bf16.mxu0 0
      %6054 = vmatpush1.bf16.msra.mxu0 0
      %6055 = vmatprep.subr.bf16.mxu0 0
      %6056 = vmatpush1.bf16.msra.mxu0 0
      %6057 = vmatprep.subr.bf16.mxu0 0
      %6058 = vmatpush1.bf16.msra.mxu0 0
      %6059 = vmatprep.subr.bf16.mxu0 0
      %6060 = vmatpush1.bf16.msra.mxu0 0
      %6061 = vmatprep.subr.bf16.mxu0 0
      %6062 = vmatpush1.bf16.msra.mxu0 0
      %6063 = vmatprep.subr.bf16.mxu0 0
      %6064 = vmatpush1.bf16.msra.mxu0 0
      %6065 = vmatprep.subr.bf16.mxu0 0
      %6066 = vmatpush1.bf16.msra.mxu0 0
      %6067 = vmatprep.subr.bf16.mxu0 0
      %6068 = vmatpush1.bf16.msra.mxu0 0
      %6069 = vmatprep.subr.bf16.mxu0 0
      %6070 = vmatpush1.bf16.msra.mxu0 0
      %6071 = vmatprep.subr.bf16.mxu0 0
      %6072 = vmatpush1.bf16.msra.mxu0 0
      %6073 = vmatprep.subr.bf16.mxu0 0
      %6074 = vmatpush1.bf16.msra.mxu0 0
      %6075 = vmatprep.subr.bf16.mxu0 0
      %6076 = vmatpush1.bf16.msra.mxu0 0
      %6077 = vmatprep.mubr.bf16.mxu0 0
      %6078 = vmatmul.mubr.bf16.gmra.mrb[0].mxu0 %v6022
      %v6079 = vpop.f32.mrb[0].mxu0
      %v6080 = vadd.f32 %v5995, %v6079
      %v6081 = vpop.f32.mrb[0].mxu0
      %v6082 = vpop.f32.mrb[0].mxu0
      %v6083 = vadd.f32 %v5995, %v6082
      %v6084 = vpop.f32.mrb[0].mxu0
      %6085 = vmatprep.mubr.bf16.mxu0 0
      %6086 = vmatmul.mubr.bf16.gmra.mrb[0].mxu0 %v6025
      %v6087 = vpop.f32.mrb[0].mxu0
      %v6088 = vadd.f32 %v5995, %v6087
      %v6089 = vpop.f32.mrb[0].mxu0
      %v6090 = vpop.f32.mrb[0].mxu0
      %v6091 = vadd.f32 %v5995, %v6090
      %v6092 = vpop.f32.mrb[0].mxu0
      %6093 = vmatprep.mubr.bf16.mxu0 0
      %6094 = vmatmul.mubr.bf16.gmra.mrb[0].mxu0 %v6028
      %v6095 = vpop.f32.mrb[0].mxu0
      %v6096 = vadd.f32 %v5995, %v6095
      %v6097 = vpop.f32.mrb[0].mxu0
      %v6098 = vpop.f32.mrb[0].mxu0
      %v6099 = vadd.f32 %v5995, %v6098
      %v6100 = vpop.f32.mrb[0].mxu0
      %6101 = vmatprep.mubr.bf16.mxu0 0
      %6102 = vmatmul.mubr.bf16.gmra.mrb[0].mxu0 %v6031
      %v6103 = vpop.f32.mrb[0].mxu0
      %v6104 = vadd.f32 %v5995, %v6103
      %v6105 = vpop.f32.mrb[0].mxu0
      %v6106 = vpop.f32.mrb[0].mxu0
      %v6107 = vadd.f32 %v5995, %v6106
      %v6108 = vpop.f32.mrb[0].mxu0
      %6109 = vmatprep.mubr.bf16.mxu0 0
      %6110 = vmatmul.mubr.bf16.gmra.mrb[0].mxu0 %v6034
      %v6111 = vpop.f32.mrb[0].mxu0
      %v6112 = vadd.f32 %v5995, %v6111
      %v6113 = vpop.f32.mrb[0].mxu0
      %v6114 = vpop.f32.mrb[0].mxu0
      %v6115 = vadd.f32 %v5995, %v6114
      %v6116 = vpop.f32.mrb[0].mxu0
      %6117 = vmatprep.mubr.bf16.mxu0 0
      %6118 = vmatmul.mubr.bf16.gmra.mrb[0].mxu0 %v6037
      %v6119 = vpop.f32.mrb[0].mxu0
      %v6120 = vadd.f32 %v5995, %v6119
      %v6121 = vpop.f32.mrb[0].mxu0
      %v6122 = vpop.f32.mrb[0].mxu0
      %v6123 = vadd.f32 %v5995, %v6122
      %v6124 = vpop.f32.mrb[0].mxu0
      %6125 = vmatprep.mubr.bf16.mxu0 0
      %6126 = vmatmul.mubr.bf16.gmra.mrb[0].mxu0 %v6040
      %v6127 = vpop.f32.mrb[0].mxu0
      %v6128 = vadd.f32 %v5995, %v6127
      %v6129 = vpop.f32.mrb[0].mxu0
      %v6130 = vpop.f32.mrb[0].mxu0
      %v6131 = vadd.f32 %v5995, %v6130
      %v6132 = vpop.f32.mrb[0].mxu0
      %6133 = vmatprep.mubr.bf16.mxu0 0
      %6134 = vmatmul.mubr.bf16.gmra.mrb[0].mxu0 %v6043
      %v6135 = vpop.f32.mrb[0].mxu0
      %v6136 = vadd.f32 %v5995, %v6135
      %v6137 = vpop.f32.mrb[0].mxu0
      %v6138 = vpop.f32.mrb[0].mxu0
      %v6139 = vadd.f32 %v5995, %v6138
      %v6140 = vpop.f32.mrb[0].mxu0
      %6141 = vdwg.mxu0
      %v6142 = vsel %vm5790, %v6080, 0.0
      %v6143 = vsel %vm5790, %v6083, 0.0
      %v6144 = vadd.f32 %v6142, %v6143
      %v6145 = vsel %vm5790, %v6088, 0.0
      %v6146 = vadd.f32 %v6144, %v6145
      %v6147 = vsel %vm5790, %v6091, 0.0
      %v6148 = vadd.f32 %v6146, %v6147
      %v6149 = vsel %vm5790, %v6096, 0.0
      %v6150 = vadd.f32 %v6148, %v6149
      %v6151 = vsel %vm5790, %v6099, 0.0
      %v6152 = vadd.f32 %v6150, %v6151
      %v6153 = vsel %vm5790, %v6104, 0.0
      %v6154 = vadd.f32 %v6152, %v6153
      %v6155 = vsel %vm5790, %v6107, 0.0
      %v6156 = vadd.f32 %v6154, %v6155
      %v6157 = vsel %vm5790, %v6112, 0.0
      %v6158 = vadd.f32 %v6156, %v6157
      %v6159 = vsel %vm5790, %v6115, 0.0
      %v6160 = vadd.f32 %v6158, %v6159
      %v6161 = vsel %vm5790, %v6120, 0.0
      %v6162 = vadd.f32 %v6160, %v6161
      %v6163 = vsel %vm5790, %v6123, 0.0
      %v6164 = vadd.f32 %v6162, %v6163
      %v6165 = vsel %vm5790, %v6128, 0.0
      %v6166 = vadd.f32 %v6164, %v6165
      %v6167 = vsel %vm5790, %v6131, 0.0
      %v6168 = vadd.f32 %v6166, %v6167
      %v6169 = vsel %vm5790, %v6136, 0.0
      %v6170 = vadd.f32 %v6168, %v6169
      %v6171 = vsel %vm5790, %v6139, 0.0
      %v6172 = vadd.f32 %v6170, %v6171
      %v6173 = vrot.slane %v6172, 4
      %v6174 = vadd.f32 %v6172, %v6173
      %v6175 = vrot.slane %v6174, 2
      %v6176 = vadd.f32 %v6174, %v6175
      %v6177 = vrot.slane %v6176, 1
      %v6178 = vadd.f32 %v6176, %v6177
      %v6179 = vmul.f32 %v6178, 0.0078125
      %v6180 = vld [vmem:[%s1229] sm:$0xff]
      %v6181 = vld [vmem:[%s1229 + $0x8] sm:$0xff]
      %v6182 = vld [vmem:[%s1229 + $0x10] sm:$0xff]
      %v6183 = vld [vmem:[%s1229 + $0x18] sm:$0xff]
      %v6184 = vld [vmem:[%s1229 + $0x20] sm:$0xff]
      %v6185 = vld [vmem:[%s1229 + $0x28] sm:$0xff]
      %v6186 = vld [vmem:[%s1229 + $0x30] sm:$0xff]
      %v6187 = vld [vmem:[%s1229 + $0x38] sm:$0xff]
      %v6188 = vld [vmem:[%s1232] sm:$0x1]
      %v6190 = vsel %vm5790, %v6179, 0
      %6192 = vmatprep.subr.mxu0 0.0
      %6193 = vmatpush1.msra.mxu0 %v6180
      %6194 = vmatprep.subr.mxu0 0.0
      %6195 = vmatpush1.msra.mxu0 %v6181
      %6196 = vmatprep.subr.mxu0 0.0
      %6197 = vmatpush1.msra.mxu0 %v6182
      %6198 = vmatprep.subr.mxu0 0.0
      %6199 = vmatpush1.msra.mxu0 %v6183
      %6200 = vmatprep.subr.mxu0 0.0
      %6201 = vmatpush1.msra.mxu0 %v6184
      %6202 = vmatprep.subr.mxu0 0.0
      %6203 = vmatpush1.msra.mxu0 %v6185
      %6204 = vmatprep.subr.mxu0 0.0
      %6205 = vmatpush1.msra.mxu0 %v6186
      %6206 = vmatprep.subr.mxu0 0.0
      %6207 = vmatpush1.msra.mxu0 %v6187
      %6208 = vmatprep.subr.mxu0 0.0
      %6209 = vmatpush1.msra.mxu0 0.0
      %6210 = vmatprep.subr.mxu0 0.0
      %6211 = vmatpush1.msra.mxu0 0.0
      %6212 = vmatprep.subr.mxu0 0.0
      %6213 = vmatpush1.msra.mxu0 0.0
      %6214 = vmatprep.subr.mxu0 0.0
      %6215 = vmatpush1.msra.mxu0 0.0
      %6216 = vmatprep.subr.mxu0 0.0
      %6217 = vmatpush1.msra.mxu0 0.0
      %6218 = vmatprep.subr.mxu0 0.0
      %6219 = vmatpush1.msra.mxu0 0.0
      %6220 = vmatprep.subr.mxu0 0.0
      %6221 = vmatpush1.msra.mxu0 0.0
      %6222 = vmatprep.subr.mxu0 0.0
      %6223 = vmatpush1.msra.mxu0 0.0
      %6224 = vmatprep.subr.mxu0 0.0
      %6225 = vmatpush1.msra.mxu0 0.0
      %6226 = vmatprep.subr.mxu0 0.0
      %6227 = vmatpush1.msra.mxu0 0.0
      %6228 = vmatprep.subr.mxu0 0.0
      %6229 = vmatpush1.msra.mxu0 0.0
      %6230 = vmatprep.subr.mxu0 0.0
      %6231 = vmatpush1.msra.mxu0 0.0
      %6232 = vmatprep.subr.mxu0 0.0
      %6233 = vmatpush1.msra.mxu0 0.0
      %6234 = vmatprep.subr.mxu0 0.0
      %6235 = vmatpush1.msra.mxu0 0.0
      %6236 = vmatprep.subr.mxu0 0.0
      %6237 = vmatpush1.msra.mxu0 0.0
      %6238 = vmatprep.subr.mxu0 0.0
      %6239 = vmatpush1.msra.mxu0 0.0
      %6240 = vmatprep.subr.mxu0 0.0
      %6241 = vmatpush1.msra.mxu0 0.0
      %6242 = vmatprep.subr.mxu0 0.0
      %6243 = vmatpush1.msra.mxu0 0.0
      %6244 = vmatprep.subr.mxu0 0.0
      %6245 = vmatpush1.msra.mxu0 0.0
      %6246 = vmatprep.subr.mxu0 0.0
      %6247 = vmatpush1.msra.mxu0 0.0
      %6248 = vmatprep.subr.mxu0 0.0
      %6249 = vmatpush1.msra.mxu0 0.0
      %6250 = vmatprep.subr.mxu0 0.0
      %6251 = vmatpush1.msra.mxu0 0.0
      %6252 = vmatprep.subr.mxu0 0.0
      %6253 = vmatpush1.msra.mxu0 0.0
      %6254 = vmatprep.subr.mxu0 0.0
      %6255 = vmatpush1.msra.mxu0 0.0
      %6256 = vmatprep.mubr.f32.mxu0 0.0
      %6257 = vmatmul.mubr.f32.gmra.mrb[0].mxu0 %v6190
      %v6258 = vpop.f32.mrb[0].mxu0
      %v6259 = vadd.f32 %v6188, %v6258
      %v6260 = vpop.f32.mrb[0].mxu0
      %6261 = vdwg.mxu0
      %v6262 = vxor.u32 %v6259, 2147483648
      %v6263 = vmul.f32 %v6262, 1.442695
      %v6264 = vpow.pop %v6263
      %v6265 = vadd.f32 %v6264, 1.0
      %v6266 = vrcp.pop %v6265
      %v6267 = vmul.f32 1.0, %v6266
      %v6268 = vmul.f32 %v6259, %v6267
      %v6269 = vld [vmem:[%s1237] sm:$0xff]
      %v6270 = vld [vmem:[%s1237 + $0x8] sm:$0xff]
      %v6271 = vld [vmem:[%s1240] sm:$0x1]
      %vm6272 = vcmask 130048
      %v6274 = vsel %vm6272, %v6268, 0
      %6276 = vmatprep.subr.mxu0 0.0
      %6277 = vmatpush1.msra.mxu0 %v6269
      %6278 = vmatprep.subr.mxu0 0.0
      %6279 = vmatpush1.msra.mxu0 %v6270
      %6280 = vmatprep.subr.mxu0 0.0
      %6281 = vmatpush1.msra.mxu0 0.0
      %6282 = vmatprep.subr.mxu0 0.0
      %6283 = vmatpush1.msra.mxu0 0.0
      %6284 = vmatprep.subr.mxu0 0.0
      %6285 = vmatpush1.msra.mxu0 0.0
      %6286 = vmatprep.subr.mxu0 0.0
      %6287 = vmatpush1.msra.mxu0 0.0
      %6288 = vmatprep.subr.mxu0 0.0
      %6289 = vmatpush1.msra.mxu0 0.0
      %6290 = vmatprep.subr.mxu0 0.0
      %6291 = vmatpush1.msra.mxu0 0.0
      %6292 = vmatprep.subr.mxu0 0.0
      %6293 = vmatpush1.msra.mxu0 0.0
      %6294 = vmatprep.subr.mxu0 0.0
      %6295 = vmatpush1.msra.mxu0 0.0
      %6296 = vmatprep.subr.mxu0 0.0
      %6297 = vmatpush1.msra.mxu0 0.0
      %6298 = vmatprep.subr.mxu0 0.0
      %6299 = vmatpush1.msra.mxu0 0.0
      %6300 = vmatprep.subr.mxu0 0.0
      %6301 = vmatpush1.msra.mxu0 0.0
      %6302 = vmatprep.subr.mxu0 0.0
      %6303 = vmatpush1.msra.mxu0 0.0
      %6304 = vmatprep.subr.mxu0 0.0
      %6305 = vmatpush1.msra.mxu0 0.0
      %6306 = vmatprep.subr.mxu0 0.0
      %6307 = vmatpush1.msra.mxu0 0.0
      %6308 = vmatprep.subr.mxu0 0.0
      %6309 = vmatpush1.msra.mxu0 0.0
      %6310 = vmatprep.subr.mxu0 0.0
      %6311 = vmatpush1.msra.mxu0 0.0
      %6312 = vmatprep.subr.mxu0 0.0
      %6313 = vmatpush1.msra.mxu0 0.0
      %6314 = vmatprep.subr.mxu0 0.0
      %6315 = vmatpush1.msra.mxu0 0.0
      %6316 = vmatprep.subr.mxu0 0.0
      %6317 = vmatpush1.msra.mxu0 0.0
      %6318 = vmatprep.subr.mxu0 0.0
      %6319 = vmatpush1.msra.mxu0 0.0
      %6320 = vmatprep.subr.mxu0 0.0
      %6321 = vmatpush1.msra.mxu0 0.0
      %6322 = vmatprep.subr.mxu0 0.0
      %6323 = vmatpush1.msra.mxu0 0.0
      %6324 = vmatprep.subr.mxu0 0.0
      %6325 = vmatpush1.msra.mxu0 0.0
      %6326 = vmatprep.subr.mxu0 0.0
      %6327 = vmatpush1.msra.mxu0 0.0
      %6328 = vmatprep.subr.mxu0 0.0
      %6329 = vmatpush1.msra.mxu0 0.0
      %6330 = vmatprep.subr.mxu0 0.0
      %6331 = vmatpush1.msra.mxu0 0.0
      %6332 = vmatprep.subr.mxu0 0.0
      %6333 = vmatpush1.msra.mxu0 0.0
      %6334 = vmatprep.subr.mxu0 0.0
      %6335 = vmatpush1.msra.mxu0 0.0
      %6336 = vmatprep.subr.mxu0 0.0
      %6337 = vmatpush1.msra.mxu0 0.0
      %6338 = vmatprep.subr.mxu0 0.0
      %6339 = vmatpush1.msra.mxu0 0.0
      %6340 = vmatprep.mubr.f32.mxu0 0.0
      %6341 = vmatmul.mubr.f32.gmra.mrb[0].mxu0 %v6274
      %v6342 = vpop.f32.mrb[0].mxu0
      %v6343 = vadd.f32 %v6271, %v6342
      %v6344 = vpop.f32.mrb[0].mxu0
      %6345 = vdwg.mxu0
      %v6346 = vxor.u32 %v6343, 2147483648
      %v6347 = vmul.f32 %v6346, 1.442695
      %v6348 = vpow.pop %v6347
      %v6349 = vadd.f32 %v6348, 1.0
      %v6350 = vrcp.pop %v6349
      %v6351 = vmul.f32 1.0, %v6350
      %v6352 = vlaneseq
      %v6353 = vshrl.u32 %v6352, 7
      %v6354 = vsub.s32 0, %v6353
      %v6355 = vrot.slane %v6351, %v6354
      %v6356 = vmul.f32 %v6080, %v6355
      %v6357 = vmul.f32 %v6083, %v6355
      %v6358 = vmul.f32 %v6088, %v6355
      %v6359 = vmul.f32 %v6091, %v6355
      %v6360 = vmul.f32 %v6096, %v6355
      %v6361 = vmul.f32 %v6099, %v6355
      %v6362 = vmul.f32 %v6104, %v6355
      %v6363 = vmul.f32 %v6107, %v6355
      %v6364 = vmul.f32 %v6112, %v6355
      %v6365 = vmul.f32 %v6115, %v6355
      %v6366 = vmul.f32 %v6120, %v6355
      %v6367 = vmul.f32 %v6123, %v6355
      %v6368 = vmul.f32 %v6128, %v6355
      %v6369 = vmul.f32 %v6131, %v6355
      %v6370 = vmul.f32 %v6136, %v6355
      %v6371 = vmul.f32 %v6139, %v6355
      %v6372 = vpack.c.bf16 %v5666, %v5665
      %v6373 = vpack.c.bf16 %v5668, %v5667
      %v6374 = vpack.c.bf16 %v5670, %v5669
      %v6375 = vpack.c.bf16 %v5672, %v5671
      %v6376 = vpack.c.bf16 %v5674, %v5673
      %v6377 = vpack.c.bf16 %v5676, %v5675
      %v6378 = vpack.c.bf16 %v5678, %v5677
      %v6379 = vpack.c.bf16 %v5680, %v5679
      %v6380 = vld [vmem:[%s1245] sm:$0xf]
      %v6381 = vld [vmem:[%s1245 + $0x4] sm:$0xf]
      %v6382 = vld [vmem:[%s1245 + $0x8] sm:$0xf]
      %v6383 = vld [vmem:[%s1245 + $0xc] sm:$0xf]
      %v6384 = vld [vmem:[%s1250] sm:$0xff]
      %v6385 = vld [vmem:[%s1250 + $0x8] sm:$0xff]
      %v6386 = vld [vmem:[%s1250 + $0x10] sm:$0xff]
      %v6387 = vld [vmem:[%s1250 + $0x18] sm:$0xff]
      %vm6388 = vcmask 261120
      %v6390 = vsel %vm6388, %v1260, 0
      %6392 = vmatprep.subr.mxu0 0.0
      %6393 = vmatpush1.msra.mxu0 %v6384
      %6394 = vmatprep.subr.mxu0 0.0
      %6395 = vmatpush1.msra.mxu0 %v6385
      %6396 = vmatprep.subr.mxu0 0.0
      %6397 = vmatpush1.msra.mxu0 %v6386
      %6398 = vmatprep.subr.mxu0 0.0
      %6399 = vmatpush1.msra.mxu0 %v6387
      %6400 = vmatprep.subr.mxu0 0.0
      %6401 = vmatpush1.msra.mxu0 0.0
      %6402 = vmatprep.subr.mxu0 0.0
      %6403 = vmatpush1.msra.mxu0 0.0
      %6404 = vmatprep.subr.mxu0 0.0
      %6405 = vmatpush1.msra.mxu0 0.0
      %6406 = vmatprep.subr.mxu0 0.0
      %6407 = vmatpush1.msra.mxu0 0.0
      %6408 = vmatprep.subr.mxu0 0.0
      %6409 = vmatpush1.msra.mxu0 0.0
      %6410 = vmatprep.subr.mxu0 0.0
      %6411 = vmatpush1.msra.mxu0 0.0
      %6412 = vmatprep.subr.mxu0 0.0
      %6413 = vmatpush1.msra.mxu0 0.0
      %6414 = vmatprep.subr.mxu0 0.0
      %6415 = vmatpush1.msra.mxu0 0.0
      %6416 = vmatprep.subr.mxu0 0.0
      %6417 = vmatpush1.msra.mxu0 0.0
      %6418 = vmatprep.subr.mxu0 0.0
      %6419 = vmatpush1.msra.mxu0 0.0
      %6420 = vmatprep.subr.mxu0 0.0
      %6421 = vmatpush1.msra.mxu0 0.0
      %6422 = vmatprep.subr.mxu0 0.0
      %6423 = vmatpush1.msra.mxu0 0.0
      %6424 = vmatprep.subr.mxu0 0.0
      %6425 = vmatpush1.msra.mxu0 0.0
      %6426 = vmatprep.subr.mxu0 0.0
      %6427 = vmatpush1.msra.mxu0 0.0
      %6428 = vmatprep.subr.mxu0 0.0
      %6429 = vmatpush1.msra.mxu0 0.0
      %6430 = vmatprep.subr.mxu0 0.0
      %6431 = vmatpush1.msra.mxu0 0.0
      %6432 = vmatprep.subr.mxu0 0.0
      %6433 = vmatpush1.msra.mxu0 0.0
      %6434 = vmatprep.subr.mxu0 0.0
      %6435 = vmatpush1.msra.mxu0 0.0
      %6436 = vmatprep.subr.mxu0 0.0
      %6437 = vmatpush1.msra.mxu0 0.0
      %6438 = vmatprep.subr.mxu0 0.0
      %6439 = vmatpush1.msra.mxu0 0.0
      %6440 = vmatprep.subr.mxu0 0.0
      %6441 = vmatpush1.msra.mxu0 0.0
      %6442 = vmatprep.subr.mxu0 0.0
      %6443 = vmatpush1.msra.mxu0 0.0
      %6444 = vmatprep.subr.mxu0 0.0
      %6445 = vmatpush1.msra.mxu0 0.0
      %6446 = vmatprep.subr.mxu0 0.0
      %6447 = vmatpush1.msra.mxu0 0.0
      %6448 = vmatprep.subr.mxu0 0.0
      %6449 = vmatpush1.msra.mxu0 0.0
      %6450 = vmatprep.subr.mxu0 0.0
      %6451 = vmatpush1.msra.mxu0 0.0
      %6452 = vmatprep.subr.mxu0 0.0
      %6453 = vmatpush1.msra.mxu0 0.0
      %6454 = vmatprep.subr.mxu0 0.0
      %6455 = vmatpush1.msra.mxu0 0.0
      %6456 = vmatprep.mubr.f32.mxu0 0.0
      %6457 = vmatmul.mubr.f32.gmra.mrb[0].mxu0 %v6390
      %v6458 = vpop.f32.mrb[0].mxu0
      %v6459 = vadd.f32 0.0, %v6458
      %v6460 = vpop.f32.mrb[0].mxu0
      %6461 = vdwg.mxu0
      %v6462 = vlaneseq
      %v6463 = vshrl.u32 %v6462, 7
      %v6464 = vsub.s32 0, %v6463
      %v6465 = vrot.slane %v6459, %v6464
      %v6470 = vunpack.c.l.b16 %v6380
      %v6471 = vunpack.c.l.b16 %v6381
      %v6472 = vunpack.c.l.b16 %v6382
      %v6473 = vunpack.c.l.b16 %v6383
      %v6474 = vpack.c.b16 %v6471, %v6470
      %v6475 = vpack.c.b16 %v6473, %v6472
      %v6479 = vsel %vm6388, %v6372, 0
      %v6482 = vsel %vm6388, %v6373, 0
      %v6485 = vsel %vm6388, %v6374, 0
      %v6488 = vsel %vm6388, %v6375, 0
      %v6491 = vsel %vm6388, %v6376, 0
      %v6494 = vsel %vm6388, %v6377, 0
      %v6497 = vsel %vm6388, %v6378, 0
      %v6500 = vsel %vm6388, %v6379, 0
      %6502 = vmatprep.subr.bf16.mxu0 0
      %6503 = vmatpush1.bf16.msra.mxu0 %v6474
      %6504 = vmatprep.subr.bf16.mxu0 0
      %6505 = vmatpush1.bf16.msra.mxu0 %v6475
      %6506 = vmatprep.subr.bf16.mxu0 0
      %6507 = vmatpush1.bf16.msra.mxu0 0
      %6508 = vmatprep.subr.bf16.mxu0 0
      %6509 = vmatpush1.bf16.msra.mxu0 0
      %6510 = vmatprep.subr.bf16.mxu0 0
      %6511 = vmatpush1.bf16.msra.mxu0 0
      %6512 = vmatprep.subr.bf16.mxu0 0
      %6513 = vmatpush1.bf16.msra.mxu0 0
      %6514 = vmatprep.subr.bf16.mxu0 0
      %6515 = vmatpush1.bf16.msra.mxu0 0
      %6516 = vmatprep.subr.bf16.mxu0 0
      %6517 = vmatpush1.bf16.msra.mxu0 0
      %6518 = vmatprep.subr.bf16.mxu0 0
      %6519 = vmatpush1.bf16.msra.mxu0 0
      %6520 = vmatprep.subr.bf16.mxu0 0
      %6521 = vmatpush1.bf16.msra.mxu0 0
      %6522 = vmatprep.subr.bf16.mxu0 0
      %6523 = vmatpush1.bf16.msra.mxu0 0
      %6524 = vmatprep.subr.bf16.mxu0 0
      %6525 = vmatpush1.bf16.msra.mxu0 0
      %6526 = vmatprep.subr.bf16.mxu0 0
      %6527 = vmatpush1.bf16.msra.mxu0 0
      %6528 = vmatprep.subr.bf16.mxu0 0
      %6529 = vmatpush1.bf16.msra.mxu0 0
      %6530 = vmatprep.subr.bf16.mxu0 0
      %6531 = vmatpush1.bf16.msra.mxu0 0
      %6532 = vmatprep.subr.bf16.mxu0 0
      %6533 = vmatpush1.bf16.msra.mxu0 0
      %6534 = vmatprep.mubr.bf16.mxu0 0
      %6535 = vmatmul.mubr.bf16.gmra.mrb[0].mxu0 %v6479
      %v6536 = vpop.f32.mrb[0].mxu0
      %v6537 = vadd.f32 %v6465, %v6536
      %v6538 = vpop.f32.mrb[0].mxu0
      %v6539 = vpop.f32.mrb[0].mxu0
      %v6540 = vadd.f32 %v6465, %v6539
      %v6541 = vpop.f32.mrb[0].mxu0
      %6542 = vmatprep.mubr.bf16.mxu0 0
      %6543 = vmatmul.mubr.bf16.gmra.mrb[0].mxu0 %v6482
      %v6544 = vpop.f32.mrb[0].mxu0
      %v6545 = vadd.f32 %v6465, %v6544
      %v6546 = vpop.f32.mrb[0].mxu0
      %v6547 = vpop.f32.mrb[0].mxu0
      %v6548 = vadd.f32 %v6465, %v6547
      %v6549 = vpop.f32.mrb[0].mxu0
      %6550 = vmatprep.mubr.bf16.mxu0 0
      %6551 = vmatmul.mubr.bf16.gmra.mrb[0].mxu0 %v6485
      %v6552 = vpop.f32.mrb[0].mxu0
      %v6553 = vadd.f32 %v6465, %v6552
      %v6554 = vpop.f32.mrb[0].mxu0
      %v6555 = vpop.f32.mrb[0].mxu0
      %v6556 = vadd.f32 %v6465, %v6555
      %v6557 = vpop.f32.mrb[0].mxu0
      %6558 = vmatprep.mubr.bf16.mxu0 0
      %6559 = vmatmul.mubr.bf16.gmra.mrb[0].mxu0 %v6488
      %v6560 = vpop.f32.mrb[0].mxu0
      %v6561 = vadd.f32 %v6465, %v6560
      %v6562 = vpop.f32.mrb[0].mxu0
      %v6563 = vpop.f32.mrb[0].mxu0
      %v6564 = vadd.f32 %v6465, %v6563
      %v6565 = vpop.f32.mrb[0].mxu0
      %6566 = vmatprep.mubr.bf16.mxu0 0
      %6567 = vmatmul.mubr.bf16.gmra.mrb[0].mxu0 %v6491
      %v6568 = vpop.f32.mrb[0].mxu0
      %v6569 = vadd.f32 %v6465, %v6568
      %v6570 = vpop.f32.mrb[0].mxu0
      %v6571 = vpop.f32.mrb[0].mxu0
      %v6572 = vadd.f32 %v6465, %v6571
      %v6573 = vpop.f32.mrb[0].mxu0
      %6574 = vmatprep.mubr.bf16.mxu0 0
      %6575 = vmatmul.mubr.bf16.gmra.mrb[0].mxu0 %v6494
      %v6576 = vpop.f32.mrb[0].mxu0
      %v6577 = vadd.f32 %v6465, %v6576
      %v6578 = vpop.f32.mrb[0].mxu0
      %v6579 = vpop.f32.mrb[0].mxu0
      %v6580 = vadd.f32 %v6465, %v6579
      %v6581 = vpop.f32.mrb[0].mxu0
      %6582 = vmatprep.mubr.bf16.mxu0 0
      %6583 = vmatmul.mubr.bf16.gmra.mrb[0].mxu0 %v6497
      %v6584 = vpop.f32.mrb[0].mxu0
      %v6585 = vadd.f32 %v6465, %v6584
      %v6586 = vpop.f32.mrb[0].mxu0
      %v6587 = vpop.f32.mrb[0].mxu0
      %v6588 = vadd.f32 %v6465, %v6587
      %v6589 = vpop.f32.mrb[0].mxu0
      %6590 = vmatprep.mubr.bf16.mxu0 0
      %6591 = vmatmul.mubr.bf16.gmra.mrb[0].mxu0 %v6500
      %v6592 = vpop.f32.mrb[0].mxu0
      %v6593 = vadd.f32 %v6465, %v6592
      %v6594 = vpop.f32.mrb[0].mxu0
      %v6595 = vpop.f32.mrb[0].mxu0
      %v6596 = vadd.f32 %v6465, %v6595
      %v6597 = vpop.f32.mrb[0].mxu0
      %6598 = vdwg.mxu0
      %v6599 = vld [vmem:[%s1253] sm:$0x1]
      %v6601 = vlaneseq
      %v6602 = vshrl.u32 %v6601, 7
      %v6603 = vsub.s32 0, %v6602
      %v6604 = vrot.slane %v6599, %v6603
      %v6606 = vadd.f32 %v6537, %v6604
      %v6607 = vadd.f32 %v6540, %v6604
      %v6608 = vadd.f32 %v6545, %v6604
      %v6609 = vadd.f32 %v6548, %v6604
      %v6610 = vadd.f32 %v6553, %v6604
      %v6611 = vadd.f32 %v6556, %v6604
      %v6612 = vadd.f32 %v6561, %v6604
      %v6613 = vadd.f32 %v6564, %v6604
      %v6614 = vadd.f32 %v6569, %v6604
      %v6615 = vadd.f32 %v6572, %v6604
      %v6616 = vadd.f32 %v6577, %v6604
      %v6617 = vadd.f32 %v6580, %v6604
      %v6618 = vadd.f32 %v6585, %v6604
      %v6619 = vadd.f32 %v6588, %v6604
      %v6620 = vadd.f32 %v6593, %v6604
      %v6621 = vadd.f32 %v6596, %v6604
      %v6622 = vadd.f32 %v5649, %v6356
      %v6623 = vadd.f32 %v5650, %v6357
      %v6624 = vadd.f32 %v5651, %v6358
      %v6625 = vadd.f32 %v5652, %v6359
      %v6626 = vadd.f32 %v5653, %v6360
      %v6627 = vadd.f32 %v5654, %v6361
      %v6628 = vadd.f32 %v5655, %v6362
      %v6629 = vadd.f32 %v5656, %v6363
      %v6630 = vadd.f32 %v5657, %v6364
      %v6631 = vadd.f32 %v5658, %v6365
      %v6632 = vadd.f32 %v5659, %v6366
      %v6633 = vadd.f32 %v5660, %v6367
      %v6634 = vadd.f32 %v5661, %v6368
      %v6635 = vadd.f32 %v5662, %v6369
      %v6636 = vadd.f32 %v5663, %v6370
      %v6637 = vadd.f32 %v5664, %v6371
      %v6638 = vadd.f32 %v6622, %v6606
      %v6639 = vadd.f32 %v6623, %v6607
      %v6640 = vadd.f32 %v6624, %v6608
      %v6641 = vadd.f32 %v6625, %v6609
      %v6642 = vadd.f32 %v6626, %v6610
      %v6643 = vadd.f32 %v6627, %v6611
      %v6644 = vadd.f32 %v6628, %v6612
      %v6645 = vadd.f32 %v6629, %v6613
      %v6646 = vadd.f32 %v6630, %v6614
      %v6647 = vadd.f32 %v6631, %v6615
      %v6648 = vadd.f32 %v6632, %v6616
      %v6649 = vadd.f32 %v6633, %v6617
      %v6650 = vadd.f32 %v6634, %v6618
      %v6651 = vadd.f32 %v6635, %v6619
      %v6652 = vadd.f32 %v6636, %v6620
      %v6653 = vadd.f32 %v6637, %v6621
      %6654 = vst.msk [vmem:[#allocation3] sm:$0xff] %vm5790, %v6638
      %6655 = vst.msk [vmem:[#allocation3 + $0x8] sm:$0xff] %vm5790, %v6639
      %6656 = vst.msk [vmem:[#allocation3 + $0x10] sm:$0xff] %vm5790, %v6640
      %6657 = vst.msk [vmem:[#allocation3 + $0x18] sm:$0xff] %vm5790, %v6641
      %6658 = vst.msk [vmem:[#allocation3 + $0x20] sm:$0xff] %vm5790, %v6642
      %6659 = vst.msk [vmem:[#allocation3 + $0x28] sm:$0xff] %vm5790, %v6643
      %6660 = vst.msk [vmem:[#allocation3 + $0x30] sm:$0xff] %vm5790, %v6644
      %6661 = vst.msk [vmem:[#allocation3 + $0x38] sm:$0xff] %vm5790, %v6645
      %6662 = vst.msk [vmem:[#allocation3 + $0x40] sm:$0xff] %vm5790, %v6646
      %6663 = vst.msk [vmem:[#allocation3 + $0x48] sm:$0xff] %vm5790, %v6647
      %6664 = vst.msk [vmem:[#allocation3 + $0x50] sm:$0xff] %vm5790, %v6648
      %6665 = vst.msk [vmem:[#allocation3 + $0x58] sm:$0xff] %vm5790, %v6649
      %6666 = vst.msk [vmem:[#allocation3 + $0x60] sm:$0xff] %vm5790, %v6650
      %6667 = vst.msk [vmem:[#allocation3 + $0x68] sm:$0xff] %vm5790, %v6651
      %6668 = vst.msk [vmem:[#allocation3 + $0x70] sm:$0xff] %vm5790, %v6652
      %6669 = vst.msk [vmem:[#allocation3 + $0x78] sm:$0xff] %vm5790, %v6653
      %p6670 = scmp.eq.s32.totalorder %s81, 1
      // Predicated region
      $region153: #{tpu_custom_call.1} parent=147 // pred_check
        %p6671 = pneg %p6670
      $region154: #{tpu_custom_call.1} parent=147 // pred_check_branch
        %6673 = sbr.rel (%p6671) target = $region156
      $region155: #{tpu_custom_call.1} parent=147 // pred_region
        %v6674 = vld [vmem:[%s51] sm:$0x1]
        %v6676 = vlaneseq
        %v6677 = vshrl.u32 %v6676, 7
        %v6678 = vsub.s32 0, %v6677
        %v6679 = vrot.slane %v6674, %v6678
        %v6681 = vmul.f32 %v6638, %v6679
        %v6682 = vmul.f32 %v6639, %v6679
        %v6683 = vmul.f32 %v6640, %v6679
        %v6684 = vmul.f32 %v6641, %v6679
        %v6685 = vmul.f32 %v6642, %v6679
        %v6686 = vmul.f32 %v6643, %v6679
        %v6687 = vmul.f32 %v6644, %v6679
        %v6688 = vmul.f32 %v6645, %v6679
        %v6689 = vmul.f32 %v6646, %v6679
        %v6690 = vmul.f32 %v6647, %v6679
        %v6691 = vmul.f32 %v6648, %v6679
        %v6692 = vmul.f32 %v6649, %v6679
        %v6693 = vmul.f32 %v6650, %v6679
        %v6694 = vmul.f32 %v6651, %v6679
        %v6695 = vmul.f32 %v6652, %v6679
        %v6696 = vmul.f32 %v6653, %v6679
        %v6697 = vld [vmem:[%s53] sm:$0x1]
        %v6699 = vlaneseq
        %v6700 = vshrl.u32 %v6699, 7
        %v6701 = vsub.s32 0, %v6700
        %v6702 = vrot.slane %v6697, %v6701
        %v6704 = vadd.f32 %v6681, %v6702
        %v6705 = vadd.f32 %v6682, %v6702
        %v6706 = vadd.f32 %v6683, %v6702
        %v6707 = vadd.f32 %v6684, %v6702
        %v6708 = vadd.f32 %v6685, %v6702
        %v6709 = vadd.f32 %v6686, %v6702
        %v6710 = vadd.f32 %v6687, %v6702
        %v6711 = vadd.f32 %v6688, %v6702
        %v6712 = vadd.f32 %v6689, %v6702
        %v6713 = vadd.f32 %v6690, %v6702
        %v6714 = vadd.f32 %v6691, %v6702
        %v6715 = vadd.f32 %v6692, %v6702
        %v6716 = vadd.f32 %v6693, %v6702
        %v6717 = vadd.f32 %v6694, %v6702
        %v6718 = vadd.f32 %v6695, %v6702
        %v6719 = vadd.f32 %v6696, %v6702
        %v6720 = vmax.f32 %v6704, 0.0
        %v6721 = vmax.f32 %v6705, 0.0
        %v6722 = vmax.f32 %v6706, 0.0
        %v6723 = vmax.f32 %v6707, 0.0
        %v6724 = vmax.f32 %v6708, 0.0
        %v6725 = vmax.f32 %v6709, 0.0
        %v6726 = vmax.f32 %v6710, 0.0
        %v6727 = vmax.f32 %v6711, 0.0
        %v6728 = vmax.f32 %v6712, 0.0
        %v6729 = vmax.f32 %v6713, 0.0
        %v6730 = vmax.f32 %v6714, 0.0
        %v6731 = vmax.f32 %v6715, 0.0
        %v6732 = vmax.f32 %v6716, 0.0
        %v6733 = vmax.f32 %v6717, 0.0
        %v6734 = vmax.f32 %v6718, 0.0
        %v6735 = vmax.f32 %v6719, 0.0
        %v6736 = vld [vmem:[%s57] sm:$0x1]
        %v6738 = vlaneseq
        %v6739 = vshrl.u32 %v6738, 7
        %v6740 = vsub.s32 0, %v6739
        %v6741 = vrot.slane %v6736, %v6740
        %v6743 = vmul.f32 %v6638, %v6741
        %v6744 = vmul.f32 %v6639, %v6741
        %v6745 = vmul.f32 %v6640, %v6741
        %v6746 = vmul.f32 %v6641, %v6741
        %v6747 = vmul.f32 %v6642, %v6741
        %v6748 = vmul.f32 %v6643, %v6741
        %v6749 = vmul.f32 %v6644, %v6741
        %v6750 = vmul.f32 %v6645, %v6741
        %v6751 = vmul.f32 %v6646, %v6741
        %v6752 = vmul.f32 %v6647, %v6741
        %v6753 = vmul.f32 %v6648, %v6741
        %v6754 = vmul.f32 %v6649, %v6741
        %v6755 = vmul.f32 %v6650, %v6741
        %v6756 = vmul.f32 %v6651, %v6741
        %v6757 = vmul.f32 %v6652, %v6741
        %v6758 = vmul.f32 %v6653, %v6741
        %v6759 = vld [vmem:[%s59] sm:$0x1]
        %v6761 = vlaneseq
        %v6762 = vshrl.u32 %v6761, 7
        %v6763 = vsub.s32 0, %v6762
        %v6764 = vrot.slane %v6759, %v6763
        %v6766 = vadd.f32 %v6743, %v6764
        %v6767 = vadd.f32 %v6744, %v6764
        %v6768 = vadd.f32 %v6745, %v6764
        %v6769 = vadd.f32 %v6746, %v6764
        %v6770 = vadd.f32 %v6747, %v6764
        %v6771 = vadd.f32 %v6748, %v6764
        %v6772 = vadd.f32 %v6749, %v6764
        %v6773 = vadd.f32 %v6750, %v6764
        %v6774 = vadd.f32 %v6751, %v6764
        %v6775 = vadd.f32 %v6752, %v6764
        %v6776 = vadd.f32 %v6753, %v6764
        %v6777 = vadd.f32 %v6754, %v6764
        %v6778 = vadd.f32 %v6755, %v6764
        %v6779 = vadd.f32 %v6756, %v6764
        %v6780 = vadd.f32 %v6757, %v6764
        %v6781 = vadd.f32 %v6758, %v6764
        %v6782 = vmax.f32 %v6766, 0.0
        %v6783 = vmax.f32 %v6767, 0.0
        %v6784 = vmax.f32 %v6768, 0.0
        %v6785 = vmax.f32 %v6769, 0.0
        %v6786 = vmax.f32 %v6770, 0.0
        %v6787 = vmax.f32 %v6771, 0.0
        %v6788 = vmax.f32 %v6772, 0.0
        %v6789 = vmax.f32 %v6773, 0.0
        %v6790 = vmax.f32 %v6774, 0.0
        %v6791 = vmax.f32 %v6775, 0.0
        %v6792 = vmax.f32 %v6776, 0.0
        %v6793 = vmax.f32 %v6777, 0.0
        %v6794 = vmax.f32 %v6778, 0.0
        %v6795 = vmax.f32 %v6779, 0.0
        %v6796 = vmax.f32 %v6780, 0.0
        %v6797 = vmax.f32 %v6781, 0.0
        %v6798 = vpack.c.bf16 %v6721, %v6720
        %v6799 = vpack.c.bf16 %v6723, %v6722
        %v6800 = vpack.c.bf16 %v6725, %v6724
        %v6801 = vpack.c.bf16 %v6727, %v6726
        %v6802 = vpack.c.bf16 %v6729, %v6728
        %v6803 = vpack.c.bf16 %v6731, %v6730
        %v6804 = vpack.c.bf16 %v6733, %v6732
        %v6805 = vpack.c.bf16 %v6735, %v6734
        %v6806 = vld [vmem:[%s55] sm:$0xf]
        %v6807 = vld [vmem:[%s55 + $0x4] sm:$0xf]
        %v6808 = vld [vmem:[%s55 + $0x8] sm:$0xf]
        %v6809 = vld [vmem:[%s55 + $0xc] sm:$0xf]
        %v6810 = vld [vmem:[%s55 + $0x10] sm:$0xf]
        %v6811 = vld [vmem:[%s55 + $0x14] sm:$0xf]
        %v6812 = vld [vmem:[%s55 + $0x18] sm:$0xf]
        %v6813 = vld [vmem:[%s55 + $0x1c] sm:$0xf]
        %v6814 = vpack.c.bf16 %v6783, %v6782
        %v6815 = vpack.c.bf16 %v6785, %v6784
        %v6816 = vpack.c.bf16 %v6787, %v6786
        %v6817 = vpack.c.bf16 %v6789, %v6788
        %v6818 = vpack.c.bf16 %v6791, %v6790
        %v6819 = vpack.c.bf16 %v6793, %v6792
        %v6820 = vpack.c.bf16 %v6795, %v6794
        %v6821 = vpack.c.bf16 %v6797, %v6796
        %v6822 = vld [vmem:[%s61] sm:$0xf]
        %v6823 = vld [vmem:[%s61 + $0x4] sm:$0xf]
        %v6824 = vld [vmem:[%s61 + $0x8] sm:$0xf]
        %v6825 = vld [vmem:[%s61 + $0xc] sm:$0xf]
        %v6826 = vld [vmem:[%s61 + $0x10] sm:$0xf]
        %v6827 = vld [vmem:[%s61 + $0x14] sm:$0xf]
        %v6828 = vld [vmem:[%s61 + $0x18] sm:$0xf]
        %v6829 = vld [vmem:[%s61 + $0x1c] sm:$0xf]
        %v6838 = vunpack.c.l.b16 %v6822
        %v6839 = vunpack.c.l.b16 %v6823
        %v6840 = vunpack.c.l.b16 %v6824
        %v6841 = vunpack.c.l.b16 %v6825
        %v6842 = vunpack.c.l.b16 %v6826
        %v6843 = vunpack.c.l.b16 %v6827
        %v6844 = vunpack.c.l.b16 %v6828
        %v6845 = vunpack.c.l.b16 %v6829
        %v6846 = vpack.c.b16 %v6839, %v6838
        %v6847 = vpack.c.b16 %v6841, %v6840
        %v6848 = vpack.c.b16 %v6843, %v6842
        %v6849 = vpack.c.b16 %v6845, %v6844
        %v6855 = vsel %vm5790, %v6814, 0
        %v6858 = vsel %vm5790, %v6815, 0
        %v6861 = vsel %vm5790, %v6816, 0
        %v6864 = vsel %vm5790, %v6817, 0
        %v6867 = vsel %vm5790, %v6818, 0
        %v6870 = vsel %vm5790, %v6819, 0
        %v6873 = vsel %vm5790, %v6820, 0
        %v6876 = vsel %vm5790, %v6821, 0
        %6878 = vmatprep.subr.bf16.mxu0 0
        %6879 = vmatpush1.bf16.msra.mxu0 %v6846
        %6880 = vmatprep.subr.bf16.mxu0 0
        %6881 = vmatpush1.bf16.msra.mxu0 %v6847
        %6882 = vmatprep.subr.bf16.mxu0 0
        %6883 = vmatpush1.bf16.msra.mxu0 %v6848
        %6884 = vmatprep.subr.bf16.mxu0 0
        %6885 = vmatpush1.bf16.msra.mxu0 %v6849
        %6886 = vmatprep.subr.bf16.mxu0 0
        %6887 = vmatpush1.bf16.msra.mxu0 0
        %6888 = vmatprep.subr.bf16.mxu0 0
        %6889 = vmatpush1.bf16.msra.mxu0 0
        %6890 = vmatprep.subr.bf16.mxu0 0
        %6891 = vmatpush1.bf16.msra.mxu0 0
        %6892 = vmatprep.subr.bf16.mxu0 0
        %6893 = vmatpush1.bf16.msra.mxu0 0
        %6894 = vmatprep.subr.bf16.mxu0 0
        %6895 = vmatpush1.bf16.msra.mxu0 0
        %6896 = vmatprep.subr.bf16.mxu0 0
        %6897 = vmatpush1.bf16.msra.mxu0 0
        %6898 = vmatprep.subr.bf16.mxu0 0
        %6899 = vmatpush1.bf16.msra.mxu0 0
        %6900 = vmatprep.subr.bf16.mxu0 0
        %6901 = vmatpush1.bf16.msra.mxu0 0
        %6902 = vmatprep.subr.bf16.mxu0 0
        %6903 = vmatpush1.bf16.msra.mxu0 0
        %6904 = vmatprep.subr.bf16.mxu0 0
        %6905 = vmatpush1.bf16.msra.mxu0 0
        %6906 = vmatprep.subr.bf16.mxu0 0
        %6907 = vmatpush1.bf16.msra.mxu0 0
        %6908 = vmatprep.subr.bf16.mxu0 0
        %6909 = vmatpush1.bf16.msra.mxu0 0
        %6910 = vmatprep.mubr.bf16.mxu0 0
        %6911 = vmatmul.mubr.bf16.gmra.mrb[0].mxu0 %v6855
        %v6912 = vpop.f32.mrb[0].mxu0
        %v6913 = vadd.f32 0.0, %v6912
        %v6914 = vpop.f32.mrb[0].mxu0
        %v6915 = vpop.f32.mrb[0].mxu0
        %v6916 = vadd.f32 0.0, %v6915
        %v6917 = vpop.f32.mrb[0].mxu0
        %6918 = vmatprep.mubr.bf16.mxu0 0
        %6919 = vmatmul.mubr.bf16.gmra.mrb[0].mxu0 %v6858
        %v6920 = vpop.f32.mrb[0].mxu0
        %v6921 = vadd.f32 0.0, %v6920
        %v6922 = vpop.f32.mrb[0].mxu0
        %v6923 = vpop.f32.mrb[0].mxu0
        %v6924 = vadd.f32 0.0, %v6923
        %v6925 = vpop.f32.mrb[0].mxu0
        %6926 = vmatprep.mubr.bf16.mxu0 0
        %6927 = vmatmul.mubr.bf16.gmra.mrb[0].mxu0 %v6861
        %v6928 = vpop.f32.mrb[0].mxu0
        %v6929 = vadd.f32 0.0, %v6928
        %v6930 = vpop.f32.mrb[0].mxu0
        %v6931 = vpop.f32.mrb[0].mxu0
        %v6932 = vadd.f32 0.0, %v6931
        %v6933 = vpop.f32.mrb[0].mxu0
        %6934 = vmatprep.mubr.bf16.mxu0 0
        %6935 = vmatmul.mubr.bf16.gmra.mrb[0].mxu0 %v6864
        %v6936 = vpop.f32.mrb[0].mxu0
        %v6937 = vadd.f32 0.0, %v6936
        %v6938 = vpop.f32.mrb[0].mxu0
        %v6939 = vpop.f32.mrb[0].mxu0
        %v6940 = vadd.f32 0.0, %v6939
        %v6941 = vpop.f32.mrb[0].mxu0
        %6942 = vmatprep.mubr.bf16.mxu0 0
        %6943 = vmatmul.mubr.bf16.gmra.mrb[0].mxu0 %v6867
        %v6944 = vpop.f32.mrb[0].mxu0
        %v6945 = vadd.f32 0.0, %v6944
        %v6946 = vpop.f32.mrb[0].mxu0
        %v6947 = vpop.f32.mrb[0].mxu0
        %v6948 = vadd.f32 0.0, %v6947
        %v6949 = vpop.f32.mrb[0].mxu0
        %6950 = vmatprep.mubr.bf16.mxu0 0
        %6951 = vmatmul.mubr.bf16.gmra.mrb[0].mxu0 %v6870
        %v6952 = vpop.f32.mrb[0].mxu0
        %v6953 = vadd.f32 0.0, %v6952
        %v6954 = vpop.f32.mrb[0].mxu0
        %v6955 = vpop.f32.mrb[0].mxu0
        %v6956 = vadd.f32 0.0, %v6955
        %v6957 = vpop.f32.mrb[0].mxu0
        %6958 = vmatprep.mubr.bf16.mxu0 0
        %6959 = vmatmul.mubr.bf16.gmra.mrb[0].mxu0 %v6873
        %v6960 = vpop.f32.mrb[0].mxu0
        %v6961 = vadd.f32 0.0, %v6960
        %v6962 = vpop.f32.mrb[0].mxu0
        %v6963 = vpop.f32.mrb[0].mxu0
        %v6964 = vadd.f32 0.0, %v6963
        %v6965 = vpop.f32.mrb[0].mxu0
        %6966 = vmatprep.mubr.bf16.mxu0 0
        %6967 = vmatmul.mubr.bf16.gmra.mrb[0].mxu0 %v6876
        %v6968 = vpop.f32.mrb[0].mxu0
        %v6969 = vadd.f32 0.0, %v6968
        %v6970 = vpop.f32.mrb[0].mxu0
        %v6971 = vpop.f32.mrb[0].mxu0
        %v6972 = vadd.f32 0.0, %v6971
        %v6973 = vpop.f32.mrb[0].mxu0
        %6974 = vdwg.mxu0
        %v6983 = vunpack.c.l.b16 %v6806
        %v6984 = vunpack.c.l.b16 %v6807
        %v6985 = vunpack.c.l.b16 %v6808
        %v6986 = vunpack.c.l.b16 %v6809
        %v6987 = vunpack.c.l.b16 %v6810
        %v6988 = vunpack.c.l.b16 %v6811
        %v6989 = vunpack.c.l.b16 %v6812
        %v6990 = vunpack.c.l.b16 %v6813
        %v6991 = vpack.c.b16 %v6984, %v6983
        %v6992 = vpack.c.b16 %v6986, %v6985
        %v6993 = vpack.c.b16 %v6988, %v6987
        %v6994 = vpack.c.b16 %v6990, %v6989
        %v7000 = vsel %vm5790, %v6798, 0
        %v7003 = vsel %vm5790, %v6799, 0
        %v7006 = vsel %vm5790, %v6800, 0
        %v7009 = vsel %vm5790, %v6801, 0
        %v7012 = vsel %vm5790, %v6802, 0
        %v7015 = vsel %vm5790, %v6803, 0
        %v7018 = vsel %vm5790, %v6804, 0
        %v7021 = vsel %vm5790, %v6805, 0
        %7023 = vmatprep.subr.bf16.mxu0 0
        %7024 = vmatpush1.bf16.msra.mxu0 %v6991
        %7025 = vmatprep.subr.bf16.mxu0 0
        %7026 = vmatpush1.bf16.msra.mxu0 %v6992
        %7027 = vmatprep.subr.bf16.mxu0 0
        %7028 = vmatpush1.bf16.msra.mxu0 %v6993
        %7029 = vmatprep.subr.bf16.mxu0 0
        %7030 = vmatpush1.bf16.msra.mxu0 %v6994
        %7031 = vmatprep.subr.bf16.mxu0 0
        %7032 = vmatpush1.bf16.msra.mxu0 0
        %7033 = vmatprep.subr.bf16.mxu0 0
        %7034 = vmatpush1.bf16.msra.mxu0 0
        %7035 = vmatprep.subr.bf16.mxu0 0
        %7036 = vmatpush1.bf16.msra.mxu0 0
        %7037 = vmatprep.subr.bf16.mxu0 0
        %7038 = vmatpush1.bf16.msra.mxu0 0
        %7039 = vmatprep.subr.bf16.mxu0 0
        %7040 = vmatpush1.bf16.msra.mxu0 0
        %7041 = vmatprep.subr.bf16.mxu0 0
        %7042 = vmatpush1.bf16.msra.mxu0 0
        %7043 = vmatprep.subr.bf16.mxu0 0
        %7044 = vmatpush1.bf16.msra.mxu0 0
        %7045 = vmatprep.subr.bf16.mxu0 0
        %7046 = vmatpush1.bf16.msra.mxu0 0
        %7047 = vmatprep.subr.bf16.mxu0 0
        %7048 = vmatpush1.bf16.msra.mxu0 0
        %7049 = vmatprep.subr.bf16.mxu0 0
        %7050 = vmatpush1.bf16.msra.mxu0 0
        %7051 = vmatprep.subr.bf16.mxu0 0
        %7052 = vmatpush1.bf16.msra.mxu0 0
        %7053 = vmatprep.subr.bf16.mxu0 0
        %7054 = vmatpush1.bf16.msra.mxu0 0
        %7055 = vmatprep.mubr.bf16.mxu0 0
        %7056 = vmatmul.mubr.bf16.gmra.mrb[0].mxu0 %v7000
        %v7057 = vpop.f32.mrb[0].mxu0
        %v7058 = vadd.f32 %v6913, %v7057
        %v7059 = vpop.f32.mrb[0].mxu0
        %v7060 = vpop.f32.mrb[0].mxu0
        %v7061 = vadd.f32 %v6916, %v7060
        %v7062 = vpop.f32.mrb[0].mxu0
        %7063 = vmatprep.mubr.bf16.mxu0 0
        %7064 = vmatmul.mubr.bf16.gmra.mrb[0].mxu0 %v7003
        %v7065 = vpop.f32.mrb[0].mxu0
        %v7066 = vadd.f32 %v6921, %v7065
        %v7067 = vpop.f32.mrb[0].mxu0
        %v7068 = vpop.f32.mrb[0].mxu0
        %v7069 = vadd.f32 %v6924, %v7068
        %v7070 = vpop.f32.mrb[0].mxu0
        %7071 = vmatprep.mubr.bf16.mxu0 0
        %7072 = vmatmul.mubr.bf16.gmra.mrb[0].mxu0 %v7006
        %v7073 = vpop.f32.mrb[0].mxu0
        %v7074 = vadd.f32 %v6929, %v7073
        %v7075 = vpop.f32.mrb[0].mxu0
        %v7076 = vpop.f32.mrb[0].mxu0
        %v7077 = vadd.f32 %v6932, %v7076
        %v7078 = vpop.f32.mrb[0].mxu0
        %7079 = vmatprep.mubr.bf16.mxu0 0
        %7080 = vmatmul.mubr.bf16.gmra.mrb[0].mxu0 %v7009
        %v7081 = vpop.f32.mrb[0].mxu0
        %v7082 = vadd.f32 %v6937, %v7081
        %v7083 = vpop.f32.mrb[0].mxu0
        %v7084 = vpop.f32.mrb[0].mxu0
        %v7085 = vadd.f32 %v6940, %v7084
        %v7086 = vpop.f32.mrb[0].mxu0
        %7087 = vmatprep.mubr.bf16.mxu0 0
        %7088 = vmatmul.mubr.bf16.gmra.mrb[0].mxu0 %v7012
        %v7089 = vpop.f32.mrb[0].mxu0
        %v7090 = vadd.f32 %v6945, %v7089
        %v7091 = vpop.f32.mrb[0].mxu0
        %v7092 = vpop.f32.mrb[0].mxu0
        %v7093 = vadd.f32 %v6948, %v7092
        %v7094 = vpop.f32.mrb[0].mxu0
        %7095 = vmatprep.mubr.bf16.mxu0 0
        %7096 = vmatmul.mubr.bf16.gmra.mrb[0].mxu0 %v7015
        %v7097 = vpop.f32.mrb[0].mxu0
        %v7098 = vadd.f32 %v6953, %v7097
        %v7099 = vpop.f32.mrb[0].mxu0
        %v7100 = vpop.f32.mrb[0].mxu0
        %v7101 = vadd.f32 %v6956, %v7100
        %v7102 = vpop.f32.mrb[0].mxu0
        %7103 = vmatprep.mubr.bf16.mxu0 0
        %7104 = vmatmul.mubr.bf16.gmra.mrb[0].mxu0 %v7018
        %v7105 = vpop.f32.mrb[0].mxu0
        %v7106 = vadd.f32 %v6961, %v7105
        %v7107 = vpop.f32.mrb[0].mxu0
        %v7108 = vpop.f32.mrb[0].mxu0
        %v7109 = vadd.f32 %v6964, %v7108
        %v7110 = vpop.f32.mrb[0].mxu0
        %7111 = vmatprep.mubr.bf16.mxu0 0
        %7112 = vmatmul.mubr.bf16.gmra.mrb[0].mxu0 %v7021
        %v7113 = vpop.f32.mrb[0].mxu0
        %v7114 = vadd.f32 %v6969, %v7113
        %v7115 = vpop.f32.mrb[0].mxu0
        %v7116 = vpop.f32.mrb[0].mxu0
        %v7117 = vadd.f32 %v6972, %v7116
        %v7118 = vpop.f32.mrb[0].mxu0
        %7119 = vdwg.mxu0
        %v7120 = vld [vmem:[%s63] sm:$0x1]
        %v7122 = vlaneseq
        %v7123 = vshrl.u32 %v7122, 7
        %v7124 = vsub.s32 0, %v7123
        %v7125 = vrot.slane %v7120, %v7124
        %v7127 = vadd.f32 %v7058, %v7125
        %v7128 = vadd.f32 %v7061, %v7125
        %v7129 = vadd.f32 %v7066, %v7125
        %v7130 = vadd.f32 %v7069, %v7125
        %v7131 = vadd.f32 %v7074, %v7125
        %v7132 = vadd.f32 %v7077, %v7125
        %v7133 = vadd.f32 %v7082, %v7125
        %v7134 = vadd.f32 %v7085, %v7125
        %v7135 = vadd.f32 %v7090, %v7125
        %v7136 = vadd.f32 %v7093, %v7125
        %v7137 = vadd.f32 %v7098, %v7125
        %v7138 = vadd.f32 %v7101, %v7125
        %v7139 = vadd.f32 %v7106, %v7125
        %v7140 = vadd.f32 %v7109, %v7125
        %v7141 = vadd.f32 %v7114, %v7125
        %v7142 = vadd.f32 %v7117, %v7125
        %v7143 = vlaneseq
        %v7144 = vand.u32 %v7143, 127
        %vm7145 = vcmp.eq.s32.totalorder %v7144, 3
        %v7146 = vxor.u32 %v7127, 2147483648
        %v7147 = vxor.u32 %v7128, 2147483648
        %v7148 = vxor.u32 %v7129, 2147483648
        %v7149 = vxor.u32 %v7130, 2147483648
        %v7150 = vxor.u32 %v7131, 2147483648
        %v7151 = vxor.u32 %v7132, 2147483648
        %v7152 = vxor.u32 %v7133, 2147483648
        %v7153 = vxor.u32 %v7134, 2147483648
        %v7154 = vxor.u32 %v7135, 2147483648
        %v7155 = vxor.u32 %v7136, 2147483648
        %v7156 = vxor.u32 %v7137, 2147483648
        %v7157 = vxor.u32 %v7138, 2147483648
        %v7158 = vxor.u32 %v7139, 2147483648
        %v7159 = vxor.u32 %v7140, 2147483648
        %v7160 = vxor.u32 %v7141, 2147483648
        %v7161 = vxor.u32 %v7142, 2147483648
        %v7162 = vmul.f32 %v7146, 1.442695
        %v7163 = vpow.pop %v7162
        %v7164 = vmul.f32 %v7147, 1.442695
        %v7165 = vpow.pop %v7164
        %v7166 = vmul.f32 %v7148, 1.442695
        %v7167 = vpow.pop %v7166
        %v7168 = vmul.f32 %v7149, 1.442695
        %v7169 = vpow.pop %v7168
        %v7170 = vmul.f32 %v7150, 1.442695
        %v7171 = vpow.pop %v7170
        %v7172 = vmul.f32 %v7151, 1.442695
        %v7173 = vpow.pop %v7172
        %v7174 = vmul.f32 %v7152, 1.442695
        %v7175 = vpow.pop %v7174
        %v7176 = vmul.f32 %v7153, 1.442695
        %v7177 = vpow.pop %v7176
        %v7178 = vmul.f32 %v7154, 1.442695
        %v7179 = vpow.pop %v7178
        %v7180 = vmul.f32 %v7155, 1.442695
        %v7181 = vpow.pop %v7180
        %v7182 = vmul.f32 %v7156, 1.442695
        %v7183 = vpow.pop %v7182
        %v7184 = vmul.f32 %v7157, 1.442695
        %v7185 = vpow.pop %v7184
        %v7186 = vmul.f32 %v7158, 1.442695
        %v7187 = vpow.pop %v7186
        %v7188 = vmul.f32 %v7159, 1.442695
        %v7189 = vpow.pop %v7188
        %v7190 = vmul.f32 %v7160, 1.442695
        %v7191 = vpow.pop %v7190
        %v7192 = vmul.f32 %v7161, 1.442695
        %v7193 = vpow.pop %v7192
        %v7194 = vadd.f32 %v7163, 1.0
        %v7195 = vadd.f32 %v7165, 1.0
        %v7196 = vadd.f32 %v7167, 1.0
        %v7197 = vadd.f32 %v7169, 1.0
        %v7198 = vadd.f32 %v7171, 1.0
        %v7199 = vadd.f32 %v7173, 1.0
        %v7200 = vadd.f32 %v7175, 1.0
        %v7201 = vadd.f32 %v7177, 1.0
        %v7202 = vadd.f32 %v7179, 1.0
        %v7203 = vadd.f32 %v7181, 1.0
        %v7204 = vadd.f32 %v7183, 1.0
        %v7205 = vadd.f32 %v7185, 1.0
        %v7206 = vadd.f32 %v7187, 1.0
        %v7207 = vadd.f32 %v7189, 1.0
        %v7208 = vadd.f32 %v7191, 1.0
        %v7209 = vadd.f32 %v7193, 1.0
        %v7210 = vrcp.pop %v7194
        %v7211 = vmul.f32 1.0, %v7210
        %v7212 = vrcp.pop %v7195
        %v7213 = vmul.f32 1.0, %v7212
        %v7214 = vrcp.pop %v7196
        %v7215 = vmul.f32 1.0, %v7214
        %v7216 = vrcp.pop %v7197
        %v7217 = vmul.f32 1.0, %v7216
        %v7218 = vrcp.pop %v7198
        %v7219 = vmul.f32 1.0, %v7218
        %v7220 = vrcp.pop %v7199
        %v7221 = vmul.f32 1.0, %v7220
        %v7222 = vrcp.pop %v7200
        %v7223 = vmul.f32 1.0, %v7222
        %v7224 = vrcp.pop %v7201
        %v7225 = vmul.f32 1.0, %v7224
        %v7226 = vrcp.pop %v7202
        %v7227 = vmul.f32 1.0, %v7226
        %v7228 = vrcp.pop %v7203
        %v7229 = vmul.f32 1.0, %v7228
        %v7230 = vrcp.pop %v7204
        %v7231 = vmul.f32 1.0, %v7230
        %v7232 = vrcp.pop %v7205
        %v7233 = vmul.f32 1.0, %v7232
        %v7234 = vrcp.pop %v7206
        %v7235 = vmul.f32 1.0, %v7234
        %v7236 = vrcp.pop %v7207
        %v7237 = vmul.f32 1.0, %v7236
        %v7238 = vrcp.pop %v7208
        %v7239 = vmul.f32 1.0, %v7238
        %v7240 = vrcp.pop %v7209
        %v7241 = vmul.f32 1.0, %v7240
        %v7242 = vsel %vm7145, %v7211, %v7127
        %v7243 = vsel %vm7145, %v7213, %v7128
        %v7244 = vsel %vm7145, %v7215, %v7129
        %v7245 = vsel %vm7145, %v7217, %v7130
        %v7246 = vsel %vm7145, %v7219, %v7131
        %v7247 = vsel %vm7145, %v7221, %v7132
        %v7248 = vsel %vm7145, %v7223, %v7133
        %v7249 = vsel %vm7145, %v7225, %v7134
        %v7250 = vsel %vm7145, %v7227, %v7135
        %v7251 = vsel %vm7145, %v7229, %v7136
        %v7252 = vsel %vm7145, %v7231, %v7137
        %v7253 = vsel %vm7145, %v7233, %v7138
        %v7254 = vsel %vm7145, %v7235, %v7139
        %v7255 = vsel %vm7145, %v7237, %v7140
        %v7256 = vsel %vm7145, %v7239, %v7141
        %v7257 = vsel %vm7145, %v7241, %v7142
        %vm7258 = vcmask 31744
        %7259 = vst.msk [vmem:[%s1258] sm:$0xff] %vm7258, %v7242
        %7260 = vst.msk [vmem:[%s1258 + $0x8] sm:$0xff] %vm7258, %v7243
        %7261 = vst.msk [vmem:[%s1258 + $0x10] sm:$0xff] %vm7258, %v7244
        %7262 = vst.msk [vmem:[%s1258 + $0x18] sm:$0xff] %vm7258, %v7245
        %7263 = vst.msk [vmem:[%s1258 + $0x20] sm:$0xff] %vm7258, %v7246
        %7264 = vst.msk [vmem:[%s1258 + $0x28] sm:$0xff] %vm7258, %v7247
        %7265 = vst.msk [vmem:[%s1258 + $0x30] sm:$0xff] %vm7258, %v7248
        %7266 = vst.msk [vmem:[%s1258 + $0x38] sm:$0xff] %vm7258, %v7249
        %7267 = vst.msk [vmem:[%s1258 + $0x40] sm:$0xff] %vm7258, %v7250
        %7268 = vst.msk [vmem:[%s1258 + $0x48] sm:$0xff] %vm7258, %v7251
        %7269 = vst.msk [vmem:[%s1258 + $0x50] sm:$0xff] %vm7258, %v7252
        %7270 = vst.msk [vmem:[%s1258 + $0x58] sm:$0xff] %vm7258, %v7253
        %7271 = vst.msk [vmem:[%s1258 + $0x60] sm:$0xff] %vm7258, %v7254
        %7272 = vst.msk [vmem:[%s1258 + $0x68] sm:$0xff] %vm7258, %v7255
        %7273 = vst.msk [vmem:[%s1258 + $0x70] sm:$0xff] %vm7258, %v7256
        %7274 = vst.msk [vmem:[%s1258 + $0x78] sm:$0xff] %vm7258, %v7257
      $region156: #{tpu_custom_call.1} parent=147 // pred_fallthru
        _
      %p7275 = scmp.lt.s32.totalorder %s80, 1
      %s7276 = scalar_select %p7275, %s80, 1
      %s7277 = smul.addr %s7276, 16
      %s7278 = smul.addr %s7277, 8
      %s7279 = scalar_lea.vmem %s65, %s7278
      // Predicated region
      $region157: #{tpu_custom_call.1} parent=147 // pred_check
        %p7280 = pneg %p863
      $region158: #{tpu_custom_call.1} parent=147 // pred_check_branch
        %7282 = sbr.rel (%p7280) target = $region160
      $region159: #{tpu_custom_call.1} parent=147 // pred_region
        _
      $region160: #{tpu_custom_call.1} parent=147 // pred_fallthru
        _
    $region148: #{tpu_custom_call.1} parent=5 // pred_fallthru
      _
    %p7283 = scmp.le.s32.totalorder 2, %s71
    // Predicated region
    $region161: #{tpu_custom_call.1} parent=5 // pred_check
      %p7284 = pneg %p7283
    $region162: #{tpu_custom_call.1} parent=5 // pred_check_branch
      %7286 = sbr.rel (%p7284) target = $region164
    $region163: #{tpu_custom_call.1} parent=5 // pred_region
      %s7287 = ssub.s32 %s71, 2
      // Predicated region
      $region165: #{tpu_custom_call.1} parent=163 // pred_check
        %p7288 = pneg %p869
      $region166: #{tpu_custom_call.1} parent=163 // pred_check_branch
        %7290 = sbr.rel (%p7288) target = $region168
      $region167: #{tpu_custom_call.1} parent=163 // pred_region
        %p7291 = scmp.lt.s32.totalorder %s82, 1
        %s7292 = scalar_select %p7291, %s82, 1
        %s7293 = smul.addr %s7292, 16
        %s7294 = smul.addr %s7293, 8
        %s7295 = scalar_lea.vmem %s65, %s7294
      $region168: #{tpu_custom_call.1} parent=163 // pred_fallthru
        _
    $region164: #{tpu_custom_call.1} parent=5 // pred_fallthru
      _
  $region6: #{tpu_custom_call.1} parent=0 // loop_footer
    %s75 = sadd.s32 1, %s71
  $region7: #{tpu_custom_call.1} parent=0 // loop_footer_branch
    %70 = sbr.rel target = $region3
  $region8: #{tpu_custom_call.1} parent=0 // loop_exit
    _

</llo_original>
